<compile_context>
chip_gen: v7x
topology: tpu7x:2x2x1
jax: 0.10.0
libtpu: 0.0.40
codegen_flags: <defaults>
</compile_context>

<pallas_src>
import functools

import numpy as np
import jax
import jax.numpy as jnp
from jax import lax
from jax.experimental import pallas as pl
from jax.experimental.pallas import tpu as pltpu


def _sigmoid(v):
    # Numerically stable sigmoid routed to the EUP (tanh).
    return 0.5 * (jnp.tanh(0.5 * v) + 1.0)


def _const_spec(shape):
    nd = len(shape)
    return pl.BlockSpec(shape, lambda n: (0,) * nd)


# ---------------------------------------------------------------------------
# In-kernel helpers: depth-tap accumulation and fused LayerNorm+ReLU.
# ---------------------------------------------------------------------------
def _shift_lanes_zero(blk, off_lanes):
    """out[:, i] = blk[:, i + off_lanes] where in range, else 0 (static offset)."""
    if off_lanes == 0:
        return blk
    c, k = blk.shape
    z = jnp.zeros((c, abs(off_lanes)), blk.dtype)
    if off_lanes > 0:
        return jnp.concatenate([blk[:, off_lanes:], z], axis=1)
    return jnp.concatenate([z, blk[:, :k + off_lanes]], axis=1)


def _accumulate_depth_taps(P, n_kd, cout, d, hw):
    """P: (n_kd*cout, d*hw) per-tap products.  Accumulates the depth taps with
    the proper +/- kd*hw lane shift and implicit zero depth-padding."""
    pad = (n_kd - 1) // 2
    acc = jnp.zeros((cout, d * hw), jnp.float32)
    for t in range(n_kd):
        acc = acc + _shift_lanes_zero(P[t * cout:(t + 1) * cout, :], (t - pad) * hw)
    return acc


def _layernorm_relu(x, g, b, eps):
    mean = jnp.mean(x, axis=1, keepdims=True)
    dev = x - mean
    var = jnp.mean(dev * dev, axis=1, keepdims=True)
    return jnp.maximum(dev * lax.rsqrt(var + eps) * g + b, 0.0)


# ---------------------------------------------------------------------------
# Conv3d (k=7 or k=3) + bias + LayerNorm(D,H,W) + ReLU, depth taps in-kernel.
# ---------------------------------------------------------------------------
def _conv_kd_ln_relu_kernel(w_ref, c_ref, b_ref, g_ref, bt_ref, o_ref,
                            *, n_kd, cout, d, hw, eps):
    P = jnp.dot(w_ref[...], c_ref[0], preferred_element_type=jnp.float32)
    acc = _accumulate_depth_taps(P, n_kd, cout, d, hw) + b_ref[...]
    o_ref[0] = _layernorm_relu(acc, g_ref[...], bt_ref[...], eps).astype(o_ref.dtype)


def conv_kd_ln_relu(w_stacked, cols, bias, gamma, beta, *, n_kd, cout, d, hw,
                    out_dtype, eps=1e-5):
    """w_stacked: (n_kd*cout, Cin*k*k) bf16. cols: (N, Cin*k*k, DHW) bf16
    (im2col over (kh, kw) only). Returns (N, cout, DHW) in out_dtype."""
    N, Ck, K = cols.shape
    f32 = jnp.float32
    kern = functools.partial(_conv_kd_ln_relu_kernel, n_kd=n_kd, cout=cout,
                             d=d, hw=hw, eps=eps)
    return pl.pallas_call(
        kern,
        out_shape=jax.ShapeDtypeStruct((N, cout, K), out_dtype),
        grid=(N,),
        in_specs=[_const_spec(w_stacked.shape),
                  pl.BlockSpec((1, Ck, K), lambda n: (n, 0, 0)),
                  _const_spec((cout, 1)),
                  _const_spec((1, K)),
                  _const_spec((1, K))],
        out_specs=pl.BlockSpec((1, cout, K), lambda n: (n, 0, 0)),
        compiler_params=pltpu.CompilerParams(dimension_semantics=("parallel",)),
    )(w_stacked, cols, bias.astype(f32).reshape(cout, 1),
      gamma.reshape(1, K).astype(f32), beta.reshape(1, K).astype(f32))


# ---------------------------------------------------------------------------
# Fused: Conv3d k=3 (+bias+LN+ReLU)  then  Conv3d k=1 (+bias+LN+ReLU).
# ---------------------------------------------------------------------------
def _conv3_conv1_kernel(w3_ref, c_ref, b3_ref, g2_ref, bt2_ref,
                        w1_ref, b1_ref, g3_ref, bt3_ref, o_ref,
                        *, cout, d, hw, eps):
    P = jnp.dot(w3_ref[...], c_ref[0], preferred_element_type=jnp.float32)
    acc = _accumulate_depth_taps(P, 3, cout, d, hw) + b3_ref[...]
    h = _layernorm_relu(acc, g2_ref[...], bt2_ref[...], eps)
    acc2 = jnp.dot(w1_ref[...], h.astype(jnp.bfloat16),
                   preferred_element_type=jnp.float32) + b1_ref[...]
    o_ref[0] = _layernorm_relu(acc2, g3_ref[...], bt3_ref[...], eps)


def conv3_conv1_ln_relu(w3s, cols, b3, g2, bt2, w1m, b1, g3, bt3,
                        *, cout, d, hw, eps=1e-5):
    N, Ck, K = cols.shape
    f32 = jnp.float32
    kern = functools.partial(_conv3_conv1_kernel, cout=cout, d=d, hw=hw, eps=eps)
    return pl.pallas_call(
        kern,
        out_shape=jax.ShapeDtypeStruct((N, cout, K), jnp.float32),
        grid=(N,),
        in_specs=[_const_spec(w3s.shape),
                  pl.BlockSpec((1, Ck, K), lambda n: (n, 0, 0)),
                  _const_spec((cout, 1)),
                  _const_spec((1, K)), _const_spec((1, K)),
                  _const_spec(w1m.shape),
                  _const_spec((cout, 1)),
                  _const_spec((1, K)), _const_spec((1, K))],
        out_specs=pl.BlockSpec((1, cout, K), lambda n: (n, 0, 0)),
        compiler_params=pltpu.CompilerParams(dimension_semantics=("parallel",)),
    )(w3s, cols, b3.astype(f32).reshape(cout, 1),
      g2.reshape(1, K).astype(f32), bt2.reshape(1, K).astype(f32),
      w1m, b1.astype(f32).reshape(cout, 1),
      g3.reshape(1, K).astype(f32), bt3.reshape(1, K).astype(f32))


# ---------------------------------------------------------------------------
# MaxPool3d(2, 2): 8 strided corner views -> elementwise max, bf16 output.
# ---------------------------------------------------------------------------
def _max8_kernel(*refs):
    o_ref = refs[-1]
    m = refs[0][...]
    for r in refs[1:-1]:
        m = jnp.maximum(m, r[...])
    o_ref[...] = m.astype(o_ref.dtype)


def maxpool3d_2(x):
    # TODO(synk): the 8 corner views are still XLA strided slices; building
    # them inside the kernel from one (1,C,D,H,W) block would save ~0.5 MiB.
    N, C, D, H, W = x.shape
    Do, Ho, Wo = D // 2, H // 2, W // 2
    Ko = Do * Ho * Wo
    parts = [x[:, :, di::2, hi::2, wi::2].reshape(N, C, Ko)
             for di in (0, 1) for hi in (0, 1) for wi in (0, 1)]
    spec = pl.BlockSpec((1, C, Ko), lambda n: (n, 0, 0))
    out = pl.pallas_call(
        _max8_kernel,
        out_shape=jax.ShapeDtypeStruct((N, C, Ko), jnp.bfloat16),
        grid=(N,),
        in_specs=[spec] * 8,
        out_specs=spec,
        compiler_params=pltpu.CompilerParams(dimension_semantics=("parallel",)),
    )(*parts)
    return out.reshape(N, C, Do, Ho, Wo)


# ---------------------------------------------------------------------------
# XLA glue: (kh, kw)-only im2col and the k=2/s=2 skip-connect im2col.
# ---------------------------------------------------------------------------
def im2col_hw(x, k, pad):
    """x: (N,C,D,H,W) -> (N, C*k*k, D*H*W); taps (c, kh, kw); depth NOT expanded.
    TODO(synk): the remaining 49x/9x patch gather could also move in-kernel."""
    N, C, D, H, W = x.shape
    xp = jnp.pad(x, ((0, 0), (0, 0), (0, 0), (pad, pad), (pad, pad)))
    t = jnp.stack([xp[:, :, :, kh:kh + H, :] for kh in range(k)], axis=2)
    t = jnp.stack([t[:, :, :, :, :, kw:kw + W] for kw in range(k)], axis=3)
    return t.reshape(N, C * k * k, D * H * W)


def im2col_k2s2(x):
    """Conv3d kernel=2, stride=2, padding=0 (SkipConnect)."""
    N, C, D, H, W = x.shape
    Do, Ho, Wo = D // 2, H // 2, W // 2
    xr = x.reshape(N, C, Do, 2, Ho, 2, Wo, 2)
    xr = xr.transpose(0, 1, 3, 5, 7, 2, 4, 6)     # (N, C, kd, kh, kw, Do, Ho, Wo)
    return xr.reshape(N, C * 8, Do * Ho * Wo)


# ---------------------------------------------------------------------------
# Kernel A: SkipConnect conv + BatchNorm3d (batch stats) + residual add +
# CBAM channel attention (avg/max pool, shared MLP, sigmoid) + channel stats.
# ---------------------------------------------------------------------------
def _skipbn_add_chatt_kernel(y_ref, sc_ref, ws_ref, bs_ref, g_ref, b_ref,
                             w1t_ref, w2t_ref, x4_ref, ca_ref, st_ref, *, eps):
    N, _, K = y_ref.shape
    count = float(N * K)
    # SkipConnect: Conv3d(k=2, s=2, bias=True) as one matmul per batch element.
    skip = jnp.stack(
        [jnp.dot(ws_ref[...], sc_ref[n], preferred_element_type=jnp.float32)
         for n in range(N)], axis=0) + bs_ref[...]
    # BatchNorm3d with training-mode batch statistics (biased variance).
    # TODO(synk): running_mean/var buffers are not updated (forward value only).
    mean = jnp.sum(jnp.sum(skip, axis=2, keepdims=True), axis=0, keepdims=True) / count
    dev = skip - mean
    var = jnp.sum(jnp.sum(dev * dev, axis=2, keepdims=True), axis=0, keepdims=True) / count
    bn = dev * lax.rsqrt(var + eps) * g_ref[...] + b_ref[...]
    x4 = y_ref[...] + bn
    x4_ref[...] = x4
    # CBAM channel attention: adaptive avg/max pool over DHW -> shared MLP -> sigmoid.
    avg_v = jnp.mean(x4, axis=2)                              # (N, C)
    max_v = jnp.max(x4, axis=2)                               # (N, C)

    def mlp(v):
        h = jnp.maximum(jnp.sum(v[:, :, None] * w1t_ref[...][None], axis=1), 0.0)
        return jnp.sum(h[:, :, None] * w2t_ref[...][None], axis=1)

    ca = _sigmoid(mlp(avg_v) + mlp(max_v))                    # (N, C)
    ca_ref[...] = ca[:, :, None]
    # Channel gate + [mean, max] channel stats for the spatial attention
    # (order matches torch.cat([avg_out, max_out], dim=1) in the reference).
    out1 = ca[:, :, None] * x4
    st_ref[...] = jnp.concatenate(
        [jnp.mean(out1, axis=1, keepdims=True),
         jnp.max(out1, axis=1, keepdims=True)], axis=1).astype(st_ref.dtype)


def skipbn_add_chatt(y, skip_cols, w_skip, b_skip, bn_g, bn_b, w1t, w2t, eps=1e-5):
    N, C, K = y.shape
    f32 = jnp.float32
    return pl.pallas_call(
        functools.partial(_skipbn_add_chatt_kernel, eps=eps),
        out_shape=(jax.ShapeDtypeStruct((N, C, K), jnp.float32),    # x4
                   jax.ShapeDtypeStruct((N, C, 1), jnp.float32),    # sigmoid(channel att)
                   jax.ShapeDtypeStruct((N, 2, K), jnp.bfloat16)),  # [mean, max] over C
    )(y, skip_cols, w_skip,
      b_skip.astype(f32).reshape(1, C, 1),
      bn_g.astype(f32).reshape(1, C, 1),
      bn_b.astype(f32).reshape(1, C, 1),
      w1t.astype(f32), w2t.astype(f32))


# ---------------------------------------------------------------------------
# Kernel B: spatial-attention 7^3 conv (depth taps in-kernel) + channel gate
# + spatial gate + Encoder4 residual, all fused.
# ---------------------------------------------------------------------------
def _cbam_tail_kernel(ws_ref, x4_ref, ca_ref, cols_ref, o_ref, *, n_kd, d, hw):
    P = jnp.dot(ws_ref[...], cols_ref[0], preferred_element_type=jnp.float32)
    sa = _accumulate_depth_taps(P, n_kd, 1, d, hw)            # (1, K) pre-sigmoid
    x4 = x4_ref[0]
    out1 = ca_ref[0] * x4                                     # channel gate (recomputed)
    o_ref[0] = _sigmoid(sa) * out1 + x4                       # spatial gate + residual


def cbam_tail(sa_ws, x4, ca_sig, sa_cols, *, d, hw):
    N, C, K = x4.shape
    n_kd, Ck = sa_ws.shape
    ck_pad = (-Ck) % 16
    row_pad = (-n_kd) % 8
    if ck_pad or row_pad:
        sa_ws = jnp.pad(sa_ws, ((0, row_pad), (0, ck_pad)))
        sa_cols = jnp.pad(sa_cols, ((0, 0), (0, ck_pad), (0, 0)))
    Ckp = Ck + ck_pad
    kern = functools.partial(_cbam_tail_kernel, n_kd=n_kd, d=d, hw=hw)
    return pl.pallas_call(
        kern,
        out_shape=jax.ShapeDtypeStruct((N, C, K), jnp.float32),
        grid=(N,),
        in_specs=[_const_spec(sa_ws.shape),
                  pl.BlockSpec((1, C, K), lambda n: (n, 0, 0)),
                  pl.BlockSpec((1, C, 1), lambda n: (n, 0, 0)),
                  pl.BlockSpec((1, Ckp, K), lambda n: (n, 0, 0))],
        out_specs=pl.BlockSpec((1, C, K), lambda n: (n, 0, 0)),
        compiler_params=pltpu.CompilerParams(dimension_semantics=("parallel",)),
    )(sa_ws, x4, ca_sig, sa_cols)


# ---------------------------------------------------------------------------
# Encoder4 forward
# ---------------------------------------------------------------------------
def encoder4_forward(x3, p, eps=1e-5):
    N, Cin, D, H, W = x3.shape
    Do = D // 2
    HW = (H // 2) * (W // 2)
    K = Do * HW
    Cout = p['w7'].shape[0]
    bf16 = jnp.bfloat16

    # enc3: MaxPool3d(2,2) + TribleConv (conv7 / conv3+conv1, LN+ReLU fused)
    pool = maxpool3d_2(x3)                                            # bf16
    w7s = p['w7'].transpose(2, 0, 1, 3, 4).reshape(7 * Cout, Cin * 49).astype(bf16)
    h1 = conv_kd_ln_relu(w7s, im2col_hw(pool, 7, 3), p['b7'],
                         p['ln1_g'], p['ln1_b'], n_kd=7, cout=Cout,
                         d=Do, hw=HW, out_dtype=bf16, eps=eps)        # (N,Cout,K) bf16

    w3s = p['w3'].transpose(2, 0, 1, 3, 4).reshape(3 * Cout, Cout * 9).astype(bf16)
    w1m = p['w1'].reshape(Cout, Cout).astype(bf16)
    y = conv3_conv1_ln_relu(w3s, im2col_hw(h1.reshape(N, Cout, Do, Do, Do), 3, 1),
                            p['b3'], p['ln2_g'], p['ln2_b'],
                            w1m, p['b1'], p['ln3_g'], p['ln3_b'],
                            cout=Cout, d=Do, hw=HW, eps=eps)          # (N,Cout,K) f32

    # skipconnect4 + BatchNorm + add + channel attention (fused, whole batch)
    skip_cols = im2col_k2s2(x3.astype(bf16))                          # (N,Cin*8,K) bf16
    ws = p['skip_w'].reshape(Cout, Cin * 8).astype(bf16)
    w1t = p['ca_w1'].reshape(-1, Cout).T                              # (C, hid)
    w2t = p['ca_w2'].reshape(Cout, -1).T                              # (hid, C)
    x4, ca_sig, stats = skipbn_add_chatt(y, skip_cols, ws, p['skip_b'],
                                         p['bn_g'], p['bn_b'], w1t, w2t, eps=eps)

    # spatial attention + gates + residual (fused)
    sa_ws = p['sa_w'].transpose(2, 0, 1, 3, 4).reshape(7, 2 * 49).astype(bf16)
    sa_cols = im2col_hw(stats.reshape(N, 2, Do, Do, Do), 7, 3)        # (N,98,K) bf16
    out = cbam_tail(sa_ws, x4, ca_sig, sa_cols, d=Do, hw=HW)
    return out.reshape(N, Cout, Do, Do, Do)


# ---------------------------------------------------------------------------
# Deterministic parameter initialization
# ---------------------------------------------------------------------------
def init_params(key, in_channels, out_channels, dhw, ratio=16):
    kit = iter(jax.random.split(key, 16))

    def conv_w(shape):
        fan_in = int(np.prod(shape[1:]))
        return jax.random.normal(next(kit), shape, jnp.float32) / np.sqrt(fan_in)

    def conv_b(n):
        return 0.01 * jax.random.normal(next(kit), (n,), jnp.float32)

    hid = max(out_channels // ratio, 1)
    ones3 = jnp.ones((dhw, dhw, dhw), jnp.float32)
    zeros3 = jnp.zeros((dhw, dhw, dhw), jnp.float32)
    return {
        'w7': conv_w((out_channels, in_channels, 7, 7, 7)), 'b7': conv_b(out_channels),
        'ln1_g': ones3, 'ln1_b': zeros3,
        'w3': conv_w((out_channels, out_channels, 3, 3, 3)), 'b3': conv_b(out_channels),
        'ln2_g': ones3, 'ln2_b': zeros3,
        'w1': conv_w((out_channels, out_channels, 1, 1, 1)), 'b1': conv_b(out_channels),
        'ln3_g': ones3, 'ln3_b': zeros3,
        'skip_w': conv_w((out_channels, in_channels, 2, 2, 2)), 'skip_b': conv_b(out_channels),
        'bn_g': jnp.ones((out_channels,), jnp.float32),
        'bn_b': jnp.zeros((out_channels,), jnp.float32),
        'ca_w1': conv_w((hid, out_channels, 1, 1, 1)),
        'ca_w2': conv_w((out_channels, hid, 1, 1, 1)),
        'sa_w': conv_w((1, 2, 7, 7, 7)),
    }


if __name__ == "__main__":
    key = jax.random.PRNGKey(0)
    kx, kp = jax.random.split(key)
    N, NCH, S = 2, 4, 16                      # x3 carries 4*n_channels channels
    Cin, Cout = 4 * NCH, 8 * NCH              # 16 -> 32
    x3 = jax.random.normal(kx, (N, Cin, S, S, S), jnp.float32)
    params = init_params(kp, in_channels=Cin, out_channels=Cout, dhw=S // 2)

    fwd = jax.jit(encoder4_forward)
    out = jax.block_until_ready(fwd(x3, params))

    assert out.shape == (N, Cout, S // 2, S // 2, S // 2), out.shape
    assert bool(jnp.all(jnp.isfinite(out)))
    print("KERNEL_OK")
</pallas_src>

<mosaic_0001>
module attributes {stable_mosaic.version = 11 : i64} {
  func.func @_max8_kernel(%arg0: i32, %arg1: memref<1x16x512xf32, #tpu.memory_space<vmem>>, %arg2: memref<1x16x512xf32, #tpu.memory_space<vmem>>, %arg3: memref<1x16x512xf32, #tpu.memory_space<vmem>>, %arg4: memref<1x16x512xf32, #tpu.memory_space<vmem>>, %arg5: memref<1x16x512xf32, #tpu.memory_space<vmem>>, %arg6: memref<1x16x512xf32, #tpu.memory_space<vmem>>, %arg7: memref<1x16x512xf32, #tpu.memory_space<vmem>>, %arg8: memref<1x16x512xf32, #tpu.memory_space<vmem>>, %arg9: memref<1x16x512xbf16, #tpu.memory_space<vmem>>) attributes {dimension_semantics = [#tpu.dimension_semantics<parallel>], iteration_bounds = array<i64: 2>, scalar_prefetch = 0 : i64, scratch_operands = 0 : i64, tpu.core_type = #tpu.core_type<tc>, window_params = [{transform_indices = @transform_0, window_bounds = array<i64: 1, 16, 512>}, {transform_indices = @transform_1, window_bounds = array<i64: 1, 16, 512>}, {transform_indices = @transform_2, window_bounds = array<i64: 1, 16, 512>}, {transform_indices = @transform_3, window_bounds = array<i64: 1, 16, 512>}, {transform_indices = @transform_4, window_bounds = array<i64: 1, 16, 512>}, {transform_indices = @transform_5, window_bounds = array<i64: 1, 16, 512>}, {transform_indices = @transform_6, window_bounds = array<i64: 1, 16, 512>}, {transform_indices = @transform_7, window_bounds = array<i64: 1, 16, 512>}, {transform_indices = @transform_8, window_bounds = array<i64: 1, 16, 512>}]} {
    %c0 = arith.constant 0 : index
    %c0_0 = arith.constant 0 : index
    %c0_1 = arith.constant 0 : index
    %0 = vector.load %arg1[%c0, %c0_0, %c0_1] : memref<1x16x512xf32, #tpu.memory_space<vmem>>, vector<1x16x512xf32>
    %c0_2 = arith.constant 0 : index
    %c0_3 = arith.constant 0 : index
    %c0_4 = arith.constant 0 : index
    %1 = vector.load %arg2[%c0_2, %c0_3, %c0_4] : memref<1x16x512xf32, #tpu.memory_space<vmem>>, vector<1x16x512xf32>
    %2 = arith.maximumf %0, %1 : vector<1x16x512xf32>
    %c0_5 = arith.constant 0 : index
    %c0_6 = arith.constant 0 : index
    %c0_7 = arith.constant 0 : index
    %3 = vector.load %arg3[%c0_5, %c0_6, %c0_7] : memref<1x16x512xf32, #tpu.memory_space<vmem>>, vector<1x16x512xf32>
    %4 = arith.maximumf %2, %3 : vector<1x16x512xf32>
    %c0_8 = arith.constant 0 : index
    %c0_9 = arith.constant 0 : index
    %c0_10 = arith.constant 0 : index
    %5 = vector.load %arg4[%c0_8, %c0_9, %c0_10] : memref<1x16x512xf32, #tpu.memory_space<vmem>>, vector<1x16x512xf32>
    %6 = arith.maximumf %4, %5 : vector<1x16x512xf32>
    %c0_11 = arith.constant 0 : index
    %c0_12 = arith.constant 0 : index
    %c0_13 = arith.constant 0 : index
    %7 = vector.load %arg5[%c0_11, %c0_12, %c0_13] : memref<1x16x512xf32, #tpu.memory_space<vmem>>, vector<1x16x512xf32>
    %8 = arith.maximumf %6, %7 : vector<1x16x512xf32>
    %c0_14 = arith.constant 0 : index
    %c0_15 = arith.constant 0 : index
    %c0_16 = arith.constant 0 : index
    %9 = vector.load %arg6[%c0_14, %c0_15, %c0_16] : memref<1x16x512xf32, #tpu.memory_space<vmem>>, vector<1x16x512xf32>
    %10 = arith.maximumf %8, %9 : vector<1x16x512xf32>
    %c0_17 = arith.constant 0 : index
    %c0_18 = arith.constant 0 : index
    %c0_19 = arith.constant 0 : index
    %11 = vector.load %arg7[%c0_17, %c0_18, %c0_19] : memref<1x16x512xf32, #tpu.memory_space<vmem>>, vector<1x16x512xf32>
    %12 = arith.maximumf %10, %11 : vector<1x16x512xf32>
    %c0_20 = arith.constant 0 : index
    %c0_21 = arith.constant 0 : index
    %c0_22 = arith.constant 0 : index
    %13 = vector.load %arg8[%c0_20, %c0_21, %c0_22] : memref<1x16x512xf32, #tpu.memory_space<vmem>>, vector<1x16x512xf32>
    %14 = arith.maximumf %12, %13 : vector<1x16x512xf32>
    %15 = arith.truncf %14 : vector<1x16x512xf32> to vector<1x16x512xbf16>
    %c0_23 = arith.constant 0 : index
    %c0_24 = arith.constant 0 : index
    %c0_25 = arith.constant 0 : index
    %16 = vector.load %arg9[%c0_23, %c0_24, %c0_25] : memref<1x16x512xbf16, #tpu.memory_space<vmem>>, vector<1x16x512xbf16>
    tpu.vector_store %arg9[%c0_23, %c0_24, %c0_25], %15 {strides = array<i32>} : memref<1x16x512xbf16, #tpu.memory_space<vmem>>, vector<1x16x512xbf16>,
    return
  }
  func.func @transform_0(%arg0: i32) -> (i32, i32, i32) {
    %c0_i32 = arith.constant 0 : i32
    %c0_i32_0 = arith.constant 0 : i32
    %c0_i32_1 = arith.constant 0 : i32
    return %arg0, %c0_i32, %c0_i32_0 : i32, i32, i32
  }
  func.func @transform_1(%arg0: i32) -> (i32, i32, i32) {
    %c0_i32 = arith.constant 0 : i32
    %c0_i32_0 = arith.constant 0 : i32
    %c0_i32_1 = arith.constant 0 : i32
    return %arg0, %c0_i32, %c0_i32_0 : i32, i32, i32
  }
  func.func @transform_2(%arg0: i32) -> (i32, i32, i32) {
    %c0_i32 = arith.constant 0 : i32
    %c0_i32_0 = arith.constant 0 : i32
    %c0_i32_1 = arith.constant 0 : i32
    return %arg0, %c0_i32, %c0_i32_0 : i32, i32, i32
  }
  func.func @transform_3(%arg0: i32) -> (i32, i32, i32) {
    %c0_i32 = arith.constant 0 : i32
    %c0_i32_0 = arith.constant 0 : i32
    %c0_i32_1 = arith.constant 0 : i32
    return %arg0, %c0_i32, %c0_i32_0 : i32, i32, i32
  }
  func.func @transform_4(%arg0: i32) -> (i32, i32, i32) {
    %c0_i32 = arith.constant 0 : i32
    %c0_i32_0 = arith.constant 0 : i32
    %c0_i32_1 = arith.constant 0 : i32
    return %arg0, %c0_i32, %c0_i32_0 : i32, i32, i32
  }
  func.func @transform_5(%arg0: i32) -> (i32, i32, i32) {
    %c0_i32 = arith.constant 0 : i32
    %c0_i32_0 = arith.constant 0 : i32
    %c0_i32_1 = arith.constant 0 : i32
    return %arg0, %c0_i32, %c0_i32_0 : i32, i32, i32
  }
  func.func @transform_6(%arg0: i32) -> (i32, i32, i32) {
    %c0_i32 = arith.constant 0 : i32
    %c0_i32_0 = arith.constant 0 : i32
    %c0_i32_1 = arith.constant 0 : i32
    return %arg0, %c0_i32, %c0_i32_0 : i32, i32, i32
  }
  func.func @transform_7(%arg0: i32) -> (i32, i32, i32) {
    %c0_i32 = arith.constant 0 : i32
    %c0_i32_0 = arith.constant 0 : i32
    %c0_i32_1 = arith.constant 0 : i32
    return %arg0, %c0_i32, %c0_i32_0 : i32, i32, i32
  }
  func.func @transform_8(%arg0: i32) -> (i32, i32, i32) {
    %c0_i32 = arith.constant 0 : i32
    %c0_i32_0 = arith.constant 0 : i32
    %c0_i32_1 = arith.constant 0 : i32
    return %arg0, %c0_i32, %c0_i32_0 : i32, i32, i32
  }
}

module attributes {stable_mosaic.version = 11 : i64} {
  func.func @_conv_kd_ln_relu_kernel(%arg0: i32, %arg1: memref<224x784xbf16, #tpu.memory_space<vmem>>, %arg2: memref<1x784x512xbf16, #tpu.memory_space<vmem>>, %arg3: memref<32x1xf32, #tpu.memory_space<vmem>>, %arg4: memref<1x512xf32, #tpu.memory_space<vmem>>, %arg5: memref<1x512xf32, #tpu.memory_space<vmem>>, %arg6: memref<1x32x512xbf16, #tpu.memory_space<vmem>>) attributes {dimension_semantics = [#tpu.dimension_semantics<parallel>], iteration_bounds = array<i64: 2>, scalar_prefetch = 0 : i64, scratch_operands = 0 : i64, tpu.core_type = #tpu.core_type<tc>, window_params = [{pipeline_mode = #tpu.pipeline_mode<synchronous>, transform_indices = @transform_0, window_bounds = array<i64: 224, 784>}, {transform_indices = @transform_1, window_bounds = array<i64: 1, 784, 512>}, {pipeline_mode = #tpu.pipeline_mode<synchronous>, transform_indices = @transform_2, window_bounds = array<i64: 32, 1>}, {pipeline_mode = #tpu.pipeline_mode<synchronous>, transform_indices = @transform_3, window_bounds = array<i64: 1, 512>}, {pipeline_mode = #tpu.pipeline_mode<synchronous>, transform_indices = @transform_4, window_bounds = array<i64: 1, 512>}, {transform_indices = @transform_5, window_bounds = array<i64: 1, 32, 512>}]} {
    %c0 = arith.constant 0 : index
    %c0_0 = arith.constant 0 : index
    %0 = vector.load %arg1[%c0, %c0_0] : memref<224x784xbf16, #tpu.memory_space<vmem>>, vector<224x784xbf16>
    %c0_1 = arith.constant 0 : index
    %c0_2 = arith.constant 0 : index
    %c0_3 = arith.constant 0 : index
    %1 = vector.load %arg2[%c0_1, %c0_2, %c0_3] : memref<1x784x512xbf16, #tpu.memory_space<vmem>>, vector<1x784x512xbf16>
    %2 = vector.shape_cast %1 : vector<1x784x512xbf16> to vector<784x512xbf16>
    %cst = arith.constant dense<0.000000e+00> : vector<224x512xf32>
    %3 = tpu.matmul %0, %2, %cst {dimension_numbers = #tpu.dot_dimension_numbers<[1], [0], [0], [1], [0, 0, 1, 1], [], []>} : vector<224x784xbf16>, vector<784x512xbf16>, vector<224x512xf32> -> vector<224x512xf32>
    %cst_4 = arith.constant 0.000000e+00 : f32
    %4 = vector.broadcast %cst_4 : f32 to vector<32x512xf32>
    %5 = vector.extract_strided_slice %3 {offsets = [0, 0], sizes = [32, 512], strides = [1, 1]} : vector<224x512xf32> to vector<32x512xf32>
    %cst_5 = arith.constant 0.000000e+00 : f32
    %6 = vector.broadcast %cst_5 : f32 to vector<32x192xf32>
    %7 = vector.extract_strided_slice %5 {offsets = [0, 0], sizes = [32, 320], strides = [1, 1]} : vector<32x512xf32> to vector<32x320xf32>
    %8 = tpu.concatenate %6, %7 in 1 : vector<32x192xf32>, vector<32x320xf32> -> vector<32x512xf32>
    %9 = arith.addf %4, %8 : vector<32x512xf32>
    %10 = vector.extract_strided_slice %3 {offsets = [32, 0], sizes = [32, 512], strides = [1, 1]} : vector<224x512xf32> to vector<32x512xf32>
    %cst_6 = arith.constant 0.000000e+00 : f32
    %11 = vector.broadcast %cst_6 : f32 to vector<32x128xf32>
    %12 = vector.extract_strided_slice %10 {offsets = [0, 0], sizes = [32, 384], strides = [1, 1]} : vector<32x512xf32> to vector<32x384xf32>
    %13 = tpu.concatenate %11, %12 in 1 : vector<32x128xf32>, vector<32x384xf32> -> vector<32x512xf32>
    %14 = arith.addf %9, %13 : vector<32x512xf32>
    %15 = vector.extract_strided_slice %3 {offsets = [64, 0], sizes = [32, 512], strides = [1, 1]} : vector<224x512xf32> to vector<32x512xf32>
    %cst_7 = arith.constant 0.000000e+00 : f32
    %16 = vector.broadcast %cst_7 : f32 to vector<32x64xf32>
    %17 = vector.extract_strided_slice %15 {offsets = [0, 0], sizes = [32, 448], strides = [1, 1]} : vector<32x512xf32> to vector<32x448xf32>
    %18 = tpu.concatenate %16, %17 in 1 : vector<32x64xf32>, vector<32x448xf32> -> vector<32x512xf32>
    %19 = arith.addf %14, %18 : vector<32x512xf32>
    %20 = vector.extract_strided_slice %3 {offsets = [96, 0], sizes = [32, 512], strides = [1, 1]} : vector<224x512xf32> to vector<32x512xf32>
    %21 = arith.addf %19, %20 : vector<32x512xf32>
    %22 = vector.extract_strided_slice %3 {offsets = [128, 0], sizes = [32, 512], strides = [1, 1]} : vector<224x512xf32> to vector<32x512xf32>
    %cst_8 = arith.constant 0.000000e+00 : f32
    %23 = vector.broadcast %cst_8 : f32 to vector<32x64xf32>
    %24 = vector.extract_strided_slice %22 {offsets = [0, 64], sizes = [32, 448], strides = [1, 1]} : vector<32x512xf32> to vector<32x448xf32>
    %25 = tpu.concatenate %24, %23 in 1 : vector<32x448xf32>, vector<32x64xf32> -> vector<32x512xf32>
    %26 = arith.addf %21, %25 : vector<32x512xf32>
    %27 = vector.extract_strided_slice %3 {offsets = [160, 0], sizes = [32, 512], strides = [1, 1]} : vector<224x512xf32> to vector<32x512xf32>
    %cst_9 = arith.constant 0.000000e+00 : f32
    %28 = vector.broadcast %cst_9 : f32 to vector<32x128xf32>
    %29 = vector.extract_strided_slice %27 {offsets = [0, 128], sizes = [32, 384], strides = [1, 1]} : vector<32x512xf32> to vector<32x384xf32>
    %30 = tpu.concatenate %29, %28 in 1 : vector<32x384xf32>, vector<32x128xf32> -> vector<32x512xf32>
    %31 = arith.addf %26, %30 : vector<32x512xf32>
    %32 = vector.extract_strided_slice %3 {offsets = [192, 0], sizes = [32, 512], strides = [1, 1]} : vector<224x512xf32> to vector<32x512xf32>
    %cst_10 = arith.constant 0.000000e+00 : f32
    %33 = vector.broadcast %cst_10 : f32 to vector<32x192xf32>
    %34 = vector.extract_strided_slice %32 {offsets = [0, 192], sizes = [32, 320], strides = [1, 1]} : vector<32x512xf32> to vector<32x320xf32>
    %35 = tpu.concatenate %34, %33 in 1 : vector<32x320xf32>, vector<32x192xf32> -> vector<32x512xf32>
    %36 = arith.addf %31, %35 : vector<32x512xf32>
    %c0_11 = arith.constant 0 : index
    %c0_12 = arith.constant 0 : index
    %37 = vector.load %arg3[%c0_11, %c0_12] : memref<32x1xf32, #tpu.memory_space<vmem>>, vector<32x1xf32>
    %38 = vector.broadcast %37 : vector<32x1xf32> to vector<32x512xf32>
    %39 = arith.addf %36, %38 : vector<32x512xf32>
    %c0_13 = arith.constant 0 : index
    %c0_14 = arith.constant 0 : index
    %40 = vector.load %arg4[%c0_13, %c0_14] : memref<1x512xf32, #tpu.memory_space<vmem>>, vector<1x512xf32>
    %c0_15 = arith.constant 0 : index
    %c0_16 = arith.constant 0 : index
    %41 = vector.load %arg5[%c0_15, %c0_16] : memref<1x512xf32, #tpu.memory_space<vmem>>, vector<1x512xf32>
    %cst_17 = arith.constant dense<0.000000e+00> : vector<32xf32>
    %42 = vector.multi_reduction <add>, %39, %cst_17 [1] : vector<32x512xf32> to vector<32xf32>
    %43 = vector.shape_cast %42 : vector<32xf32> to vector<32x1xf32>
    %cst_18 = arith.constant 5.120000e+02 : f32
    %44 = vector.broadcast %cst_18 : f32 to vector<32x1xf32>
    %45 = arith.divf %43, %44 : vector<32x1xf32>
    %46 = vector.broadcast %45 : vector<32x1xf32> to vector<32x512xf32>
    %47 = arith.subf %39, %46 : vector<32x512xf32>
    %48 = arith.mulf %47, %47 : vector<32x512xf32>
    %cst_19 = arith.constant dense<0.000000e+00> : vector<32xf32>
    %49 = vector.multi_reduction <add>, %48, %cst_19 [1] : vector<32x512xf32> to vector<32xf32>
    %50 = vector.shape_cast %49 : vector<32xf32> to vector<32x1xf32>
    %cst_20 = arith.constant 5.120000e+02 : f32
    %51 = vector.broadcast %cst_20 : f32 to vector<32x1xf32>
    %52 = arith.divf %50, %51 : vector<32x1xf32>
    %cst_21 = arith.constant 9.99999974E-6 : f32
    %53 = vector.broadcast %cst_21 : f32 to vector<32x1xf32>
    %54 = arith.addf %52, %53 : vector<32x1xf32>
    %55 = math.rsqrt %54 : vector<32x1xf32>
    %56 = vector.broadcast %55 : vector<32x1xf32> to vector<32x512xf32>
    %57 = arith.mulf %47, %56 : vector<32x512xf32>
    %58 = vector.broadcast %40 : vector<1x512xf32> to vector<32x512xf32>
    %59 = arith.mulf %57, %58 : vector<32x512xf32>
    %60 = vector.broadcast %41 : vector<1x512xf32> to vector<32x512xf32>
    %61 = arith.addf %59, %60 : vector<32x512xf32>
    %cst_22 = arith.constant 0.000000e+00 : f32
    %62 = vector.broadcast %cst_22 : f32 to vector<32x512xf32>
    %63 = arith.maximumf %61, %62 : vector<32x512xf32>
    %64 = arith.truncf %63 : vector<32x512xf32> to vector<32x512xbf16>
    %c0_23 = arith.constant 0 : index
    %c0_24 = arith.constant 0 : index
    %c0_25 = arith.constant 0 : index
    %65 = vector.load %arg6[%c0_23, %c0_24, %c0_25] : memref<1x32x512xbf16, #tpu.memory_space<vmem>>, vector<1x32x512xbf16>
    %66 = vector.shape_cast %65 : vector<1x32x512xbf16> to vector<32x512xbf16>
    %67 = vector.shape_cast %64 : vector<32x512xbf16> to vector<1x32x512xbf16>
    tpu.vector_store %arg6[%c0_23, %c0_24, %c0_25], %67 {strides = array<i32>} : memref<1x32x512xbf16, #tpu.memory_space<vmem>>, vector<1x32x512xbf16>,
    return
  }
  func.func @transform_0(%arg0: i32) -> (i32, i32) {
    %c0_i32 = arith.constant 0 : i32
    %c0_i32_0 = arith.constant 0 : i32
    %c0_i32_1 = arith.constant 0 : i32
    return %c0_i32, %c0_i32_0 : i32, i32
  }
  func.func @transform_1(%arg0: i32) -> (i32, i32, i32) {
    %c0_i32 = arith.constant 0 : i32
    %c0_i32_0 = arith.constant 0 : i32
    %c0_i32_1 = arith.constant 0 : i32
    return %arg0, %c0_i32, %c0_i32_0 : i32, i32, i32
  }
  func.func @transform_2(%arg0: i32) -> (i32, i32) {
    %c0_i32 = arith.constant 0 : i32
    %c0_i32_0 = arith.constant 0 : i32
    %c0_i32_1 = arith.constant 0 : i32
    return %c0_i32, %c0_i32_0 : i32, i32
  }
  func.func @transform_3(%arg0: i32) -> (i32, i32) {
    %c0_i32 = arith.constant 0 : i32
    %c0_i32_0 = arith.constant 0 : i32
    %c0_i32_1 = arith.constant 0 : i32
    return %c0_i32, %c0_i32_0 : i32, i32
  }
  func.func @transform_4(%arg0: i32) -> (i32, i32) {
    %c0_i32 = arith.constant 0 : i32
    %c0_i32_0 = arith.constant 0 : i32
    %c0_i32_1 = arith.constant 0 : i32
    return %c0_i32, %c0_i32_0 : i32, i32
  }
  func.func @transform_5(%arg0: i32) -> (i32, i32, i32) {
    %c0_i32 = arith.constant 0 : i32
    %c0_i32_0 = arith.constant 0 : i32
    %c0_i32_1 = arith.constant 0 : i32
    return %arg0, %c0_i32, %c0_i32_0 : i32, i32, i32
  }
}

module attributes {stable_mosaic.version = 11 : i64} {
  func.func @_conv3_conv1_kernel(%arg0: i32, %arg1: memref<96x288xbf16, #tpu.memory_space<vmem>>, %arg2: memref<1x288x512xbf16, #tpu.memory_space<vmem>>, %arg3: memref<32x1xf32, #tpu.memory_space<vmem>>, %arg4: memref<1x512xf32, #tpu.memory_space<vmem>>, %arg5: memref<1x512xf32, #tpu.memory_space<vmem>>, %arg6: memref<32x32xbf16, #tpu.memory_space<vmem>>, %arg7: memref<32x1xf32, #tpu.memory_space<vmem>>, %arg8: memref<1x512xf32, #tpu.memory_space<vmem>>, %arg9: memref<1x512xf32, #tpu.memory_space<vmem>>, %arg10: memref<1x32x512xf32, #tpu.memory_space<vmem>>) attributes {dimension_semantics = [#tpu.dimension_semantics<parallel>], iteration_bounds = array<i64: 2>, scalar_prefetch = 0 : i64, scratch_operands = 0 : i64, tpu.core_type = #tpu.core_type<tc>, window_params = [{pipeline_mode = #tpu.pipeline_mode<synchronous>, transform_indices = @transform_0, window_bounds = array<i64: 96, 288>}, {transform_indices = @transform_1, window_bounds = array<i64: 1, 288, 512>}, {pipeline_mode = #tpu.pipeline_mode<synchronous>, transform_indices = @transform_2, window_bounds = array<i64: 32, 1>}, {pipeline_mode = #tpu.pipeline_mode<synchronous>, transform_indices = @transform_3, window_bounds = array<i64: 1, 512>}, {pipeline_mode = #tpu.pipeline_mode<synchronous>, transform_indices = @transform_4, window_bounds = array<i64: 1, 512>}, {pipeline_mode = #tpu.pipeline_mode<synchronous>, transform_indices = @transform_5, window_bounds = array<i64: 32, 32>}, {pipeline_mode = #tpu.pipeline_mode<synchronous>, transform_indices = @transform_6, window_bounds = array<i64: 32, 1>}, {pipeline_mode = #tpu.pipeline_mode<synchronous>, transform_indices = @transform_7, window_bounds = array<i64: 1, 512>}, {pipeline_mode = #tpu.pipeline_mode<synchronous>, transform_indices = @transform_8, window_bounds = array<i64: 1, 512>}, {transform_indices = @transform_9, window_bounds = array<i64: 1, 32, 512>}]} {
    %c0 = arith.constant 0 : index
    %c0_0 = arith.constant 0 : index
    %0 = vector.load %arg1[%c0, %c0_0] : memref<96x288xbf16, #tpu.memory_space<vmem>>, vector<96x288xbf16>
    %c0_1 = arith.constant 0 : index
    %c0_2 = arith.constant 0 : index
    %c0_3 = arith.constant 0 : index
    %1 = vector.load %arg2[%c0_1, %c0_2, %c0_3] : memref<1x288x512xbf16, #tpu.memory_space<vmem>>, vector<1x288x512xbf16>
    %2 = vector.shape_cast %1 : vector<1x288x512xbf16> to vector<288x512xbf16>
    %cst = arith.constant dense<0.000000e+00> : vector<96x512xf32>
    %3 = tpu.matmul %0, %2, %cst {dimension_numbers = #tpu.dot_dimension_numbers<[1], [0], [0], [1], [0, 0, 1, 1], [], []>} : vector<96x288xbf16>, vector<288x512xbf16>, vector<96x512xf32> -> vector<96x512xf32>
    %cst_4 = arith.constant 0.000000e+00 : f32
    %4 = vector.broadcast %cst_4 : f32 to vector<32x512xf32>
    %5 = vector.extract_strided_slice %3 {offsets = [0, 0], sizes = [32, 512], strides = [1, 1]} : vector<96x512xf32> to vector<32x512xf32>
    %cst_5 = arith.constant 0.000000e+00 : f32
    %6 = vector.broadcast %cst_5 : f32 to vector<32x64xf32>
    %7 = vector.extract_strided_slice %5 {offsets = [0, 0], sizes = [32, 448], strides = [1, 1]} : vector<32x512xf32> to vector<32x448xf32>
    %8 = tpu.concatenate %6, %7 in 1 : vector<32x64xf32>, vector<32x448xf32> -> vector<32x512xf32>
    %9 = arith.addf %4, %8 : vector<32x512xf32>
    %10 = vector.extract_strided_slice %3 {offsets = [32, 0], sizes = [32, 512], strides = [1, 1]} : vector<96x512xf32> to vector<32x512xf32>
    %11 = arith.addf %9, %10 : vector<32x512xf32>
    %12 = vector.extract_strided_slice %3 {offsets = [64, 0], sizes = [32, 512], strides = [1, 1]} : vector<96x512xf32> to vector<32x512xf32>
    %cst_6 = arith.constant 0.000000e+00 : f32
    %13 = vector.broadcast %cst_6 : f32 to vector<32x64xf32>
    %14 = vector.extract_strided_slice %12 {offsets = [0, 64], sizes = [32, 448], strides = [1, 1]} : vector<32x512xf32> to vector<32x448xf32>
    %15 = tpu.concatenate %14, %13 in 1 : vector<32x448xf32>, vector<32x64xf32> -> vector<32x512xf32>
    %16 = arith.addf %11, %15 : vector<32x512xf32>
    %c0_7 = arith.constant 0 : index
    %c0_8 = arith.constant 0 : index
    %17 = vector.load %arg3[%c0_7, %c0_8] : memref<32x1xf32, #tpu.memory_space<vmem>>, vector<32x1xf32>
    %18 = vector.broadcast %17 : vector<32x1xf32> to vector<32x512xf32>
    %19 = arith.addf %16, %18 : vector<32x512xf32>
    %c0_9 = arith.constant 0 : index
    %c0_10 = arith.constant 0 : index
    %20 = vector.load %arg4[%c0_9, %c0_10] : memref<1x512xf32, #tpu.memory_space<vmem>>, vector<1x512xf32>
    %c0_11 = arith.constant 0 : index
    %c0_12 = arith.constant 0 : index
    %21 = vector.load %arg5[%c0_11, %c0_12] : memref<1x512xf32, #tpu.memory_space<vmem>>, vector<1x512xf32>
    %cst_13 = arith.constant dense<0.000000e+00> : vector<32xf32>
    %22 = vector.multi_reduction <add>, %19, %cst_13 [1] : vector<32x512xf32> to vector<32xf32>
    %23 = vector.shape_cast %22 : vector<32xf32> to vector<32x1xf32>
    %cst_14 = arith.constant 5.120000e+02 : f32
    %24 = vector.broadcast %cst_14 : f32 to vector<32x1xf32>
    %25 = arith.divf %23, %24 : vector<32x1xf32>
    %26 = vector.broadcast %25 : vector<32x1xf32> to vector<32x512xf32>
    %27 = arith.subf %19, %26 : vector<32x512xf32>
    %28 = arith.mulf %27, %27 : vector<32x512xf32>
    %cst_15 = arith.constant dense<0.000000e+00> : vector<32xf32>
    %29 = vector.multi_reduction <add>, %28, %cst_15 [1] : vector<32x512xf32> to vector<32xf32>
    %30 = vector.shape_cast %29 : vector<32xf32> to vector<32x1xf32>
    %cst_16 = arith.constant 5.120000e+02 : f32
    %31 = vector.broadcast %cst_16 : f32 to vector<32x1xf32>
    %32 = arith.divf %30, %31 : vector<32x1xf32>
    %cst_17 = arith.constant 9.99999974E-6 : f32
    %33 = vector.broadcast %cst_17 : f32 to vector<32x1xf32>
    %34 = arith.addf %32, %33 : vector<32x1xf32>
    %35 = math.rsqrt %34 : vector<32x1xf32>
    %36 = vector.broadcast %35 : vector<32x1xf32> to vector<32x512xf32>
    %37 = arith.mulf %27, %36 : vector<32x512xf32>
    %38 = vector.broadcast %20 : vector<1x512xf32> to vector<32x512xf32>
    %39 = arith.mulf %37, %38 : vector<32x512xf32>
    %40 = vector.broadcast %21 : vector<1x512xf32> to vector<32x512xf32>
    %41 = arith.addf %39, %40 : vector<32x512xf32>
    %cst_18 = arith.constant 0.000000e+00 : f32
    %42 = vector.broadcast %cst_18 : f32 to vector<32x512xf32>
    %43 = arith.maximumf %41, %42 : vector<32x512xf32>
    %c0_19 = arith.constant 0 : index
    %c0_20 = arith.constant 0 : index
    %44 = vector.load %arg6[%c0_19, %c0_20] : memref<32x32xbf16, #tpu.memory_space<vmem>>, vector<32x32xbf16>
    %45 = arith.truncf %43 : vector<32x512xf32> to vector<32x512xbf16>
    %cst_21 = arith.constant dense<0.000000e+00> : vector<32x512xf32>
    %46 = tpu.matmul %44, %45, %cst_21 {dimension_numbers = #tpu.dot_dimension_numbers<[1], [0], [0], [1], [0, 0, 1, 1], [], []>} : vector<32x32xbf16>, vector<32x512xbf16>, vector<32x512xf32> -> vector<32x512xf32>
    %c0_22 = arith.constant 0 : index
    %c0_23 = arith.constant 0 : index
    %47 = vector.load %arg7[%c0_22, %c0_23] : memref<32x1xf32, #tpu.memory_space<vmem>>, vector<32x1xf32>
    %48 = vector.broadcast %47 : vector<32x1xf32> to vector<32x512xf32>
    %49 = arith.addf %46, %48 : vector<32x512xf32>
    %c0_24 = arith.constant 0 : index
    %c0_25 = arith.constant 0 : index
    %50 = vector.load %arg8[%c0_24, %c0_25] : memref<1x512xf32, #tpu.memory_space<vmem>>, vector<1x512xf32>
    %c0_26 = arith.constant 0 : index
    %c0_27 = arith.constant 0 : index
    %51 = vector.load %arg9[%c0_26, %c0_27] : memref<1x512xf32, #tpu.memory_space<vmem>>, vector<1x512xf32>
    %cst_28 = arith.constant dense<0.000000e+00> : vector<32xf32>
    %52 = vector.multi_reduction <add>, %49, %cst_28 [1] : vector<32x512xf32> to vector<32xf32>
    %53 = vector.shape_cast %52 : vector<32xf32> to vector<32x1xf32>
    %cst_29 = arith.constant 5.120000e+02 : f32
    %54 = vector.broadcast %cst_29 : f32 to vector<32x1xf32>
    %55 = arith.divf %53, %54 : vector<32x1xf32>
    %56 = vector.broadcast %55 : vector<32x1xf32> to vector<32x512xf32>
    %57 = arith.subf %49, %56 : vector<32x512xf32>
    %58 = arith.mulf %57, %57 : vector<32x512xf32>
    %cst_30 = arith.constant dense<0.000000e+00> : vector<32xf32>
    %59 = vector.multi_reduction <add>, %58, %cst_30 [1] : vector<32x512xf32> to vector<32xf32>
    %60 = vector.shape_cast %59 : vector<32xf32> to vector<32x1xf32>
    %cst_31 = arith.constant 5.120000e+02 : f32
    %61 = vector.broadcast %cst_31 : f32 to vector<32x1xf32>
    %62 = arith.divf %60, %61 : vector<32x1xf32>
    %cst_32 = arith.constant 9.99999974E-6 : f32
    %63 = vector.broadcast %cst_32 : f32 to vector<32x1xf32>
    %64 = arith.addf %62, %63 : vector<32x1xf32>
    %65 = math.rsqrt %64 : vector<32x1xf32>
    %66 = vector.broadcast %65 : vector<32x1xf32> to vector<32x512xf32>
    %67 = arith.mulf %57, %66 : vector<32x512xf32>
    %68 = vector.broadcast %50 : vector<1x512xf32> to vector<32x512xf32>
    %69 = arith.mulf %67, %68 : vector<32x512xf32>
    %70 = vector.broadcast %51 : vector<1x512xf32> to vector<32x512xf32>
    %71 = arith.addf %69, %70 : vector<32x512xf32>
    %cst_33 = arith.constant 0.000000e+00 : f32
    %72 = vector.broadcast %cst_33 : f32 to vector<32x512xf32>
    %73 = arith.maximumf %71, %72 : vector<32x512xf32>
    %c0_34 = arith.constant 0 : index
    %c0_35 = arith.constant 0 : index
    %c0_36 = arith.constant 0 : index
    %74 = vector.load %arg10[%c0_34, %c0_35, %c0_36] : memref<1x32x512xf32, #tpu.memory_space<vmem>>, vector<1x32x512xf32>
    %75 = vector.shape_cast %74 : vector<1x32x512xf32> to vector<32x512xf32>
    %76 = vector.shape_cast %73 : vector<32x512xf32> to vector<1x32x512xf32>
    tpu.vector_store %arg10[%c0_34, %c0_35, %c0_36], %76 {strides = array<i32>} : memref<1x32x512xf32, #tpu.memory_space<vmem>>, vector<1x32x512xf32>,
    return
  }
  func.func @transform_0(%arg0: i32) -> (i32, i32) {
    %c0_i32 = arith.constant 0 : i32
    %c0_i32_0 = arith.constant 0 : i32
    %c0_i32_1 = arith.constant 0 : i32
    return %c0_i32, %c0_i32_0 : i32, i32
  }
  func.func @transform_1(%arg0: i32) -> (i32, i32, i32) {
    %c0_i32 = arith.constant 0 : i32
    %c0_i32_0 = arith.constant 0 : i32
    %c0_i32_1 = arith.constant 0 : i32
    return %arg0, %c0_i32, %c0_i32_0 : i32, i32, i32
  }
  func.func @transform_2(%arg0: i32) -> (i32, i32) {
    %c0_i32 = arith.constant 0 : i32
    %c0_i32_0 = arith.constant 0 : i32
    %c0_i32_1 = arith.constant 0 : i32
    return %c0_i32, %c0_i32_0 : i32, i32
  }
  func.func @transform_3(%arg0: i32) -> (i32, i32) {
    %c0_i32 = arith.constant 0 : i32
    %c0_i32_0 = arith.constant 0 : i32
    %c0_i32_1 = arith.constant 0 : i32
    return %c0_i32, %c0_i32_0 : i32, i32
  }
  func.func @transform_4(%arg0: i32) -> (i32, i32) {
    %c0_i32 = arith.constant 0 : i32
    %c0_i32_0 = arith.constant 0 : i32
    %c0_i32_1 = arith.constant 0 : i32
    return %c0_i32, %c0_i32_0 : i32, i32
  }
  func.func @transform_5(%arg0: i32) -> (i32, i32) {
    %c0_i32 = arith.constant 0 : i32
    %c0_i32_0 = arith.constant 0 : i32
    %c0_i32_1 = arith.constant 0 : i32
    return %c0_i32, %c0_i32_0 : i32, i32
  }
  func.func @transform_6(%arg0: i32) -> (i32, i32) {
    %c0_i32 = arith.constant 0 : i32
    %c0_i32_0 = arith.constant 0 : i32
    %c0_i32_1 = arith.constant 0 : i32
    return %c0_i32, %c0_i32_0 : i32, i32
  }
  func.func @transform_7(%arg0: i32) -> (i32, i32) {
    %c0_i32 = arith.constant 0 : i32
    %c0_i32_0 = arith.constant 0 : i32
    %c0_i32_1 = arith.constant 0 : i32
    return %c0_i32, %c0_i32_0 : i32, i32
  }
  func.func @transform_8(%arg0: i32) -> (i32, i32) {
    %c0_i32 = arith.constant 0 : i32
    %c0_i32_0 = arith.constant 0 : i32
    %c0_i32_1 = arith.constant 0 : i32
    return %c0_i32, %c0_i32_0 : i32, i32
  }
  func.func @transform_9(%arg0: i32) -> (i32, i32, i32) {
    %c0_i32 = arith.constant 0 : i32
    %c0_i32_0 = arith.constant 0 : i32
    %c0_i32_1 = arith.constant 0 : i32
    return %arg0, %c0_i32, %c0_i32_0 : i32, i32, i32
  }
}

module attributes {stable_mosaic.version = 11 : i64} {
  func.func @_skipbn_add_chatt_kernel(%arg0: memref<2x32x512xf32, #tpu.memory_space<vmem>>, %arg1: memref<2x128x512xbf16, #tpu.memory_space<vmem>>, %arg2: memref<32x128xbf16, #tpu.memory_space<vmem>>, %arg3: memref<1x32x1xf32, #tpu.memory_space<vmem>>, %arg4: memref<1x32x1xf32, #tpu.memory_space<vmem>>, %arg5: memref<1x32x1xf32, #tpu.memory_space<vmem>>, %arg6: memref<32x2xf32, #tpu.memory_space<vmem>>, %arg7: memref<2x32xf32, #tpu.memory_space<vmem>>, %arg8: memref<2x32x512xf32, #tpu.memory_space<vmem>>, %arg9: memref<2x32x1xf32, #tpu.memory_space<vmem>>, %arg10: memref<2x2x512xbf16, #tpu.memory_space<vmem>>) attributes {dimension_semantics = [], scalar_prefetch = 0 : i64, scratch_operands = 0 : i64, tpu.core_type = #tpu.core_type<tc>} {
    %c0 = arith.constant 0 : index
    %c0_0 = arith.constant 0 : index
    %0 = vector.load %arg2[%c0, %c0_0] : memref<32x128xbf16, #tpu.memory_space<vmem>>, vector<32x128xbf16>
    %c0_1 = arith.constant 0 : index
    %c0_2 = arith.constant 0 : index
    %c0_3 = arith.constant 0 : index
    %1 = vector.load %arg1[%c0_1, %c0_2, %c0_3] : memref<2x128x512xbf16, #tpu.memory_space<vmem>>, vector<1x128x512xbf16>
    %2 = vector.shape_cast %1 : vector<1x128x512xbf16> to vector<128x512xbf16>
    %cst = arith.constant dense<0.000000e+00> : vector<32x512xf32>
    %3 = tpu.matmul %0, %2, %cst {dimension_numbers = #tpu.dot_dimension_numbers<[1], [0], [0], [1], [0, 0, 1, 1], [], []>} : vector<32x128xbf16>, vector<128x512xbf16>, vector<32x512xf32> -> vector<32x512xf32>
    %c0_4 = arith.constant 0 : index
    %c0_5 = arith.constant 0 : index
    %4 = vector.load %arg2[%c0_4, %c0_5] : memref<32x128xbf16, #tpu.memory_space<vmem>>, vector<32x128xbf16>
    %c1 = arith.constant 1 : index
    %c0_6 = arith.constant 0 : index
    %c0_7 = arith.constant 0 : index
    %5 = vector.load %arg1[%c1, %c0_6, %c0_7] : memref<2x128x512xbf16, #tpu.memory_space<vmem>>, vector<1x128x512xbf16>
    %6 = vector.shape_cast %5 : vector<1x128x512xbf16> to vector<128x512xbf16>
    %cst_8 = arith.constant dense<0.000000e+00> : vector<32x512xf32>
    %7 = tpu.matmul %4, %6, %cst_8 {dimension_numbers = #tpu.dot_dimension_numbers<[1], [0], [0], [1], [0, 0, 1, 1], [], []>} : vector<32x128xbf16>, vector<128x512xbf16>, vector<32x512xf32> -> vector<32x512xf32>
    %8 = vector.shape_cast %3 : vector<32x512xf32> to vector<1x32x512xf32>
    %9 = vector.shape_cast %7 : vector<32x512xf32> to vector<1x32x512xf32>
    %10 = tpu.concatenate %8, %9 in 0 : vector<1x32x512xf32>, vector<1x32x512xf32> -> vector<2x32x512xf32>
    %c0_9 = arith.constant 0 : index
    %c0_10 = arith.constant 0 : index
    %c0_11 = arith.constant 0 : index
    %11 = vector.load %arg3[%c0_9, %c0_10, %c0_11] : memref<1x32x1xf32, #tpu.memory_space<vmem>>, vector<1x32x1xf32>
    %12 = vector.broadcast %11 : vector<1x32x1xf32> to vector<2x32x512xf32>
    %13 = arith.addf %10, %12 : vector<2x32x512xf32>
    %cst_12 = arith.constant dense<0.000000e+00> : vector<2x32xf32>
    %14 = vector.multi_reduction <add>, %13, %cst_12 [2] : vector<2x32x512xf32> to vector<2x32xf32>
    %15 = vector.shape_cast %14 : vector<2x32xf32> to vector<2x32x1xf32>
    %cst_13 = arith.constant dense<0.000000e+00> : vector<32x1xf32>
    %16 = vector.multi_reduction <add>, %15, %cst_13 [0] : vector<2x32x1xf32> to vector<32x1xf32>
    %17 = vector.shape_cast %16 : vector<32x1xf32> to vector<1x32x1xf32>
    %cst_14 = arith.constant 1.024000e+03 : f32
    %18 = vector.broadcast %cst_14 : f32 to vector<1x32x1xf32>
    %19 = arith.divf %17, %18 : vector<1x32x1xf32>
    %20 = vector.broadcast %19 : vector<1x32x1xf32> to vector<2x32x512xf32>
    %21 = arith.subf %13, %20 : vector<2x32x512xf32>
    %22 = arith.mulf %21, %21 : vector<2x32x512xf32>
    %cst_15 = arith.constant dense<0.000000e+00> : vector<2x32xf32>
    %23 = vector.multi_reduction <add>, %22, %cst_15 [2] : vector<2x32x512xf32> to vector<2x32xf32>
    %24 = vector.shape_cast %23 : vector<2x32xf32> to vector<2x32x1xf32>
    %cst_16 = arith.constant dense<0.000000e+00> : vector<32x1xf32>
    %25 = vector.multi_reduction <add>, %24, %cst_16 [0] : vector<2x32x1xf32> to vector<32x1xf32>
    %26 = vector.shape_cast %25 : vector<32x1xf32> to vector<1x32x1xf32>
    %cst_17 = arith.constant 1.024000e+03 : f32
    %27 = vector.broadcast %cst_17 : f32 to vector<1x32x1xf32>
    %28 = arith.divf %26, %27 : vector<1x32x1xf32>
    %cst_18 = arith.constant 9.99999974E-6 : f32
    %29 = vector.broadcast %cst_18 : f32 to vector<1x32x1xf32>
    %30 = arith.addf %28, %29 : vector<1x32x1xf32>
    %31 = math.rsqrt %30 : vector<1x32x1xf32>
    %32 = vector.broadcast %31 : vector<1x32x1xf32> to vector<2x32x512xf32>
    %33 = arith.mulf %21, %32 : vector<2x32x512xf32>
    %c0_19 = arith.constant 0 : index
    %c0_20 = arith.constant 0 : index
    %c0_21 = arith.constant 0 : index
    %34 = vector.load %arg4[%c0_19, %c0_20, %c0_21] : memref<1x32x1xf32, #tpu.memory_space<vmem>>, vector<1x32x1xf32>
    %35 = vector.broadcast %34 : vector<1x32x1xf32> to vector<2x32x512xf32>
    %36 = arith.mulf %33, %35 : vector<2x32x512xf32>
    %c0_22 = arith.constant 0 : index
    %c0_23 = arith.constant 0 : index
    %c0_24 = arith.constant 0 : index
    %37 = vector.load %arg5[%c0_22, %c0_23, %c0_24] : memref<1x32x1xf32, #tpu.memory_space<vmem>>, vector<1x32x1xf32>
    %38 = vector.broadcast %37 : vector<1x32x1xf32> to vector<2x32x512xf32>
    %39 = arith.addf %36, %38 : vector<2x32x512xf32>
    %c0_25 = arith.constant 0 : index
    %c0_26 = arith.constant 0 : index
    %c0_27 = arith.constant 0 : index
    %40 = vector.load %arg0[%c0_25, %c0_26, %c0_27] : memref<2x32x512xf32, #tpu.memory_space<vmem>>, vector<2x32x512xf32>
    %41 = arith.addf %40, %39 : vector<2x32x512xf32>
    %c0_28 = arith.constant 0 : index
    %c0_29 = arith.constant 0 : index
    %c0_30 = arith.constant 0 : index
    %42 = vector.load %arg8[%c0_28, %c0_29, %c0_30] : memref<2x32x512xf32, #tpu.memory_space<vmem>>, vector<2x32x512xf32>
    tpu.vector_store %arg8[%c0_28, %c0_29, %c0_30], %41 {strides = array<i32>} : memref<2x32x512xf32, #tpu.memory_space<vmem>>, vector<2x32x512xf32>,
    %cst_31 = arith.constant dense<0.000000e+00> : vector<2x32xf32>
    %43 = vector.multi_reduction <add>, %41, %cst_31 [2] : vector<2x32x512xf32> to vector<2x32xf32>
    %cst_32 = arith.constant 5.120000e+02 : f32
    %44 = vector.broadcast %cst_32 : f32 to vector<2x32xf32>
    %45 = arith.divf %43, %44 : vector<2x32xf32>
    %cst_33 = arith.constant dense<0xFF800000> : vector<2x32xf32>
    %46 = vector.multi_reduction <maximumf>, %41, %cst_33 [2] : vector<2x32x512xf32> to vector<2x32xf32>
    %47 = vector.shape_cast %45 : vector<2x32xf32> to vector<2x32x1xf32>
    %c0_34 = arith.constant 0 : index
    %c0_35 = arith.constant 0 : index
    %48 = vector.load %arg6[%c0_34, %c0_35] : memref<32x2xf32, #tpu.memory_space<vmem>>, vector<32x2xf32>
    %49 = vector.shape_cast %48 : vector<32x2xf32> to vector<1x32x2xf32>
    %50 = vector.broadcast %47 : vector<2x32x1xf32> to vector<2x32x2xf32>
    %51 = vector.broadcast %49 : vector<1x32x2xf32> to vector<2x32x2xf32>
    %52 = arith.mulf %50, %51 : vector<2x32x2xf32>
    %cst_36 = arith.constant dense<0.000000e+00> : vector<2x2xf32>
    %53 = vector.multi_reduction <add>, %52, %cst_36 [1] : vector<2x32x2xf32> to vector<2x2xf32>
    %cst_37 = arith.constant 0.000000e+00 : f32
    %54 = vector.broadcast %cst_37 : f32 to vector<2x2xf32>
    %55 = arith.maximumf %53, %54 : vector<2x2xf32>
    %56 = vector.shape_cast %55 : vector<2x2xf32> to vector<2x2x1xf32>
    %c0_38 = arith.constant 0 : index
    %c0_39 = arith.constant 0 : index
    %57 = vector.load %arg7[%c0_38, %c0_39] : memref<2x32xf32, #tpu.memory_space<vmem>>, vector<2x32xf32>
    %58 = vector.shape_cast %57 : vector<2x32xf32> to vector<1x2x32xf32>
    %59 = vector.broadcast %56 : vector<2x2x1xf32> to vector<2x2x32xf32>
    %60 = vector.broadcast %58 : vector<1x2x32xf32> to vector<2x2x32xf32>
    %61 = arith.mulf %59, %60 : vector<2x2x32xf32>
    %cst_40 = arith.constant dense<0.000000e+00> : vector<2x32xf32>
    %62 = vector.multi_reduction <add>, %61, %cst_40 [1] : vector<2x2x32xf32> to vector<2x32xf32>
    %63 = vector.shape_cast %46 : vector<2x32xf32> to vector<2x32x1xf32>
    %c0_41 = arith.constant 0 : index
    %c0_42 = arith.constant 0 : index
    %64 = vector.load %arg6[%c0_41, %c0_42] : memref<32x2xf32, #tpu.memory_space<vmem>>, vector<32x2xf32>
    %65 = vector.shape_cast %64 : vector<32x2xf32> to vector<1x32x2xf32>
    %66 = vector.broadcast %63 : vector<2x32x1xf32> to vector<2x32x2xf32>
    %67 = vector.broadcast %65 : vector<1x32x2xf32> to vector<2x32x2xf32>
    %68 = arith.mulf %66, %67 : vector<2x32x2xf32>
    %cst_43 = arith.constant dense<0.000000e+00> : vector<2x2xf32>
    %69 = vector.multi_reduction <add>, %68, %cst_43 [1] : vector<2x32x2xf32> to vector<2x2xf32>
    %cst_44 = arith.constant 0.000000e+00 : f32
    %70 = vector.broadcast %cst_44 : f32 to vector<2x2xf32>
    %71 = arith.maximumf %69, %70 : vector<2x2xf32>
    %72 = vector.shape_cast %71 : vector<2x2xf32> to vector<2x2x1xf32>
    %c0_45 = arith.constant 0 : index
    %c0_46 = arith.constant 0 : index
    %73 = vector.load %arg7[%c0_45, %c0_46] : memref<2x32xf32, #tpu.memory_space<vmem>>, vector<2x32xf32>
    %74 = vector.shape_cast %73 : vector<2x32xf32> to vector<1x2x32xf32>
    %75 = vector.broadcast %72 : vector<2x2x1xf32> to vector<2x2x32xf32>
    %76 = vector.broadcast %74 : vector<1x2x32xf32> to vector<2x2x32xf32>
    %77 = arith.mulf %75, %76 : vector<2x2x32xf32>
    %cst_47 = arith.constant dense<0.000000e+00> : vector<2x32xf32>
    %78 = vector.multi_reduction <add>, %77, %cst_47 [1] : vector<2x2x32xf32> to vector<2x32xf32>
    %79 = arith.addf %62, %78 : vector<2x32xf32>
    %cst_48 = arith.constant 5.000000e-01 : f32
    %80 = vector.broadcast %cst_48 : f32 to vector<2x32xf32>
    %81 = arith.mulf %80, %79 : vector<2x32xf32>
    %82 = math.tanh %81 : vector<2x32xf32>
    %cst_49 = arith.constant 1.000000e+00 : f32
    %83 = vector.broadcast %cst_49 : f32 to vector<2x32xf32>
    %84 = arith.addf %82, %83 : vector<2x32xf32>
    %cst_50 = arith.constant 5.000000e-01 : f32
    %85 = vector.broadcast %cst_50 : f32 to vector<2x32xf32>
    %86 = arith.mulf %85, %84 : vector<2x32xf32>
    %87 = vector.shape_cast %86 : vector<2x32xf32> to vector<2x32x1xf32>
    %c0_51 = arith.constant 0 : index
    %c0_52 = arith.constant 0 : index
    %c0_53 = arith.constant 0 : index
    %88 = vector.load %arg9[%c0_51, %c0_52, %c0_53] : memref<2x32x1xf32, #tpu.memory_space<vmem>>, vector<2x32x1xf32>
    tpu.vector_store %arg9[%c0_51, %c0_52, %c0_53], %87 {strides = array<i32>} : memref<2x32x1xf32, #tpu.memory_space<vmem>>, vector<2x32x1xf32>,
    %89 = vector.shape_cast %86 : vector<2x32xf32> to vector<2x32x1xf32>
    %90 = vector.broadcast %89 : vector<2x32x1xf32> to vector<2x32x512xf32>
    %91 = arith.mulf %90, %41 : vector<2x32x512xf32>
    %cst_54 = arith.constant dense<0.000000e+00> : vector<2x512xf32>
    %92 = vector.multi_reduction <add>, %91, %cst_54 [1] : vector<2x32x512xf32> to vector<2x512xf32>
    %93 = vector.shape_cast %92 : vector<2x512xf32> to vector<2x1x512xf32>
    %cst_55 = arith.constant 3.200000e+01 : f32
    %94 = vector.broadcast %cst_55 : f32 to vector<2x1x512xf32>
    %95 = arith.divf %93, %94 : vector<2x1x512xf32>
    %cst_56 = arith.constant dense<0xFF800000> : vector<2x512xf32>
    %96 = vector.multi_reduction <maximumf>, %91, %cst_56 [1] : vector<2x32x512xf32> to vector<2x512xf32>
    %97 = vector.shape_cast %96 : vector<2x512xf32> to vector<2x1x512xf32>
    %98 = tpu.concatenate %95, %97 in 1 : vector<2x1x512xf32>, vector<2x1x512xf32> -> vector<2x2x512xf32>
    %99 = arith.truncf %98 : vector<2x2x512xf32> to vector<2x2x512xbf16>
    %c0_57 = arith.constant 0 : index
    %c0_58 = arith.constant 0 : index
    %c0_59 = arith.constant 0 : index
    %100 = vector.load %arg10[%c0_57, %c0_58, %c0_59] : memref<2x2x512xbf16, #tpu.memory_space<vmem>>, vector<2x2x512xbf16>
    tpu.vector_store %arg10[%c0_57, %c0_58, %c0_59], %99 {strides = array<i32>} : memref<2x2x512xbf16, #tpu.memory_space<vmem>>, vector<2x2x512xbf16>,
    return
  }
}

module attributes {stable_mosaic.version = 11 : i64} {
  func.func @_cbam_tail_kernel(%arg0: i32, %arg1: memref<8x112xbf16, #tpu.memory_space<vmem>>, %arg2: memref<1x32x512xf32, #tpu.memory_space<vmem>>, %arg3: memref<1x32x1xf32, #tpu.memory_space<vmem>>, %arg4: memref<1x112x512xbf16, #tpu.memory_space<vmem>>, %arg5: memref<1x32x512xf32, #tpu.memory_space<vmem>>) attributes {dimension_semantics = [#tpu.dimension_semantics<parallel>], iteration_bounds = array<i64: 2>, scalar_prefetch = 0 : i64, scratch_operands = 0 : i64, tpu.core_type = #tpu.core_type<tc>, window_params = [{pipeline_mode = #tpu.pipeline_mode<synchronous>, transform_indices = @transform_0, window_bounds = array<i64: 8, 112>}, {transform_indices = @transform_1, window_bounds = array<i64: 1, 32, 512>}, {transform_indices = @transform_2, window_bounds = array<i64: 1, 32, 1>}, {transform_indices = @transform_3, window_bounds = array<i64: 1, 112, 512>}, {transform_indices = @transform_4, window_bounds = array<i64: 1, 32, 512>}]} {
    %c0 = arith.constant 0 : index
    %c0_0 = arith.constant 0 : index
    %0 = vector.load %arg1[%c0, %c0_0] : memref<8x112xbf16, #tpu.memory_space<vmem>>, vector<8x112xbf16>
    %c0_1 = arith.constant 0 : index
    %c0_2 = arith.constant 0 : index
    %c0_3 = arith.constant 0 : index
    %1 = vector.load %arg4[%c0_1, %c0_2, %c0_3] : memref<1x112x512xbf16, #tpu.memory_space<vmem>>, vector<1x112x512xbf16>
    %2 = vector.shape_cast %1 : vector<1x112x512xbf16> to vector<112x512xbf16>
    %cst = arith.constant dense<0.000000e+00> : vector<8x512xf32>
    %3 = tpu.matmul %0, %2, %cst {dimension_numbers = #tpu.dot_dimension_numbers<[1], [0], [0], [1], [0, 0, 1, 1], [], []>} : vector<8x112xbf16>, vector<112x512xbf16>, vector<8x512xf32> -> vector<8x512xf32>
    %cst_4 = arith.constant 0.000000e+00 : f32
    %4 = vector.broadcast %cst_4 : f32 to vector<1x512xf32>
    %5 = vector.extract_strided_slice %3 {offsets = [0, 0], sizes = [1, 512], strides = [1, 1]} : vector<8x512xf32> to vector<1x512xf32>
    %cst_5 = arith.constant 0.000000e+00 : f32
    %6 = vector.broadcast %cst_5 : f32 to vector<1x192xf32>
    %7 = vector.extract_strided_slice %5 {offsets = [0, 0], sizes = [1, 320], strides = [1, 1]} : vector<1x512xf32> to vector<1x320xf32>
    %8 = tpu.concatenate %6, %7 in 1 : vector<1x192xf32>, vector<1x320xf32> -> vector<1x512xf32>
    %9 = arith.addf %4, %8 : vector<1x512xf32>
    %10 = vector.extract_strided_slice %3 {offsets = [1, 0], sizes = [1, 512], strides = [1, 1]} : vector<8x512xf32> to vector<1x512xf32>
    %cst_6 = arith.constant 0.000000e+00 : f32
    %11 = vector.broadcast %cst_6 : f32 to vector<1x128xf32>
    %12 = vector.extract_strided_slice %10 {offsets = [0, 0], sizes = [1, 384], strides = [1, 1]} : vector<1x512xf32> to vector<1x384xf32>
    %13 = tpu.concatenate %11, %12 in 1 : vector<1x128xf32>, vector<1x384xf32> -> vector<1x512xf32>
    %14 = arith.addf %9, %13 : vector<1x512xf32>
    %15 = vector.extract_strided_slice %3 {offsets = [2, 0], sizes = [1, 512], strides = [1, 1]} : vector<8x512xf32> to vector<1x512xf32>
    %cst_7 = arith.constant 0.000000e+00 : f32
    %16 = vector.broadcast %cst_7 : f32 to vector<1x64xf32>
    %17 = vector.extract_strided_slice %15 {offsets = [0, 0], sizes = [1, 448], strides = [1, 1]} : vector<1x512xf32> to vector<1x448xf32>
    %18 = tpu.concatenate %16, %17 in 1 : vector<1x64xf32>, vector<1x448xf32> -> vector<1x512xf32>
    %19 = arith.addf %14, %18 : vector<1x512xf32>
    %20 = vector.extract_strided_slice %3 {offsets = [3, 0], sizes = [1, 512], strides = [1, 1]} : vector<8x512xf32> to vector<1x512xf32>
    %21 = arith.addf %19, %20 : vector<1x512xf32>
    %22 = vector.extract_strided_slice %3 {offsets = [4, 0], sizes = [1, 512], strides = [1, 1]} : vector<8x512xf32> to vector<1x512xf32>
    %cst_8 = arith.constant 0.000000e+00 : f32
    %23 = vector.broadcast %cst_8 : f32 to vector<1x64xf32>
    %24 = vector.extract_strided_slice %22 {offsets = [0, 64], sizes = [1, 448], strides = [1, 1]} : vector<1x512xf32> to vector<1x448xf32>
    %25 = tpu.concatenate %24, %23 in 1 : vector<1x448xf32>, vector<1x64xf32> -> vector<1x512xf32>
    %26 = arith.addf %21, %25 : vector<1x512xf32>
    %27 = vector.extract_strided_slice %3 {offsets = [5, 0], sizes = [1, 512], strides = [1, 1]} : vector<8x512xf32> to vector<1x512xf32>
    %cst_9 = arith.constant 0.000000e+00 : f32
    %28 = vector.broadcast %cst_9 : f32 to vector<1x128xf32>
    %29 = vector.extract_strided_slice %27 {offsets = [0, 128], sizes = [1, 384], strides = [1, 1]} : vector<1x512xf32> to vector<1x384xf32>
    %30 = tpu.concatenate %29, %28 in 1 : vector<1x384xf32>, vector<1x128xf32> -> vector<1x512xf32>
    %31 = arith.addf %26, %30 : vector<1x512xf32>
    %32 = vector.extract_strided_slice %3 {offsets = [6, 0], sizes = [1, 512], strides = [1, 1]} : vector<8x512xf32> to vector<1x512xf32>
    %cst_10 = arith.constant 0.000000e+00 : f32
    %33 = vector.broadcast %cst_10 : f32 to vector<1x192xf32>
    %34 = vector.extract_strided_slice %32 {offsets = [0, 192], sizes = [1, 320], strides = [1, 1]} : vector<1x512xf32> to vector<1x320xf32>
    %35 = tpu.concatenate %34, %33 in 1 : vector<1x320xf32>, vector<1x192xf32> -> vector<1x512xf32>
    %36 = arith.addf %31, %35 : vector<1x512xf32>
    %c0_11 = arith.constant 0 : index
    %c0_12 = arith.constant 0 : index
    %c0_13 = arith.constant 0 : index
    %37 = vector.load %arg2[%c0_11, %c0_12, %c0_13] : memref<1x32x512xf32, #tpu.memory_space<vmem>>, vector<1x32x512xf32>
    %38 = vector.shape_cast %37 : vector<1x32x512xf32> to vector<32x512xf32>
    %c0_14 = arith.constant 0 : index
    %c0_15 = arith.constant 0 : index
    %c0_16 = arith.constant 0 : index
    %39 = vector.load %arg3[%c0_14, %c0_15, %c0_16] : memref<1x32x1xf32, #tpu.memory_space<vmem>>, vector<1x32x1xf32>
    %40 = vector.shape_cast %39 : vector<1x32x1xf32> to vector<32x1xf32>
    %41 = vector.broadcast %40 : vector<32x1xf32> to vector<32x512xf32>
    %42 = arith.mulf %41, %38 : vector<32x512xf32>
    %cst_17 = arith.constant 5.000000e-01 : f32
    %43 = vector.broadcast %cst_17 : f32 to vector<1x512xf32>
    %44 = arith.mulf %43, %36 : vector<1x512xf32>
    %45 = math.tanh %44 : vector<1x512xf32>
    %cst_18 = arith.constant 1.000000e+00 : f32
    %46 = vector.broadcast %cst_18 : f32 to vector<1x512xf32>
    %47 = arith.addf %45, %46 : vector<1x512xf32>
    %cst_19 = arith.constant 5.000000e-01 : f32
    %48 = vector.broadcast %cst_19 : f32 to vector<1x512xf32>
    %49 = arith.mulf %48, %47 : vector<1x512xf32>
    %50 = vector.broadcast %49 : vector<1x512xf32> to vector<32x512xf32>
    %51 = arith.mulf %50, %42 : vector<32x512xf32>
    %52 = arith.addf %51, %38 : vector<32x512xf32>
    %c0_20 = arith.constant 0 : index
    %c0_21 = arith.constant 0 : index
    %c0_22 = arith.constant 0 : index
    %53 = vector.load %arg5[%c0_20, %c0_21, %c0_22] : memref<1x32x512xf32, #tpu.memory_space<vmem>>, vector<1x32x512xf32>
    %54 = vector.shape_cast %53 : vector<1x32x512xf32> to vector<32x512xf32>
    %55 = vector.shape_cast %52 : vector<32x512xf32> to vector<1x32x512xf32>
    tpu.vector_store %arg5[%c0_20, %c0_21, %c0_22], %55 {strides = array<i32>} : memref<1x32x512xf32, #tpu.memory_space<vmem>>, vector<1x32x512xf32>,
    return
  }
  func.func @transform_0(%arg0: i32) -> (i32, i32) {
    %c0_i32 = arith.constant 0 : i32
    %c0_i32_0 = arith.constant 0 : i32
    %c0_i32_1 = arith.constant 0 : i32
    return %c0_i32, %c0_i32_0 : i32, i32
  }
  func.func @transform_1(%arg0: i32) -> (i32, i32, i32) {
    %c0_i32 = arith.constant 0 : i32
    %c0_i32_0 = arith.constant 0 : i32
    %c0_i32_1 = arith.constant 0 : i32
    return %arg0, %c0_i32, %c0_i32_0 : i32, i32, i32
  }
  func.func @transform_2(%arg0: i32) -> (i32, i32, i32) {
    %c0_i32 = arith.constant 0 : i32
    %c0_i32_0 = arith.constant 0 : i32
    %c0_i32_1 = arith.constant 0 : i32
    return %arg0, %c0_i32, %c0_i32_0 : i32, i32, i32
  }
  func.func @transform_3(%arg0: i32) -> (i32, i32, i32) {
    %c0_i32 = arith.constant 0 : i32
    %c0_i32_0 = arith.constant 0 : i32
    %c0_i32_1 = arith.constant 0 : i32
    return %arg0, %c0_i32, %c0_i32_0 : i32, i32, i32
  }
  func.func @transform_4(%arg0: i32) -> (i32, i32, i32) {
    %c0_i32 = arith.constant 0 : i32
    %c0_i32_0 = arith.constant 0 : i32
    %c0_i32_1 = arith.constant 0 : i32
    return %arg0, %c0_i32, %c0_i32_0 : i32, i32, i32
  }
}

</mosaic_0001>

<llo_original>
// kernel: encoder4_forward.5
$region0: #{encoder4_forward.5}
  #allocation0 [shape = 'u32[]', space=smem, size = 0x4, offset = 0x4, fixed_abs, tag = 'smem constant byte address 0x4 - core index']
  #allocation1 [shape = 'u32[144,128]{1,0:T(1,128)}', space=vmem, size = 0x12000, scoped, tag = 'internal scratch']
  %s0 = inlined_call_operand.vmem [shape: f32[2,16,512], index: 0, kind: input, shape index: {}]
  %s1 = inlined_call_operand.vmem [shape: f32[2,16,512], index: 1, kind: input, shape index: {}]
  %s2 = inlined_call_operand.vmem [shape: f32[2,16,512], index: 2, kind: input, shape index: {}]
  %s3 = inlined_call_operand.vmem [shape: f32[2,16,512], index: 3, kind: input, shape index: {}]
  %s4 = inlined_call_operand.vmem [shape: f32[2,16,512], index: 4, kind: input, shape index: {}]
  %s5 = inlined_call_operand.vmem [shape: f32[2,16,512], index: 5, kind: input, shape index: {}]
  %s6 = inlined_call_operand.vmem [shape: f32[2,16,512], index: 6, kind: input, shape index: {}]
  %s7 = inlined_call_operand.vmem [shape: f32[2,16,512], index: 7, kind: input, shape index: {}]
  %s8 = inlined_call_operand.vmem [shape: bf16[2,16,512], index: 8, kind: output, shape index: {}]
  %s9 = sld [smem:[#allocation0]]
  $region65: #{encoder4_forward.5} parent=0
    _
  %s11 = ssub.s32 1, %s9
  %s12 = scalar_select 0, %s11, %s9
  loop: start=0, step=1, limit=4
  $region2: #{encoder4_forward.5} parent=0 // loop_pre_header
    _
  $region3: #{encoder4_forward.5} parent=0 // loop_header
    %s14 = sphi 0, %s18
    %p15 = scmp.ge.s32.totalorder %s14, 4
    %s24 = sphi 0, %s26
    %s27 = sphi 0, %s24
    %s28 = sphi 0, %s27
    %s44 = sphi 0, %s28
    %s50 = sphi 0, %s52
    %s53 = sphi 0, %s50
    %s54 = sphi 0, %s53
    %s70 = sphi 0, %s54
    %s76 = sphi 0, %s78
    %s79 = sphi 0, %s76
    %s80 = sphi 0, %s79
    %s96 = sphi 0, %s80
    %s102 = sphi 0, %s104
    %s105 = sphi 0, %s102
    %s106 = sphi 0, %s105
    %s122 = sphi 0, %s106
    %s128 = sphi 0, %s130
    %s131 = sphi 0, %s128
    %s132 = sphi 0, %s131
    %s148 = sphi 0, %s132
    %s154 = sphi 0, %s156
    %s157 = sphi 0, %s154
    %s158 = sphi 0, %s157
    %s174 = sphi 0, %s158
    %s180 = sphi 0, %s182
    %s183 = sphi 0, %s180
    %s184 = sphi 0, %s183
    %s200 = sphi 0, %s184
    %s206 = sphi 0, %s208
    %s209 = sphi 0, %s206
    %s210 = sphi 0, %s209
    %s226 = sphi 0, %s210
    %s232 = sphi 0, %s234
    %s235 = sphi 0, %s232
    %s236 = sphi 0, %s235
    %s252 = sphi 0, %s236
  $region4: #{encoder4_forward.5} parent=0 // loop_header_branch
    %17 = sbr.rel (%p15) target = $region8
  $region5: #{encoder4_forward.5} parent=0 // loop_body
    %s19 = ssub.s32 %s14, 1
    %s20 = ssub.s32 %s14, 2
    %s21 = sadd.s32 %s14, 1
    %s22 = ssub.s32 %s14, %s21
    %p23 = scmp.eq.s32.totalorder %s22, 0
    %s25 = sadd.s32 %s24, 1
    %s26 = scalar_select %p23, %s24, %s25
    %p29 = pneg %p23
    %p30 = scmp.eq.s32.totalorder %s14, 1
    %p31 = por %p29, %p30
    %p32 = scmp.ne.s32.totalorder %s24, %s27
    %p33 = scmp.eq.s32.totalorder %s14, 0
    %p34 = por %p32, %p33
    %p35 = scmp.ne.s32.totalorder %s24, %s27
    %p36 = scmp.eq.s32.totalorder %s19, 1
    %p37 = por %p35, %p36
    %p38 = scmp.ne.s32.totalorder %s27, %s28
    %p39 = scmp.eq.s32.totalorder %s19, 0
    %p40 = por %p38, %p39
    %p41 = scmp.ne.s32.totalorder %s27, %s28
    %p42 = scmp.eq.s32.totalorder %s20, 1
    %p43 = por %p41, %p42
    %p45 = scmp.ne.s32.totalorder %s28, %s44
    %p46 = scmp.eq.s32.totalorder %s20, 0
    %p47 = por %p45, %p46
    %s48 = ssub.s32 %s14, %s21
    %p49 = scmp.eq.s32.totalorder %s48, 0
    %s51 = sadd.s32 %s50, 1
    %s52 = scalar_select %p49, %s50, %s51
    %p55 = pneg %p49
    %p56 = scmp.eq.s32.totalorder %s14, 1
    %p57 = por %p55, %p56
    %p58 = scmp.ne.s32.totalorder %s50, %s53
    %p59 = scmp.eq.s32.totalorder %s14, 0
    %p60 = por %p58, %p59
    %p61 = scmp.ne.s32.totalorder %s50, %s53
    %p62 = scmp.eq.s32.totalorder %s19, 1
    %p63 = por %p61, %p62
    %p64 = scmp.ne.s32.totalorder %s53, %s54
    %p65 = scmp.eq.s32.totalorder %s19, 0
    %p66 = por %p64, %p65
    %p67 = scmp.ne.s32.totalorder %s53, %s54
    %p68 = scmp.eq.s32.totalorder %s20, 1
    %p69 = por %p67, %p68
    %p71 = scmp.ne.s32.totalorder %s54, %s70
    %p72 = scmp.eq.s32.totalorder %s20, 0
    %p73 = por %p71, %p72
    %s74 = ssub.s32 %s14, %s21
    %p75 = scmp.eq.s32.totalorder %s74, 0
    %s77 = sadd.s32 %s76, 1
    %s78 = scalar_select %p75, %s76, %s77
    %p81 = pneg %p75
    %p82 = scmp.eq.s32.totalorder %s14, 1
    %p83 = por %p81, %p82
    %p84 = scmp.ne.s32.totalorder %s76, %s79
    %p85 = scmp.eq.s32.totalorder %s14, 0
    %p86 = por %p84, %p85
    %p87 = scmp.ne.s32.totalorder %s76, %s79
    %p88 = scmp.eq.s32.totalorder %s19, 1
    %p89 = por %p87, %p88
    %p90 = scmp.ne.s32.totalorder %s79, %s80
    %p91 = scmp.eq.s32.totalorder %s19, 0
    %p92 = por %p90, %p91
    %p93 = scmp.ne.s32.totalorder %s79, %s80
    %p94 = scmp.eq.s32.totalorder %s20, 1
    %p95 = por %p93, %p94
    %p97 = scmp.ne.s32.totalorder %s80, %s96
    %p98 = scmp.eq.s32.totalorder %s20, 0
    %p99 = por %p97, %p98
    %s100 = ssub.s32 %s14, %s21
    %p101 = scmp.eq.s32.totalorder %s100, 0
    %s103 = sadd.s32 %s102, 1
    %s104 = scalar_select %p101, %s102, %s103
    %p107 = pneg %p101
    %p108 = scmp.eq.s32.totalorder %s14, 1
    %p109 = por %p107, %p108
    %p110 = scmp.ne.s32.totalorder %s102, %s105
    %p111 = scmp.eq.s32.totalorder %s14, 0
    %p112 = por %p110, %p111
    %p113 = scmp.ne.s32.totalorder %s102, %s105
    %p114 = scmp.eq.s32.totalorder %s19, 1
    %p115 = por %p113, %p114
    %p116 = scmp.ne.s32.totalorder %s105, %s106
    %p117 = scmp.eq.s32.totalorder %s19, 0
    %p118 = por %p116, %p117
    %p119 = scmp.ne.s32.totalorder %s105, %s106
    %p120 = scmp.eq.s32.totalorder %s20, 1
    %p121 = por %p119, %p120
    %p123 = scmp.ne.s32.totalorder %s106, %s122
    %p124 = scmp.eq.s32.totalorder %s20, 0
    %p125 = por %p123, %p124
    %s126 = ssub.s32 %s14, %s21
    %p127 = scmp.eq.s32.totalorder %s126, 0
    %s129 = sadd.s32 %s128, 1
    %s130 = scalar_select %p127, %s128, %s129
    %p133 = pneg %p127
    %p134 = scmp.eq.s32.totalorder %s14, 1
    %p135 = por %p133, %p134
    %p136 = scmp.ne.s32.totalorder %s128, %s131
    %p137 = scmp.eq.s32.totalorder %s14, 0
    %p138 = por %p136, %p137
    %p139 = scmp.ne.s32.totalorder %s128, %s131
    %p140 = scmp.eq.s32.totalorder %s19, 1
    %p141 = por %p139, %p140
    %p142 = scmp.ne.s32.totalorder %s131, %s132
    %p143 = scmp.eq.s32.totalorder %s19, 0
    %p144 = por %p142, %p143
    %p145 = scmp.ne.s32.totalorder %s131, %s132
    %p146 = scmp.eq.s32.totalorder %s20, 1
    %p147 = por %p145, %p146
    %p149 = scmp.ne.s32.totalorder %s132, %s148
    %p150 = scmp.eq.s32.totalorder %s20, 0
    %p151 = por %p149, %p150
    %s152 = ssub.s32 %s14, %s21
    %p153 = scmp.eq.s32.totalorder %s152, 0
    %s155 = sadd.s32 %s154, 1
    %s156 = scalar_select %p153, %s154, %s155
    %p159 = pneg %p153
    %p160 = scmp.eq.s32.totalorder %s14, 1
    %p161 = por %p159, %p160
    %p162 = scmp.ne.s32.totalorder %s154, %s157
    %p163 = scmp.eq.s32.totalorder %s14, 0
    %p164 = por %p162, %p163
    %p165 = scmp.ne.s32.totalorder %s154, %s157
    %p166 = scmp.eq.s32.totalorder %s19, 1
    %p167 = por %p165, %p166
    %p168 = scmp.ne.s32.totalorder %s157, %s158
    %p169 = scmp.eq.s32.totalorder %s19, 0
    %p170 = por %p168, %p169
    %p171 = scmp.ne.s32.totalorder %s157, %s158
    %p172 = scmp.eq.s32.totalorder %s20, 1
    %p173 = por %p171, %p172
    %p175 = scmp.ne.s32.totalorder %s158, %s174
    %p176 = scmp.eq.s32.totalorder %s20, 0
    %p177 = por %p175, %p176
    %s178 = ssub.s32 %s14, %s21
    %p179 = scmp.eq.s32.totalorder %s178, 0
    %s181 = sadd.s32 %s180, 1
    %s182 = scalar_select %p179, %s180, %s181
    %p185 = pneg %p179
    %p186 = scmp.eq.s32.totalorder %s14, 1
    %p187 = por %p185, %p186
    %p188 = scmp.ne.s32.totalorder %s180, %s183
    %p189 = scmp.eq.s32.totalorder %s14, 0
    %p190 = por %p188, %p189
    %p191 = scmp.ne.s32.totalorder %s180, %s183
    %p192 = scmp.eq.s32.totalorder %s19, 1
    %p193 = por %p191, %p192
    %p194 = scmp.ne.s32.totalorder %s183, %s184
    %p195 = scmp.eq.s32.totalorder %s19, 0
    %p196 = por %p194, %p195
    %p197 = scmp.ne.s32.totalorder %s183, %s184
    %p198 = scmp.eq.s32.totalorder %s20, 1
    %p199 = por %p197, %p198
    %p201 = scmp.ne.s32.totalorder %s184, %s200
    %p202 = scmp.eq.s32.totalorder %s20, 0
    %p203 = por %p201, %p202
    %s204 = ssub.s32 %s14, %s21
    %p205 = scmp.eq.s32.totalorder %s204, 0
    %s207 = sadd.s32 %s206, 1
    %s208 = scalar_select %p205, %s206, %s207
    %p211 = pneg %p205
    %p212 = scmp.eq.s32.totalorder %s14, 1
    %p213 = por %p211, %p212
    %p214 = scmp.ne.s32.totalorder %s206, %s209
    %p215 = scmp.eq.s32.totalorder %s14, 0
    %p216 = por %p214, %p215
    %p217 = scmp.ne.s32.totalorder %s206, %s209
    %p218 = scmp.eq.s32.totalorder %s19, 1
    %p219 = por %p217, %p218
    %p220 = scmp.ne.s32.totalorder %s209, %s210
    %p221 = scmp.eq.s32.totalorder %s19, 0
    %p222 = por %p220, %p221
    %p223 = scmp.ne.s32.totalorder %s209, %s210
    %p224 = scmp.eq.s32.totalorder %s20, 1
    %p225 = por %p223, %p224
    %p227 = scmp.ne.s32.totalorder %s210, %s226
    %p228 = scmp.eq.s32.totalorder %s20, 0
    %p229 = por %p227, %p228
    %s230 = ssub.s32 %s14, %s21
    %p231 = scmp.eq.s32.totalorder %s230, 0
    %s233 = sadd.s32 %s232, 1
    %s234 = scalar_select %p231, %s232, %s233
    %p237 = pneg %p231
    %p238 = scmp.eq.s32.totalorder %s14, 1
    %p239 = por %p237, %p238
    %p240 = scmp.ne.s32.totalorder %s232, %s235
    %p241 = scmp.eq.s32.totalorder %s14, 0
    %p242 = por %p240, %p241
    %p243 = scmp.ne.s32.totalorder %s232, %s235
    %p244 = scmp.eq.s32.totalorder %s19, 1
    %p245 = por %p243, %p244
    %p246 = scmp.ne.s32.totalorder %s235, %s236
    %p247 = scmp.eq.s32.totalorder %s19, 0
    %p248 = por %p246, %p247
    %p249 = scmp.ne.s32.totalorder %s235, %s236
    %p250 = scmp.eq.s32.totalorder %s20, 1
    %p251 = por %p249, %p250
    %p253 = scmp.ne.s32.totalorder %s236, %s252
    %p254 = scmp.eq.s32.totalorder %s20, 0
    %p255 = por %p253, %p254
    %p256 = scmp.le.s32.totalorder 1, %s14
    %p257 = scmp.lt.s32.totalorder %s14, 3
    %p258 = pnand %p256, %p257
    %p259 = pneg %p258
    // Predicated region
    $region9: #{encoder4_forward.5} parent=5 // pred_check
      _
    $region10: #{encoder4_forward.5} parent=5 // pred_check_branch
      %261 = sbr.rel (%p258) target = $region12
    $region11: #{encoder4_forward.5} parent=5 // pred_region
      %s262 = ssub.s32 %s14, 1
    $region12: #{encoder4_forward.5} parent=5 // pred_fallthru
      _
    %p263 = scmp.lt.s32.totalorder %s14, 2
    // Predicated region
    $region13: #{encoder4_forward.5} parent=5 // pred_check
      %p264 = pneg %p263
    $region14: #{encoder4_forward.5} parent=5 // pred_check_branch
      %266 = sbr.rel (%p264) target = $region16
    $region15: #{encoder4_forward.5} parent=5 // pred_region
      // Predicated region
      $region17: #{encoder4_forward.5} parent=15 // pred_check
        %p267 = pneg %p34
      $region18: #{encoder4_forward.5} parent=15 // pred_check_branch
        %269 = sbr.rel (%p267) target = $region20
      $region19: #{encoder4_forward.5} parent=15 // pred_region
        %p270 = scmp.lt.s32.totalorder %s14, 1
        %s271 = scalar_select %p270, %s14, 1
        %s272 = smul.addr %s271, 8
        %s273 = smul.addr %s272, 8
        %s274 = scalar_lea.vmem %s0, %s273
      $region20: #{encoder4_forward.5} parent=15 // pred_fallthru
        _
      // Predicated region
      $region21: #{encoder4_forward.5} parent=15 // pred_check
        %p275 = pneg %p60
      $region22: #{encoder4_forward.5} parent=15 // pred_check_branch
        %277 = sbr.rel (%p275) target = $region24
      $region23: #{encoder4_forward.5} parent=15 // pred_region
        %p278 = scmp.lt.s32.totalorder %s14, 1
        %s279 = scalar_select %p278, %s14, 1
        %s280 = smul.addr %s279, 8
        %s281 = smul.addr %s280, 8
        %s282 = scalar_lea.vmem %s1, %s281
      $region24: #{encoder4_forward.5} parent=15 // pred_fallthru
        _
      // Predicated region
      $region25: #{encoder4_forward.5} parent=15 // pred_check
        %p283 = pneg %p86
      $region26: #{encoder4_forward.5} parent=15 // pred_check_branch
        %285 = sbr.rel (%p283) target = $region28
      $region27: #{encoder4_forward.5} parent=15 // pred_region
        %p286 = scmp.lt.s32.totalorder %s14, 1
        %s287 = scalar_select %p286, %s14, 1
        %s288 = smul.addr %s287, 8
        %s289 = smul.addr %s288, 8
        %s290 = scalar_lea.vmem %s2, %s289
      $region28: #{encoder4_forward.5} parent=15 // pred_fallthru
        _
      // Predicated region
      $region29: #{encoder4_forward.5} parent=15 // pred_check
        %p291 = pneg %p112
      $region30: #{encoder4_forward.5} parent=15 // pred_check_branch
        %293 = sbr.rel (%p291) target = $region32
      $region31: #{encoder4_forward.5} parent=15 // pred_region
        %p294 = scmp.lt.s32.totalorder %s14, 1
        %s295 = scalar_select %p294, %s14, 1
        %s296 = smul.addr %s295, 8
        %s297 = smul.addr %s296, 8
        %s298 = scalar_lea.vmem %s3, %s297
      $region32: #{encoder4_forward.5} parent=15 // pred_fallthru
        _
      // Predicated region
      $region33: #{encoder4_forward.5} parent=15 // pred_check
        %p299 = pneg %p138
      $region34: #{encoder4_forward.5} parent=15 // pred_check_branch
        %301 = sbr.rel (%p299) target = $region36
      $region35: #{encoder4_forward.5} parent=15 // pred_region
        %p302 = scmp.lt.s32.totalorder %s14, 1
        %s303 = scalar_select %p302, %s14, 1
        %s304 = smul.addr %s303, 8
        %s305 = smul.addr %s304, 8
        %s306 = scalar_lea.vmem %s4, %s305
      $region36: #{encoder4_forward.5} parent=15 // pred_fallthru
        _
      // Predicated region
      $region37: #{encoder4_forward.5} parent=15 // pred_check
        %p307 = pneg %p164
      $region38: #{encoder4_forward.5} parent=15 // pred_check_branch
        %309 = sbr.rel (%p307) target = $region40
      $region39: #{encoder4_forward.5} parent=15 // pred_region
        %p310 = scmp.lt.s32.totalorder %s14, 1
        %s311 = scalar_select %p310, %s14, 1
        %s312 = smul.addr %s311, 8
        %s313 = smul.addr %s312, 8
        %s314 = scalar_lea.vmem %s5, %s313
      $region40: #{encoder4_forward.5} parent=15 // pred_fallthru
        _
      // Predicated region
      $region41: #{encoder4_forward.5} parent=15 // pred_check
        %p315 = pneg %p190
      $region42: #{encoder4_forward.5} parent=15 // pred_check_branch
        %317 = sbr.rel (%p315) target = $region44
      $region43: #{encoder4_forward.5} parent=15 // pred_region
        %p318 = scmp.lt.s32.totalorder %s14, 1
        %s319 = scalar_select %p318, %s14, 1
        %s320 = smul.addr %s319, 8
        %s321 = smul.addr %s320, 8
        %s322 = scalar_lea.vmem %s6, %s321
      $region44: #{encoder4_forward.5} parent=15 // pred_fallthru
        _
      // Predicated region
      $region45: #{encoder4_forward.5} parent=15 // pred_check
        %p323 = pneg %p216
      $region46: #{encoder4_forward.5} parent=15 // pred_check_branch
        %325 = sbr.rel (%p323) target = $region48
      $region47: #{encoder4_forward.5} parent=15 // pred_region
        %p326 = scmp.lt.s32.totalorder %s14, 1
        %s327 = scalar_select %p326, %s14, 1
        %s328 = smul.addr %s327, 8
        %s329 = smul.addr %s328, 8
        %s330 = scalar_lea.vmem %s7, %s329
      $region48: #{encoder4_forward.5} parent=15 // pred_fallthru
        _
    $region16: #{encoder4_forward.5} parent=5 // pred_fallthru
      _
    %p331 = scmp.le.s32.totalorder 1, %s14
    %p332 = scmp.lt.s32.totalorder %s14, 3
    %p333 = pnand %p331, %p332
    %p334 = pneg %p333
    // Predicated region
    $region49: #{encoder4_forward.5} parent=5 // pred_check
      _
    $region50: #{encoder4_forward.5} parent=5 // pred_check_branch
      %336 = sbr.rel (%p333) target = $region52
    $region51: #{encoder4_forward.5} parent=5 // pred_region
      %s337 = ssub.s32 %s14, 1
      %p338 = scmp.lt.s32.totalorder %s19, 1
      %s339 = scalar_select %p338, %s19, 1
      %s340 = smul.addr %s339, 8
      %s341 = smul.addr %s340, 8
      %s342 = scalar_lea.vmem %s0, %s341
      %p343 = pneg %p40
      %p344 = pneg %p37
      %p345 = scmp.lt.s32.totalorder %s19, 1
      %s346 = scalar_select %p345, %s19, 1
      %s347 = smul.addr %s346, 8
      %s348 = smul.addr %s347, 8
      %s349 = scalar_lea.vmem %s1, %s348
      %p350 = pneg %p66
      %p351 = pneg %p63
      %p352 = scmp.lt.s32.totalorder %s19, 1
      %s353 = scalar_select %p352, %s19, 1
      %s354 = smul.addr %s353, 8
      %s355 = smul.addr %s354, 8
      %s356 = scalar_lea.vmem %s2, %s355
      %p357 = pneg %p92
      %p358 = pneg %p89
      %p359 = scmp.lt.s32.totalorder %s19, 1
      %s360 = scalar_select %p359, %s19, 1
      %s361 = smul.addr %s360, 8
      %s362 = smul.addr %s361, 8
      %s363 = scalar_lea.vmem %s3, %s362
      %p364 = pneg %p118
      %p365 = pneg %p115
      %p366 = scmp.lt.s32.totalorder %s19, 1
      %s367 = scalar_select %p366, %s19, 1
      %s368 = smul.addr %s367, 8
      %s369 = smul.addr %s368, 8
      %s370 = scalar_lea.vmem %s4, %s369
      %p371 = pneg %p144
      %p372 = pneg %p141
      %p373 = scmp.lt.s32.totalorder %s19, 1
      %s374 = scalar_select %p373, %s19, 1
      %s375 = smul.addr %s374, 8
      %s376 = smul.addr %s375, 8
      %s377 = scalar_lea.vmem %s5, %s376
      %p378 = pneg %p170
      %p379 = pneg %p167
      %p380 = scmp.lt.s32.totalorder %s19, 1
      %s381 = scalar_select %p380, %s19, 1
      %s382 = smul.addr %s381, 8
      %s383 = smul.addr %s382, 8
      %s384 = scalar_lea.vmem %s6, %s383
      %p385 = pneg %p196
      %p386 = pneg %p193
      %p387 = scmp.lt.s32.totalorder %s19, 1
      %s388 = scalar_select %p387, %s19, 1
      %s389 = smul.addr %s388, 8
      %s390 = smul.addr %s389, 8
      %s391 = scalar_lea.vmem %s7, %s390
      %p392 = pneg %p222
      %p393 = pneg %p219
      %p394 = pneg %p248
      %p395 = pneg %p245
      %p396 = scmp.lt.s32.totalorder %s19, 1
      %s397 = scalar_select %p396, %s19, 1
      %s398 = smul.addr %s397, 8
      %s399 = smul.addr %s398, 4
      %s400 = scalar_lea.vmem %s8, %s399
      %p401 = scmp.lt.s32.totalorder %s19, 1
      %s402 = scalar_select %p401, %s19, 1
      %s403 = smul.addr %s402, 8
      %s404 = smul.addr %s403, 8
      %s405 = scalar_lea.vmem %s0, %s404
      %p406 = scmp.lt.s32.totalorder %s19, 1
      %s407 = scalar_select %p406, %s19, 1
      %s408 = smul.addr %s407, 8
      %s409 = smul.addr %s408, 8
      %s410 = scalar_lea.vmem %s1, %s409
      %p411 = scmp.lt.s32.totalorder %s19, 1
      %s412 = scalar_select %p411, %s19, 1
      %s413 = smul.addr %s412, 8
      %s414 = smul.addr %s413, 8
      %s415 = scalar_lea.vmem %s2, %s414
      %p416 = scmp.lt.s32.totalorder %s19, 1
      %s417 = scalar_select %p416, %s19, 1
      %s418 = smul.addr %s417, 8
      %s419 = smul.addr %s418, 8
      %s420 = scalar_lea.vmem %s3, %s419
      %p421 = scmp.lt.s32.totalorder %s19, 1
      %s422 = scalar_select %p421, %s19, 1
      %s423 = smul.addr %s422, 8
      %s424 = smul.addr %s423, 8
      %s425 = scalar_lea.vmem %s4, %s424
      %p426 = scmp.lt.s32.totalorder %s19, 1
      %s427 = scalar_select %p426, %s19, 1
      %s428 = smul.addr %s427, 8
      %s429 = smul.addr %s428, 8
      %s430 = scalar_lea.vmem %s5, %s429
      %p431 = scmp.lt.s32.totalorder %s19, 1
      %s432 = scalar_select %p431, %s19, 1
      %s433 = smul.addr %s432, 8
      %s434 = smul.addr %s433, 8
      %s435 = scalar_lea.vmem %s6, %s434
      %p436 = scmp.lt.s32.totalorder %s19, 1
      %s437 = scalar_select %p436, %s19, 1
      %s438 = smul.addr %s437, 8
      %s439 = smul.addr %s438, 8
      %s440 = scalar_lea.vmem %s7, %s439
      %p441 = scmp.lt.s32.totalorder %s19, 1
      %s442 = scalar_select %p441, %s19, 1
      %s443 = smul.addr %s442, 8
      %s444 = smul.addr %s443, 4
      %s445 = scalar_lea.vmem %s8, %s444
      %v446 = vld [vmem:[%s405] sm:$0xff]
      %v447 = vld [vmem:[%s405 + $0x8] sm:$0xff]
      %v448 = vld [vmem:[%s405 + $0x10] sm:$0xff]
      %v449 = vld [vmem:[%s405 + $0x18] sm:$0xff]
      %v450 = vld [vmem:[%s405 + $0x20] sm:$0xff]
      %v451 = vld [vmem:[%s405 + $0x28] sm:$0xff]
      %v452 = vld [vmem:[%s405 + $0x30] sm:$0xff]
      %v453 = vld [vmem:[%s405 + $0x38] sm:$0xff]
      %v454 = vld [vmem:[%s410] sm:$0xff]
      %v455 = vld [vmem:[%s410 + $0x8] sm:$0xff]
      %v456 = vld [vmem:[%s410 + $0x10] sm:$0xff]
      %v457 = vld [vmem:[%s410 + $0x18] sm:$0xff]
      %v458 = vld [vmem:[%s410 + $0x20] sm:$0xff]
      %v459 = vld [vmem:[%s410 + $0x28] sm:$0xff]
      %v460 = vld [vmem:[%s410 + $0x30] sm:$0xff]
      %v461 = vld [vmem:[%s410 + $0x38] sm:$0xff]
      %v462 = vmax.f32 %v446, %v454
      %v463 = vmax.f32 %v447, %v455
      %v464 = vmax.f32 %v448, %v456
      %v465 = vmax.f32 %v449, %v457
      %v466 = vmax.f32 %v450, %v458
      %v467 = vmax.f32 %v451, %v459
      %v468 = vmax.f32 %v452, %v460
      %v469 = vmax.f32 %v453, %v461
      %v470 = vld [vmem:[%s415] sm:$0xff]
      %v471 = vld [vmem:[%s415 + $0x8] sm:$0xff]
      %v472 = vld [vmem:[%s415 + $0x10] sm:$0xff]
      %v473 = vld [vmem:[%s415 + $0x18] sm:$0xff]
      %v474 = vld [vmem:[%s415 + $0x20] sm:$0xff]
      %v475 = vld [vmem:[%s415 + $0x28] sm:$0xff]
      %v476 = vld [vmem:[%s415 + $0x30] sm:$0xff]
      %v477 = vld [vmem:[%s415 + $0x38] sm:$0xff]
      %v478 = vmax.f32 %v462, %v470
      %v479 = vmax.f32 %v463, %v471
      %v480 = vmax.f32 %v464, %v472
      %v481 = vmax.f32 %v465, %v473
      %v482 = vmax.f32 %v466, %v474
      %v483 = vmax.f32 %v467, %v475
      %v484 = vmax.f32 %v468, %v476
      %v485 = vmax.f32 %v469, %v477
      %v486 = vld [vmem:[%s420] sm:$0xff]
      %v487 = vld [vmem:[%s420 + $0x8] sm:$0xff]
      %v488 = vld [vmem:[%s420 + $0x10] sm:$0xff]
      %v489 = vld [vmem:[%s420 + $0x18] sm:$0xff]
      %v490 = vld [vmem:[%s420 + $0x20] sm:$0xff]
      %v491 = vld [vmem:[%s420 + $0x28] sm:$0xff]
      %v492 = vld [vmem:[%s420 + $0x30] sm:$0xff]
      %v493 = vld [vmem:[%s420 + $0x38] sm:$0xff]
      %v494 = vmax.f32 %v478, %v486
      %v495 = vmax.f32 %v479, %v487
      %v496 = vmax.f32 %v480, %v488
      %v497 = vmax.f32 %v481, %v489
      %v498 = vmax.f32 %v482, %v490
      %v499 = vmax.f32 %v483, %v491
      %v500 = vmax.f32 %v484, %v492
      %v501 = vmax.f32 %v485, %v493
      %v502 = vld [vmem:[%s425] sm:$0xff]
      %v503 = vld [vmem:[%s425 + $0x8] sm:$0xff]
      %v504 = vld [vmem:[%s425 + $0x10] sm:$0xff]
      %v505 = vld [vmem:[%s425 + $0x18] sm:$0xff]
      %v506 = vld [vmem:[%s425 + $0x20] sm:$0xff]
      %v507 = vld [vmem:[%s425 + $0x28] sm:$0xff]
      %v508 = vld [vmem:[%s425 + $0x30] sm:$0xff]
      %v509 = vld [vmem:[%s425 + $0x38] sm:$0xff]
      %v510 = vmax.f32 %v494, %v502
      %v511 = vmax.f32 %v495, %v503
      %v512 = vmax.f32 %v496, %v504
      %v513 = vmax.f32 %v497, %v505
      %v514 = vmax.f32 %v498, %v506
      %v515 = vmax.f32 %v499, %v507
      %v516 = vmax.f32 %v500, %v508
      %v517 = vmax.f32 %v501, %v509
      %v518 = vld [vmem:[%s430] sm:$0xff]
      %v519 = vld [vmem:[%s430 + $0x8] sm:$0xff]
      %v520 = vld [vmem:[%s430 + $0x10] sm:$0xff]
      %v521 = vld [vmem:[%s430 + $0x18] sm:$0xff]
      %v522 = vld [vmem:[%s430 + $0x20] sm:$0xff]
      %v523 = vld [vmem:[%s430 + $0x28] sm:$0xff]
      %v524 = vld [vmem:[%s430 + $0x30] sm:$0xff]
      %v525 = vld [vmem:[%s430 + $0x38] sm:$0xff]
      %v526 = vmax.f32 %v510, %v518
      %v527 = vmax.f32 %v511, %v519
      %v528 = vmax.f32 %v512, %v520
      %v529 = vmax.f32 %v513, %v521
      %v530 = vmax.f32 %v514, %v522
      %v531 = vmax.f32 %v515, %v523
      %v532 = vmax.f32 %v516, %v524
      %v533 = vmax.f32 %v517, %v525
      %v534 = vld [vmem:[%s435] sm:$0xff]
      %v535 = vld [vmem:[%s435 + $0x8] sm:$0xff]
      %v536 = vld [vmem:[%s435 + $0x10] sm:$0xff]
      %v537 = vld [vmem:[%s435 + $0x18] sm:$0xff]
      %v538 = vld [vmem:[%s435 + $0x20] sm:$0xff]
      %v539 = vld [vmem:[%s435 + $0x28] sm:$0xff]
      %v540 = vld [vmem:[%s435 + $0x30] sm:$0xff]
      %v541 = vld [vmem:[%s435 + $0x38] sm:$0xff]
      %v542 = vmax.f32 %v526, %v534
      %v543 = vmax.f32 %v527, %v535
      %v544 = vmax.f32 %v528, %v536
      %v545 = vmax.f32 %v529, %v537
      %v546 = vmax.f32 %v530, %v538
      %v547 = vmax.f32 %v531, %v539
      %v548 = vmax.f32 %v532, %v540
      %v549 = vmax.f32 %v533, %v541
      %v550 = vld [vmem:[%s440] sm:$0xff]
      %v551 = vld [vmem:[%s440 + $0x8] sm:$0xff]
      %v552 = vld [vmem:[%s440 + $0x10] sm:$0xff]
      %v553 = vld [vmem:[%s440 + $0x18] sm:$0xff]
      %v554 = vld [vmem:[%s440 + $0x20] sm:$0xff]
      %v555 = vld [vmem:[%s440 + $0x28] sm:$0xff]
      %v556 = vld [vmem:[%s440 + $0x30] sm:$0xff]
      %v557 = vld [vmem:[%s440 + $0x38] sm:$0xff]
      %v558 = vmax.f32 %v542, %v550
      %v559 = vmax.f32 %v543, %v551
      %v560 = vmax.f32 %v544, %v552
      %v561 = vmax.f32 %v545, %v553
      %v562 = vmax.f32 %v546, %v554
      %v563 = vmax.f32 %v547, %v555
      %v564 = vmax.f32 %v548, %v556
      %v565 = vmax.f32 %v549, %v557
      %v566 = vpack.c.bf16 %v562, %v558
      %v567 = vpack.c.bf16 %v563, %v559
      %v568 = vpack.c.bf16 %v564, %v560
      %v569 = vpack.c.bf16 %v565, %v561
      %v574 = vunpack.c.l.b16 %v566
      %v575 = vunpack.c.l.b16 %v567
      %v576 = vunpack.c.l.b16 %v568
      %v577 = vunpack.c.l.b16 %v569
      %v578 = vunpack.c.h.b16 %v566
      %v579 = vunpack.c.h.b16 %v567
      %v580 = vunpack.c.h.b16 %v568
      %v581 = vunpack.c.h.b16 %v569
      %v582 = vpack.c.b16 %v575, %v574
      %v583 = vpack.c.b16 %v577, %v576
      %v584 = vpack.c.b16 %v579, %v578
      %v585 = vpack.c.b16 %v581, %v580
      %590 = vst [vmem:[%s445] sm:$0xff] %v582
      %591 = vst [vmem:[%s445 + $0x8] sm:$0xff] %v583
      %592 = vst [vmem:[%s445 + $0x10] sm:$0xff] %v584
      %593 = vst [vmem:[%s445 + $0x18] sm:$0xff] %v585
      %p594 = scmp.lt.s32.totalorder %s19, 1
      %s595 = scalar_select %p594, %s19, 1
      %s596 = smul.addr %s595, 8
      %s597 = smul.addr %s596, 4
      %s598 = scalar_lea.vmem %s8, %s597
      // Predicated region
      $region53: #{encoder4_forward.5} parent=51 // pred_check
        %p599 = pneg %p245
      $region54: #{encoder4_forward.5} parent=51 // pred_check_branch
        %601 = sbr.rel (%p599) target = $region56
      $region55: #{encoder4_forward.5} parent=51 // pred_region
        _
      $region56: #{encoder4_forward.5} parent=51 // pred_fallthru
        _
    $region52: #{encoder4_forward.5} parent=5 // pred_fallthru
      _
    %p602 = scmp.le.s32.totalorder 2, %s14
    // Predicated region
    $region57: #{encoder4_forward.5} parent=5 // pred_check
      %p603 = pneg %p602
    $region58: #{encoder4_forward.5} parent=5 // pred_check_branch
      %605 = sbr.rel (%p603) target = $region60
    $region59: #{encoder4_forward.5} parent=5 // pred_region
      %s606 = ssub.s32 %s14, 2
      // Predicated region
      $region61: #{encoder4_forward.5} parent=59 // pred_check
        %p607 = pneg %p251
      $region62: #{encoder4_forward.5} parent=59 // pred_check_branch
        %609 = sbr.rel (%p607) target = $region64
      $region63: #{encoder4_forward.5} parent=59 // pred_region
        %p610 = scmp.lt.s32.totalorder %s20, 1
        %s611 = scalar_select %p610, %s20, 1
        %s612 = smul.addr %s611, 8
        %s613 = smul.addr %s612, 4
        %s614 = scalar_lea.vmem %s8, %s613
      $region64: #{encoder4_forward.5} parent=59 // pred_fallthru
        _
    $region60: #{encoder4_forward.5} parent=5 // pred_fallthru
      _
  $region6: #{encoder4_forward.5} parent=0 // loop_footer
    %s18 = sadd.s32 1, %s14
  $region7: #{encoder4_forward.5} parent=0 // loop_footer_branch
    %13 = sbr.rel target = $region3
  $region8: #{encoder4_forward.5} parent=0 // loop_exit
    _

// kernel: encoder4_forward.6
$region0: #{encoder4_forward.6}
  #allocation0 [shape = 'u32[]', space=smem, size = 0x4, offset = 0x4, fixed_abs, tag = 'smem constant byte address 0x4 - core index']
  #allocation1 [shape = 'u32[144,128]{1,0:T(1,128)}', space=vmem, size = 0x12000, scoped, tag = 'internal scratch']
  %s0 = inlined_call_operand.vmem [shape: bf16[224,784], index: 0, kind: input, shape index: {}]
  %s1 = inlined_call_operand.vmem [shape: bf16[2,784,512], index: 1, kind: input, shape index: {}]
  %s2 = inlined_call_operand.vmem [shape: f32[32,1], index: 2, kind: input, shape index: {}]
  %s3 = inlined_call_operand.vmem [shape: f32[1,512], index: 3, kind: input, shape index: {}]
  %s4 = inlined_call_operand.vmem [shape: f32[1,512], index: 4, kind: input, shape index: {}]
  %s5 = inlined_call_operand.vmem [shape: bf16[2,32,512], index: 5, kind: output, shape index: {}]
  %s6 = sld [smem:[#allocation0]]
  $region53: #{encoder4_forward.6} parent=0
    _
  %s8 = ssub.s32 1, %s6
  %s9 = scalar_select 0, %s8, %s6
  loop: start=0, step=1, limit=4
  $region2: #{encoder4_forward.6} parent=0 // loop_pre_header
    _
  $region3: #{encoder4_forward.6} parent=0 // loop_header
    %s11 = sphi 0, %s15
    %p12 = scmp.ge.s32.totalorder %s11, 4
    %s19 = sphi 0, %s19
    %s21 = sphi 0, %s19
    %s22 = sphi 0, %s21
    %s36 = sphi 0, %s22
    %s42 = sphi 0, %s44
    %s45 = sphi 0, %s42
    %s46 = sphi 0, %s45
    %s62 = sphi 0, %s46
    %s66 = sphi 0, %s66
    %s68 = sphi 0, %s66
    %s69 = sphi 0, %s68
    %s83 = sphi 0, %s69
    %s87 = sphi 0, %s87
    %s89 = sphi 0, %s87
    %s90 = sphi 0, %s89
    %s104 = sphi 0, %s90
    %s108 = sphi 0, %s108
    %s110 = sphi 0, %s108
    %s111 = sphi 0, %s110
    %s125 = sphi 0, %s111
    %s131 = sphi 0, %s133
    %s134 = sphi 0, %s131
    %s135 = sphi 0, %s134
    %s151 = sphi 0, %s135
  $region4: #{encoder4_forward.6} parent=0 // loop_header_branch
    %14 = sbr.rel (%p12) target = $region8
  $region5: #{encoder4_forward.6} parent=0 // loop_body
    %s16 = ssub.s32 %s11, 1
    %s17 = ssub.s32 %s11, 2
    %s18 = sadd.s32 %s11, 1
    %s20 = sadd.s32 %s19, 1
    %p23 = scmp.eq.s32.totalorder %s11, 1
    %p24 = scmp.ne.s32.totalorder %s19, %s21
    %p25 = scmp.eq.s32.totalorder %s11, 0
    %p26 = por %p24, %p25
    %p27 = scmp.ne.s32.totalorder %s19, %s21
    %p28 = scmp.eq.s32.totalorder %s16, 1
    %p29 = por %p27, %p28
    %p30 = scmp.ne.s32.totalorder %s21, %s22
    %p31 = scmp.eq.s32.totalorder %s16, 0
    %p32 = por %p30, %p31
    %p33 = scmp.ne.s32.totalorder %s21, %s22
    %p34 = scmp.eq.s32.totalorder %s17, 1
    %p35 = por %p33, %p34
    %p37 = scmp.ne.s32.totalorder %s22, %s36
    %p38 = scmp.eq.s32.totalorder %s17, 0
    %p39 = por %p37, %p38
    %s40 = ssub.s32 %s11, %s18
    %p41 = scmp.eq.s32.totalorder %s40, 0
    %s43 = sadd.s32 %s42, 1
    %s44 = scalar_select %p41, %s42, %s43
    %p47 = pneg %p41
    %p48 = scmp.eq.s32.totalorder %s11, 1
    %p49 = por %p47, %p48
    %p50 = scmp.ne.s32.totalorder %s42, %s45
    %p51 = scmp.eq.s32.totalorder %s11, 0
    %p52 = por %p50, %p51
    %p53 = scmp.ne.s32.totalorder %s42, %s45
    %p54 = scmp.eq.s32.totalorder %s16, 1
    %p55 = por %p53, %p54
    %p56 = scmp.ne.s32.totalorder %s45, %s46
    %p57 = scmp.eq.s32.totalorder %s16, 0
    %p58 = por %p56, %p57
    %p59 = scmp.ne.s32.totalorder %s45, %s46
    %p60 = scmp.eq.s32.totalorder %s17, 1
    %p61 = por %p59, %p60
    %p63 = scmp.ne.s32.totalorder %s46, %s62
    %p64 = scmp.eq.s32.totalorder %s17, 0
    %p65 = por %p63, %p64
    %s67 = sadd.s32 %s66, 1
    %p70 = scmp.eq.s32.totalorder %s11, 1
    %p71 = scmp.ne.s32.totalorder %s66, %s68
    %p72 = scmp.eq.s32.totalorder %s11, 0
    %p73 = por %p71, %p72
    %p74 = scmp.ne.s32.totalorder %s66, %s68
    %p75 = scmp.eq.s32.totalorder %s16, 1
    %p76 = por %p74, %p75
    %p77 = scmp.ne.s32.totalorder %s68, %s69
    %p78 = scmp.eq.s32.totalorder %s16, 0
    %p79 = por %p77, %p78
    %p80 = scmp.ne.s32.totalorder %s68, %s69
    %p81 = scmp.eq.s32.totalorder %s17, 1
    %p82 = por %p80, %p81
    %p84 = scmp.ne.s32.totalorder %s69, %s83
    %p85 = scmp.eq.s32.totalorder %s17, 0
    %p86 = por %p84, %p85
    %s88 = sadd.s32 %s87, 1
    %p91 = scmp.eq.s32.totalorder %s11, 1
    %p92 = scmp.ne.s32.totalorder %s87, %s89
    %p93 = scmp.eq.s32.totalorder %s11, 0
    %p94 = por %p92, %p93
    %p95 = scmp.ne.s32.totalorder %s87, %s89
    %p96 = scmp.eq.s32.totalorder %s16, 1
    %p97 = por %p95, %p96
    %p98 = scmp.ne.s32.totalorder %s89, %s90
    %p99 = scmp.eq.s32.totalorder %s16, 0
    %p100 = por %p98, %p99
    %p101 = scmp.ne.s32.totalorder %s89, %s90
    %p102 = scmp.eq.s32.totalorder %s17, 1
    %p103 = por %p101, %p102
    %p105 = scmp.ne.s32.totalorder %s90, %s104
    %p106 = scmp.eq.s32.totalorder %s17, 0
    %p107 = por %p105, %p106
    %s109 = sadd.s32 %s108, 1
    %p112 = scmp.eq.s32.totalorder %s11, 1
    %p113 = scmp.ne.s32.totalorder %s108, %s110
    %p114 = scmp.eq.s32.totalorder %s11, 0
    %p115 = por %p113, %p114
    %p116 = scmp.ne.s32.totalorder %s108, %s110
    %p117 = scmp.eq.s32.totalorder %s16, 1
    %p118 = por %p116, %p117
    %p119 = scmp.ne.s32.totalorder %s110, %s111
    %p120 = scmp.eq.s32.totalorder %s16, 0
    %p121 = por %p119, %p120
    %p122 = scmp.ne.s32.totalorder %s110, %s111
    %p123 = scmp.eq.s32.totalorder %s17, 1
    %p124 = por %p122, %p123
    %p126 = scmp.ne.s32.totalorder %s111, %s125
    %p127 = scmp.eq.s32.totalorder %s17, 0
    %p128 = por %p126, %p127
    %s129 = ssub.s32 %s11, %s18
    %p130 = scmp.eq.s32.totalorder %s129, 0
    %s132 = sadd.s32 %s131, 1
    %s133 = scalar_select %p130, %s131, %s132
    %p136 = pneg %p130
    %p137 = scmp.eq.s32.totalorder %s11, 1
    %p138 = por %p136, %p137
    %p139 = scmp.ne.s32.totalorder %s131, %s134
    %p140 = scmp.eq.s32.totalorder %s11, 0
    %p141 = por %p139, %p140
    %p142 = scmp.ne.s32.totalorder %s131, %s134
    %p143 = scmp.eq.s32.totalorder %s16, 1
    %p144 = por %p142, %p143
    %p145 = scmp.ne.s32.totalorder %s134, %s135
    %p146 = scmp.eq.s32.totalorder %s16, 0
    %p147 = por %p145, %p146
    %p148 = scmp.ne.s32.totalorder %s134, %s135
    %p149 = scmp.eq.s32.totalorder %s17, 1
    %p150 = por %p148, %p149
    %p152 = scmp.ne.s32.totalorder %s135, %s151
    %p153 = scmp.eq.s32.totalorder %s17, 0
    %p154 = por %p152, %p153
    %p155 = scmp.le.s32.totalorder 1, %s11
    %p156 = scmp.lt.s32.totalorder %s11, 3
    %p157 = pnand %p155, %p156
    %p158 = pneg %p157
    // Predicated region
    $region9: #{encoder4_forward.6} parent=5 // pred_check
      _
    $region10: #{encoder4_forward.6} parent=5 // pred_check_branch
      %160 = sbr.rel (%p157) target = $region12
    $region11: #{encoder4_forward.6} parent=5 // pred_region
      %s161 = ssub.s32 %s11, 1
      // Predicated region
      $region13: #{encoder4_forward.6} parent=11 // pred_check
        %p162 = pneg %p32
      $region14: #{encoder4_forward.6} parent=11 // pred_check_branch
        %164 = sbr.rel (%p162) target = $region16
      $region15: #{encoder4_forward.6} parent=11 // pred_region
        _
      $region16: #{encoder4_forward.6} parent=11 // pred_fallthru
        _
      // Predicated region
      $region17: #{encoder4_forward.6} parent=11 // pred_check
        %p165 = pneg %p79
      $region18: #{encoder4_forward.6} parent=11 // pred_check_branch
        %167 = sbr.rel (%p165) target = $region20
      $region19: #{encoder4_forward.6} parent=11 // pred_region
        _
      $region20: #{encoder4_forward.6} parent=11 // pred_fallthru
        _
      // Predicated region
      $region21: #{encoder4_forward.6} parent=11 // pred_check
        %p168 = pneg %p100
      $region22: #{encoder4_forward.6} parent=11 // pred_check_branch
        %170 = sbr.rel (%p168) target = $region24
      $region23: #{encoder4_forward.6} parent=11 // pred_region
        _
      $region24: #{encoder4_forward.6} parent=11 // pred_fallthru
        _
      // Predicated region
      $region25: #{encoder4_forward.6} parent=11 // pred_check
        %p171 = pneg %p121
      $region26: #{encoder4_forward.6} parent=11 // pred_check_branch
        %173 = sbr.rel (%p171) target = $region28
      $region27: #{encoder4_forward.6} parent=11 // pred_region
        _
      $region28: #{encoder4_forward.6} parent=11 // pred_fallthru
        _
    $region12: #{encoder4_forward.6} parent=5 // pred_fallthru
      _
    %p174 = scmp.lt.s32.totalorder %s11, 2
    // Predicated region
    $region29: #{encoder4_forward.6} parent=5 // pred_check
      %p175 = pneg %p174
    $region30: #{encoder4_forward.6} parent=5 // pred_check_branch
      %177 = sbr.rel (%p175) target = $region32
    $region31: #{encoder4_forward.6} parent=5 // pred_region
      // Predicated region
      $region33: #{encoder4_forward.6} parent=31 // pred_check
        %p178 = pneg %p52
      $region34: #{encoder4_forward.6} parent=31 // pred_check_branch
        %180 = sbr.rel (%p178) target = $region36
      $region35: #{encoder4_forward.6} parent=31 // pred_region
        %p181 = scmp.lt.s32.totalorder %s11, 1
        %s182 = scalar_select %p181, %s11, 1
        %s183 = smul.addr %s182, 392
        %s184 = smul.addr %s183, 4
        %s185 = scalar_lea.vmem %s1, %s184
      $region36: #{encoder4_forward.6} parent=31 // pred_fallthru
        _
    $region32: #{encoder4_forward.6} parent=5 // pred_fallthru
      _
    %p186 = scmp.le.s32.totalorder 1, %s11
    %p187 = scmp.lt.s32.totalorder %s11, 3
    %p188 = pnand %p186, %p187
    %p189 = pneg %p188
    // Predicated region
    $region37: #{encoder4_forward.6} parent=5 // pred_check
      _
    $region38: #{encoder4_forward.6} parent=5 // pred_check_branch
      %191 = sbr.rel (%p188) target = $region40
    $region39: #{encoder4_forward.6} parent=5 // pred_region
      %s192 = ssub.s32 %s11, 1
      %p193 = pneg %p32
      %p194 = pneg %p29
      %p195 = scmp.lt.s32.totalorder %s16, 1
      %s196 = scalar_select %p195, %s16, 1
      %s197 = smul.addr %s196, 392
      %s198 = smul.addr %s197, 4
      %s199 = scalar_lea.vmem %s1, %s198
      %p200 = pneg %p58
      %p201 = pneg %p55
      %p202 = pneg %p79
      %p203 = pneg %p76
      %p204 = pneg %p100
      %p205 = pneg %p97
      %p206 = pneg %p121
      %p207 = pneg %p118
      %p208 = pneg %p147
      %p209 = pneg %p144
      %p210 = scmp.lt.s32.totalorder %s16, 1
      %s211 = scalar_select %p210, %s16, 1
      %s212 = smul.addr %s211, 16
      %s213 = smul.addr %s212, 4
      %s214 = scalar_lea.vmem %s5, %s213
      %p215 = scmp.lt.s32.totalorder %s16, 1
      %s216 = scalar_select %p215, %s16, 1
      %s217 = smul.addr %s216, 392
      %s218 = smul.addr %s217, 4
      %s219 = scalar_lea.vmem %s1, %s218
      %p220 = scmp.lt.s32.totalorder %s16, 1
      %s221 = scalar_select %p220, %s16, 1
      %s222 = smul.addr %s221, 16
      %s223 = smul.addr %s222, 4
      %s224 = scalar_lea.vmem %s5, %s223
      %v226 = vld [vmem:[%s0] sm:$0xff]
      %v227 = vld [vmem:[%s0 + $0x8] sm:$0xff]
      %v228 = vld [vmem:[%s0 + $0x10] sm:$0xff]
      %v229 = vld [vmem:[%s0 + $0x18] sm:$0xf]
      %v230 = vld [vmem:[%s0 + $0x1c] sm:$0xff]
      %v231 = vld [vmem:[%s0 + $0x24] sm:$0xff]
      %v232 = vld [vmem:[%s0 + $0x2c] sm:$0xff]
      %v233 = vld [vmem:[%s0 + $0x34] sm:$0xf]
      %v234 = vld [vmem:[%s0 + $0x38] sm:$0xff]
      %v235 = vld [vmem:[%s0 + $0x40] sm:$0xff]
      %v236 = vld [vmem:[%s0 + $0x48] sm:$0xff]
      %v237 = vld [vmem:[%s0 + $0x50] sm:$0xf]
      %v238 = vld [vmem:[%s0 + $0x54] sm:$0xff]
      %v239 = vld [vmem:[%s0 + $0x5c] sm:$0xff]
      %v240 = vld [vmem:[%s0 + $0x64] sm:$0xff]
      %v241 = vld [vmem:[%s0 + $0x6c] sm:$0xf]
      %v242 = vld [vmem:[%s0 + $0x70] sm:$0xff]
      %v243 = vld [vmem:[%s0 + $0x78] sm:$0xff]
      %v244 = vld [vmem:[%s0 + $0x80] sm:$0xff]
      %v245 = vld [vmem:[%s0 + $0x88] sm:$0xf]
      %v246 = vld [vmem:[%s0 + $0x8c] sm:$0xff]
      %v247 = vld [vmem:[%s0 + $0x94] sm:$0xff]
      %v248 = vld [vmem:[%s0 + $0x9c] sm:$0xff]
      %v249 = vld [vmem:[%s0 + $0xa4] sm:$0xf]
      %v250 = vld [vmem:[%s0 + $0xa8] sm:$0xff]
      %v251 = vld [vmem:[%s0 + $0xb0] sm:$0xff]
      %v252 = vld [vmem:[%s0 + $0xb8] sm:$0xff]
      %v253 = vld [vmem:[%s0 + $0xc0] sm:$0xf]
      %v254 = vld [vmem:[%s0 + $0xc4] sm:$0xff]
      %v255 = vld [vmem:[%s0 + $0xcc] sm:$0xff]
      %v256 = vld [vmem:[%s0 + $0xd4] sm:$0xff]
      %v257 = vld [vmem:[%s0 + $0xdc] sm:$0xf]
      %v258 = vld [vmem:[%s0 + $0xe0] sm:$0xff]
      %v259 = vld [vmem:[%s0 + $0xe8] sm:$0xff]
      %v260 = vld [vmem:[%s0 + $0xf0] sm:$0xff]
      %v261 = vld [vmem:[%s0 + $0xf8] sm:$0xf]
      %v262 = vld [vmem:[%s0 + $0xfc] sm:$0xff]
      %v263 = vld [vmem:[%s0 + $0x104] sm:$0xff]
      %v264 = vld [vmem:[%s0 + $0x10c] sm:$0xff]
      %v265 = vld [vmem:[%s0 + $0x114] sm:$0xf]
      %v266 = vld [vmem:[%s0 + $0x118] sm:$0xff]
      %v267 = vld [vmem:[%s0 + $0x120] sm:$0xff]
      %v268 = vld [vmem:[%s0 + $0x128] sm:$0xff]
      %v269 = vld [vmem:[%s0 + $0x130] sm:$0xf]
      %v270 = vld [vmem:[%s0 + $0x134] sm:$0xff]
      %v271 = vld [vmem:[%s0 + $0x13c] sm:$0xff]
      %v272 = vld [vmem:[%s0 + $0x144] sm:$0xff]
      %v273 = vld [vmem:[%s0 + $0x14c] sm:$0xf]
      %v274 = vld [vmem:[%s0 + $0x150] sm:$0xff]
      %v275 = vld [vmem:[%s0 + $0x158] sm:$0xff]
      %v276 = vld [vmem:[%s0 + $0x160] sm:$0xff]
      %v277 = vld [vmem:[%s0 + $0x168] sm:$0xf]
      %v278 = vld [vmem:[%s0 + $0x16c] sm:$0xff]
      %v279 = vld [vmem:[%s0 + $0x174] sm:$0xff]
      %v280 = vld [vmem:[%s0 + $0x17c] sm:$0xff]
      %v281 = vld [vmem:[%s0 + $0x184] sm:$0xf]
      %v282 = vld [vmem:[%s0 + $0x188] sm:$0xff]
      %v283 = vld [vmem:[%s0 + $0x190] sm:$0xff]
      %v284 = vld [vmem:[%s0 + $0x198] sm:$0xff]
      %v285 = vld [vmem:[%s0 + $0x1a0] sm:$0xf]
      %v286 = vld [vmem:[%s0 + $0x1a4] sm:$0xff]
      %v287 = vld [vmem:[%s0 + $0x1ac] sm:$0xff]
      %v288 = vld [vmem:[%s0 + $0x1b4] sm:$0xff]
      %v289 = vld [vmem:[%s0 + $0x1bc] sm:$0xf]
      %v290 = vld [vmem:[%s0 + $0x1c0] sm:$0xff]
      %v291 = vld [vmem:[%s0 + $0x1c8] sm:$0xff]
      %v292 = vld [vmem:[%s0 + $0x1d0] sm:$0xff]
      %v293 = vld [vmem:[%s0 + $0x1d8] sm:$0xf]
      %v294 = vld [vmem:[%s0 + $0x1dc] sm:$0xff]
      %v295 = vld [vmem:[%s0 + $0x1e4] sm:$0xff]
      %v296 = vld [vmem:[%s0 + $0x1ec] sm:$0xff]
      %v297 = vld [vmem:[%s0 + $0x1f4] sm:$0xf]
      %v298 = vld [vmem:[%s0 + $0x1f8] sm:$0xff]
      %v299 = vld [vmem:[%s0 + $0x200] sm:$0xff]
      %v300 = vld [vmem:[%s0 + $0x208] sm:$0xff]
      %v301 = vld [vmem:[%s0 + $0x210] sm:$0xf]
      %v302 = vld [vmem:[%s0 + $0x214] sm:$0xff]
      %v303 = vld [vmem:[%s0 + $0x21c] sm:$0xff]
      %v304 = vld [vmem:[%s0 + $0x224] sm:$0xff]
      %v305 = vld [vmem:[%s0 + $0x22c] sm:$0xf]
      %v306 = vld [vmem:[%s0 + $0x230] sm:$0xff]
      %v307 = vld [vmem:[%s0 + $0x238] sm:$0xff]
      %v308 = vld [vmem:[%s0 + $0x240] sm:$0xff]
      %v309 = vld [vmem:[%s0 + $0x248] sm:$0xf]
      %v310 = vld [vmem:[%s0 + $0x24c] sm:$0xff]
      %v311 = vld [vmem:[%s0 + $0x254] sm:$0xff]
      %v312 = vld [vmem:[%s0 + $0x25c] sm:$0xff]
      %v313 = vld [vmem:[%s0 + $0x264] sm:$0xf]
      %v314 = vld [vmem:[%s0 + $0x268] sm:$0xff]
      %v315 = vld [vmem:[%s0 + $0x270] sm:$0xff]
      %v316 = vld [vmem:[%s0 + $0x278] sm:$0xff]
      %v317 = vld [vmem:[%s0 + $0x280] sm:$0xf]
      %v318 = vld [vmem:[%s0 + $0x284] sm:$0xff]
      %v319 = vld [vmem:[%s0 + $0x28c] sm:$0xff]
      %v320 = vld [vmem:[%s0 + $0x294] sm:$0xff]
      %v321 = vld [vmem:[%s0 + $0x29c] sm:$0xf]
      %v322 = vld [vmem:[%s0 + $0x2a0] sm:$0xff]
      %v323 = vld [vmem:[%s0 + $0x2a8] sm:$0xff]
      %v324 = vld [vmem:[%s0 + $0x2b0] sm:$0xff]
      %v325 = vld [vmem:[%s0 + $0x2b8] sm:$0xf]
      %v326 = vld [vmem:[%s0 + $0x2bc] sm:$0xff]
      %v327 = vld [vmem:[%s0 + $0x2c4] sm:$0xff]
      %v328 = vld [vmem:[%s0 + $0x2cc] sm:$0xff]
      %v329 = vld [vmem:[%s0 + $0x2d4] sm:$0xf]
      %v330 = vld [vmem:[%s0 + $0x2d8] sm:$0xff]
      %v331 = vld [vmem:[%s0 + $0x2e0] sm:$0xff]
      %v332 = vld [vmem:[%s0 + $0x2e8] sm:$0xff]
      %v333 = vld [vmem:[%s0 + $0x2f0] sm:$0xf]
      %v334 = vld [vmem:[%s0 + $0x2f4] sm:$0xff]
      %v335 = vld [vmem:[%s0 + $0x2fc] sm:$0xff]
      %v336 = vld [vmem:[%s0 + $0x304] sm:$0xff]
      %v337 = vld [vmem:[%s0 + $0x30c] sm:$0xf]
      %v338 = vld [vmem:[%s219] sm:$0xff]
      %v339 = vld [vmem:[%s219 + $0x8] sm:$0xff]
      %v340 = vld [vmem:[%s219 + $0x10] sm:$0xff]
      %v341 = vld [vmem:[%s219 + $0x18] sm:$0xff]
      %v342 = vld [vmem:[%s219 + $0x20] sm:$0xff]
      %v343 = vld [vmem:[%s219 + $0x28] sm:$0xff]
      %v344 = vld [vmem:[%s219 + $0x30] sm:$0xff]
      %v345 = vld [vmem:[%s219 + $0x38] sm:$0xff]
      %v346 = vld [vmem:[%s219 + $0x40] sm:$0xff]
      %v347 = vld [vmem:[%s219 + $0x48] sm:$0xff]
      %v348 = vld [vmem:[%s219 + $0x50] sm:$0xff]
      %v349 = vld [vmem:[%s219 + $0x58] sm:$0xff]
      %v350 = vld [vmem:[%s219 + $0x60] sm:$0xff]
      %v351 = vld [vmem:[%s219 + $0x68] sm:$0xff]
      %v352 = vld [vmem:[%s219 + $0x70] sm:$0xff]
      %v353 = vld [vmem:[%s219 + $0x78] sm:$0xff]
      %v354 = vld [vmem:[%s219 + $0x80] sm:$0xff]
      %v355 = vld [vmem:[%s219 + $0x88] sm:$0xff]
      %v356 = vld [vmem:[%s219 + $0x90] sm:$0xff]
      %v357 = vld [vmem:[%s219 + $0x98] sm:$0xff]
      %v358 = vld [vmem:[%s219 + $0xa0] sm:$0xff]
      %v359 = vld [vmem:[%s219 + $0xa8] sm:$0xff]
      %v360 = vld [vmem:[%s219 + $0xb0] sm:$0xff]
      %v361 = vld [vmem:[%s219 + $0xb8] sm:$0xff]
      %v362 = vld [vmem:[%s219 + $0xc0] sm:$0xff]
      %v363 = vld [vmem:[%s219 + $0xc8] sm:$0xff]
      %v364 = vld [vmem:[%s219 + $0xd0] sm:$0xff]
      %v365 = vld [vmem:[%s219 + $0xd8] sm:$0xff]
      %v366 = vld [vmem:[%s219 + $0xe0] sm:$0xff]
      %v367 = vld [vmem:[%s219 + $0xe8] sm:$0xff]
      %v368 = vld [vmem:[%s219 + $0xf0] sm:$0xff]
      %v369 = vld [vmem:[%s219 + $0xf8] sm:$0xff]
      %v370 = vld [vmem:[%s219 + $0x100] sm:$0xff]
      %v371 = vld [vmem:[%s219 + $0x108] sm:$0xff]
      %v372 = vld [vmem:[%s219 + $0x110] sm:$0xff]
      %v373 = vld [vmem:[%s219 + $0x118] sm:$0xff]
      %v374 = vld [vmem:[%s219 + $0x120] sm:$0xff]
      %v375 = vld [vmem:[%s219 + $0x128] sm:$0xff]
      %v376 = vld [vmem:[%s219 + $0x130] sm:$0xff]
      %v377 = vld [vmem:[%s219 + $0x138] sm:$0xff]
      %v378 = vld [vmem:[%s219 + $0x140] sm:$0xff]
      %v379 = vld [vmem:[%s219 + $0x148] sm:$0xff]
      %v380 = vld [vmem:[%s219 + $0x150] sm:$0xff]
      %v381 = vld [vmem:[%s219 + $0x158] sm:$0xff]
      %v382 = vld [vmem:[%s219 + $0x160] sm:$0xff]
      %v383 = vld [vmem:[%s219 + $0x168] sm:$0xff]
      %v384 = vld [vmem:[%s219 + $0x170] sm:$0xff]
      %v385 = vld [vmem:[%s219 + $0x178] sm:$0xff]
      %v386 = vld [vmem:[%s219 + $0x180] sm:$0xff]
      %v387 = vld [vmem:[%s219 + $0x188] sm:$0xff]
      %v388 = vld [vmem:[%s219 + $0x190] sm:$0xff]
      %v389 = vld [vmem:[%s219 + $0x198] sm:$0xff]
      %v390 = vld [vmem:[%s219 + $0x1a0] sm:$0xff]
      %v391 = vld [vmem:[%s219 + $0x1a8] sm:$0xff]
      %v392 = vld [vmem:[%s219 + $0x1b0] sm:$0xff]
      %v393 = vld [vmem:[%s219 + $0x1b8] sm:$0xff]
      %v394 = vld [vmem:[%s219 + $0x1c0] sm:$0xff]
      %v395 = vld [vmem:[%s219 + $0x1c8] sm:$0xff]
      %v396 = vld [vmem:[%s219 + $0x1d0] sm:$0xff]
      %v397 = vld [vmem:[%s219 + $0x1d8] sm:$0xff]
      %v398 = vld [vmem:[%s219 + $0x1e0] sm:$0xff]
      %v399 = vld [vmem:[%s219 + $0x1e8] sm:$0xff]
      %v400 = vld [vmem:[%s219 + $0x1f0] sm:$0xff]
      %v401 = vld [vmem:[%s219 + $0x1f8] sm:$0xff]
      %v402 = vld [vmem:[%s219 + $0x200] sm:$0xff]
      %v403 = vld [vmem:[%s219 + $0x208] sm:$0xff]
      %v404 = vld [vmem:[%s219 + $0x210] sm:$0xff]
      %v405 = vld [vmem:[%s219 + $0x218] sm:$0xff]
      %v406 = vld [vmem:[%s219 + $0x220] sm:$0xff]
      %v407 = vld [vmem:[%s219 + $0x228] sm:$0xff]
      %v408 = vld [vmem:[%s219 + $0x230] sm:$0xff]
      %v409 = vld [vmem:[%s219 + $0x238] sm:$0xff]
      %v410 = vld [vmem:[%s219 + $0x240] sm:$0xff]
      %v411 = vld [vmem:[%s219 + $0x248] sm:$0xff]
      %v412 = vld [vmem:[%s219 + $0x250] sm:$0xff]
      %v413 = vld [vmem:[%s219 + $0x258] sm:$0xff]
      %v414 = vld [vmem:[%s219 + $0x260] sm:$0xff]
      %v415 = vld [vmem:[%s219 + $0x268] sm:$0xff]
      %v416 = vld [vmem:[%s219 + $0x270] sm:$0xff]
      %v417 = vld [vmem:[%s219 + $0x278] sm:$0xff]
      %v418 = vld [vmem:[%s219 + $0x280] sm:$0xff]
      %v419 = vld [vmem:[%s219 + $0x288] sm:$0xff]
      %v420 = vld [vmem:[%s219 + $0x290] sm:$0xff]
      %v421 = vld [vmem:[%s219 + $0x298] sm:$0xff]
      %v422 = vld [vmem:[%s219 + $0x2a0] sm:$0xff]
      %v423 = vld [vmem:[%s219 + $0x2a8] sm:$0xff]
      %v424 = vld [vmem:[%s219 + $0x2b0] sm:$0xff]
      %v425 = vld [vmem:[%s219 + $0x2b8] sm:$0xff]
      %v426 = vld [vmem:[%s219 + $0x2c0] sm:$0xff]
      %v427 = vld [vmem:[%s219 + $0x2c8] sm:$0xff]
      %v428 = vld [vmem:[%s219 + $0x2d0] sm:$0xff]
      %v429 = vld [vmem:[%s219 + $0x2d8] sm:$0xff]
      %v430 = vld [vmem:[%s219 + $0x2e0] sm:$0xff]
      %v431 = vld [vmem:[%s219 + $0x2e8] sm:$0xff]
      %v432 = vld [vmem:[%s219 + $0x2f0] sm:$0xff]
      %v433 = vld [vmem:[%s219 + $0x2f8] sm:$0xff]
      %v434 = vld [vmem:[%s219 + $0x300] sm:$0xff]
      %v435 = vld [vmem:[%s219 + $0x308] sm:$0xff]
      %v436 = vld [vmem:[%s219 + $0x310] sm:$0xff]
      %v437 = vld [vmem:[%s219 + $0x318] sm:$0xff]
      %v438 = vld [vmem:[%s219 + $0x320] sm:$0xff]
      %v439 = vld [vmem:[%s219 + $0x328] sm:$0xff]
      %v440 = vld [vmem:[%s219 + $0x330] sm:$0xff]
      %v441 = vld [vmem:[%s219 + $0x338] sm:$0xff]
      %v442 = vld [vmem:[%s219 + $0x340] sm:$0xff]
      %v443 = vld [vmem:[%s219 + $0x348] sm:$0xff]
      %v444 = vld [vmem:[%s219 + $0x350] sm:$0xff]
      %v445 = vld [vmem:[%s219 + $0x358] sm:$0xff]
      %v446 = vld [vmem:[%s219 + $0x360] sm:$0xff]
      %v447 = vld [vmem:[%s219 + $0x368] sm:$0xff]
      %v448 = vld [vmem:[%s219 + $0x370] sm:$0xff]
      %v449 = vld [vmem:[%s219 + $0x378] sm:$0xff]
      %v450 = vld [vmem:[%s219 + $0x380] sm:$0xff]
      %v451 = vld [vmem:[%s219 + $0x388] sm:$0xff]
      %v452 = vld [vmem:[%s219 + $0x390] sm:$0xff]
      %v453 = vld [vmem:[%s219 + $0x398] sm:$0xff]
      %v454 = vld [vmem:[%s219 + $0x3a0] sm:$0xff]
      %v455 = vld [vmem:[%s219 + $0x3a8] sm:$0xff]
      %v456 = vld [vmem:[%s219 + $0x3b0] sm:$0xff]
      %v457 = vld [vmem:[%s219 + $0x3b8] sm:$0xff]
      %v458 = vld [vmem:[%s219 + $0x3c0] sm:$0xff]
      %v459 = vld [vmem:[%s219 + $0x3c8] sm:$0xff]
      %v460 = vld [vmem:[%s219 + $0x3d0] sm:$0xff]
      %v461 = vld [vmem:[%s219 + $0x3d8] sm:$0xff]
      %v462 = vld [vmem:[%s219 + $0x3e0] sm:$0xff]
      %v463 = vld [vmem:[%s219 + $0x3e8] sm:$0xff]
      %v464 = vld [vmem:[%s219 + $0x3f0] sm:$0xff]
      %v465 = vld [vmem:[%s219 + $0x3f8] sm:$0xff]
      %v466 = vld [vmem:[%s219 + $0x400] sm:$0xff]
      %v467 = vld [vmem:[%s219 + $0x408] sm:$0xff]
      %v468 = vld [vmem:[%s219 + $0x410] sm:$0xff]
      %v469 = vld [vmem:[%s219 + $0x418] sm:$0xff]
      %v470 = vld [vmem:[%s219 + $0x420] sm:$0xff]
      %v471 = vld [vmem:[%s219 + $0x428] sm:$0xff]
      %v472 = vld [vmem:[%s219 + $0x430] sm:$0xff]
      %v473 = vld [vmem:[%s219 + $0x438] sm:$0xff]
      %v474 = vld [vmem:[%s219 + $0x440] sm:$0xff]
      %v475 = vld [vmem:[%s219 + $0x448] sm:$0xff]
      %v476 = vld [vmem:[%s219 + $0x450] sm:$0xff]
      %v477 = vld [vmem:[%s219 + $0x458] sm:$0xff]
      %v478 = vld [vmem:[%s219 + $0x460] sm:$0xff]
      %v479 = vld [vmem:[%s219 + $0x468] sm:$0xff]
      %v480 = vld [vmem:[%s219 + $0x470] sm:$0xff]
      %v481 = vld [vmem:[%s219 + $0x478] sm:$0xff]
      %v482 = vld [vmem:[%s219 + $0x480] sm:$0xff]
      %v483 = vld [vmem:[%s219 + $0x488] sm:$0xff]
      %v484 = vld [vmem:[%s219 + $0x490] sm:$0xff]
      %v485 = vld [vmem:[%s219 + $0x498] sm:$0xff]
      %v486 = vld [vmem:[%s219 + $0x4a0] sm:$0xff]
      %v487 = vld [vmem:[%s219 + $0x4a8] sm:$0xff]
      %v488 = vld [vmem:[%s219 + $0x4b0] sm:$0xff]
      %v489 = vld [vmem:[%s219 + $0x4b8] sm:$0xff]
      %v490 = vld [vmem:[%s219 + $0x4c0] sm:$0xff]
      %v491 = vld [vmem:[%s219 + $0x4c8] sm:$0xff]
      %v492 = vld [vmem:[%s219 + $0x4d0] sm:$0xff]
      %v493 = vld [vmem:[%s219 + $0x4d8] sm:$0xff]
      %v494 = vld [vmem:[%s219 + $0x4e0] sm:$0xff]
      %v495 = vld [vmem:[%s219 + $0x4e8] sm:$0xff]
      %v496 = vld [vmem:[%s219 + $0x4f0] sm:$0xff]
      %v497 = vld [vmem:[%s219 + $0x4f8] sm:$0xff]
      %v498 = vld [vmem:[%s219 + $0x500] sm:$0xff]
      %v499 = vld [vmem:[%s219 + $0x508] sm:$0xff]
      %v500 = vld [vmem:[%s219 + $0x510] sm:$0xff]
      %v501 = vld [vmem:[%s219 + $0x518] sm:$0xff]
      %v502 = vld [vmem:[%s219 + $0x520] sm:$0xff]
      %v503 = vld [vmem:[%s219 + $0x528] sm:$0xff]
      %v504 = vld [vmem:[%s219 + $0x530] sm:$0xff]
      %v505 = vld [vmem:[%s219 + $0x538] sm:$0xff]
      %v506 = vld [vmem:[%s219 + $0x540] sm:$0xff]
      %v507 = vld [vmem:[%s219 + $0x548] sm:$0xff]
      %v508 = vld [vmem:[%s219 + $0x550] sm:$0xff]
      %v509 = vld [vmem:[%s219 + $0x558] sm:$0xff]
      %v510 = vld [vmem:[%s219 + $0x560] sm:$0xff]
      %v511 = vld [vmem:[%s219 + $0x568] sm:$0xff]
      %v512 = vld [vmem:[%s219 + $0x570] sm:$0xff]
      %v513 = vld [vmem:[%s219 + $0x578] sm:$0xff]
      %v514 = vld [vmem:[%s219 + $0x580] sm:$0xff]
      %v515 = vld [vmem:[%s219 + $0x588] sm:$0xff]
      %v516 = vld [vmem:[%s219 + $0x590] sm:$0xff]
      %v517 = vld [vmem:[%s219 + $0x598] sm:$0xff]
      %v518 = vld [vmem:[%s219 + $0x5a0] sm:$0xff]
      %v519 = vld [vmem:[%s219 + $0x5a8] sm:$0xff]
      %v520 = vld [vmem:[%s219 + $0x5b0] sm:$0xff]
      %v521 = vld [vmem:[%s219 + $0x5b8] sm:$0xff]
      %v522 = vld [vmem:[%s219 + $0x5c0] sm:$0xff]
      %v523 = vld [vmem:[%s219 + $0x5c8] sm:$0xff]
      %v524 = vld [vmem:[%s219 + $0x5d0] sm:$0xff]
      %v525 = vld [vmem:[%s219 + $0x5d8] sm:$0xff]
      %v526 = vld [vmem:[%s219 + $0x5e0] sm:$0xff]
      %v527 = vld [vmem:[%s219 + $0x5e8] sm:$0xff]
      %v528 = vld [vmem:[%s219 + $0x5f0] sm:$0xff]
      %v529 = vld [vmem:[%s219 + $0x5f8] sm:$0xff]
      %v530 = vld [vmem:[%s219 + $0x600] sm:$0xff]
      %v531 = vld [vmem:[%s219 + $0x608] sm:$0xff]
      %v532 = vld [vmem:[%s219 + $0x610] sm:$0xff]
      %v533 = vld [vmem:[%s219 + $0x618] sm:$0xff]
      %v646 = vunpack.c.l.b16 %v226
      %v647 = vunpack.c.h.b16 %v226
      %v648 = vunpack.c.l.b16 %v227
      %v649 = vunpack.c.h.b16 %v227
      %v650 = vunpack.c.l.b16 %v228
      %v651 = vunpack.c.h.b16 %v228
      %v652 = vunpack.c.l.b16 %v229
      %v653 = vunpack.c.l.b16 %v230
      %v654 = vunpack.c.h.b16 %v230
      %v655 = vunpack.c.l.b16 %v231
      %v656 = vunpack.c.h.b16 %v231
      %v657 = vunpack.c.l.b16 %v232
      %v658 = vunpack.c.h.b16 %v232
      %v659 = vunpack.c.l.b16 %v233
      %v660 = vunpack.c.l.b16 %v234
      %v661 = vunpack.c.h.b16 %v234
      %v662 = vunpack.c.l.b16 %v235
      %v663 = vunpack.c.h.b16 %v235
      %v664 = vunpack.c.l.b16 %v236
      %v665 = vunpack.c.h.b16 %v236
      %v666 = vunpack.c.l.b16 %v237
      %v667 = vunpack.c.l.b16 %v238
      %v668 = vunpack.c.h.b16 %v238
      %v669 = vunpack.c.l.b16 %v239
      %v670 = vunpack.c.h.b16 %v239
      %v671 = vunpack.c.l.b16 %v240
      %v672 = vunpack.c.h.b16 %v240
      %v673 = vunpack.c.l.b16 %v241
      %v674 = vunpack.c.l.b16 %v242
      %v675 = vunpack.c.h.b16 %v242
      %v676 = vunpack.c.l.b16 %v243
      %v677 = vunpack.c.h.b16 %v243
      %v678 = vunpack.c.l.b16 %v244
      %v679 = vunpack.c.h.b16 %v244
      %v680 = vunpack.c.l.b16 %v245
      %v681 = vunpack.c.l.b16 %v246
      %v682 = vunpack.c.h.b16 %v246
      %v683 = vunpack.c.l.b16 %v247
      %v684 = vunpack.c.h.b16 %v247
      %v685 = vunpack.c.l.b16 %v248
      %v686 = vunpack.c.h.b16 %v248
      %v687 = vunpack.c.l.b16 %v249
      %v688 = vunpack.c.l.b16 %v250
      %v689 = vunpack.c.h.b16 %v250
      %v690 = vunpack.c.l.b16 %v251
      %v691 = vunpack.c.h.b16 %v251
      %v692 = vunpack.c.l.b16 %v252
      %v693 = vunpack.c.h.b16 %v252
      %v694 = vunpack.c.l.b16 %v253
      %v695 = vunpack.c.l.b16 %v254
      %v696 = vunpack.c.h.b16 %v254
      %v697 = vunpack.c.l.b16 %v255
      %v698 = vunpack.c.h.b16 %v255
      %v699 = vunpack.c.l.b16 %v256
      %v700 = vunpack.c.h.b16 %v256
      %v701 = vunpack.c.l.b16 %v257
      %v702 = vunpack.c.l.b16 %v258
      %v703 = vunpack.c.h.b16 %v258
      %v704 = vunpack.c.l.b16 %v259
      %v705 = vunpack.c.h.b16 %v259
      %v706 = vunpack.c.l.b16 %v260
      %v707 = vunpack.c.h.b16 %v260
      %v708 = vunpack.c.l.b16 %v261
      %v709 = vunpack.c.l.b16 %v262
      %v710 = vunpack.c.h.b16 %v262
      %v711 = vunpack.c.l.b16 %v263
      %v712 = vunpack.c.h.b16 %v263
      %v713 = vunpack.c.l.b16 %v264
      %v714 = vunpack.c.h.b16 %v264
      %v715 = vunpack.c.l.b16 %v265
      %v716 = vunpack.c.l.b16 %v266
      %v717 = vunpack.c.h.b16 %v266
      %v718 = vunpack.c.l.b16 %v267
      %v719 = vunpack.c.h.b16 %v267
      %v720 = vunpack.c.l.b16 %v268
      %v721 = vunpack.c.h.b16 %v268
      %v722 = vunpack.c.l.b16 %v269
      %v723 = vunpack.c.l.b16 %v270
      %v724 = vunpack.c.h.b16 %v270
      %v725 = vunpack.c.l.b16 %v271
      %v726 = vunpack.c.h.b16 %v271
      %v727 = vunpack.c.l.b16 %v272
      %v728 = vunpack.c.h.b16 %v272
      %v729 = vunpack.c.l.b16 %v273
      %v730 = vunpack.c.l.b16 %v274
      %v731 = vunpack.c.h.b16 %v274
      %v732 = vunpack.c.l.b16 %v275
      %v733 = vunpack.c.h.b16 %v275
      %v734 = vunpack.c.l.b16 %v276
      %v735 = vunpack.c.h.b16 %v276
      %v736 = vunpack.c.l.b16 %v277
      %v737 = vunpack.c.l.b16 %v278
      %v738 = vunpack.c.h.b16 %v278
      %v739 = vunpack.c.l.b16 %v279
      %v740 = vunpack.c.h.b16 %v279
      %v741 = vunpack.c.l.b16 %v280
      %v742 = vunpack.c.h.b16 %v280
      %v743 = vunpack.c.l.b16 %v281
      %v744 = vunpack.c.l.b16 %v282
      %v745 = vunpack.c.h.b16 %v282
      %v746 = vunpack.c.l.b16 %v283
      %v747 = vunpack.c.h.b16 %v283
      %v748 = vunpack.c.l.b16 %v284
      %v749 = vunpack.c.h.b16 %v284
      %v750 = vunpack.c.l.b16 %v285
      %v751 = vunpack.c.l.b16 %v286
      %v752 = vunpack.c.h.b16 %v286
      %v753 = vunpack.c.l.b16 %v287
      %v754 = vunpack.c.h.b16 %v287
      %v755 = vunpack.c.l.b16 %v288
      %v756 = vunpack.c.h.b16 %v288
      %v757 = vunpack.c.l.b16 %v289
      %v758 = vunpack.c.l.b16 %v290
      %v759 = vunpack.c.h.b16 %v290
      %v760 = vunpack.c.l.b16 %v291
      %v761 = vunpack.c.h.b16 %v291
      %v762 = vunpack.c.l.b16 %v292
      %v763 = vunpack.c.h.b16 %v292
      %v764 = vunpack.c.l.b16 %v293
      %v765 = vunpack.c.l.b16 %v294
      %v766 = vunpack.c.h.b16 %v294
      %v767 = vunpack.c.l.b16 %v295
      %v768 = vunpack.c.h.b16 %v295
      %v769 = vunpack.c.l.b16 %v296
      %v770 = vunpack.c.h.b16 %v296
      %v771 = vunpack.c.l.b16 %v297
      %v772 = vunpack.c.l.b16 %v298
      %v773 = vunpack.c.h.b16 %v298
      %v774 = vunpack.c.l.b16 %v299
      %v775 = vunpack.c.h.b16 %v299
      %v776 = vunpack.c.l.b16 %v300
      %v777 = vunpack.c.h.b16 %v300
      %v778 = vunpack.c.l.b16 %v301
      %v779 = vunpack.c.l.b16 %v302
      %v780 = vunpack.c.h.b16 %v302
      %v781 = vunpack.c.l.b16 %v303
      %v782 = vunpack.c.h.b16 %v303
      %v783 = vunpack.c.l.b16 %v304
      %v784 = vunpack.c.h.b16 %v304
      %v785 = vunpack.c.l.b16 %v305
      %v786 = vunpack.c.l.b16 %v306
      %v787 = vunpack.c.h.b16 %v306
      %v788 = vunpack.c.l.b16 %v307
      %v789 = vunpack.c.h.b16 %v307
      %v790 = vunpack.c.l.b16 %v308
      %v791 = vunpack.c.h.b16 %v308
      %v792 = vunpack.c.l.b16 %v309
      %v793 = vunpack.c.l.b16 %v310
      %v794 = vunpack.c.h.b16 %v310
      %v795 = vunpack.c.l.b16 %v311
      %v796 = vunpack.c.h.b16 %v311
      %v797 = vunpack.c.l.b16 %v312
      %v798 = vunpack.c.h.b16 %v312
      %v799 = vunpack.c.l.b16 %v313
      %v800 = vunpack.c.l.b16 %v314
      %v801 = vunpack.c.h.b16 %v314
      %v802 = vunpack.c.l.b16 %v315
      %v803 = vunpack.c.h.b16 %v315
      %v804 = vunpack.c.l.b16 %v316
      %v805 = vunpack.c.h.b16 %v316
      %v806 = vunpack.c.l.b16 %v317
      %v807 = vunpack.c.l.b16 %v318
      %v808 = vunpack.c.h.b16 %v318
      %v809 = vunpack.c.l.b16 %v319
      %v810 = vunpack.c.h.b16 %v319
      %v811 = vunpack.c.l.b16 %v320
      %v812 = vunpack.c.h.b16 %v320
      %v813 = vunpack.c.l.b16 %v321
      %v814 = vunpack.c.l.b16 %v322
      %v815 = vunpack.c.h.b16 %v322
      %v816 = vunpack.c.l.b16 %v323
      %v817 = vunpack.c.h.b16 %v323
      %v818 = vunpack.c.l.b16 %v324
      %v819 = vunpack.c.h.b16 %v324
      %v820 = vunpack.c.l.b16 %v325
      %v821 = vunpack.c.l.b16 %v326
      %v822 = vunpack.c.h.b16 %v326
      %v823 = vunpack.c.l.b16 %v327
      %v824 = vunpack.c.h.b16 %v327
      %v825 = vunpack.c.l.b16 %v328
      %v826 = vunpack.c.h.b16 %v328
      %v827 = vunpack.c.l.b16 %v329
      %v828 = vunpack.c.l.b16 %v330
      %v829 = vunpack.c.h.b16 %v330
      %v830 = vunpack.c.l.b16 %v331
      %v831 = vunpack.c.h.b16 %v331
      %v832 = vunpack.c.l.b16 %v332
      %v833 = vunpack.c.h.b16 %v332
      %v834 = vunpack.c.l.b16 %v333
      %v835 = vunpack.c.l.b16 %v334
      %v836 = vunpack.c.h.b16 %v334
      %v837 = vunpack.c.l.b16 %v335
      %v838 = vunpack.c.h.b16 %v335
      %v839 = vunpack.c.l.b16 %v336
      %v840 = vunpack.c.h.b16 %v336
      %v841 = vunpack.c.l.b16 %v337
      %v842 = vpack.c.b16 %v653, %v646
      %v843 = vpack.c.b16 %v654, %v647
      %v844 = vpack.c.b16 %v655, %v648
      %v845 = vpack.c.b16 %v656, %v649
      %v846 = vpack.c.b16 %v657, %v650
      %v847 = vpack.c.b16 %v658, %v651
      %v848 = vpack.c.b16 %v659, %v652
      %v849 = vpack.c.b16 %v667, %v660
      %v850 = vpack.c.b16 %v668, %v661
      %v851 = vpack.c.b16 %v669, %v662
      %v852 = vpack.c.b16 %v670, %v663
      %v853 = vpack.c.b16 %v671, %v664
      %v854 = vpack.c.b16 %v672, %v665
      %v855 = vpack.c.b16 %v673, %v666
      %v856 = vpack.c.b16 %v681, %v674
      %v857 = vpack.c.b16 %v682, %v675
      %v858 = vpack.c.b16 %v683, %v676
      %v859 = vpack.c.b16 %v684, %v677
      %v860 = vpack.c.b16 %v685, %v678
      %v861 = vpack.c.b16 %v686, %v679
      %v862 = vpack.c.b16 %v687, %v680
      %v863 = vpack.c.b16 %v695, %v688
      %v864 = vpack.c.b16 %v696, %v689
      %v865 = vpack.c.b16 %v697, %v690
      %v866 = vpack.c.b16 %v698, %v691
      %v867 = vpack.c.b16 %v699, %v692
      %v868 = vpack.c.b16 %v700, %v693
      %v869 = vpack.c.b16 %v701, %v694
      %v870 = vpack.c.b16 %v709, %v702
      %v871 = vpack.c.b16 %v710, %v703
      %v872 = vpack.c.b16 %v711, %v704
      %v873 = vpack.c.b16 %v712, %v705
      %v874 = vpack.c.b16 %v713, %v706
      %v875 = vpack.c.b16 %v714, %v707
      %v876 = vpack.c.b16 %v715, %v708
      %v877 = vpack.c.b16 %v723, %v716
      %v878 = vpack.c.b16 %v724, %v717
      %v879 = vpack.c.b16 %v725, %v718
      %v880 = vpack.c.b16 %v726, %v719
      %v881 = vpack.c.b16 %v727, %v720
      %v882 = vpack.c.b16 %v728, %v721
      %v883 = vpack.c.b16 %v729, %v722
      %v884 = vpack.c.b16 %v737, %v730
      %v885 = vpack.c.b16 %v738, %v731
      %v886 = vpack.c.b16 %v739, %v732
      %v887 = vpack.c.b16 %v740, %v733
      %v888 = vpack.c.b16 %v741, %v734
      %v889 = vpack.c.b16 %v742, %v735
      %v890 = vpack.c.b16 %v743, %v736
      %v891 = vpack.c.b16 %v751, %v744
      %v892 = vpack.c.b16 %v752, %v745
      %v893 = vpack.c.b16 %v753, %v746
      %v894 = vpack.c.b16 %v754, %v747
      %v895 = vpack.c.b16 %v755, %v748
      %v896 = vpack.c.b16 %v756, %v749
      %v897 = vpack.c.b16 %v757, %v750
      %v898 = vpack.c.b16 %v765, %v758
      %v899 = vpack.c.b16 %v766, %v759
      %v900 = vpack.c.b16 %v767, %v760
      %v901 = vpack.c.b16 %v768, %v761
      %v902 = vpack.c.b16 %v769, %v762
      %v903 = vpack.c.b16 %v770, %v763
      %v904 = vpack.c.b16 %v771, %v764
      %v905 = vpack.c.b16 %v779, %v772
      %v906 = vpack.c.b16 %v780, %v773
      %v907 = vpack.c.b16 %v781, %v774
      %v908 = vpack.c.b16 %v782, %v775
      %v909 = vpack.c.b16 %v783, %v776
      %v910 = vpack.c.b16 %v784, %v777
      %v911 = vpack.c.b16 %v785, %v778
      %v912 = vpack.c.b16 %v793, %v786
      %v913 = vpack.c.b16 %v794, %v787
      %v914 = vpack.c.b16 %v795, %v788
      %v915 = vpack.c.b16 %v796, %v789
      %v916 = vpack.c.b16 %v797, %v790
      %v917 = vpack.c.b16 %v798, %v791
      %v918 = vpack.c.b16 %v799, %v792
      %v919 = vpack.c.b16 %v807, %v800
      %v920 = vpack.c.b16 %v808, %v801
      %v921 = vpack.c.b16 %v809, %v802
      %v922 = vpack.c.b16 %v810, %v803
      %v923 = vpack.c.b16 %v811, %v804
      %v924 = vpack.c.b16 %v812, %v805
      %v925 = vpack.c.b16 %v813, %v806
      %v926 = vpack.c.b16 %v821, %v814
      %v927 = vpack.c.b16 %v822, %v815
      %v928 = vpack.c.b16 %v823, %v816
      %v929 = vpack.c.b16 %v824, %v817
      %v930 = vpack.c.b16 %v825, %v818
      %v931 = vpack.c.b16 %v826, %v819
      %v932 = vpack.c.b16 %v827, %v820
      %v933 = vpack.c.b16 %v835, %v828
      %v934 = vpack.c.b16 %v836, %v829
      %v935 = vpack.c.b16 %v837, %v830
      %v936 = vpack.c.b16 %v838, %v831
      %v937 = vpack.c.b16 %v839, %v832
      %v938 = vpack.c.b16 %v840, %v833
      %v939 = vpack.c.b16 %v841, %v834
      %v1220 = vunpack.c.l.b16 %v338
      %v1221 = vunpack.c.h.b16 %v338
      %v1222 = vunpack.c.l.b16 %v339
      %v1223 = vunpack.c.h.b16 %v339
      %v1224 = vunpack.c.l.b16 %v340
      %v1225 = vunpack.c.h.b16 %v340
      %v1226 = vunpack.c.l.b16 %v341
      %v1227 = vunpack.c.h.b16 %v341
      %v1228 = vunpack.c.l.b16 %v342
      %v1229 = vunpack.c.h.b16 %v342
      %v1230 = vunpack.c.l.b16 %v343
      %v1231 = vunpack.c.h.b16 %v343
      %v1232 = vunpack.c.l.b16 %v344
      %v1233 = vunpack.c.h.b16 %v344
      %v1234 = vunpack.c.l.b16 %v345
      %v1235 = vunpack.c.h.b16 %v345
      %v1236 = vunpack.c.l.b16 %v346
      %v1237 = vunpack.c.h.b16 %v346
      %v1238 = vunpack.c.l.b16 %v347
      %v1239 = vunpack.c.h.b16 %v347
      %v1240 = vunpack.c.l.b16 %v348
      %v1241 = vunpack.c.h.b16 %v348
      %v1242 = vunpack.c.l.b16 %v349
      %v1243 = vunpack.c.h.b16 %v349
      %v1244 = vunpack.c.l.b16 %v350
      %v1245 = vunpack.c.h.b16 %v350
      %v1246 = vunpack.c.l.b16 %v351
      %v1247 = vunpack.c.h.b16 %v351
      %v1248 = vunpack.c.l.b16 %v352
      %v1249 = vunpack.c.h.b16 %v352
      %v1250 = vunpack.c.l.b16 %v353
      %v1251 = vunpack.c.h.b16 %v353
      %v1252 = vunpack.c.l.b16 %v354
      %v1253 = vunpack.c.h.b16 %v354
      %v1254 = vunpack.c.l.b16 %v355
      %v1255 = vunpack.c.h.b16 %v355
      %v1256 = vunpack.c.l.b16 %v356
      %v1257 = vunpack.c.h.b16 %v356
      %v1258 = vunpack.c.l.b16 %v357
      %v1259 = vunpack.c.h.b16 %v357
      %v1260 = vunpack.c.l.b16 %v358
      %v1261 = vunpack.c.h.b16 %v358
      %v1262 = vunpack.c.l.b16 %v359
      %v1263 = vunpack.c.h.b16 %v359
      %v1264 = vunpack.c.l.b16 %v360
      %v1265 = vunpack.c.h.b16 %v360
      %v1266 = vunpack.c.l.b16 %v361
      %v1267 = vunpack.c.h.b16 %v361
      %v1268 = vunpack.c.l.b16 %v362
      %v1269 = vunpack.c.h.b16 %v362
      %v1270 = vunpack.c.l.b16 %v363
      %v1271 = vunpack.c.h.b16 %v363
      %v1272 = vunpack.c.l.b16 %v364
      %v1273 = vunpack.c.h.b16 %v364
      %v1274 = vunpack.c.l.b16 %v365
      %v1275 = vunpack.c.h.b16 %v365
      %v1276 = vunpack.c.l.b16 %v366
      %v1277 = vunpack.c.h.b16 %v366
      %v1278 = vunpack.c.l.b16 %v367
      %v1279 = vunpack.c.h.b16 %v367
      %v1280 = vunpack.c.l.b16 %v368
      %v1281 = vunpack.c.h.b16 %v368
      %v1282 = vunpack.c.l.b16 %v369
      %v1283 = vunpack.c.h.b16 %v369
      %v1284 = vunpack.c.l.b16 %v370
      %v1285 = vunpack.c.h.b16 %v370
      %v1286 = vunpack.c.l.b16 %v371
      %v1287 = vunpack.c.h.b16 %v371
      %v1288 = vunpack.c.l.b16 %v372
      %v1289 = vunpack.c.h.b16 %v372
      %v1290 = vunpack.c.l.b16 %v373
      %v1291 = vunpack.c.h.b16 %v373
      %v1292 = vunpack.c.l.b16 %v374
      %v1293 = vunpack.c.h.b16 %v374
      %v1294 = vunpack.c.l.b16 %v375
      %v1295 = vunpack.c.h.b16 %v375
      %v1296 = vunpack.c.l.b16 %v376
      %v1297 = vunpack.c.h.b16 %v376
      %v1298 = vunpack.c.l.b16 %v377
      %v1299 = vunpack.c.h.b16 %v377
      %v1300 = vunpack.c.l.b16 %v378
      %v1301 = vunpack.c.h.b16 %v378
      %v1302 = vunpack.c.l.b16 %v379
      %v1303 = vunpack.c.h.b16 %v379
      %v1304 = vunpack.c.l.b16 %v380
      %v1305 = vunpack.c.h.b16 %v380
      %v1306 = vunpack.c.l.b16 %v381
      %v1307 = vunpack.c.h.b16 %v381
      %v1308 = vunpack.c.l.b16 %v382
      %v1309 = vunpack.c.h.b16 %v382
      %v1310 = vunpack.c.l.b16 %v383
      %v1311 = vunpack.c.h.b16 %v383
      %v1312 = vunpack.c.l.b16 %v384
      %v1313 = vunpack.c.h.b16 %v384
      %v1314 = vunpack.c.l.b16 %v385
      %v1315 = vunpack.c.h.b16 %v385
      %v1316 = vunpack.c.l.b16 %v386
      %v1317 = vunpack.c.h.b16 %v386
      %v1318 = vunpack.c.l.b16 %v387
      %v1319 = vunpack.c.h.b16 %v387
      %v1320 = vunpack.c.l.b16 %v388
      %v1321 = vunpack.c.h.b16 %v388
      %v1322 = vunpack.c.l.b16 %v389
      %v1323 = vunpack.c.h.b16 %v389
      %v1324 = vunpack.c.l.b16 %v390
      %v1325 = vunpack.c.h.b16 %v390
      %v1326 = vunpack.c.l.b16 %v391
      %v1327 = vunpack.c.h.b16 %v391
      %v1328 = vunpack.c.l.b16 %v392
      %v1329 = vunpack.c.h.b16 %v392
      %v1330 = vunpack.c.l.b16 %v393
      %v1331 = vunpack.c.h.b16 %v393
      %v1332 = vunpack.c.l.b16 %v394
      %v1333 = vunpack.c.h.b16 %v394
      %v1334 = vunpack.c.l.b16 %v395
      %v1335 = vunpack.c.h.b16 %v395
      %v1336 = vunpack.c.l.b16 %v396
      %v1337 = vunpack.c.h.b16 %v396
      %v1338 = vunpack.c.l.b16 %v397
      %v1339 = vunpack.c.h.b16 %v397
      %v1340 = vunpack.c.l.b16 %v398
      %v1341 = vunpack.c.h.b16 %v398
      %v1342 = vunpack.c.l.b16 %v399
      %v1343 = vunpack.c.h.b16 %v399
      %v1344 = vunpack.c.l.b16 %v400
      %v1345 = vunpack.c.h.b16 %v400
      %v1346 = vunpack.c.l.b16 %v401
      %v1347 = vunpack.c.h.b16 %v401
      %v1348 = vunpack.c.l.b16 %v402
      %v1349 = vunpack.c.h.b16 %v402
      %v1350 = vunpack.c.l.b16 %v403
      %v1351 = vunpack.c.h.b16 %v403
      %v1352 = vunpack.c.l.b16 %v404
      %v1353 = vunpack.c.h.b16 %v404
      %v1354 = vunpack.c.l.b16 %v405
      %v1355 = vunpack.c.h.b16 %v405
      %v1356 = vunpack.c.l.b16 %v406
      %v1357 = vunpack.c.h.b16 %v406
      %v1358 = vunpack.c.l.b16 %v407
      %v1359 = vunpack.c.h.b16 %v407
      %v1360 = vunpack.c.l.b16 %v408
      %v1361 = vunpack.c.h.b16 %v408
      %v1362 = vunpack.c.l.b16 %v409
      %v1363 = vunpack.c.h.b16 %v409
      %v1364 = vunpack.c.l.b16 %v410
      %v1365 = vunpack.c.h.b16 %v410
      %v1366 = vunpack.c.l.b16 %v411
      %v1367 = vunpack.c.h.b16 %v411
      %v1368 = vunpack.c.l.b16 %v412
      %v1369 = vunpack.c.h.b16 %v412
      %v1370 = vunpack.c.l.b16 %v413
      %v1371 = vunpack.c.h.b16 %v413
      %v1372 = vunpack.c.l.b16 %v414
      %v1373 = vunpack.c.h.b16 %v414
      %v1374 = vunpack.c.l.b16 %v415
      %v1375 = vunpack.c.h.b16 %v415
      %v1376 = vunpack.c.l.b16 %v416
      %v1377 = vunpack.c.h.b16 %v416
      %v1378 = vunpack.c.l.b16 %v417
      %v1379 = vunpack.c.h.b16 %v417
      %v1380 = vunpack.c.l.b16 %v418
      %v1381 = vunpack.c.h.b16 %v418
      %v1382 = vunpack.c.l.b16 %v419
      %v1383 = vunpack.c.h.b16 %v419
      %v1384 = vunpack.c.l.b16 %v420
      %v1385 = vunpack.c.h.b16 %v420
      %v1386 = vunpack.c.l.b16 %v421
      %v1387 = vunpack.c.h.b16 %v421
      %v1388 = vunpack.c.l.b16 %v422
      %v1389 = vunpack.c.h.b16 %v422
      %v1390 = vunpack.c.l.b16 %v423
      %v1391 = vunpack.c.h.b16 %v423
      %v1392 = vunpack.c.l.b16 %v424
      %v1393 = vunpack.c.h.b16 %v424
      %v1394 = vunpack.c.l.b16 %v425
      %v1395 = vunpack.c.h.b16 %v425
      %v1396 = vunpack.c.l.b16 %v426
      %v1397 = vunpack.c.h.b16 %v426
      %v1398 = vunpack.c.l.b16 %v427
      %v1399 = vunpack.c.h.b16 %v427
      %v1400 = vunpack.c.l.b16 %v428
      %v1401 = vunpack.c.h.b16 %v428
      %v1402 = vunpack.c.l.b16 %v429
      %v1403 = vunpack.c.h.b16 %v429
      %v1404 = vunpack.c.l.b16 %v430
      %v1405 = vunpack.c.h.b16 %v430
      %v1406 = vunpack.c.l.b16 %v431
      %v1407 = vunpack.c.h.b16 %v431
      %v1408 = vunpack.c.l.b16 %v432
      %v1409 = vunpack.c.h.b16 %v432
      %v1410 = vunpack.c.l.b16 %v433
      %v1411 = vunpack.c.h.b16 %v433
      %v1412 = vunpack.c.l.b16 %v434
      %v1413 = vunpack.c.h.b16 %v434
      %v1414 = vunpack.c.l.b16 %v435
      %v1415 = vunpack.c.h.b16 %v435
      %v1416 = vunpack.c.l.b16 %v436
      %v1417 = vunpack.c.h.b16 %v436
      %v1418 = vunpack.c.l.b16 %v437
      %v1419 = vunpack.c.h.b16 %v437
      %v1420 = vunpack.c.l.b16 %v438
      %v1421 = vunpack.c.h.b16 %v438
      %v1422 = vunpack.c.l.b16 %v439
      %v1423 = vunpack.c.h.b16 %v439
      %v1424 = vunpack.c.l.b16 %v440
      %v1425 = vunpack.c.h.b16 %v440
      %v1426 = vunpack.c.l.b16 %v441
      %v1427 = vunpack.c.h.b16 %v441
      %v1428 = vunpack.c.l.b16 %v442
      %v1429 = vunpack.c.h.b16 %v442
      %v1430 = vunpack.c.l.b16 %v443
      %v1431 = vunpack.c.h.b16 %v443
      %v1432 = vunpack.c.l.b16 %v444
      %v1433 = vunpack.c.h.b16 %v444
      %v1434 = vunpack.c.l.b16 %v445
      %v1435 = vunpack.c.h.b16 %v445
      %v1436 = vunpack.c.l.b16 %v446
      %v1437 = vunpack.c.h.b16 %v446
      %v1438 = vunpack.c.l.b16 %v447
      %v1439 = vunpack.c.h.b16 %v447
      %v1440 = vunpack.c.l.b16 %v448
      %v1441 = vunpack.c.h.b16 %v448
      %v1442 = vunpack.c.l.b16 %v449
      %v1443 = vunpack.c.h.b16 %v449
      %v1444 = vunpack.c.l.b16 %v450
      %v1445 = vunpack.c.h.b16 %v450
      %v1446 = vunpack.c.l.b16 %v451
      %v1447 = vunpack.c.h.b16 %v451
      %v1448 = vunpack.c.l.b16 %v452
      %v1449 = vunpack.c.h.b16 %v452
      %v1450 = vunpack.c.l.b16 %v453
      %v1451 = vunpack.c.h.b16 %v453
      %v1452 = vunpack.c.l.b16 %v454
      %v1453 = vunpack.c.h.b16 %v454
      %v1454 = vunpack.c.l.b16 %v455
      %v1455 = vunpack.c.h.b16 %v455
      %v1456 = vunpack.c.l.b16 %v456
      %v1457 = vunpack.c.h.b16 %v456
      %v1458 = vunpack.c.l.b16 %v457
      %v1459 = vunpack.c.h.b16 %v457
      %v1460 = vunpack.c.l.b16 %v458
      %v1461 = vunpack.c.h.b16 %v458
      %v1462 = vunpack.c.l.b16 %v459
      %v1463 = vunpack.c.h.b16 %v459
      %v1464 = vunpack.c.l.b16 %v460
      %v1465 = vunpack.c.h.b16 %v460
      %v1466 = vunpack.c.l.b16 %v461
      %v1467 = vunpack.c.h.b16 %v461
      %v1468 = vunpack.c.l.b16 %v462
      %v1469 = vunpack.c.h.b16 %v462
      %v1470 = vunpack.c.l.b16 %v463
      %v1471 = vunpack.c.h.b16 %v463
      %v1472 = vunpack.c.l.b16 %v464
      %v1473 = vunpack.c.h.b16 %v464
      %v1474 = vunpack.c.l.b16 %v465
      %v1475 = vunpack.c.h.b16 %v465
      %v1476 = vunpack.c.l.b16 %v466
      %v1477 = vunpack.c.h.b16 %v466
      %v1478 = vunpack.c.l.b16 %v467
      %v1479 = vunpack.c.h.b16 %v467
      %v1480 = vunpack.c.l.b16 %v468
      %v1481 = vunpack.c.h.b16 %v468
      %v1482 = vunpack.c.l.b16 %v469
      %v1483 = vunpack.c.h.b16 %v469
      %v1484 = vunpack.c.l.b16 %v470
      %v1485 = vunpack.c.h.b16 %v470
      %v1486 = vunpack.c.l.b16 %v471
      %v1487 = vunpack.c.h.b16 %v471
      %v1488 = vunpack.c.l.b16 %v472
      %v1489 = vunpack.c.h.b16 %v472
      %v1490 = vunpack.c.l.b16 %v473
      %v1491 = vunpack.c.h.b16 %v473
      %v1492 = vunpack.c.l.b16 %v474
      %v1493 = vunpack.c.h.b16 %v474
      %v1494 = vunpack.c.l.b16 %v475
      %v1495 = vunpack.c.h.b16 %v475
      %v1496 = vunpack.c.l.b16 %v476
      %v1497 = vunpack.c.h.b16 %v476
      %v1498 = vunpack.c.l.b16 %v477
      %v1499 = vunpack.c.h.b16 %v477
      %v1500 = vunpack.c.l.b16 %v478
      %v1501 = vunpack.c.h.b16 %v478
      %v1502 = vunpack.c.l.b16 %v479
      %v1503 = vunpack.c.h.b16 %v479
      %v1504 = vunpack.c.l.b16 %v480
      %v1505 = vunpack.c.h.b16 %v480
      %v1506 = vunpack.c.l.b16 %v481
      %v1507 = vunpack.c.h.b16 %v481
      %v1508 = vunpack.c.l.b16 %v482
      %v1509 = vunpack.c.h.b16 %v482
      %v1510 = vunpack.c.l.b16 %v483
      %v1511 = vunpack.c.h.b16 %v483
      %v1512 = vunpack.c.l.b16 %v484
      %v1513 = vunpack.c.h.b16 %v484
      %v1514 = vunpack.c.l.b16 %v485
      %v1515 = vunpack.c.h.b16 %v485
      %v1516 = vunpack.c.l.b16 %v486
      %v1517 = vunpack.c.h.b16 %v486
      %v1518 = vunpack.c.l.b16 %v487
      %v1519 = vunpack.c.h.b16 %v487
      %v1520 = vunpack.c.l.b16 %v488
      %v1521 = vunpack.c.h.b16 %v488
      %v1522 = vunpack.c.l.b16 %v489
      %v1523 = vunpack.c.h.b16 %v489
      %v1524 = vunpack.c.l.b16 %v490
      %v1525 = vunpack.c.h.b16 %v490
      %v1526 = vunpack.c.l.b16 %v491
      %v1527 = vunpack.c.h.b16 %v491
      %v1528 = vunpack.c.l.b16 %v492
      %v1529 = vunpack.c.h.b16 %v492
      %v1530 = vunpack.c.l.b16 %v493
      %v1531 = vunpack.c.h.b16 %v493
      %v1532 = vunpack.c.l.b16 %v494
      %v1533 = vunpack.c.h.b16 %v494
      %v1534 = vunpack.c.l.b16 %v495
      %v1535 = vunpack.c.h.b16 %v495
      %v1536 = vunpack.c.l.b16 %v496
      %v1537 = vunpack.c.h.b16 %v496
      %v1538 = vunpack.c.l.b16 %v497
      %v1539 = vunpack.c.h.b16 %v497
      %v1540 = vunpack.c.l.b16 %v498
      %v1541 = vunpack.c.h.b16 %v498
      %v1542 = vunpack.c.l.b16 %v499
      %v1543 = vunpack.c.h.b16 %v499
      %v1544 = vunpack.c.l.b16 %v500
      %v1545 = vunpack.c.h.b16 %v500
      %v1546 = vunpack.c.l.b16 %v501
      %v1547 = vunpack.c.h.b16 %v501
      %v1548 = vunpack.c.l.b16 %v502
      %v1549 = vunpack.c.h.b16 %v502
      %v1550 = vunpack.c.l.b16 %v503
      %v1551 = vunpack.c.h.b16 %v503
      %v1552 = vunpack.c.l.b16 %v504
      %v1553 = vunpack.c.h.b16 %v504
      %v1554 = vunpack.c.l.b16 %v505
      %v1555 = vunpack.c.h.b16 %v505
      %v1556 = vunpack.c.l.b16 %v506
      %v1557 = vunpack.c.h.b16 %v506
      %v1558 = vunpack.c.l.b16 %v507
      %v1559 = vunpack.c.h.b16 %v507
      %v1560 = vunpack.c.l.b16 %v508
      %v1561 = vunpack.c.h.b16 %v508
      %v1562 = vunpack.c.l.b16 %v509
      %v1563 = vunpack.c.h.b16 %v509
      %v1564 = vunpack.c.l.b16 %v510
      %v1565 = vunpack.c.h.b16 %v510
      %v1566 = vunpack.c.l.b16 %v511
      %v1567 = vunpack.c.h.b16 %v511
      %v1568 = vunpack.c.l.b16 %v512
      %v1569 = vunpack.c.h.b16 %v512
      %v1570 = vunpack.c.l.b16 %v513
      %v1571 = vunpack.c.h.b16 %v513
      %v1572 = vunpack.c.l.b16 %v514
      %v1573 = vunpack.c.h.b16 %v514
      %v1574 = vunpack.c.l.b16 %v515
      %v1575 = vunpack.c.h.b16 %v515
      %v1576 = vunpack.c.l.b16 %v516
      %v1577 = vunpack.c.h.b16 %v516
      %v1578 = vunpack.c.l.b16 %v517
      %v1579 = vunpack.c.h.b16 %v517
      %v1580 = vunpack.c.l.b16 %v518
      %v1581 = vunpack.c.h.b16 %v518
      %v1582 = vunpack.c.l.b16 %v519
      %v1583 = vunpack.c.h.b16 %v519
      %v1584 = vunpack.c.l.b16 %v520
      %v1585 = vunpack.c.h.b16 %v520
      %v1586 = vunpack.c.l.b16 %v521
      %v1587 = vunpack.c.h.b16 %v521
      %v1588 = vunpack.c.l.b16 %v522
      %v1589 = vunpack.c.h.b16 %v522
      %v1590 = vunpack.c.l.b16 %v523
      %v1591 = vunpack.c.h.b16 %v523
      %v1592 = vunpack.c.l.b16 %v524
      %v1593 = vunpack.c.h.b16 %v524
      %v1594 = vunpack.c.l.b16 %v525
      %v1595 = vunpack.c.h.b16 %v525
      %v1596 = vunpack.c.l.b16 %v526
      %v1597 = vunpack.c.h.b16 %v526
      %v1598 = vunpack.c.l.b16 %v527
      %v1599 = vunpack.c.h.b16 %v527
      %v1600 = vunpack.c.l.b16 %v528
      %v1601 = vunpack.c.h.b16 %v528
      %v1602 = vunpack.c.l.b16 %v529
      %v1603 = vunpack.c.h.b16 %v529
      %v1604 = vunpack.c.l.b16 %v530
      %v1605 = vunpack.c.h.b16 %v530
      %v1606 = vunpack.c.l.b16 %v531
      %v1607 = vunpack.c.h.b16 %v531
      %v1608 = vunpack.c.l.b16 %v532
      %v1609 = vunpack.c.h.b16 %v532
      %v1610 = vunpack.c.l.b16 %v533
      %v1611 = vunpack.c.h.b16 %v533
      %v1612 = vpack.c.b16 %v1224, %v1220
      %v1613 = vpack.c.b16 %v1225, %v1221
      %v1614 = vpack.c.b16 %v1226, %v1222
      %v1615 = vpack.c.b16 %v1227, %v1223
      %v1616 = vpack.c.b16 %v1232, %v1228
      %v1617 = vpack.c.b16 %v1233, %v1229
      %v1618 = vpack.c.b16 %v1234, %v1230
      %v1619 = vpack.c.b16 %v1235, %v1231
      %v1620 = vpack.c.b16 %v1240, %v1236
      %v1621 = vpack.c.b16 %v1241, %v1237
      %v1622 = vpack.c.b16 %v1242, %v1238
      %v1623 = vpack.c.b16 %v1243, %v1239
      %v1624 = vpack.c.b16 %v1248, %v1244
      %v1625 = vpack.c.b16 %v1249, %v1245
      %v1626 = vpack.c.b16 %v1250, %v1246
      %v1627 = vpack.c.b16 %v1251, %v1247
      %v1628 = vpack.c.b16 %v1256, %v1252
      %v1629 = vpack.c.b16 %v1257, %v1253
      %v1630 = vpack.c.b16 %v1258, %v1254
      %v1631 = vpack.c.b16 %v1259, %v1255
      %v1632 = vpack.c.b16 %v1264, %v1260
      %v1633 = vpack.c.b16 %v1265, %v1261
      %v1634 = vpack.c.b16 %v1266, %v1262
      %v1635 = vpack.c.b16 %v1267, %v1263
      %v1636 = vpack.c.b16 %v1272, %v1268
      %v1637 = vpack.c.b16 %v1273, %v1269
      %v1638 = vpack.c.b16 %v1274, %v1270
      %v1639 = vpack.c.b16 %v1275, %v1271
      %v1640 = vpack.c.b16 %v1280, %v1276
      %v1641 = vpack.c.b16 %v1281, %v1277
      %v1642 = vpack.c.b16 %v1282, %v1278
      %v1643 = vpack.c.b16 %v1283, %v1279
      %v1644 = vpack.c.b16 %v1288, %v1284
      %v1645 = vpack.c.b16 %v1289, %v1285
      %v1646 = vpack.c.b16 %v1290, %v1286
      %v1647 = vpack.c.b16 %v1291, %v1287
      %v1648 = vpack.c.b16 %v1296, %v1292
      %v1649 = vpack.c.b16 %v1297, %v1293
      %v1650 = vpack.c.b16 %v1298, %v1294
      %v1651 = vpack.c.b16 %v1299, %v1295
      %v1652 = vpack.c.b16 %v1304, %v1300
      %v1653 = vpack.c.b16 %v1305, %v1301
      %v1654 = vpack.c.b16 %v1306, %v1302
      %v1655 = vpack.c.b16 %v1307, %v1303
      %v1656 = vpack.c.b16 %v1312, %v1308
      %v1657 = vpack.c.b16 %v1313, %v1309
      %v1658 = vpack.c.b16 %v1314, %v1310
      %v1659 = vpack.c.b16 %v1315, %v1311
      %v1660 = vpack.c.b16 %v1320, %v1316
      %v1661 = vpack.c.b16 %v1321, %v1317
      %v1662 = vpack.c.b16 %v1322, %v1318
      %v1663 = vpack.c.b16 %v1323, %v1319
      %v1664 = vpack.c.b16 %v1328, %v1324
      %v1665 = vpack.c.b16 %v1329, %v1325
      %v1666 = vpack.c.b16 %v1330, %v1326
      %v1667 = vpack.c.b16 %v1331, %v1327
      %v1668 = vpack.c.b16 %v1336, %v1332
      %v1669 = vpack.c.b16 %v1337, %v1333
      %v1670 = vpack.c.b16 %v1338, %v1334
      %v1671 = vpack.c.b16 %v1339, %v1335
      %v1672 = vpack.c.b16 %v1344, %v1340
      %v1673 = vpack.c.b16 %v1345, %v1341
      %v1674 = vpack.c.b16 %v1346, %v1342
      %v1675 = vpack.c.b16 %v1347, %v1343
      %v1676 = vpack.c.b16 %v1352, %v1348
      %v1677 = vpack.c.b16 %v1353, %v1349
      %v1678 = vpack.c.b16 %v1354, %v1350
      %v1679 = vpack.c.b16 %v1355, %v1351
      %v1680 = vpack.c.b16 %v1360, %v1356
      %v1681 = vpack.c.b16 %v1361, %v1357
      %v1682 = vpack.c.b16 %v1362, %v1358
      %v1683 = vpack.c.b16 %v1363, %v1359
      %v1684 = vpack.c.b16 %v1368, %v1364
      %v1685 = vpack.c.b16 %v1369, %v1365
      %v1686 = vpack.c.b16 %v1370, %v1366
      %v1687 = vpack.c.b16 %v1371, %v1367
      %v1688 = vpack.c.b16 %v1376, %v1372
      %v1689 = vpack.c.b16 %v1377, %v1373
      %v1690 = vpack.c.b16 %v1378, %v1374
      %v1691 = vpack.c.b16 %v1379, %v1375
      %v1692 = vpack.c.b16 %v1384, %v1380
      %v1693 = vpack.c.b16 %v1385, %v1381
      %v1694 = vpack.c.b16 %v1386, %v1382
      %v1695 = vpack.c.b16 %v1387, %v1383
      %v1696 = vpack.c.b16 %v1392, %v1388
      %v1697 = vpack.c.b16 %v1393, %v1389
      %v1698 = vpack.c.b16 %v1394, %v1390
      %v1699 = vpack.c.b16 %v1395, %v1391
      %v1700 = vpack.c.b16 %v1400, %v1396
      %v1701 = vpack.c.b16 %v1401, %v1397
      %v1702 = vpack.c.b16 %v1402, %v1398
      %v1703 = vpack.c.b16 %v1403, %v1399
      %v1704 = vpack.c.b16 %v1408, %v1404
      %v1705 = vpack.c.b16 %v1409, %v1405
      %v1706 = vpack.c.b16 %v1410, %v1406
      %v1707 = vpack.c.b16 %v1411, %v1407
      %v1708 = vpack.c.b16 %v1416, %v1412
      %v1709 = vpack.c.b16 %v1417, %v1413
      %v1710 = vpack.c.b16 %v1418, %v1414
      %v1711 = vpack.c.b16 %v1419, %v1415
      %v1712 = vpack.c.b16 %v1424, %v1420
      %v1713 = vpack.c.b16 %v1425, %v1421
      %v1714 = vpack.c.b16 %v1426, %v1422
      %v1715 = vpack.c.b16 %v1427, %v1423
      %v1716 = vpack.c.b16 %v1432, %v1428
      %v1717 = vpack.c.b16 %v1433, %v1429
      %v1718 = vpack.c.b16 %v1434, %v1430
      %v1719 = vpack.c.b16 %v1435, %v1431
      %v1720 = vpack.c.b16 %v1440, %v1436
      %v1721 = vpack.c.b16 %v1441, %v1437
      %v1722 = vpack.c.b16 %v1442, %v1438
      %v1723 = vpack.c.b16 %v1443, %v1439
      %v1724 = vpack.c.b16 %v1448, %v1444
      %v1725 = vpack.c.b16 %v1449, %v1445
      %v1726 = vpack.c.b16 %v1450, %v1446
      %v1727 = vpack.c.b16 %v1451, %v1447
      %v1728 = vpack.c.b16 %v1456, %v1452
      %v1729 = vpack.c.b16 %v1457, %v1453
      %v1730 = vpack.c.b16 %v1458, %v1454
      %v1731 = vpack.c.b16 %v1459, %v1455
      %v1732 = vpack.c.b16 %v1464, %v1460
      %v1733 = vpack.c.b16 %v1465, %v1461
      %v1734 = vpack.c.b16 %v1466, %v1462
      %v1735 = vpack.c.b16 %v1467, %v1463
      %v1736 = vpack.c.b16 %v1472, %v1468
      %v1737 = vpack.c.b16 %v1473, %v1469
      %v1738 = vpack.c.b16 %v1474, %v1470
      %v1739 = vpack.c.b16 %v1475, %v1471
      %v1740 = vpack.c.b16 %v1480, %v1476
      %v1741 = vpack.c.b16 %v1481, %v1477
      %v1742 = vpack.c.b16 %v1482, %v1478
      %v1743 = vpack.c.b16 %v1483, %v1479
      %v1744 = vpack.c.b16 %v1488, %v1484
      %v1745 = vpack.c.b16 %v1489, %v1485
      %v1746 = vpack.c.b16 %v1490, %v1486
      %v1747 = vpack.c.b16 %v1491, %v1487
      %v1748 = vpack.c.b16 %v1496, %v1492
      %v1749 = vpack.c.b16 %v1497, %v1493
      %v1750 = vpack.c.b16 %v1498, %v1494
      %v1751 = vpack.c.b16 %v1499, %v1495
      %v1752 = vpack.c.b16 %v1504, %v1500
      %v1753 = vpack.c.b16 %v1505, %v1501
      %v1754 = vpack.c.b16 %v1506, %v1502
      %v1755 = vpack.c.b16 %v1507, %v1503
      %v1756 = vpack.c.b16 %v1512, %v1508
      %v1757 = vpack.c.b16 %v1513, %v1509
      %v1758 = vpack.c.b16 %v1514, %v1510
      %v1759 = vpack.c.b16 %v1515, %v1511
      %v1760 = vpack.c.b16 %v1520, %v1516
      %v1761 = vpack.c.b16 %v1521, %v1517
      %v1762 = vpack.c.b16 %v1522, %v1518
      %v1763 = vpack.c.b16 %v1523, %v1519
      %v1764 = vpack.c.b16 %v1528, %v1524
      %v1765 = vpack.c.b16 %v1529, %v1525
      %v1766 = vpack.c.b16 %v1530, %v1526
      %v1767 = vpack.c.b16 %v1531, %v1527
      %v1768 = vpack.c.b16 %v1536, %v1532
      %v1769 = vpack.c.b16 %v1537, %v1533
      %v1770 = vpack.c.b16 %v1538, %v1534
      %v1771 = vpack.c.b16 %v1539, %v1535
      %v1772 = vpack.c.b16 %v1544, %v1540
      %v1773 = vpack.c.b16 %v1545, %v1541
      %v1774 = vpack.c.b16 %v1546, %v1542
      %v1775 = vpack.c.b16 %v1547, %v1543
      %v1776 = vpack.c.b16 %v1552, %v1548
      %v1777 = vpack.c.b16 %v1553, %v1549
      %v1778 = vpack.c.b16 %v1554, %v1550
      %v1779 = vpack.c.b16 %v1555, %v1551
      %v1780 = vpack.c.b16 %v1560, %v1556
      %v1781 = vpack.c.b16 %v1561, %v1557
      %v1782 = vpack.c.b16 %v1562, %v1558
      %v1783 = vpack.c.b16 %v1563, %v1559
      %v1784 = vpack.c.b16 %v1568, %v1564
      %v1785 = vpack.c.b16 %v1569, %v1565
      %v1786 = vpack.c.b16 %v1570, %v1566
      %v1787 = vpack.c.b16 %v1571, %v1567
      %v1788 = vpack.c.b16 %v1576, %v1572
      %v1789 = vpack.c.b16 %v1577, %v1573
      %v1790 = vpack.c.b16 %v1578, %v1574
      %v1791 = vpack.c.b16 %v1579, %v1575
      %v1792 = vpack.c.b16 %v1584, %v1580
      %v1793 = vpack.c.b16 %v1585, %v1581
      %v1794 = vpack.c.b16 %v1586, %v1582
      %v1795 = vpack.c.b16 %v1587, %v1583
      %v1796 = vpack.c.b16 %v1592, %v1588
      %v1797 = vpack.c.b16 %v1593, %v1589
      %v1798 = vpack.c.b16 %v1594, %v1590
      %v1799 = vpack.c.b16 %v1595, %v1591
      %v1800 = vpack.c.b16 %v1600, %v1596
      %v1801 = vpack.c.b16 %v1601, %v1597
      %v1802 = vpack.c.b16 %v1602, %v1598
      %v1803 = vpack.c.b16 %v1603, %v1599
      %v1804 = vpack.c.b16 %v1608, %v1604
      %v1805 = vpack.c.b16 %v1609, %v1605
      %v1806 = vpack.c.b16 %v1610, %v1606
      %v1807 = vpack.c.b16 %v1611, %v1607
      %vm2004 = vcmask 130048
      %v2006 = vsel %vm2004, %v848, 0
      %v2009 = vsel %vm2004, %v855, 0
      %v2012 = vsel %vm2004, %v862, 0
      %v2015 = vsel %vm2004, %v869, 0
      %v2018 = vsel %vm2004, %v876, 0
      %v2021 = vsel %vm2004, %v883, 0
      %v2024 = vsel %vm2004, %v890, 0
      %v2027 = vsel %vm2004, %v897, 0
      %v2030 = vsel %vm2004, %v904, 0
      %v2033 = vsel %vm2004, %v911, 0
      %v2036 = vsel %vm2004, %v918, 0
      %v2039 = vsel %vm2004, %v925, 0
      %v2042 = vsel %vm2004, %v932, 0
      %v2045 = vsel %vm2004, %v939, 0
      %2047 = vmatprep.subr.bf16.mxu0 %v1613
      %2048 = vmatpush1.bf16.msra.mxu0 %v1612
      %2049 = vmatprep.subr.bf16.mxu0 %v1617
      %2050 = vmatpush1.bf16.msra.mxu0 %v1616
      %2051 = vmatprep.subr.bf16.mxu0 %v1621
      %2052 = vmatpush1.bf16.msra.mxu0 %v1620
      %2053 = vmatprep.subr.bf16.mxu0 %v1625
      %2054 = vmatpush1.bf16.msra.mxu0 %v1624
      %2055 = vmatprep.subr.bf16.mxu0 %v1629
      %2056 = vmatpush1.bf16.msra.mxu0 %v1628
      %2057 = vmatprep.subr.bf16.mxu0 %v1633
      %2058 = vmatpush1.bf16.msra.mxu0 %v1632
      %2059 = vmatprep.subr.bf16.mxu0 %v1637
      %2060 = vmatpush1.bf16.msra.mxu0 %v1636
      %2061 = vmatprep.subr.bf16.mxu0 %v1641
      %2062 = vmatpush1.bf16.msra.mxu0 %v1640
      %2063 = vmatprep.subr.bf16.mxu0 %v1645
      %2064 = vmatpush1.bf16.msra.mxu0 %v1644
      %2065 = vmatprep.subr.bf16.mxu0 %v1649
      %2066 = vmatpush1.bf16.msra.mxu0 %v1648
      %2067 = vmatprep.subr.bf16.mxu0 %v1653
      %2068 = vmatpush1.bf16.msra.mxu0 %v1652
      %2069 = vmatprep.subr.bf16.mxu0 %v1657
      %2070 = vmatpush1.bf16.msra.mxu0 %v1656
      %2071 = vmatprep.subr.bf16.mxu0 %v1661
      %2072 = vmatpush1.bf16.msra.mxu0 %v1660
      %2073 = vmatprep.subr.bf16.mxu0 %v1665
      %2074 = vmatpush1.bf16.msra.mxu0 %v1664
      %2075 = vmatprep.subr.bf16.mxu0 %v1669
      %2076 = vmatpush1.bf16.msra.mxu0 %v1668
      %2077 = vmatprep.subr.bf16.mxu0 %v1673
      %2078 = vmatpush1.bf16.msra.mxu0 %v1672
      %2079 = vmatprep.mubr.bf16.mxu0 %v843
      %2080 = vmatmul.mubr.bf16.gmra.mrb[0].mxu0 %v842
      %v2081 = vpop.f32.mrb[0].mxu0
      %v2082 = vadd.f32 0.0, %v2081
      %v2083 = vpop.f32.mrb[0].mxu0
      %v2084 = vadd.f32 0.0, %v2083
      %v2085 = vpop.f32.mrb[0].mxu0
      %v2086 = vadd.f32 0.0, %v2085
      %v2087 = vpop.f32.mrb[0].mxu0
      %v2088 = vadd.f32 0.0, %v2087
      %2089 = vmatprep.mubr.bf16.mxu0 %v850
      %2090 = vmatmul.mubr.bf16.gmra.mrb[0].mxu0 %v849
      %v2091 = vpop.f32.mrb[0].mxu0
      %v2092 = vadd.f32 0.0, %v2091
      %v2093 = vpop.f32.mrb[0].mxu0
      %v2094 = vadd.f32 0.0, %v2093
      %v2095 = vpop.f32.mrb[0].mxu0
      %v2096 = vadd.f32 0.0, %v2095
      %v2097 = vpop.f32.mrb[0].mxu0
      %v2098 = vadd.f32 0.0, %v2097
      %2099 = vmatprep.mubr.bf16.mxu0 %v857
      %2100 = vmatmul.mubr.bf16.gmra.mrb[0].mxu0 %v856
      %v2101 = vpop.f32.mrb[0].mxu0
      %v2102 = vadd.f32 0.0, %v2101
      %v2103 = vpop.f32.mrb[0].mxu0
      %v2104 = vadd.f32 0.0, %v2103
      %v2105 = vpop.f32.mrb[0].mxu0
      %v2106 = vadd.f32 0.0, %v2105
      %v2107 = vpop.f32.mrb[0].mxu0
      %v2108 = vadd.f32 0.0, %v2107
      %2109 = vmatprep.mubr.bf16.mxu0 %v864
      %2110 = vmatmul.mubr.bf16.gmra.mrb[0].mxu0 %v863
      %v2111 = vpop.f32.mrb[0].mxu0
      %v2112 = vadd.f32 0.0, %v2111
      %v2113 = vpop.f32.mrb[0].mxu0
      %v2114 = vadd.f32 0.0, %v2113
      %v2115 = vpop.f32.mrb[0].mxu0
      %v2116 = vadd.f32 0.0, %v2115
      %v2117 = vpop.f32.mrb[0].mxu0
      %v2118 = vadd.f32 0.0, %v2117
      %2119 = vmatprep.mubr.bf16.mxu0 %v871
      %2120 = vmatmul.mubr.bf16.gmra.mrb[0].mxu0 %v870
      %v2121 = vpop.f32.mrb[0].mxu0
      %v2122 = vadd.f32 0.0, %v2121
      %v2123 = vpop.f32.mrb[0].mxu0
      %v2124 = vadd.f32 0.0, %v2123
      %v2125 = vpop.f32.mrb[0].mxu0
      %v2126 = vadd.f32 0.0, %v2125
      %v2127 = vpop.f32.mrb[0].mxu0
      %v2128 = vadd.f32 0.0, %v2127
      %2129 = vmatprep.mubr.bf16.mxu0 %v878
      %2130 = vmatmul.mubr.bf16.gmra.mrb[0].mxu0 %v877
      %v2131 = vpop.f32.mrb[0].mxu0
      %v2132 = vadd.f32 0.0, %v2131
      %v2133 = vpop.f32.mrb[0].mxu0
      %v2134 = vadd.f32 0.0, %v2133
      %v2135 = vpop.f32.mrb[0].mxu0
      %v2136 = vadd.f32 0.0, %v2135
      %v2137 = vpop.f32.mrb[0].mxu0
      %v2138 = vadd.f32 0.0, %v2137
      %2139 = vmatprep.mubr.bf16.mxu0 %v885
      %2140 = vmatmul.mubr.bf16.gmra.mrb[0].mxu0 %v884
      %v2141 = vpop.f32.mrb[0].mxu0
      %v2142 = vadd.f32 0.0, %v2141
      %v2143 = vpop.f32.mrb[0].mxu0
      %v2144 = vadd.f32 0.0, %v2143
      %v2145 = vpop.f32.mrb[0].mxu0
      %v2146 = vadd.f32 0.0, %v2145
      %v2147 = vpop.f32.mrb[0].mxu0
      %v2148 = vadd.f32 0.0, %v2147
      %2149 = vmatprep.mubr.bf16.mxu0 %v892
      %2150 = vmatmul.mubr.bf16.gmra.mrb[0].mxu0 %v891
      %v2151 = vpop.f32.mrb[0].mxu0
      %v2152 = vadd.f32 0.0, %v2151
      %v2153 = vpop.f32.mrb[0].mxu0
      %v2154 = vadd.f32 0.0, %v2153
      %v2155 = vpop.f32.mrb[0].mxu0
      %v2156 = vadd.f32 0.0, %v2155
      %v2157 = vpop.f32.mrb[0].mxu0
      %v2158 = vadd.f32 0.0, %v2157
      %2159 = vmatprep.mubr.bf16.mxu0 %v899
      %2160 = vmatmul.mubr.bf16.gmra.mrb[0].mxu0 %v898
      %v2161 = vpop.f32.mrb[0].mxu0
      %v2162 = vadd.f32 0.0, %v2161
      %v2163 = vpop.f32.mrb[0].mxu0
      %v2164 = vadd.f32 0.0, %v2163
      %v2165 = vpop.f32.mrb[0].mxu0
      %v2166 = vadd.f32 0.0, %v2165
      %v2167 = vpop.f32.mrb[0].mxu0
      %v2168 = vadd.f32 0.0, %v2167
      %2169 = vmatprep.mubr.bf16.mxu0 %v906
      %2170 = vmatmul.mubr.bf16.gmra.mrb[0].mxu0 %v905
      %v2171 = vpop.f32.mrb[0].mxu0
      %v2172 = vadd.f32 0.0, %v2171
      %v2173 = vpop.f32.mrb[0].mxu0
      %v2174 = vadd.f32 0.0, %v2173
      %v2175 = vpop.f32.mrb[0].mxu0
      %v2176 = vadd.f32 0.0, %v2175
      %v2177 = vpop.f32.mrb[0].mxu0
      %v2178 = vadd.f32 0.0, %v2177
      %2179 = vmatprep.mubr.bf16.mxu0 %v913
      %2180 = vmatmul.mubr.bf16.gmra.mrb[0].mxu0 %v912
      %v2181 = vpop.f32.mrb[0].mxu0
      %v2182 = vpop.f32.mrb[0].mxu0
      %v2183 = vadd.f32 0.0, %v2182
      %v2184 = vpop.f32.mrb[0].mxu0
      %v2185 = vpop.f32.mrb[0].mxu0
      %v2186 = vadd.f32 0.0, %v2185
      %2187 = vmatprep.mubr.bf16.mxu0 %v920
      %2188 = vmatmul.mubr.bf16.gmra.mrb[0].mxu0 %v919
      %v2189 = vpop.f32.mrb[0].mxu0
      %v2190 = vpop.f32.mrb[0].mxu0
      %v2191 = vadd.f32 0.0, %v2190
      %v2192 = vpop.f32.mrb[0].mxu0
      %v2193 = vpop.f32.mrb[0].mxu0
      %v2194 = vadd.f32 0.0, %v2193
      %2195 = vmatprep.mubr.bf16.mxu0 %v927
      %2196 = vmatmul.mubr.bf16.gmra.mrb[0].mxu0 %v926
      %v2197 = vpop.f32.mrb[0].mxu0
      %v2198 = vpop.f32.mrb[0].mxu0
      %v2199 = vadd.f32 0.0, %v2198
      %v2200 = vpop.f32.mrb[0].mxu0
      %v2201 = vpop.f32.mrb[0].mxu0
      %v2202 = vadd.f32 0.0, %v2201
      %2203 = vmatprep.mubr.bf16.mxu0 %v934
      %2204 = vmatmul.mubr.bf16.gmra.mrb[0].mxu0 %v933
      %v2205 = vpop.f32.mrb[0].mxu0
      %v2206 = vpop.f32.mrb[0].mxu0
      %v2207 = vadd.f32 0.0, %v2206
      %v2208 = vpop.f32.mrb[0].mxu0
      %v2209 = vpop.f32.mrb[0].mxu0
      %v2210 = vadd.f32 0.0, %v2209
      %2211 = vdwg.mxu0
      %2212 = vmatprep.subr.bf16.mxu0 %v1677
      %2213 = vmatpush1.bf16.msra.mxu0 %v1676
      %2214 = vmatprep.subr.bf16.mxu0 %v1681
      %2215 = vmatpush1.bf16.msra.mxu0 %v1680
      %2216 = vmatprep.subr.bf16.mxu0 %v1685
      %2217 = vmatpush1.bf16.msra.mxu0 %v1684
      %2218 = vmatprep.subr.bf16.mxu0 %v1689
      %2219 = vmatpush1.bf16.msra.mxu0 %v1688
      %2220 = vmatprep.subr.bf16.mxu0 %v1693
      %2221 = vmatpush1.bf16.msra.mxu0 %v1692
      %2222 = vmatprep.subr.bf16.mxu0 %v1697
      %2223 = vmatpush1.bf16.msra.mxu0 %v1696
      %2224 = vmatprep.subr.bf16.mxu0 %v1701
      %2225 = vmatpush1.bf16.msra.mxu0 %v1700
      %2226 = vmatprep.subr.bf16.mxu0 %v1705
      %2227 = vmatpush1.bf16.msra.mxu0 %v1704
      %2228 = vmatprep.subr.bf16.mxu0 %v1709
      %2229 = vmatpush1.bf16.msra.mxu0 %v1708
      %2230 = vmatprep.subr.bf16.mxu0 %v1713
      %2231 = vmatpush1.bf16.msra.mxu0 %v1712
      %2232 = vmatprep.subr.bf16.mxu0 %v1717
      %2233 = vmatpush1.bf16.msra.mxu0 %v1716
      %2234 = vmatprep.subr.bf16.mxu0 %v1721
      %2235 = vmatpush1.bf16.msra.mxu0 %v1720
      %2236 = vmatprep.subr.bf16.mxu0 %v1725
      %2237 = vmatpush1.bf16.msra.mxu0 %v1724
      %2238 = vmatprep.subr.bf16.mxu0 %v1729
      %2239 = vmatpush1.bf16.msra.mxu0 %v1728
      %2240 = vmatprep.subr.bf16.mxu0 %v1733
      %2241 = vmatpush1.bf16.msra.mxu0 %v1732
      %2242 = vmatprep.subr.bf16.mxu0 %v1737
      %2243 = vmatpush1.bf16.msra.mxu0 %v1736
      %2244 = vmatprep.mubr.bf16.mxu0 %v845
      %2245 = vmatmul.mubr.bf16.gmra.mrb[0].mxu0 %v844
      %v2246 = vpop.f32.mrb[0].mxu0
      %v2247 = vadd.f32 %v2082, %v2246
      %v2248 = vpop.f32.mrb[0].mxu0
      %v2249 = vadd.f32 %v2084, %v2248
      %v2250 = vpop.f32.mrb[0].mxu0
      %v2251 = vadd.f32 %v2086, %v2250
      %v2252 = vpop.f32.mrb[0].mxu0
      %v2253 = vadd.f32 %v2088, %v2252
      %2254 = vmatprep.mubr.bf16.mxu0 %v852
      %2255 = vmatmul.mubr.bf16.gmra.mrb[0].mxu0 %v851
      %v2256 = vpop.f32.mrb[0].mxu0
      %v2257 = vadd.f32 %v2092, %v2256
      %v2258 = vpop.f32.mrb[0].mxu0
      %v2259 = vadd.f32 %v2094, %v2258
      %v2260 = vpop.f32.mrb[0].mxu0
      %v2261 = vadd.f32 %v2096, %v2260
      %v2262 = vpop.f32.mrb[0].mxu0
      %v2263 = vadd.f32 %v2098, %v2262
      %2264 = vmatprep.mubr.bf16.mxu0 %v859
      %2265 = vmatmul.mubr.bf16.gmra.mrb[0].mxu0 %v858
      %v2266 = vpop.f32.mrb[0].mxu0
      %v2267 = vadd.f32 %v2102, %v2266
      %v2268 = vpop.f32.mrb[0].mxu0
      %v2269 = vadd.f32 %v2104, %v2268
      %v2270 = vpop.f32.mrb[0].mxu0
      %v2271 = vadd.f32 %v2106, %v2270
      %v2272 = vpop.f32.mrb[0].mxu0
      %v2273 = vadd.f32 %v2108, %v2272
      %2274 = vmatprep.mubr.bf16.mxu0 %v866
      %2275 = vmatmul.mubr.bf16.gmra.mrb[0].mxu0 %v865
      %v2276 = vpop.f32.mrb[0].mxu0
      %v2277 = vadd.f32 %v2112, %v2276
      %v2278 = vpop.f32.mrb[0].mxu0
      %v2279 = vadd.f32 %v2114, %v2278
      %v2280 = vpop.f32.mrb[0].mxu0
      %v2281 = vadd.f32 %v2116, %v2280
      %v2282 = vpop.f32.mrb[0].mxu0
      %v2283 = vadd.f32 %v2118, %v2282
      %2284 = vmatprep.mubr.bf16.mxu0 %v873
      %2285 = vmatmul.mubr.bf16.gmra.mrb[0].mxu0 %v872
      %v2286 = vpop.f32.mrb[0].mxu0
      %v2287 = vadd.f32 %v2122, %v2286
      %v2288 = vpop.f32.mrb[0].mxu0
      %v2289 = vadd.f32 %v2124, %v2288
      %v2290 = vpop.f32.mrb[0].mxu0
      %v2291 = vadd.f32 %v2126, %v2290
      %v2292 = vpop.f32.mrb[0].mxu0
      %v2293 = vadd.f32 %v2128, %v2292
      %2294 = vmatprep.mubr.bf16.mxu0 %v880
      %2295 = vmatmul.mubr.bf16.gmra.mrb[0].mxu0 %v879
      %v2296 = vpop.f32.mrb[0].mxu0
      %v2297 = vadd.f32 %v2132, %v2296
      %v2298 = vpop.f32.mrb[0].mxu0
      %v2299 = vadd.f32 %v2134, %v2298
      %v2300 = vpop.f32.mrb[0].mxu0
      %v2301 = vadd.f32 %v2136, %v2300
      %v2302 = vpop.f32.mrb[0].mxu0
      %v2303 = vadd.f32 %v2138, %v2302
      %2304 = vmatprep.mubr.bf16.mxu0 %v887
      %2305 = vmatmul.mubr.bf16.gmra.mrb[0].mxu0 %v886
      %v2306 = vpop.f32.mrb[0].mxu0
      %v2307 = vadd.f32 %v2142, %v2306
      %v2308 = vpop.f32.mrb[0].mxu0
      %v2309 = vadd.f32 %v2144, %v2308
      %v2310 = vpop.f32.mrb[0].mxu0
      %v2311 = vadd.f32 %v2146, %v2310
      %v2312 = vpop.f32.mrb[0].mxu0
      %v2313 = vadd.f32 %v2148, %v2312
      %2314 = vmatprep.mubr.bf16.mxu0 %v894
      %2315 = vmatmul.mubr.bf16.gmra.mrb[0].mxu0 %v893
      %v2316 = vpop.f32.mrb[0].mxu0
      %v2317 = vadd.f32 %v2152, %v2316
      %v2318 = vpop.f32.mrb[0].mxu0
      %v2319 = vadd.f32 %v2154, %v2318
      %v2320 = vpop.f32.mrb[0].mxu0
      %v2321 = vadd.f32 %v2156, %v2320
      %v2322 = vpop.f32.mrb[0].mxu0
      %v2323 = vadd.f32 %v2158, %v2322
      %2324 = vmatprep.mubr.bf16.mxu0 %v901
      %2325 = vmatmul.mubr.bf16.gmra.mrb[0].mxu0 %v900
      %v2326 = vpop.f32.mrb[0].mxu0
      %v2327 = vadd.f32 %v2162, %v2326
      %v2328 = vpop.f32.mrb[0].mxu0
      %v2329 = vadd.f32 %v2164, %v2328
      %v2330 = vpop.f32.mrb[0].mxu0
      %v2331 = vadd.f32 %v2166, %v2330
      %v2332 = vpop.f32.mrb[0].mxu0
      %v2333 = vadd.f32 %v2168, %v2332
      %2334 = vmatprep.mubr.bf16.mxu0 %v908
      %2335 = vmatmul.mubr.bf16.gmra.mrb[0].mxu0 %v907
      %v2336 = vpop.f32.mrb[0].mxu0
      %v2337 = vadd.f32 %v2172, %v2336
      %v2338 = vpop.f32.mrb[0].mxu0
      %v2339 = vadd.f32 %v2174, %v2338
      %v2340 = vpop.f32.mrb[0].mxu0
      %v2341 = vadd.f32 %v2176, %v2340
      %v2342 = vpop.f32.mrb[0].mxu0
      %v2343 = vadd.f32 %v2178, %v2342
      %2344 = vmatprep.mubr.bf16.mxu0 %v915
      %2345 = vmatmul.mubr.bf16.gmra.mrb[0].mxu0 %v914
      %v2346 = vpop.f32.mrb[0].mxu0
      %v2347 = vpop.f32.mrb[0].mxu0
      %v2348 = vadd.f32 %v2183, %v2347
      %v2349 = vpop.f32.mrb[0].mxu0
      %v2350 = vpop.f32.mrb[0].mxu0
      %v2351 = vadd.f32 %v2186, %v2350
      %2352 = vmatprep.mubr.bf16.mxu0 %v922
      %2353 = vmatmul.mubr.bf16.gmra.mrb[0].mxu0 %v921
      %v2354 = vpop.f32.mrb[0].mxu0
      %v2355 = vpop.f32.mrb[0].mxu0
      %v2356 = vadd.f32 %v2191, %v2355
      %v2357 = vpop.f32.mrb[0].mxu0
      %v2358 = vpop.f32.mrb[0].mxu0
      %v2359 = vadd.f32 %v2194, %v2358
      %2360 = vmatprep.mubr.bf16.mxu0 %v929
      %2361 = vmatmul.mubr.bf16.gmra.mrb[0].mxu0 %v928
      %v2362 = vpop.f32.mrb[0].mxu0
      %v2363 = vpop.f32.mrb[0].mxu0
      %v2364 = vadd.f32 %v2199, %v2363
      %v2365 = vpop.f32.mrb[0].mxu0
      %v2366 = vpop.f32.mrb[0].mxu0
      %v2367 = vadd.f32 %v2202, %v2366
      %2368 = vmatprep.mubr.bf16.mxu0 %v936
      %2369 = vmatmul.mubr.bf16.gmra.mrb[0].mxu0 %v935
      %v2370 = vpop.f32.mrb[0].mxu0
      %v2371 = vpop.f32.mrb[0].mxu0
      %v2372 = vadd.f32 %v2207, %v2371
      %v2373 = vpop.f32.mrb[0].mxu0
      %v2374 = vpop.f32.mrb[0].mxu0
      %v2375 = vadd.f32 %v2210, %v2374
      %2376 = vdwg.mxu0
      %2377 = vmatprep.subr.bf16.mxu0 %v1741
      %2378 = vmatpush1.bf16.msra.mxu0 %v1740
      %2379 = vmatprep.subr.bf16.mxu0 %v1745
      %2380 = vmatpush1.bf16.msra.mxu0 %v1744
      %2381 = vmatprep.subr.bf16.mxu0 %v1749
      %2382 = vmatpush1.bf16.msra.mxu0 %v1748
      %2383 = vmatprep.subr.bf16.mxu0 %v1753
      %2384 = vmatpush1.bf16.msra.mxu0 %v1752
      %2385 = vmatprep.subr.bf16.mxu0 %v1757
      %2386 = vmatpush1.bf16.msra.mxu0 %v1756
      %2387 = vmatprep.subr.bf16.mxu0 %v1761
      %2388 = vmatpush1.bf16.msra.mxu0 %v1760
      %2389 = vmatprep.subr.bf16.mxu0 %v1765
      %2390 = vmatpush1.bf16.msra.mxu0 %v1764
      %2391 = vmatprep.subr.bf16.mxu0 %v1769
      %2392 = vmatpush1.bf16.msra.mxu0 %v1768
      %2393 = vmatprep.subr.bf16.mxu0 %v1773
      %2394 = vmatpush1.bf16.msra.mxu0 %v1772
      %2395 = vmatprep.subr.bf16.mxu0 %v1777
      %2396 = vmatpush1.bf16.msra.mxu0 %v1776
      %2397 = vmatprep.subr.bf16.mxu0 %v1781
      %2398 = vmatpush1.bf16.msra.mxu0 %v1780
      %2399 = vmatprep.subr.bf16.mxu0 %v1785
      %2400 = vmatpush1.bf16.msra.mxu0 %v1784
      %2401 = vmatprep.subr.bf16.mxu0 %v1789
      %2402 = vmatpush1.bf16.msra.mxu0 %v1788
      %2403 = vmatprep.subr.bf16.mxu0 %v1793
      %2404 = vmatpush1.bf16.msra.mxu0 %v1792
      %2405 = vmatprep.subr.bf16.mxu0 %v1797
      %2406 = vmatpush1.bf16.msra.mxu0 %v1796
      %2407 = vmatprep.subr.bf16.mxu0 %v1801
      %2408 = vmatpush1.bf16.msra.mxu0 %v1800
      %2409 = vmatprep.mubr.bf16.mxu0 %v847
      %2410 = vmatmul.mubr.bf16.gmra.mrb[0].mxu0 %v846
      %v2411 = vpop.f32.mrb[0].mxu0
      %v2412 = vadd.f32 %v2247, %v2411
      %v2413 = vpop.f32.mrb[0].mxu0
      %v2414 = vadd.f32 %v2249, %v2413
      %v2415 = vpop.f32.mrb[0].mxu0
      %v2416 = vadd.f32 %v2251, %v2415
      %v2417 = vpop.f32.mrb[0].mxu0
      %v2418 = vadd.f32 %v2253, %v2417
      %2419 = vmatprep.mubr.bf16.mxu0 %v854
      %2420 = vmatmul.mubr.bf16.gmra.mrb[0].mxu0 %v853
      %v2421 = vpop.f32.mrb[0].mxu0
      %v2422 = vadd.f32 %v2257, %v2421
      %v2423 = vpop.f32.mrb[0].mxu0
      %v2424 = vadd.f32 %v2259, %v2423
      %v2425 = vpop.f32.mrb[0].mxu0
      %v2426 = vadd.f32 %v2261, %v2425
      %v2427 = vpop.f32.mrb[0].mxu0
      %v2428 = vadd.f32 %v2263, %v2427
      %2429 = vmatprep.mubr.bf16.mxu0 %v861
      %2430 = vmatmul.mubr.bf16.gmra.mrb[0].mxu0 %v860
      %v2431 = vpop.f32.mrb[0].mxu0
      %v2432 = vadd.f32 %v2267, %v2431
      %v2433 = vpop.f32.mrb[0].mxu0
      %v2434 = vadd.f32 %v2269, %v2433
      %v2435 = vpop.f32.mrb[0].mxu0
      %v2436 = vadd.f32 %v2271, %v2435
      %v2437 = vpop.f32.mrb[0].mxu0
      %v2438 = vadd.f32 %v2273, %v2437
      %2439 = vmatprep.mubr.bf16.mxu0 %v868
      %2440 = vmatmul.mubr.bf16.gmra.mrb[0].mxu0 %v867
      %v2441 = vpop.f32.mrb[0].mxu0
      %v2442 = vadd.f32 %v2277, %v2441
      %v2443 = vpop.f32.mrb[0].mxu0
      %v2444 = vadd.f32 %v2279, %v2443
      %v2445 = vpop.f32.mrb[0].mxu0
      %v2446 = vadd.f32 %v2281, %v2445
      %v2447 = vpop.f32.mrb[0].mxu0
      %v2448 = vadd.f32 %v2283, %v2447
      %2449 = vmatprep.mubr.bf16.mxu0 %v875
      %2450 = vmatmul.mubr.bf16.gmra.mrb[0].mxu0 %v874
      %v2451 = vpop.f32.mrb[0].mxu0
      %v2452 = vadd.f32 %v2287, %v2451
      %v2453 = vpop.f32.mrb[0].mxu0
      %v2454 = vadd.f32 %v2289, %v2453
      %v2455 = vpop.f32.mrb[0].mxu0
      %v2456 = vadd.f32 %v2291, %v2455
      %v2457 = vpop.f32.mrb[0].mxu0
      %v2458 = vadd.f32 %v2293, %v2457
      %2459 = vmatprep.mubr.bf16.mxu0 %v882
      %2460 = vmatmul.mubr.bf16.gmra.mrb[0].mxu0 %v881
      %v2461 = vpop.f32.mrb[0].mxu0
      %v2462 = vadd.f32 %v2297, %v2461
      %v2463 = vpop.f32.mrb[0].mxu0
      %v2464 = vadd.f32 %v2299, %v2463
      %v2465 = vpop.f32.mrb[0].mxu0
      %v2466 = vadd.f32 %v2301, %v2465
      %v2467 = vpop.f32.mrb[0].mxu0
      %v2468 = vadd.f32 %v2303, %v2467
      %2469 = vmatprep.mubr.bf16.mxu0 %v889
      %2470 = vmatmul.mubr.bf16.gmra.mrb[0].mxu0 %v888
      %v2471 = vpop.f32.mrb[0].mxu0
      %v2472 = vadd.f32 %v2307, %v2471
      %v2473 = vpop.f32.mrb[0].mxu0
      %v2474 = vadd.f32 %v2309, %v2473
      %v2475 = vpop.f32.mrb[0].mxu0
      %v2476 = vadd.f32 %v2311, %v2475
      %v2477 = vpop.f32.mrb[0].mxu0
      %v2478 = vadd.f32 %v2313, %v2477
      %2479 = vmatprep.mubr.bf16.mxu0 %v896
      %2480 = vmatmul.mubr.bf16.gmra.mrb[0].mxu0 %v895
      %v2481 = vpop.f32.mrb[0].mxu0
      %v2482 = vadd.f32 %v2317, %v2481
      %v2483 = vpop.f32.mrb[0].mxu0
      %v2484 = vadd.f32 %v2319, %v2483
      %v2485 = vpop.f32.mrb[0].mxu0
      %v2486 = vadd.f32 %v2321, %v2485
      %v2487 = vpop.f32.mrb[0].mxu0
      %v2488 = vadd.f32 %v2323, %v2487
      %2489 = vmatprep.mubr.bf16.mxu0 %v903
      %2490 = vmatmul.mubr.bf16.gmra.mrb[0].mxu0 %v902
      %v2491 = vpop.f32.mrb[0].mxu0
      %v2492 = vadd.f32 %v2327, %v2491
      %v2493 = vpop.f32.mrb[0].mxu0
      %v2494 = vadd.f32 %v2329, %v2493
      %v2495 = vpop.f32.mrb[0].mxu0
      %v2496 = vadd.f32 %v2331, %v2495
      %v2497 = vpop.f32.mrb[0].mxu0
      %v2498 = vadd.f32 %v2333, %v2497
      %2499 = vmatprep.mubr.bf16.mxu0 %v910
      %2500 = vmatmul.mubr.bf16.gmra.mrb[0].mxu0 %v909
      %v2501 = vpop.f32.mrb[0].mxu0
      %v2502 = vadd.f32 %v2337, %v2501
      %v2503 = vpop.f32.mrb[0].mxu0
      %v2504 = vadd.f32 %v2339, %v2503
      %v2505 = vpop.f32.mrb[0].mxu0
      %v2506 = vadd.f32 %v2341, %v2505
      %v2507 = vpop.f32.mrb[0].mxu0
      %v2508 = vadd.f32 %v2343, %v2507
      %2509 = vmatprep.mubr.bf16.mxu0 %v917
      %2510 = vmatmul.mubr.bf16.gmra.mrb[0].mxu0 %v916
      %v2511 = vpop.f32.mrb[0].mxu0
      %v2512 = vpop.f32.mrb[0].mxu0
      %v2513 = vadd.f32 %v2348, %v2512
      %v2514 = vpop.f32.mrb[0].mxu0
      %v2515 = vpop.f32.mrb[0].mxu0
      %v2516 = vadd.f32 %v2351, %v2515
      %2517 = vmatprep.mubr.bf16.mxu0 %v924
      %2518 = vmatmul.mubr.bf16.gmra.mrb[0].mxu0 %v923
      %v2519 = vpop.f32.mrb[0].mxu0
      %v2520 = vpop.f32.mrb[0].mxu0
      %v2521 = vadd.f32 %v2356, %v2520
      %v2522 = vpop.f32.mrb[0].mxu0
      %v2523 = vpop.f32.mrb[0].mxu0
      %v2524 = vadd.f32 %v2359, %v2523
      %2525 = vmatprep.mubr.bf16.mxu0 %v931
      %2526 = vmatmul.mubr.bf16.gmra.mrb[0].mxu0 %v930
      %v2527 = vpop.f32.mrb[0].mxu0
      %v2528 = vpop.f32.mrb[0].mxu0
      %v2529 = vadd.f32 %v2364, %v2528
      %v2530 = vpop.f32.mrb[0].mxu0
      %v2531 = vpop.f32.mrb[0].mxu0
      %v2532 = vadd.f32 %v2367, %v2531
      %2533 = vmatprep.mubr.bf16.mxu0 %v938
      %2534 = vmatmul.mubr.bf16.gmra.mrb[0].mxu0 %v937
      %v2535 = vpop.f32.mrb[0].mxu0
      %v2536 = vpop.f32.mrb[0].mxu0
      %v2537 = vadd.f32 %v2372, %v2536
      %v2538 = vpop.f32.mrb[0].mxu0
      %v2539 = vpop.f32.mrb[0].mxu0
      %v2540 = vadd.f32 %v2375, %v2539
      %2541 = vdwg.mxu0
      %2542 = vmatprep.subr.bf16.mxu0 %v1805
      %2543 = vmatpush1.bf16.msra.mxu0 %v1804
      %2544 = vmatprep.subr.bf16.mxu0 0
      %2545 = vmatpush1.bf16.msra.mxu0 0
      %2546 = vmatprep.subr.bf16.mxu0 0
      %2547 = vmatpush1.bf16.msra.mxu0 0
      %2548 = vmatprep.subr.bf16.mxu0 0
      %2549 = vmatpush1.bf16.msra.mxu0 0
      %2550 = vmatprep.subr.bf16.mxu0 0
      %2551 = vmatpush1.bf16.msra.mxu0 0
      %2552 = vmatprep.subr.bf16.mxu0 0
      %2553 = vmatpush1.bf16.msra.mxu0 0
      %2554 = vmatprep.subr.bf16.mxu0 0
      %2555 = vmatpush1.bf16.msra.mxu0 0
      %2556 = vmatprep.subr.bf16.mxu0 0
      %2557 = vmatpush1.bf16.msra.mxu0 0
      %2558 = vmatprep.subr.bf16.mxu0 0
      %2559 = vmatpush1.bf16.msra.mxu0 0
      %2560 = vmatprep.subr.bf16.mxu0 0
      %2561 = vmatpush1.bf16.msra.mxu0 0
      %2562 = vmatprep.subr.bf16.mxu0 0
      %2563 = vmatpush1.bf16.msra.mxu0 0
      %2564 = vmatprep.subr.bf16.mxu0 0
      %2565 = vmatpush1.bf16.msra.mxu0 0
      %2566 = vmatprep.subr.bf16.mxu0 0
      %2567 = vmatpush1.bf16.msra.mxu0 0
      %2568 = vmatprep.subr.bf16.mxu0 0
      %2569 = vmatpush1.bf16.msra.mxu0 0
      %2570 = vmatprep.subr.bf16.mxu0 0
      %2571 = vmatpush1.bf16.msra.mxu0 0
      %2572 = vmatprep.subr.bf16.mxu0 0
      %2573 = vmatpush1.bf16.msra.mxu0 0
      %2574 = vmatprep.mubr.bf16.mxu0 0
      %2575 = vmatmul.mubr.bf16.gmra.mrb[0].mxu0 %v2006
      %v2576 = vpop.f32.mrb[0].mxu0
      %v2577 = vadd.f32 %v2412, %v2576
      %v2578 = vpop.f32.mrb[0].mxu0
      %v2579 = vadd.f32 %v2414, %v2578
      %v2580 = vpop.f32.mrb[0].mxu0
      %v2581 = vadd.f32 %v2416, %v2580
      %v2582 = vpop.f32.mrb[0].mxu0
      %v2583 = vadd.f32 %v2418, %v2582
      %2584 = vmatprep.mubr.bf16.mxu0 0
      %2585 = vmatmul.mubr.bf16.gmra.mrb[0].mxu0 %v2009
      %v2586 = vpop.f32.mrb[0].mxu0
      %v2587 = vadd.f32 %v2422, %v2586
      %v2588 = vpop.f32.mrb[0].mxu0
      %v2589 = vadd.f32 %v2424, %v2588
      %v2590 = vpop.f32.mrb[0].mxu0
      %v2591 = vadd.f32 %v2426, %v2590
      %v2592 = vpop.f32.mrb[0].mxu0
      %v2593 = vadd.f32 %v2428, %v2592
      %2594 = vmatprep.mubr.bf16.mxu0 0
      %2595 = vmatmul.mubr.bf16.gmra.mrb[0].mxu0 %v2012
      %v2596 = vpop.f32.mrb[0].mxu0
      %v2597 = vadd.f32 %v2432, %v2596
      %v2598 = vpop.f32.mrb[0].mxu0
      %v2599 = vadd.f32 %v2434, %v2598
      %v2600 = vpop.f32.mrb[0].mxu0
      %v2601 = vadd.f32 %v2436, %v2600
      %v2602 = vpop.f32.mrb[0].mxu0
      %v2603 = vadd.f32 %v2438, %v2602
      %2604 = vmatprep.mubr.bf16.mxu0 0
      %2605 = vmatmul.mubr.bf16.gmra.mrb[0].mxu0 %v2015
      %v2606 = vpop.f32.mrb[0].mxu0
      %v2607 = vadd.f32 %v2442, %v2606
      %v2608 = vpop.f32.mrb[0].mxu0
      %v2609 = vadd.f32 %v2444, %v2608
      %v2610 = vpop.f32.mrb[0].mxu0
      %v2611 = vadd.f32 %v2446, %v2610
      %v2612 = vpop.f32.mrb[0].mxu0
      %v2613 = vadd.f32 %v2448, %v2612
      %2614 = vmatprep.mubr.bf16.mxu0 0
      %2615 = vmatmul.mubr.bf16.gmra.mrb[0].mxu0 %v2018
      %v2616 = vpop.f32.mrb[0].mxu0
      %v2617 = vadd.f32 %v2452, %v2616
      %v2618 = vpop.f32.mrb[0].mxu0
      %v2619 = vadd.f32 %v2454, %v2618
      %v2620 = vpop.f32.mrb[0].mxu0
      %v2621 = vadd.f32 %v2456, %v2620
      %v2622 = vpop.f32.mrb[0].mxu0
      %v2623 = vadd.f32 %v2458, %v2622
      %2624 = vmatprep.mubr.bf16.mxu0 0
      %2625 = vmatmul.mubr.bf16.gmra.mrb[0].mxu0 %v2021
      %v2626 = vpop.f32.mrb[0].mxu0
      %v2627 = vadd.f32 %v2462, %v2626
      %v2628 = vpop.f32.mrb[0].mxu0
      %v2629 = vadd.f32 %v2464, %v2628
      %v2630 = vpop.f32.mrb[0].mxu0
      %v2631 = vadd.f32 %v2466, %v2630
      %v2632 = vpop.f32.mrb[0].mxu0
      %v2633 = vadd.f32 %v2468, %v2632
      %2634 = vmatprep.mubr.bf16.mxu0 0
      %2635 = vmatmul.mubr.bf16.gmra.mrb[0].mxu0 %v2024
      %v2636 = vpop.f32.mrb[0].mxu0
      %v2637 = vadd.f32 %v2472, %v2636
      %v2638 = vpop.f32.mrb[0].mxu0
      %v2639 = vadd.f32 %v2474, %v2638
      %v2640 = vpop.f32.mrb[0].mxu0
      %v2641 = vadd.f32 %v2476, %v2640
      %v2642 = vpop.f32.mrb[0].mxu0
      %v2643 = vadd.f32 %v2478, %v2642
      %2644 = vmatprep.mubr.bf16.mxu0 0
      %2645 = vmatmul.mubr.bf16.gmra.mrb[0].mxu0 %v2027
      %v2646 = vpop.f32.mrb[0].mxu0
      %v2647 = vadd.f32 %v2482, %v2646
      %v2648 = vpop.f32.mrb[0].mxu0
      %v2649 = vadd.f32 %v2484, %v2648
      %v2650 = vpop.f32.mrb[0].mxu0
      %v2651 = vadd.f32 %v2486, %v2650
      %v2652 = vpop.f32.mrb[0].mxu0
      %v2653 = vadd.f32 %v2488, %v2652
      %2654 = vmatprep.mubr.bf16.mxu0 0
      %2655 = vmatmul.mubr.bf16.gmra.mrb[0].mxu0 %v2030
      %v2656 = vpop.f32.mrb[0].mxu0
      %v2657 = vadd.f32 %v2492, %v2656
      %v2658 = vpop.f32.mrb[0].mxu0
      %v2659 = vadd.f32 %v2494, %v2658
      %v2660 = vpop.f32.mrb[0].mxu0
      %v2661 = vadd.f32 %v2496, %v2660
      %v2662 = vpop.f32.mrb[0].mxu0
      %v2663 = vadd.f32 %v2498, %v2662
      %2664 = vmatprep.mubr.bf16.mxu0 0
      %2665 = vmatmul.mubr.bf16.gmra.mrb[0].mxu0 %v2033
      %v2666 = vpop.f32.mrb[0].mxu0
      %v2667 = vadd.f32 %v2502, %v2666
      %v2668 = vpop.f32.mrb[0].mxu0
      %v2669 = vadd.f32 %v2504, %v2668
      %v2670 = vpop.f32.mrb[0].mxu0
      %v2671 = vadd.f32 %v2506, %v2670
      %v2672 = vpop.f32.mrb[0].mxu0
      %v2673 = vadd.f32 %v2508, %v2672
      %2674 = vmatprep.mubr.bf16.mxu0 0
      %2675 = vmatmul.mubr.bf16.gmra.mrb[0].mxu0 %v2036
      %v2676 = vpop.f32.mrb[0].mxu0
      %v2677 = vpop.f32.mrb[0].mxu0
      %v2678 = vadd.f32 %v2513, %v2677
      %v2679 = vpop.f32.mrb[0].mxu0
      %v2680 = vpop.f32.mrb[0].mxu0
      %v2681 = vadd.f32 %v2516, %v2680
      %2682 = vmatprep.mubr.bf16.mxu0 0
      %2683 = vmatmul.mubr.bf16.gmra.mrb[0].mxu0 %v2039
      %v2684 = vpop.f32.mrb[0].mxu0
      %v2685 = vpop.f32.mrb[0].mxu0
      %v2686 = vadd.f32 %v2521, %v2685
      %v2687 = vpop.f32.mrb[0].mxu0
      %v2688 = vpop.f32.mrb[0].mxu0
      %v2689 = vadd.f32 %v2524, %v2688
      %2690 = vmatprep.mubr.bf16.mxu0 0
      %2691 = vmatmul.mubr.bf16.gmra.mrb[0].mxu0 %v2042
      %v2692 = vpop.f32.mrb[0].mxu0
      %v2693 = vpop.f32.mrb[0].mxu0
      %v2694 = vadd.f32 %v2529, %v2693
      %v2695 = vpop.f32.mrb[0].mxu0
      %v2696 = vpop.f32.mrb[0].mxu0
      %v2697 = vadd.f32 %v2532, %v2696
      %2698 = vmatprep.mubr.bf16.mxu0 0
      %2699 = vmatmul.mubr.bf16.gmra.mrb[0].mxu0 %v2045
      %v2700 = vpop.f32.mrb[0].mxu0
      %v2701 = vpop.f32.mrb[0].mxu0
      %v2702 = vadd.f32 %v2537, %v2701
      %v2703 = vpop.f32.mrb[0].mxu0
      %v2704 = vpop.f32.mrb[0].mxu0
      %v2705 = vadd.f32 %v2540, %v2704
      %2706 = vdwg.mxu0
      %2707 = vmatprep.subr.bf16.mxu0 %v1615
      %2708 = vmatpush1.bf16.msra.mxu0 %v1614
      %2709 = vmatprep.subr.bf16.mxu0 %v1619
      %2710 = vmatpush1.bf16.msra.mxu0 %v1618
      %2711 = vmatprep.subr.bf16.mxu0 %v1623
      %2712 = vmatpush1.bf16.msra.mxu0 %v1622
      %2713 = vmatprep.subr.bf16.mxu0 %v1627
      %2714 = vmatpush1.bf16.msra.mxu0 %v1626
      %2715 = vmatprep.subr.bf16.mxu0 %v1631
      %2716 = vmatpush1.bf16.msra.mxu0 %v1630
      %2717 = vmatprep.subr.bf16.mxu0 %v1635
      %2718 = vmatpush1.bf16.msra.mxu0 %v1634
      %2719 = vmatprep.subr.bf16.mxu0 %v1639
      %2720 = vmatpush1.bf16.msra.mxu0 %v1638
      %2721 = vmatprep.subr.bf16.mxu0 %v1643
      %2722 = vmatpush1.bf16.msra.mxu0 %v1642
      %2723 = vmatprep.subr.bf16.mxu0 %v1647
      %2724 = vmatpush1.bf16.msra.mxu0 %v1646
      %2725 = vmatprep.subr.bf16.mxu0 %v1651
      %2726 = vmatpush1.bf16.msra.mxu0 %v1650
      %2727 = vmatprep.subr.bf16.mxu0 %v1655
      %2728 = vmatpush1.bf16.msra.mxu0 %v1654
      %2729 = vmatprep.subr.bf16.mxu0 %v1659
      %2730 = vmatpush1.bf16.msra.mxu0 %v1658
      %2731 = vmatprep.subr.bf16.mxu0 %v1663
      %2732 = vmatpush1.bf16.msra.mxu0 %v1662
      %2733 = vmatprep.subr.bf16.mxu0 %v1667
      %2734 = vmatpush1.bf16.msra.mxu0 %v1666
      %2735 = vmatprep.subr.bf16.mxu0 %v1671
      %2736 = vmatpush1.bf16.msra.mxu0 %v1670
      %2737 = vmatprep.subr.bf16.mxu0 %v1675
      %2738 = vmatpush1.bf16.msra.mxu0 %v1674
      %2739 = vmatprep.mubr.bf16.mxu0 %v843
      %2740 = vmatmul.mubr.bf16.gmra.mrb[0].mxu0 %v842
      %v2741 = vpop.f32.mrb[0].mxu0
      %v2742 = vadd.f32 0.0, %v2741
      %v2743 = vpop.f32.mrb[0].mxu0
      %v2744 = vpop.f32.mrb[0].mxu0
      %v2745 = vadd.f32 0.0, %v2744
      %v2746 = vpop.f32.mrb[0].mxu0
      %2747 = vmatprep.mubr.bf16.mxu0 %v850
      %2748 = vmatmul.mubr.bf16.gmra.mrb[0].mxu0 %v849
      %v2749 = vpop.f32.mrb[0].mxu0
      %v2750 = vadd.f32 0.0, %v2749
      %v2751 = vpop.f32.mrb[0].mxu0
      %v2752 = vpop.f32.mrb[0].mxu0
      %v2753 = vadd.f32 0.0, %v2752
      %v2754 = vpop.f32.mrb[0].mxu0
      %2755 = vmatprep.mubr.bf16.mxu0 %v857
      %2756 = vmatmul.mubr.bf16.gmra.mrb[0].mxu0 %v856
      %v2757 = vpop.f32.mrb[0].mxu0
      %v2758 = vadd.f32 0.0, %v2757
      %v2759 = vpop.f32.mrb[0].mxu0
      %v2760 = vpop.f32.mrb[0].mxu0
      %v2761 = vadd.f32 0.0, %v2760
      %v2762 = vpop.f32.mrb[0].mxu0
      %2763 = vmatprep.mubr.bf16.mxu0 %v864
      %2764 = vmatmul.mubr.bf16.gmra.mrb[0].mxu0 %v863
      %v2765 = vpop.f32.mrb[0].mxu0
      %v2766 = vadd.f32 0.0, %v2765
      %v2767 = vpop.f32.mrb[0].mxu0
      %v2768 = vpop.f32.mrb[0].mxu0
      %v2769 = vadd.f32 0.0, %v2768
      %v2770 = vpop.f32.mrb[0].mxu0
      %2771 = vmatprep.mubr.bf16.mxu0 %v871
      %2772 = vmatmul.mubr.bf16.gmra.mrb[0].mxu0 %v870
      %v2773 = vpop.f32.mrb[0].mxu0
      %v2774 = vadd.f32 0.0, %v2773
      %v2775 = vpop.f32.mrb[0].mxu0
      %v2776 = vadd.f32 0.0, %v2775
      %v2777 = vpop.f32.mrb[0].mxu0
      %v2778 = vadd.f32 0.0, %v2777
      %v2779 = vpop.f32.mrb[0].mxu0
      %v2780 = vadd.f32 0.0, %v2779
      %2781 = vmatprep.mubr.bf16.mxu0 %v878
      %2782 = vmatmul.mubr.bf16.gmra.mrb[0].mxu0 %v877
      %v2783 = vpop.f32.mrb[0].mxu0
      %v2784 = vadd.f32 0.0, %v2783
      %v2785 = vpop.f32.mrb[0].mxu0
      %v2786 = vadd.f32 0.0, %v2785
      %v2787 = vpop.f32.mrb[0].mxu0
      %v2788 = vadd.f32 0.0, %v2787
      %v2789 = vpop.f32.mrb[0].mxu0
      %v2790 = vadd.f32 0.0, %v2789
      %2791 = vmatprep.mubr.bf16.mxu0 %v885
      %2792 = vmatmul.mubr.bf16.gmra.mrb[0].mxu0 %v884
      %v2793 = vpop.f32.mrb[0].mxu0
      %v2794 = vadd.f32 0.0, %v2793
      %v2795 = vpop.f32.mrb[0].mxu0
      %v2796 = vadd.f32 0.0, %v2795
      %v2797 = vpop.f32.mrb[0].mxu0
      %v2798 = vadd.f32 0.0, %v2797
      %v2799 = vpop.f32.mrb[0].mxu0
      %v2800 = vadd.f32 0.0, %v2799
      %2801 = vmatprep.mubr.bf16.mxu0 %v892
      %2802 = vmatmul.mubr.bf16.gmra.mrb[0].mxu0 %v891
      %v2803 = vpop.f32.mrb[0].mxu0
      %v2804 = vadd.f32 0.0, %v2803
      %v2805 = vpop.f32.mrb[0].mxu0
      %v2806 = vadd.f32 0.0, %v2805
      %v2807 = vpop.f32.mrb[0].mxu0
      %v2808 = vadd.f32 0.0, %v2807
      %v2809 = vpop.f32.mrb[0].mxu0
      %v2810 = vadd.f32 0.0, %v2809
      %2811 = vmatprep.mubr.bf16.mxu0 %v899
      %2812 = vmatmul.mubr.bf16.gmra.mrb[0].mxu0 %v898
      %v2813 = vpop.f32.mrb[0].mxu0
      %v2814 = vadd.f32 0.0, %v2813
      %v2815 = vpop.f32.mrb[0].mxu0
      %v2816 = vadd.f32 0.0, %v2815
      %v2817 = vpop.f32.mrb[0].mxu0
      %v2818 = vadd.f32 0.0, %v2817
      %v2819 = vpop.f32.mrb[0].mxu0
      %v2820 = vadd.f32 0.0, %v2819
      %2821 = vmatprep.mubr.bf16.mxu0 %v906
      %2822 = vmatmul.mubr.bf16.gmra.mrb[0].mxu0 %v905
      %v2823 = vpop.f32.mrb[0].mxu0
      %v2824 = vadd.f32 0.0, %v2823
      %v2825 = vpop.f32.mrb[0].mxu0
      %v2826 = vadd.f32 0.0, %v2825
      %v2827 = vpop.f32.mrb[0].mxu0
      %v2828 = vadd.f32 0.0, %v2827
      %v2829 = vpop.f32.mrb[0].mxu0
      %v2830 = vadd.f32 0.0, %v2829
      %2831 = vmatprep.mubr.bf16.mxu0 %v913
      %2832 = vmatmul.mubr.bf16.gmra.mrb[0].mxu0 %v912
      %v2833 = vpop.f32.mrb[0].mxu0
      %v2834 = vadd.f32 0.0, %v2833
      %v2835 = vpop.f32.mrb[0].mxu0
      %v2836 = vadd.f32 0.0, %v2835
      %v2837 = vpop.f32.mrb[0].mxu0
      %v2838 = vadd.f32 0.0, %v2837
      %v2839 = vpop.f32.mrb[0].mxu0
      %v2840 = vadd.f32 0.0, %v2839
      %2841 = vmatprep.mubr.bf16.mxu0 %v920
      %2842 = vmatmul.mubr.bf16.gmra.mrb[0].mxu0 %v919
      %v2843 = vpop.f32.mrb[0].mxu0
      %v2844 = vadd.f32 0.0, %v2843
      %v2845 = vpop.f32.mrb[0].mxu0
      %v2846 = vadd.f32 0.0, %v2845
      %v2847 = vpop.f32.mrb[0].mxu0
      %v2848 = vadd.f32 0.0, %v2847
      %v2849 = vpop.f32.mrb[0].mxu0
      %v2850 = vadd.f32 0.0, %v2849
      %2851 = vmatprep.mubr.bf16.mxu0 %v927
      %2852 = vmatmul.mubr.bf16.gmra.mrb[0].mxu0 %v926
      %v2853 = vpop.f32.mrb[0].mxu0
      %v2854 = vadd.f32 0.0, %v2853
      %v2855 = vpop.f32.mrb[0].mxu0
      %v2856 = vadd.f32 0.0, %v2855
      %v2857 = vpop.f32.mrb[0].mxu0
      %v2858 = vadd.f32 0.0, %v2857
      %v2859 = vpop.f32.mrb[0].mxu0
      %v2860 = vadd.f32 0.0, %v2859
      %2861 = vmatprep.mubr.bf16.mxu0 %v934
      %2862 = vmatmul.mubr.bf16.gmra.mrb[0].mxu0 %v933
      %v2863 = vpop.f32.mrb[0].mxu0
      %v2864 = vadd.f32 0.0, %v2863
      %v2865 = vpop.f32.mrb[0].mxu0
      %v2866 = vadd.f32 0.0, %v2865
      %v2867 = vpop.f32.mrb[0].mxu0
      %v2868 = vadd.f32 0.0, %v2867
      %v2869 = vpop.f32.mrb[0].mxu0
      %v2870 = vadd.f32 0.0, %v2869
      %2871 = vdwg.mxu0
      %2872 = vmatprep.subr.bf16.mxu0 %v1679
      %2873 = vmatpush1.bf16.msra.mxu0 %v1678
      %2874 = vmatprep.subr.bf16.mxu0 %v1683
      %2875 = vmatpush1.bf16.msra.mxu0 %v1682
      %2876 = vmatprep.subr.bf16.mxu0 %v1687
      %2877 = vmatpush1.bf16.msra.mxu0 %v1686
      %2878 = vmatprep.subr.bf16.mxu0 %v1691
      %2879 = vmatpush1.bf16.msra.mxu0 %v1690
      %2880 = vmatprep.subr.bf16.mxu0 %v1695
      %2881 = vmatpush1.bf16.msra.mxu0 %v1694
      %2882 = vmatprep.subr.bf16.mxu0 %v1699
      %2883 = vmatpush1.bf16.msra.mxu0 %v1698
      %2884 = vmatprep.subr.bf16.mxu0 %v1703
      %2885 = vmatpush1.bf16.msra.mxu0 %v1702
      %2886 = vmatprep.subr.bf16.mxu0 %v1707
      %2887 = vmatpush1.bf16.msra.mxu0 %v1706
      %2888 = vmatprep.subr.bf16.mxu0 %v1711
      %2889 = vmatpush1.bf16.msra.mxu0 %v1710
      %2890 = vmatprep.subr.bf16.mxu0 %v1715
      %2891 = vmatpush1.bf16.msra.mxu0 %v1714
      %2892 = vmatprep.subr.bf16.mxu0 %v1719
      %2893 = vmatpush1.bf16.msra.mxu0 %v1718
      %2894 = vmatprep.subr.bf16.mxu0 %v1723
      %2895 = vmatpush1.bf16.msra.mxu0 %v1722
      %2896 = vmatprep.subr.bf16.mxu0 %v1727
      %2897 = vmatpush1.bf16.msra.mxu0 %v1726
      %2898 = vmatprep.subr.bf16.mxu0 %v1731
      %2899 = vmatpush1.bf16.msra.mxu0 %v1730
      %2900 = vmatprep.subr.bf16.mxu0 %v1735
      %2901 = vmatpush1.bf16.msra.mxu0 %v1734
      %2902 = vmatprep.subr.bf16.mxu0 %v1739
      %2903 = vmatpush1.bf16.msra.mxu0 %v1738
      %2904 = vmatprep.mubr.bf16.mxu0 %v845
      %2905 = vmatmul.mubr.bf16.gmra.mrb[0].mxu0 %v844
      %v2906 = vpop.f32.mrb[0].mxu0
      %v2907 = vadd.f32 %v2742, %v2906
      %v2908 = vpop.f32.mrb[0].mxu0
      %v2909 = vpop.f32.mrb[0].mxu0
      %v2910 = vadd.f32 %v2745, %v2909
      %v2911 = vpop.f32.mrb[0].mxu0
      %2912 = vmatprep.mubr.bf16.mxu0 %v852
      %2913 = vmatmul.mubr.bf16.gmra.mrb[0].mxu0 %v851
      %v2914 = vpop.f32.mrb[0].mxu0
      %v2915 = vadd.f32 %v2750, %v2914
      %v2916 = vpop.f32.mrb[0].mxu0
      %v2917 = vpop.f32.mrb[0].mxu0
      %v2918 = vadd.f32 %v2753, %v2917
      %v2919 = vpop.f32.mrb[0].mxu0
      %2920 = vmatprep.mubr.bf16.mxu0 %v859
      %2921 = vmatmul.mubr.bf16.gmra.mrb[0].mxu0 %v858
      %v2922 = vpop.f32.mrb[0].mxu0
      %v2923 = vadd.f32 %v2758, %v2922
      %v2924 = vpop.f32.mrb[0].mxu0
      %v2925 = vpop.f32.mrb[0].mxu0
      %v2926 = vadd.f32 %v2761, %v2925
      %v2927 = vpop.f32.mrb[0].mxu0
      %2928 = vmatprep.mubr.bf16.mxu0 %v866
      %2929 = vmatmul.mubr.bf16.gmra.mrb[0].mxu0 %v865
      %v2930 = vpop.f32.mrb[0].mxu0
      %v2931 = vadd.f32 %v2766, %v2930
      %v2932 = vpop.f32.mrb[0].mxu0
      %v2933 = vpop.f32.mrb[0].mxu0
      %v2934 = vadd.f32 %v2769, %v2933
      %v2935 = vpop.f32.mrb[0].mxu0
      %2936 = vmatprep.mubr.bf16.mxu0 %v873
      %2937 = vmatmul.mubr.bf16.gmra.mrb[0].mxu0 %v872
      %v2938 = vpop.f32.mrb[0].mxu0
      %v2939 = vadd.f32 %v2774, %v2938
      %v2940 = vpop.f32.mrb[0].mxu0
      %v2941 = vadd.f32 %v2776, %v2940
      %v2942 = vpop.f32.mrb[0].mxu0
      %v2943 = vadd.f32 %v2778, %v2942
      %v2944 = vpop.f32.mrb[0].mxu0
      %v2945 = vadd.f32 %v2780, %v2944
      %2946 = vmatprep.mubr.bf16.mxu0 %v880
      %2947 = vmatmul.mubr.bf16.gmra.mrb[0].mxu0 %v879
      %v2948 = vpop.f32.mrb[0].mxu0
      %v2949 = vadd.f32 %v2784, %v2948
      %v2950 = vpop.f32.mrb[0].mxu0
      %v2951 = vadd.f32 %v2786, %v2950
      %v2952 = vpop.f32.mrb[0].mxu0
      %v2953 = vadd.f32 %v2788, %v2952
      %v2954 = vpop.f32.mrb[0].mxu0
      %v2955 = vadd.f32 %v2790, %v2954
      %2956 = vmatprep.mubr.bf16.mxu0 %v887
      %2957 = vmatmul.mubr.bf16.gmra.mrb[0].mxu0 %v886
      %v2958 = vpop.f32.mrb[0].mxu0
      %v2959 = vadd.f32 %v2794, %v2958
      %v2960 = vpop.f32.mrb[0].mxu0
      %v2961 = vadd.f32 %v2796, %v2960
      %v2962 = vpop.f32.mrb[0].mxu0
      %v2963 = vadd.f32 %v2798, %v2962
      %v2964 = vpop.f32.mrb[0].mxu0
      %v2965 = vadd.f32 %v2800, %v2964
      %2966 = vmatprep.mubr.bf16.mxu0 %v894
      %2967 = vmatmul.mubr.bf16.gmra.mrb[0].mxu0 %v893
      %v2968 = vpop.f32.mrb[0].mxu0
      %v2969 = vadd.f32 %v2804, %v2968
      %v2970 = vpop.f32.mrb[0].mxu0
      %v2971 = vadd.f32 %v2806, %v2970
      %v2972 = vpop.f32.mrb[0].mxu0
      %v2973 = vadd.f32 %v2808, %v2972
      %v2974 = vpop.f32.mrb[0].mxu0
      %v2975 = vadd.f32 %v2810, %v2974
      %2976 = vmatprep.mubr.bf16.mxu0 %v901
      %2977 = vmatmul.mubr.bf16.gmra.mrb[0].mxu0 %v900
      %v2978 = vpop.f32.mrb[0].mxu0
      %v2979 = vadd.f32 %v2814, %v2978
      %v2980 = vpop.f32.mrb[0].mxu0
      %v2981 = vadd.f32 %v2816, %v2980
      %v2982 = vpop.f32.mrb[0].mxu0
      %v2983 = vadd.f32 %v2818, %v2982
      %v2984 = vpop.f32.mrb[0].mxu0
      %v2985 = vadd.f32 %v2820, %v2984
      %2986 = vmatprep.mubr.bf16.mxu0 %v908
      %2987 = vmatmul.mubr.bf16.gmra.mrb[0].mxu0 %v907
      %v2988 = vpop.f32.mrb[0].mxu0
      %v2989 = vadd.f32 %v2824, %v2988
      %v2990 = vpop.f32.mrb[0].mxu0
      %v2991 = vadd.f32 %v2826, %v2990
      %v2992 = vpop.f32.mrb[0].mxu0
      %v2993 = vadd.f32 %v2828, %v2992
      %v2994 = vpop.f32.mrb[0].mxu0
      %v2995 = vadd.f32 %v2830, %v2994
      %2996 = vmatprep.mubr.bf16.mxu0 %v915
      %2997 = vmatmul.mubr.bf16.gmra.mrb[0].mxu0 %v914
      %v2998 = vpop.f32.mrb[0].mxu0
      %v2999 = vadd.f32 %v2834, %v2998
      %v3000 = vpop.f32.mrb[0].mxu0
      %v3001 = vadd.f32 %v2836, %v3000
      %v3002 = vpop.f32.mrb[0].mxu0
      %v3003 = vadd.f32 %v2838, %v3002
      %v3004 = vpop.f32.mrb[0].mxu0
      %v3005 = vadd.f32 %v2840, %v3004
      %3006 = vmatprep.mubr.bf16.mxu0 %v922
      %3007 = vmatmul.mubr.bf16.gmra.mrb[0].mxu0 %v921
      %v3008 = vpop.f32.mrb[0].mxu0
      %v3009 = vadd.f32 %v2844, %v3008
      %v3010 = vpop.f32.mrb[0].mxu0
      %v3011 = vadd.f32 %v2846, %v3010
      %v3012 = vpop.f32.mrb[0].mxu0
      %v3013 = vadd.f32 %v2848, %v3012
      %v3014 = vpop.f32.mrb[0].mxu0
      %v3015 = vadd.f32 %v2850, %v3014
      %3016 = vmatprep.mubr.bf16.mxu0 %v929
      %3017 = vmatmul.mubr.bf16.gmra.mrb[0].mxu0 %v928
      %v3018 = vpop.f32.mrb[0].mxu0
      %v3019 = vadd.f32 %v2854, %v3018
      %v3020 = vpop.f32.mrb[0].mxu0
      %v3021 = vadd.f32 %v2856, %v3020
      %v3022 = vpop.f32.mrb[0].mxu0
      %v3023 = vadd.f32 %v2858, %v3022
      %v3024 = vpop.f32.mrb[0].mxu0
      %v3025 = vadd.f32 %v2860, %v3024
      %3026 = vmatprep.mubr.bf16.mxu0 %v936
      %3027 = vmatmul.mubr.bf16.gmra.mrb[0].mxu0 %v935
      %v3028 = vpop.f32.mrb[0].mxu0
      %v3029 = vadd.f32 %v2864, %v3028
      %v3030 = vpop.f32.mrb[0].mxu0
      %v3031 = vadd.f32 %v2866, %v3030
      %v3032 = vpop.f32.mrb[0].mxu0
      %v3033 = vadd.f32 %v2868, %v3032
      %v3034 = vpop.f32.mrb[0].mxu0
      %v3035 = vadd.f32 %v2870, %v3034
      %3036 = vdwg.mxu0
      %3037 = vmatprep.subr.bf16.mxu0 %v1743
      %3038 = vmatpush1.bf16.msra.mxu0 %v1742
      %3039 = vmatprep.subr.bf16.mxu0 %v1747
      %3040 = vmatpush1.bf16.msra.mxu0 %v1746
      %3041 = vmatprep.subr.bf16.mxu0 %v1751
      %3042 = vmatpush1.bf16.msra.mxu0 %v1750
      %3043 = vmatprep.subr.bf16.mxu0 %v1755
      %3044 = vmatpush1.bf16.msra.mxu0 %v1754
      %3045 = vmatprep.subr.bf16.mxu0 %v1759
      %3046 = vmatpush1.bf16.msra.mxu0 %v1758
      %3047 = vmatprep.subr.bf16.mxu0 %v1763
      %3048 = vmatpush1.bf16.msra.mxu0 %v1762
      %3049 = vmatprep.subr.bf16.mxu0 %v1767
      %3050 = vmatpush1.bf16.msra.mxu0 %v1766
      %3051 = vmatprep.subr.bf16.mxu0 %v1771
      %3052 = vmatpush1.bf16.msra.mxu0 %v1770
      %3053 = vmatprep.subr.bf16.mxu0 %v1775
      %3054 = vmatpush1.bf16.msra.mxu0 %v1774
      %3055 = vmatprep.subr.bf16.mxu0 %v1779
      %3056 = vmatpush1.bf16.msra.mxu0 %v1778
      %3057 = vmatprep.subr.bf16.mxu0 %v1783
      %3058 = vmatpush1.bf16.msra.mxu0 %v1782
      %3059 = vmatprep.subr.bf16.mxu0 %v1787
      %3060 = vmatpush1.bf16.msra.mxu0 %v1786
      %3061 = vmatprep.subr.bf16.mxu0 %v1791
      %3062 = vmatpush1.bf16.msra.mxu0 %v1790
      %3063 = vmatprep.subr.bf16.mxu0 %v1795
      %3064 = vmatpush1.bf16.msra.mxu0 %v1794
      %3065 = vmatprep.subr.bf16.mxu0 %v1799
      %3066 = vmatpush1.bf16.msra.mxu0 %v1798
      %3067 = vmatprep.subr.bf16.mxu0 %v1803
      %3068 = vmatpush1.bf16.msra.mxu0 %v1802
      %3069 = vmatprep.mubr.bf16.mxu0 %v847
      %3070 = vmatmul.mubr.bf16.gmra.mrb[0].mxu0 %v846
      %v3071 = vpop.f32.mrb[0].mxu0
      %v3072 = vadd.f32 %v2907, %v3071
      %v3073 = vpop.f32.mrb[0].mxu0
      %v3074 = vpop.f32.mrb[0].mxu0
      %v3075 = vadd.f32 %v2910, %v3074
      %v3076 = vpop.f32.mrb[0].mxu0
      %3077 = vmatprep.mubr.bf16.mxu0 %v854
      %3078 = vmatmul.mubr.bf16.gmra.mrb[0].mxu0 %v853
      %v3079 = vpop.f32.mrb[0].mxu0
      %v3080 = vadd.f32 %v2915, %v3079
      %v3081 = vpop.f32.mrb[0].mxu0
      %v3082 = vpop.f32.mrb[0].mxu0
      %v3083 = vadd.f32 %v2918, %v3082
      %v3084 = vpop.f32.mrb[0].mxu0
      %3085 = vmatprep.mubr.bf16.mxu0 %v861
      %3086 = vmatmul.mubr.bf16.gmra.mrb[0].mxu0 %v860
      %v3087 = vpop.f32.mrb[0].mxu0
      %v3088 = vadd.f32 %v2923, %v3087
      %v3089 = vpop.f32.mrb[0].mxu0
      %v3090 = vpop.f32.mrb[0].mxu0
      %v3091 = vadd.f32 %v2926, %v3090
      %v3092 = vpop.f32.mrb[0].mxu0
      %3093 = vmatprep.mubr.bf16.mxu0 %v868
      %3094 = vmatmul.mubr.bf16.gmra.mrb[0].mxu0 %v867
      %v3095 = vpop.f32.mrb[0].mxu0
      %v3096 = vadd.f32 %v2931, %v3095
      %v3097 = vpop.f32.mrb[0].mxu0
      %v3098 = vpop.f32.mrb[0].mxu0
      %v3099 = vadd.f32 %v2934, %v3098
      %v3100 = vpop.f32.mrb[0].mxu0
      %3101 = vmatprep.mubr.bf16.mxu0 %v875
      %3102 = vmatmul.mubr.bf16.gmra.mrb[0].mxu0 %v874
      %v3103 = vpop.f32.mrb[0].mxu0
      %v3104 = vadd.f32 %v2939, %v3103
      %v3105 = vpop.f32.mrb[0].mxu0
      %v3106 = vadd.f32 %v2941, %v3105
      %v3107 = vpop.f32.mrb[0].mxu0
      %v3108 = vadd.f32 %v2943, %v3107
      %v3109 = vpop.f32.mrb[0].mxu0
      %v3110 = vadd.f32 %v2945, %v3109
      %3111 = vmatprep.mubr.bf16.mxu0 %v882
      %3112 = vmatmul.mubr.bf16.gmra.mrb[0].mxu0 %v881
      %v3113 = vpop.f32.mrb[0].mxu0
      %v3114 = vadd.f32 %v2949, %v3113
      %v3115 = vpop.f32.mrb[0].mxu0
      %v3116 = vadd.f32 %v2951, %v3115
      %v3117 = vpop.f32.mrb[0].mxu0
      %v3118 = vadd.f32 %v2953, %v3117
      %v3119 = vpop.f32.mrb[0].mxu0
      %v3120 = vadd.f32 %v2955, %v3119
      %3121 = vmatprep.mubr.bf16.mxu0 %v889
      %3122 = vmatmul.mubr.bf16.gmra.mrb[0].mxu0 %v888
      %v3123 = vpop.f32.mrb[0].mxu0
      %v3124 = vadd.f32 %v2959, %v3123
      %v3125 = vpop.f32.mrb[0].mxu0
      %v3126 = vadd.f32 %v2961, %v3125
      %v3127 = vpop.f32.mrb[0].mxu0
      %v3128 = vadd.f32 %v2963, %v3127
      %v3129 = vpop.f32.mrb[0].mxu0
      %v3130 = vadd.f32 %v2965, %v3129
      %3131 = vmatprep.mubr.bf16.mxu0 %v896
      %3132 = vmatmul.mubr.bf16.gmra.mrb[0].mxu0 %v895
      %v3133 = vpop.f32.mrb[0].mxu0
      %v3134 = vadd.f32 %v2969, %v3133
      %v3135 = vpop.f32.mrb[0].mxu0
      %v3136 = vadd.f32 %v2971, %v3135
      %v3137 = vpop.f32.mrb[0].mxu0
      %v3138 = vadd.f32 %v2973, %v3137
      %v3139 = vpop.f32.mrb[0].mxu0
      %v3140 = vadd.f32 %v2975, %v3139
      %3141 = vmatprep.mubr.bf16.mxu0 %v903
      %3142 = vmatmul.mubr.bf16.gmra.mrb[0].mxu0 %v902
      %v3143 = vpop.f32.mrb[0].mxu0
      %v3144 = vadd.f32 %v2979, %v3143
      %v3145 = vpop.f32.mrb[0].mxu0
      %v3146 = vadd.f32 %v2981, %v3145
      %v3147 = vpop.f32.mrb[0].mxu0
      %v3148 = vadd.f32 %v2983, %v3147
      %v3149 = vpop.f32.mrb[0].mxu0
      %v3150 = vadd.f32 %v2985, %v3149
      %3151 = vmatprep.mubr.bf16.mxu0 %v910
      %3152 = vmatmul.mubr.bf16.gmra.mrb[0].mxu0 %v909
      %v3153 = vpop.f32.mrb[0].mxu0
      %v3154 = vadd.f32 %v2989, %v3153
      %v3155 = vpop.f32.mrb[0].mxu0
      %v3156 = vadd.f32 %v2991, %v3155
      %v3157 = vpop.f32.mrb[0].mxu0
      %v3158 = vadd.f32 %v2993, %v3157
      %v3159 = vpop.f32.mrb[0].mxu0
      %v3160 = vadd.f32 %v2995, %v3159
      %3161 = vmatprep.mubr.bf16.mxu0 %v917
      %3162 = vmatmul.mubr.bf16.gmra.mrb[0].mxu0 %v916
      %v3163 = vpop.f32.mrb[0].mxu0
      %v3164 = vadd.f32 %v2999, %v3163
      %v3165 = vpop.f32.mrb[0].mxu0
      %v3166 = vadd.f32 %v3001, %v3165
      %v3167 = vpop.f32.mrb[0].mxu0
      %v3168 = vadd.f32 %v3003, %v3167
      %v3169 = vpop.f32.mrb[0].mxu0
      %v3170 = vadd.f32 %v3005, %v3169
      %3171 = vmatprep.mubr.bf16.mxu0 %v924
      %3172 = vmatmul.mubr.bf16.gmra.mrb[0].mxu0 %v923
      %v3173 = vpop.f32.mrb[0].mxu0
      %v3174 = vadd.f32 %v3009, %v3173
      %v3175 = vpop.f32.mrb[0].mxu0
      %v3176 = vadd.f32 %v3011, %v3175
      %v3177 = vpop.f32.mrb[0].mxu0
      %v3178 = vadd.f32 %v3013, %v3177
      %v3179 = vpop.f32.mrb[0].mxu0
      %v3180 = vadd.f32 %v3015, %v3179
      %3181 = vmatprep.mubr.bf16.mxu0 %v931
      %3182 = vmatmul.mubr.bf16.gmra.mrb[0].mxu0 %v930
      %v3183 = vpop.f32.mrb[0].mxu0
      %v3184 = vadd.f32 %v3019, %v3183
      %v3185 = vpop.f32.mrb[0].mxu0
      %v3186 = vadd.f32 %v3021, %v3185
      %v3187 = vpop.f32.mrb[0].mxu0
      %v3188 = vadd.f32 %v3023, %v3187
      %v3189 = vpop.f32.mrb[0].mxu0
      %v3190 = vadd.f32 %v3025, %v3189
      %3191 = vmatprep.mubr.bf16.mxu0 %v938
      %3192 = vmatmul.mubr.bf16.gmra.mrb[0].mxu0 %v937
      %v3193 = vpop.f32.mrb[0].mxu0
      %v3194 = vadd.f32 %v3029, %v3193
      %v3195 = vpop.f32.mrb[0].mxu0
      %v3196 = vadd.f32 %v3031, %v3195
      %v3197 = vpop.f32.mrb[0].mxu0
      %v3198 = vadd.f32 %v3033, %v3197
      %v3199 = vpop.f32.mrb[0].mxu0
      %v3200 = vadd.f32 %v3035, %v3199
      %3201 = vdwg.mxu0
      %3202 = vmatprep.subr.bf16.mxu0 %v1807
      %3203 = vmatpush1.bf16.msra.mxu0 %v1806
      %3204 = vmatprep.subr.bf16.mxu0 0
      %3205 = vmatpush1.bf16.msra.mxu0 0
      %3206 = vmatprep.subr.bf16.mxu0 0
      %3207 = vmatpush1.bf16.msra.mxu0 0
      %3208 = vmatprep.subr.bf16.mxu0 0
      %3209 = vmatpush1.bf16.msra.mxu0 0
      %3210 = vmatprep.subr.bf16.mxu0 0
      %3211 = vmatpush1.bf16.msra.mxu0 0
      %3212 = vmatprep.subr.bf16.mxu0 0
      %3213 = vmatpush1.bf16.msra.mxu0 0
      %3214 = vmatprep.subr.bf16.mxu0 0
      %3215 = vmatpush1.bf16.msra.mxu0 0
      %3216 = vmatprep.subr.bf16.mxu0 0
      %3217 = vmatpush1.bf16.msra.mxu0 0
      %3218 = vmatprep.subr.bf16.mxu0 0
      %3219 = vmatpush1.bf16.msra.mxu0 0
      %3220 = vmatprep.subr.bf16.mxu0 0
      %3221 = vmatpush1.bf16.msra.mxu0 0
      %3222 = vmatprep.subr.bf16.mxu0 0
      %3223 = vmatpush1.bf16.msra.mxu0 0
      %3224 = vmatprep.subr.bf16.mxu0 0
      %3225 = vmatpush1.bf16.msra.mxu0 0
      %3226 = vmatprep.subr.bf16.mxu0 0
      %3227 = vmatpush1.bf16.msra.mxu0 0
      %3228 = vmatprep.subr.bf16.mxu0 0
      %3229 = vmatpush1.bf16.msra.mxu0 0
      %3230 = vmatprep.subr.bf16.mxu0 0
      %3231 = vmatpush1.bf16.msra.mxu0 0
      %3232 = vmatprep.subr.bf16.mxu0 0
      %3233 = vmatpush1.bf16.msra.mxu0 0
      %3234 = vmatprep.mubr.bf16.mxu0 0
      %3235 = vmatmul.mubr.bf16.gmra.mrb[0].mxu0 %v2006
      %v3236 = vpop.f32.mrb[0].mxu0
      %v3237 = vadd.f32 %v3072, %v3236
      %v3238 = vpop.f32.mrb[0].mxu0
      %v3239 = vpop.f32.mrb[0].mxu0
      %v3240 = vadd.f32 %v3075, %v3239
      %v3241 = vpop.f32.mrb[0].mxu0
      %3242 = vmatprep.mubr.bf16.mxu0 0
      %3243 = vmatmul.mubr.bf16.gmra.mrb[0].mxu0 %v2009
      %v3244 = vpop.f32.mrb[0].mxu0
      %v3245 = vadd.f32 %v3080, %v3244
      %v3246 = vpop.f32.mrb[0].mxu0
      %v3247 = vpop.f32.mrb[0].mxu0
      %v3248 = vadd.f32 %v3083, %v3247
      %v3249 = vpop.f32.mrb[0].mxu0
      %3250 = vmatprep.mubr.bf16.mxu0 0
      %3251 = vmatmul.mubr.bf16.gmra.mrb[0].mxu0 %v2012
      %v3252 = vpop.f32.mrb[0].mxu0
      %v3253 = vadd.f32 %v3088, %v3252
      %v3254 = vpop.f32.mrb[0].mxu0
      %v3255 = vpop.f32.mrb[0].mxu0
      %v3256 = vadd.f32 %v3091, %v3255
      %v3257 = vpop.f32.mrb[0].mxu0
      %3258 = vmatprep.mubr.bf16.mxu0 0
      %3259 = vmatmul.mubr.bf16.gmra.mrb[0].mxu0 %v2015
      %v3260 = vpop.f32.mrb[0].mxu0
      %v3261 = vadd.f32 %v3096, %v3260
      %v3262 = vpop.f32.mrb[0].mxu0
      %v3263 = vpop.f32.mrb[0].mxu0
      %v3264 = vadd.f32 %v3099, %v3263
      %v3265 = vpop.f32.mrb[0].mxu0
      %3266 = vmatprep.mubr.bf16.mxu0 0
      %3267 = vmatmul.mubr.bf16.gmra.mrb[0].mxu0 %v2018
      %v3268 = vpop.f32.mrb[0].mxu0
      %v3269 = vadd.f32 %v3104, %v3268
      %v3270 = vpop.f32.mrb[0].mxu0
      %v3271 = vadd.f32 %v3106, %v3270
      %v3272 = vpop.f32.mrb[0].mxu0
      %v3273 = vadd.f32 %v3108, %v3272
      %v3274 = vpop.f32.mrb[0].mxu0
      %v3275 = vadd.f32 %v3110, %v3274
      %3276 = vmatprep.mubr.bf16.mxu0 0
      %3277 = vmatmul.mubr.bf16.gmra.mrb[0].mxu0 %v2021
      %v3278 = vpop.f32.mrb[0].mxu0
      %v3279 = vadd.f32 %v3114, %v3278
      %v3280 = vpop.f32.mrb[0].mxu0
      %v3281 = vadd.f32 %v3116, %v3280
      %v3282 = vpop.f32.mrb[0].mxu0
      %v3283 = vadd.f32 %v3118, %v3282
      %v3284 = vpop.f32.mrb[0].mxu0
      %v3285 = vadd.f32 %v3120, %v3284
      %3286 = vmatprep.mubr.bf16.mxu0 0
      %3287 = vmatmul.mubr.bf16.gmra.mrb[0].mxu0 %v2024
      %v3288 = vpop.f32.mrb[0].mxu0
      %v3289 = vadd.f32 %v3124, %v3288
      %v3290 = vpop.f32.mrb[0].mxu0
      %v3291 = vadd.f32 %v3126, %v3290
      %v3292 = vpop.f32.mrb[0].mxu0
      %v3293 = vadd.f32 %v3128, %v3292
      %v3294 = vpop.f32.mrb[0].mxu0
      %v3295 = vadd.f32 %v3130, %v3294
      %3296 = vmatprep.mubr.bf16.mxu0 0
      %3297 = vmatmul.mubr.bf16.gmra.mrb[0].mxu0 %v2027
      %v3298 = vpop.f32.mrb[0].mxu0
      %v3299 = vadd.f32 %v3134, %v3298
      %v3300 = vpop.f32.mrb[0].mxu0
      %v3301 = vadd.f32 %v3136, %v3300
      %v3302 = vpop.f32.mrb[0].mxu0
      %v3303 = vadd.f32 %v3138, %v3302
      %v3304 = vpop.f32.mrb[0].mxu0
      %v3305 = vadd.f32 %v3140, %v3304
      %3306 = vmatprep.mubr.bf16.mxu0 0
      %3307 = vmatmul.mubr.bf16.gmra.mrb[0].mxu0 %v2030
      %v3308 = vpop.f32.mrb[0].mxu0
      %v3309 = vadd.f32 %v3144, %v3308
      %v3310 = vpop.f32.mrb[0].mxu0
      %v3311 = vadd.f32 %v3146, %v3310
      %v3312 = vpop.f32.mrb[0].mxu0
      %v3313 = vadd.f32 %v3148, %v3312
      %v3314 = vpop.f32.mrb[0].mxu0
      %v3315 = vadd.f32 %v3150, %v3314
      %3316 = vmatprep.mubr.bf16.mxu0 0
      %3317 = vmatmul.mubr.bf16.gmra.mrb[0].mxu0 %v2033
      %v3318 = vpop.f32.mrb[0].mxu0
      %v3319 = vadd.f32 %v3154, %v3318
      %v3320 = vpop.f32.mrb[0].mxu0
      %v3321 = vadd.f32 %v3156, %v3320
      %v3322 = vpop.f32.mrb[0].mxu0
      %v3323 = vadd.f32 %v3158, %v3322
      %v3324 = vpop.f32.mrb[0].mxu0
      %v3325 = vadd.f32 %v3160, %v3324
      %3326 = vmatprep.mubr.bf16.mxu0 0
      %3327 = vmatmul.mubr.bf16.gmra.mrb[0].mxu0 %v2036
      %v3328 = vpop.f32.mrb[0].mxu0
      %v3329 = vadd.f32 %v3164, %v3328
      %v3330 = vpop.f32.mrb[0].mxu0
      %v3331 = vadd.f32 %v3166, %v3330
      %v3332 = vpop.f32.mrb[0].mxu0
      %v3333 = vadd.f32 %v3168, %v3332
      %v3334 = vpop.f32.mrb[0].mxu0
      %v3335 = vadd.f32 %v3170, %v3334
      %3336 = vmatprep.mubr.bf16.mxu0 0
      %3337 = vmatmul.mubr.bf16.gmra.mrb[0].mxu0 %v2039
      %v3338 = vpop.f32.mrb[0].mxu0
      %v3339 = vadd.f32 %v3174, %v3338
      %v3340 = vpop.f32.mrb[0].mxu0
      %v3341 = vadd.f32 %v3176, %v3340
      %v3342 = vpop.f32.mrb[0].mxu0
      %v3343 = vadd.f32 %v3178, %v3342
      %v3344 = vpop.f32.mrb[0].mxu0
      %v3345 = vadd.f32 %v3180, %v3344
      %3346 = vmatprep.mubr.bf16.mxu0 0
      %3347 = vmatmul.mubr.bf16.gmra.mrb[0].mxu0 %v2042
      %v3348 = vpop.f32.mrb[0].mxu0
      %v3349 = vadd.f32 %v3184, %v3348
      %v3350 = vpop.f32.mrb[0].mxu0
      %v3351 = vadd.f32 %v3186, %v3350
      %v3352 = vpop.f32.mrb[0].mxu0
      %v3353 = vadd.f32 %v3188, %v3352
      %v3354 = vpop.f32.mrb[0].mxu0
      %v3355 = vadd.f32 %v3190, %v3354
      %3356 = vmatprep.mubr.bf16.mxu0 0
      %3357 = vmatmul.mubr.bf16.gmra.mrb[0].mxu0 %v2045
      %v3358 = vpop.f32.mrb[0].mxu0
      %v3359 = vadd.f32 %v3194, %v3358
      %v3360 = vpop.f32.mrb[0].mxu0
      %v3361 = vadd.f32 %v3196, %v3360
      %v3362 = vpop.f32.mrb[0].mxu0
      %v3363 = vadd.f32 %v3198, %v3362
      %v3364 = vpop.f32.mrb[0].mxu0
      %v3365 = vadd.f32 %v3200, %v3364
      %3366 = vdwg.mxu0
      %3379 = vrot.lane.b32.xlu0 %v2577, 64
      %v3380 = vpop.permute.xlu0 %3379
      %3381 = vrot.lane.b32.xlu0 %v2579, 64
      %v3382 = vpop.permute.xlu0 %3381
      %3383 = vrot.lane.b32.xlu0 %v3237, 64
      %v3384 = vpop.permute.xlu0 %3383
      %3385 = vrot.lane.b32.xlu0 %v2581, 64
      %v3386 = vpop.permute.xlu0 %3385
      %3387 = vrot.lane.b32.xlu0 %v2583, 64
      %v3388 = vpop.permute.xlu0 %3387
      %3389 = vrot.lane.b32.xlu0 %v3240, 64
      %v3390 = vpop.permute.xlu0 %3389
      %3391 = vrot.lane.b32.xlu0 %v2587, 64
      %v3392 = vpop.permute.xlu0 %3391
      %3393 = vrot.lane.b32.xlu0 %v2589, 64
      %v3394 = vpop.permute.xlu0 %3393
      %3395 = vrot.lane.b32.xlu0 %v3245, 64
      %v3396 = vpop.permute.xlu0 %3395
      %3397 = vrot.lane.b32.xlu0 %v2591, 64
      %v3398 = vpop.permute.xlu0 %3397
      %3399 = vrot.lane.b32.xlu0 %v2593, 64
      %v3400 = vpop.permute.xlu0 %3399
      %3401 = vrot.lane.b32.xlu0 %v3248, 64
      %v3402 = vpop.permute.xlu0 %3401
      %vm3403 = vcmask 523264
      %v3404 = vsel %vm3403, %v3380, %v3382
      %v3405 = vsel %vm3403, %v3382, %v3384
      %v3406 = vsel %vm3403, %v3386, %v3388
      %v3407 = vsel %vm3403, %v3388, %v3390
      %v3408 = vsel %vm3403, %v3392, %v3394
      %v3409 = vsel %vm3403, %v3394, %v3396
      %v3410 = vsel %vm3403, %v3398, %v3400
      %v3411 = vsel %vm3403, %v3400, %v3402
      %v3424 = vsel %vm3403, 0.0, %v3380
      %v3425 = vsel %vm3403, 0.0, %v3386
      %v3426 = vsel %vm3403, 0.0, %v3392
      %v3427 = vsel %vm3403, 0.0, %v3398
      %v3428 = vadd.f32 %v3424, 0.0
      %v3429 = vadd.f32 %v3404, 0.0
      %v3430 = vadd.f32 %v3405, 0.0
      %v3431 = vadd.f32 %v3425, 0.0
      %v3432 = vadd.f32 %v3406, 0.0
      %v3433 = vadd.f32 %v3407, 0.0
      %v3434 = vadd.f32 %v3426, 0.0
      %v3435 = vadd.f32 %v3408, 0.0
      %v3436 = vadd.f32 %v3409, 0.0
      %v3437 = vadd.f32 %v3427, 0.0
      %v3438 = vadd.f32 %v3410, 0.0
      %v3439 = vadd.f32 %v3411, 0.0
      %v3440 = vadd.f32 %v3428, %v2597
      %v3441 = vadd.f32 %v3429, %v2599
      %v3442 = vadd.f32 %v3430, %v3253
      %v3443 = vadd.f32 %v3431, %v2601
      %v3444 = vadd.f32 %v3432, %v2603
      %v3445 = vadd.f32 %v3433, %v3256
      %v3446 = vadd.f32 %v3434, %v2607
      %v3447 = vadd.f32 %v3435, %v2609
      %v3448 = vadd.f32 %v3436, %v3261
      %v3449 = vadd.f32 %v3437, %v2611
      %v3450 = vadd.f32 %v3438, %v2613
      %v3451 = vadd.f32 %v3439, %v3264
      %3468 = vrot.lane.b32.xlu0 %v2617, 64
      %v3469 = vpop.permute.xlu0 %3468
      %3470 = vrot.lane.b32.xlu0 %v2619, 64
      %v3471 = vpop.permute.xlu0 %3470
      %3472 = vrot.lane.b32.xlu0 %v3269, 64
      %v3473 = vpop.permute.xlu0 %3472
      %3474 = vrot.lane.b32.xlu0 %v3271, 64
      %v3475 = vpop.permute.xlu0 %3474
      %3476 = vrot.lane.b32.xlu0 %v2621, 64
      %v3477 = vpop.permute.xlu0 %3476
      %3478 = vrot.lane.b32.xlu0 %v2623, 64
      %v3479 = vpop.permute.xlu0 %3478
      %3480 = vrot.lane.b32.xlu0 %v3273, 64
      %v3481 = vpop.permute.xlu0 %3480
      %3482 = vrot.lane.b32.xlu0 %v3275, 64
      %v3483 = vpop.permute.xlu0 %3482
      %3484 = vrot.lane.b32.xlu0 %v2627, 64
      %v3485 = vpop.permute.xlu0 %3484
      %3486 = vrot.lane.b32.xlu0 %v2629, 64
      %v3487 = vpop.permute.xlu0 %3486
      %3488 = vrot.lane.b32.xlu0 %v3279, 64
      %v3489 = vpop.permute.xlu0 %3488
      %3490 = vrot.lane.b32.xlu0 %v3281, 64
      %v3491 = vpop.permute.xlu0 %3490
      %3492 = vrot.lane.b32.xlu0 %v2631, 64
      %v3493 = vpop.permute.xlu0 %3492
      %3494 = vrot.lane.b32.xlu0 %v2633, 64
      %v3495 = vpop.permute.xlu0 %3494
      %3496 = vrot.lane.b32.xlu0 %v3283, 64
      %v3497 = vpop.permute.xlu0 %3496
      %3498 = vrot.lane.b32.xlu0 %v3285, 64
      %v3499 = vpop.permute.xlu0 %3498
      %v3500 = vsel %vm3403, %v3469, %v3471
      %v3501 = vsel %vm3403, %v3471, %v3473
      %v3502 = vsel %vm3403, %v3473, %v3475
      %v3503 = vsel %vm3403, %v3477, %v3479
      %v3504 = vsel %vm3403, %v3479, %v3481
      %v3505 = vsel %vm3403, %v3481, %v3483
      %v3506 = vsel %vm3403, %v3485, %v3487
      %v3507 = vsel %vm3403, %v3487, %v3489
      %v3508 = vsel %vm3403, %v3489, %v3491
      %v3509 = vsel %vm3403, %v3493, %v3495
      %v3510 = vsel %vm3403, %v3495, %v3497
      %v3511 = vsel %vm3403, %v3497, %v3499
      %v3528 = vsel %vm3403, 0.0, %v3469
      %v3529 = vsel %vm3403, 0.0, %v3477
      %v3530 = vsel %vm3403, 0.0, %v3485
      %v3531 = vsel %vm3403, 0.0, %v3493
      %v3532 = vadd.f32 %v3528, 0.0
      %v3533 = vadd.f32 %v3440, %v3500
      %v3534 = vadd.f32 %v3441, %v3501
      %v3535 = vadd.f32 %v3442, %v3502
      %v3536 = vadd.f32 %v3529, 0.0
      %v3537 = vadd.f32 %v3443, %v3503
      %v3538 = vadd.f32 %v3444, %v3504
      %v3539 = vadd.f32 %v3445, %v3505
      %v3540 = vadd.f32 %v3530, 0.0
      %v3541 = vadd.f32 %v3446, %v3506
      %v3542 = vadd.f32 %v3447, %v3507
      %v3543 = vadd.f32 %v3448, %v3508
      %v3544 = vadd.f32 %v3531, 0.0
      %v3545 = vadd.f32 %v3449, %v3509
      %v3546 = vadd.f32 %v3450, %v3510
      %v3547 = vadd.f32 %v3451, %v3511
      %v3548 = vadd.f32 %v3532, %v2637
      %v3549 = vadd.f32 %v3533, %v2639
      %v3550 = vadd.f32 %v3534, %v3289
      %v3551 = vadd.f32 %v3535, %v3291
      %v3552 = vadd.f32 %v3536, %v2641
      %v3553 = vadd.f32 %v3537, %v2643
      %v3554 = vadd.f32 %v3538, %v3293
      %v3555 = vadd.f32 %v3539, %v3295
      %v3556 = vadd.f32 %v3540, %v2647
      %v3557 = vadd.f32 %v3541, %v2649
      %v3558 = vadd.f32 %v3542, %v3299
      %v3559 = vadd.f32 %v3543, %v3301
      %v3560 = vadd.f32 %v3544, %v2651
      %v3561 = vadd.f32 %v3545, %v2653
      %v3562 = vadd.f32 %v3546, %v3303
      %v3563 = vadd.f32 %v3547, %v3305
      %3580 = vrot.lane.b32.xlu0 %v2657, 64
      %v3581 = vpop.permute.xlu0 %3580
      %3582 = vrot.lane.b32.xlu0 %v2659, 64
      %v3583 = vpop.permute.xlu0 %3582
      %3584 = vrot.lane.b32.xlu0 %v3309, 64
      %v3585 = vpop.permute.xlu0 %3584
      %3586 = vrot.lane.b32.xlu0 %v3311, 64
      %v3587 = vpop.permute.xlu0 %3586
      %3588 = vrot.lane.b32.xlu0 %v2661, 64
      %v3589 = vpop.permute.xlu0 %3588
      %3590 = vrot.lane.b32.xlu0 %v2663, 64
      %v3591 = vpop.permute.xlu0 %3590
      %3592 = vrot.lane.b32.xlu0 %v3313, 64
      %v3593 = vpop.permute.xlu0 %3592
      %3594 = vrot.lane.b32.xlu0 %v3315, 64
      %v3595 = vpop.permute.xlu0 %3594
      %3596 = vrot.lane.b32.xlu0 %v2667, 64
      %v3597 = vpop.permute.xlu0 %3596
      %3598 = vrot.lane.b32.xlu0 %v2669, 64
      %v3599 = vpop.permute.xlu0 %3598
      %3600 = vrot.lane.b32.xlu0 %v3319, 64
      %v3601 = vpop.permute.xlu0 %3600
      %3602 = vrot.lane.b32.xlu0 %v3321, 64
      %v3603 = vpop.permute.xlu0 %3602
      %3604 = vrot.lane.b32.xlu0 %v2671, 64
      %v3605 = vpop.permute.xlu0 %3604
      %3606 = vrot.lane.b32.xlu0 %v2673, 64
      %v3607 = vpop.permute.xlu0 %3606
      %3608 = vrot.lane.b32.xlu0 %v3323, 64
      %v3609 = vpop.permute.xlu0 %3608
      %3610 = vrot.lane.b32.xlu0 %v3325, 64
      %v3611 = vpop.permute.xlu0 %3610
      %v3612 = vsel %vm3403, %v3581, %v3583
      %v3613 = vsel %vm3403, %v3583, %v3585
      %v3614 = vsel %vm3403, %v3585, %v3587
      %v3615 = vsel %vm3403, %v3589, %v3591
      %v3616 = vsel %vm3403, %v3591, %v3593
      %v3617 = vsel %vm3403, %v3593, %v3595
      %v3618 = vsel %vm3403, %v3597, %v3599
      %v3619 = vsel %vm3403, %v3599, %v3601
      %v3620 = vsel %vm3403, %v3601, %v3603
      %v3621 = vsel %vm3403, %v3605, %v3607
      %v3622 = vsel %vm3403, %v3607, %v3609
      %v3623 = vsel %vm3403, %v3609, %v3611
      %v3640 = vsel %vm3403, %v3587, 0.0
      %v3641 = vsel %vm3403, %v3595, 0.0
      %v3642 = vsel %vm3403, %v3603, 0.0
      %v3643 = vsel %vm3403, %v3611, 0.0
      %v3644 = vadd.f32 %v3548, %v3612
      %v3645 = vadd.f32 %v3549, %v3613
      %v3646 = vadd.f32 %v3550, %v3614
      %v3647 = vadd.f32 %v3551, %v3640
      %v3648 = vadd.f32 %v3552, %v3615
      %v3649 = vadd.f32 %v3553, %v3616
      %v3650 = vadd.f32 %v3554, %v3617
      %v3651 = vadd.f32 %v3555, %v3641
      %v3652 = vadd.f32 %v3556, %v3618
      %v3653 = vadd.f32 %v3557, %v3619
      %v3654 = vadd.f32 %v3558, %v3620
      %v3655 = vadd.f32 %v3559, %v3642
      %v3656 = vadd.f32 %v3560, %v3621
      %v3657 = vadd.f32 %v3561, %v3622
      %v3658 = vadd.f32 %v3562, %v3623
      %v3659 = vadd.f32 %v3563, %v3643
      %v3660 = vadd.f32 %v3644, %v2678
      %v3661 = vadd.f32 %v3645, %v3329
      %v3662 = vadd.f32 %v3646, %v3331
      %v3663 = vadd.f32 %v3647, 0.0
      %v3664 = vadd.f32 %v3648, %v2681
      %v3665 = vadd.f32 %v3649, %v3333
      %v3666 = vadd.f32 %v3650, %v3335
      %v3667 = vadd.f32 %v3651, 0.0
      %v3668 = vadd.f32 %v3652, %v2686
      %v3669 = vadd.f32 %v3653, %v3339
      %v3670 = vadd.f32 %v3654, %v3341
      %v3671 = vadd.f32 %v3655, 0.0
      %v3672 = vadd.f32 %v3656, %v2689
      %v3673 = vadd.f32 %v3657, %v3343
      %v3674 = vadd.f32 %v3658, %v3345
      %v3675 = vadd.f32 %v3659, 0.0
      %3688 = vrot.lane.b32.xlu0 %v2694, 64
      %v3689 = vpop.permute.xlu0 %3688
      %3690 = vrot.lane.b32.xlu0 %v3349, 64
      %v3691 = vpop.permute.xlu0 %3690
      %3692 = vrot.lane.b32.xlu0 %v3351, 64
      %v3693 = vpop.permute.xlu0 %3692
      %3694 = vrot.lane.b32.xlu0 %v2697, 64
      %v3695 = vpop.permute.xlu0 %3694
      %3696 = vrot.lane.b32.xlu0 %v3353, 64
      %v3697 = vpop.permute.xlu0 %3696
      %3698 = vrot.lane.b32.xlu0 %v3355, 64
      %v3699 = vpop.permute.xlu0 %3698
      %3700 = vrot.lane.b32.xlu0 %v2702, 64
      %v3701 = vpop.permute.xlu0 %3700
      %3702 = vrot.lane.b32.xlu0 %v3359, 64
      %v3703 = vpop.permute.xlu0 %3702
      %3704 = vrot.lane.b32.xlu0 %v3361, 64
      %v3705 = vpop.permute.xlu0 %3704
      %3706 = vrot.lane.b32.xlu0 %v2705, 64
      %v3707 = vpop.permute.xlu0 %3706
      %3708 = vrot.lane.b32.xlu0 %v3363, 64
      %v3709 = vpop.permute.xlu0 %3708
      %3710 = vrot.lane.b32.xlu0 %v3365, 64
      %v3711 = vpop.permute.xlu0 %3710
      %v3712 = vsel %vm3403, %v3689, %v3691
      %v3713 = vsel %vm3403, %v3691, %v3693
      %v3714 = vsel %vm3403, %v3695, %v3697
      %v3715 = vsel %vm3403, %v3697, %v3699
      %v3716 = vsel %vm3403, %v3701, %v3703
      %v3717 = vsel %vm3403, %v3703, %v3705
      %v3718 = vsel %vm3403, %v3707, %v3709
      %v3719 = vsel %vm3403, %v3709, %v3711
      %v3732 = vsel %vm3403, %v3693, 0.0
      %v3733 = vsel %vm3403, %v3699, 0.0
      %v3734 = vsel %vm3403, %v3705, 0.0
      %v3735 = vsel %vm3403, %v3711, 0.0
      %v3736 = vadd.f32 %v3660, %v3712
      %v3737 = vadd.f32 %v3661, %v3713
      %v3738 = vadd.f32 %v3662, %v3732
      %v3739 = vadd.f32 %v3663, 0.0
      %v3740 = vadd.f32 %v3664, %v3714
      %v3741 = vadd.f32 %v3665, %v3715
      %v3742 = vadd.f32 %v3666, %v3733
      %v3743 = vadd.f32 %v3667, 0.0
      %v3744 = vadd.f32 %v3668, %v3716
      %v3745 = vadd.f32 %v3669, %v3717
      %v3746 = vadd.f32 %v3670, %v3734
      %v3747 = vadd.f32 %v3671, 0.0
      %v3748 = vadd.f32 %v3672, %v3718
      %v3749 = vadd.f32 %v3673, %v3719
      %v3750 = vadd.f32 %v3674, %v3735
      %v3751 = vadd.f32 %v3675, 0.0
      %v3752 = vld [vmem:[%s2] sm:$0xff]
      %v3753 = vld [vmem:[%s2 + $0x8] sm:$0xff]
      %v3754 = vld [vmem:[%s2 + $0x10] sm:$0xff]
      %v3755 = vld [vmem:[%s2 + $0x18] sm:$0xff]
      %3757 = vset.pattern.permute.xlu0 0
      %3758 = vperm.xlu0 %3757, %v3752
      %v3759 = vpop.permute.xlu0 %3758
      %3762 = vset.pattern.permute.xlu0 0
      %3763 = vperm.xlu0 %3762, %v3753
      %v3764 = vpop.permute.xlu0 %3763
      %3767 = vset.pattern.permute.xlu0 0
      %3768 = vperm.xlu0 %3767, %v3754
      %v3769 = vpop.permute.xlu0 %3768
      %3772 = vset.pattern.permute.xlu0 0
      %3773 = vperm.xlu0 %3772, %v3755
      %v3774 = vpop.permute.xlu0 %3773
      %v3776 = vadd.f32 %v3736, %v3759
      %v3777 = vadd.f32 %v3737, %v3759
      %v3778 = vadd.f32 %v3738, %v3759
      %v3779 = vadd.f32 %v3739, %v3759
      %v3780 = vadd.f32 %v3740, %v3764
      %v3781 = vadd.f32 %v3741, %v3764
      %v3782 = vadd.f32 %v3742, %v3764
      %v3783 = vadd.f32 %v3743, %v3764
      %v3784 = vadd.f32 %v3744, %v3769
      %v3785 = vadd.f32 %v3745, %v3769
      %v3786 = vadd.f32 %v3746, %v3769
      %v3787 = vadd.f32 %v3747, %v3769
      %v3788 = vadd.f32 %v3748, %v3774
      %v3789 = vadd.f32 %v3749, %v3774
      %v3790 = vadd.f32 %v3750, %v3774
      %v3791 = vadd.f32 %v3751, %v3774
      %v3792 = vld [vmem:[%s3] sm:$0xf]
      %v3793 = vld [vmem:[%s4] sm:$0xf]
      %v3794 = vadd.f32 %v3776, %v3777
      %v3795 = vadd.f32 %v3794, %v3778
      %v3796 = vadd.f32 %v3795, %v3779
      %3797 = vadd.xlane.f32.xlu0 %v3796
      %v3798 = vpop.xlane.xlu0 %3797
      %v3799 = vadd.f32 %v3780, %v3781
      %v3800 = vadd.f32 %v3799, %v3782
      %v3801 = vadd.f32 %v3800, %v3783
      %3802 = vadd.xlane.f32.xlu0 %v3801
      %v3803 = vpop.xlane.xlu0 %3802
      %v3804 = vadd.f32 %v3784, %v3785
      %v3805 = vadd.f32 %v3804, %v3786
      %v3806 = vadd.f32 %v3805, %v3787
      %3807 = vadd.xlane.f32.xlu0 %v3806
      %v3808 = vpop.xlane.xlu0 %3807
      %v3809 = vadd.f32 %v3788, %v3789
      %v3810 = vadd.f32 %v3809, %v3790
      %v3811 = vadd.f32 %v3810, %v3791
      %3812 = vadd.xlane.f32.xlu0 %v3811
      %v3813 = vpop.xlane.xlu0 %3812
      %v3814 = vrcp.pop 512.0
      %v3815 = vmul.f32 %v3798, %v3814
      %v3816 = vmul.f32 %v3803, %v3814
      %v3817 = vmul.f32 %v3808, %v3814
      %v3818 = vmul.f32 %v3813, %v3814
      %v3819 = vsub.f32 %v3776, %v3815
      %v3820 = vsub.f32 %v3777, %v3815
      %v3821 = vsub.f32 %v3778, %v3815
      %v3822 = vsub.f32 %v3779, %v3815
      %v3823 = vsub.f32 %v3780, %v3816
      %v3824 = vsub.f32 %v3781, %v3816
      %v3825 = vsub.f32 %v3782, %v3816
      %v3826 = vsub.f32 %v3783, %v3816
      %v3827 = vsub.f32 %v3784, %v3817
      %v3828 = vsub.f32 %v3785, %v3817
      %v3829 = vsub.f32 %v3786, %v3817
      %v3830 = vsub.f32 %v3787, %v3817
      %v3831 = vsub.f32 %v3788, %v3818
      %v3832 = vsub.f32 %v3789, %v3818
      %v3833 = vsub.f32 %v3790, %v3818
      %v3834 = vsub.f32 %v3791, %v3818
      %v3835 = vmul.f32 %v3819, %v3819
      %v3836 = vmul.f32 %v3820, %v3820
      %v3837 = vmul.f32 %v3821, %v3821
      %v3838 = vmul.f32 %v3822, %v3822
      %v3839 = vmul.f32 %v3823, %v3823
      %v3840 = vmul.f32 %v3824, %v3824
      %v3841 = vmul.f32 %v3825, %v3825
      %v3842 = vmul.f32 %v3826, %v3826
      %v3843 = vmul.f32 %v3827, %v3827
      %v3844 = vmul.f32 %v3828, %v3828
      %v3845 = vmul.f32 %v3829, %v3829
      %v3846 = vmul.f32 %v3830, %v3830
      %v3847 = vmul.f32 %v3831, %v3831
      %v3848 = vmul.f32 %v3832, %v3832
      %v3849 = vmul.f32 %v3833, %v3833
      %v3850 = vmul.f32 %v3834, %v3834
      %v3851 = vadd.f32 %v3835, %v3836
      %v3852 = vadd.f32 %v3851, %v3837
      %v3853 = vadd.f32 %v3852, %v3838
      %3854 = vadd.xlane.f32.xlu0 %v3853
      %v3855 = vpop.xlane.xlu0 %3854
      %v3856 = vadd.f32 %v3839, %v3840
      %v3857 = vadd.f32 %v3856, %v3841
      %v3858 = vadd.f32 %v3857, %v3842
      %3859 = vadd.xlane.f32.xlu0 %v3858
      %v3860 = vpop.xlane.xlu0 %3859
      %v3861 = vadd.f32 %v3843, %v3844
      %v3862 = vadd.f32 %v3861, %v3845
      %v3863 = vadd.f32 %v3862, %v3846
      %3864 = vadd.xlane.f32.xlu0 %v3863
      %v3865 = vpop.xlane.xlu0 %3864
      %v3866 = vadd.f32 %v3847, %v3848
      %v3867 = vadd.f32 %v3866, %v3849
      %v3868 = vadd.f32 %v3867, %v3850
      %3869 = vadd.xlane.f32.xlu0 %v3868
      %v3870 = vpop.xlane.xlu0 %3869
      %v3871 = vmul.f32 %v3855, %v3814
      %v3872 = vmul.f32 %v3860, %v3814
      %v3873 = vmul.f32 %v3865, %v3814
      %v3874 = vmul.f32 %v3870, %v3814
      %v3875 = vadd.f32 %v3871, 1e-05
      %v3876 = vadd.f32 %v3872, 1e-05
      %v3877 = vadd.f32 %v3873, 1e-05
      %v3878 = vadd.f32 %v3874, 1e-05
      %v3879 = vrsqrt.pop %v3875
      %v3880 = vrsqrt.pop %v3876
      %v3881 = vrsqrt.pop %v3877
      %v3882 = vrsqrt.pop %v3878
      %v3883 = vmul.f32 %v3819, %v3879
      %v3884 = vmul.f32 %v3820, %v3879
      %v3885 = vmul.f32 %v3821, %v3879
      %v3886 = vmul.f32 %v3822, %v3879
      %v3887 = vmul.f32 %v3823, %v3880
      %v3888 = vmul.f32 %v3824, %v3880
      %v3889 = vmul.f32 %v3825, %v3880
      %v3890 = vmul.f32 %v3826, %v3880
      %v3891 = vmul.f32 %v3827, %v3881
      %v3892 = vmul.f32 %v3828, %v3881
      %v3893 = vmul.f32 %v3829, %v3881
      %v3894 = vmul.f32 %v3830, %v3881
      %v3895 = vmul.f32 %v3831, %v3882
      %v3896 = vmul.f32 %v3832, %v3882
      %v3897 = vmul.f32 %v3833, %v3882
      %v3898 = vmul.f32 %v3834, %v3882
      %v3900 = vlaneseq
      %v3901 = vshrl.u32 %v3900, 7
      %v3902 = vsub.s32 0, %v3901
      %v3903 = vrot.slane %v3792, %v3902
      %v3904 = vlaneseq
      %v3905 = vshrl.u32 %v3904, 7
      %v3906 = vsub.s32 1, %v3905
      %v3907 = vrot.slane %v3792, %v3906
      %v3908 = vlaneseq
      %v3909 = vshrl.u32 %v3908, 7
      %v3910 = vsub.s32 2, %v3909
      %v3911 = vrot.slane %v3792, %v3910
      %v3912 = vlaneseq
      %v3913 = vshrl.u32 %v3912, 7
      %v3914 = vsub.s32 3, %v3913
      %v3915 = vrot.slane %v3792, %v3914
      %v3920 = vmul.f32 %v3883, %v3903
      %v3921 = vmul.f32 %v3884, %v3907
      %v3922 = vmul.f32 %v3885, %v3911
      %v3923 = vmul.f32 %v3886, %v3915
      %v3924 = vmul.f32 %v3887, %v3903
      %v3925 = vmul.f32 %v3888, %v3907
      %v3926 = vmul.f32 %v3889, %v3911
      %v3927 = vmul.f32 %v3890, %v3915
      %v3928 = vmul.f32 %v3891, %v3903
      %v3929 = vmul.f32 %v3892, %v3907
      %v3930 = vmul.f32 %v3893, %v3911
      %v3931 = vmul.f32 %v3894, %v3915
      %v3932 = vmul.f32 %v3895, %v3903
      %v3933 = vmul.f32 %v3896, %v3907
      %v3934 = vmul.f32 %v3897, %v3911
      %v3935 = vmul.f32 %v3898, %v3915
      %v3937 = vlaneseq
      %v3938 = vshrl.u32 %v3937, 7
      %v3939 = vsub.s32 0, %v3938
      %v3940 = vrot.slane %v3793, %v3939
      %v3941 = vlaneseq
      %v3942 = vshrl.u32 %v3941, 7
      %v3943 = vsub.s32 1, %v3942
      %v3944 = vrot.slane %v3793, %v3943
      %v3945 = vlaneseq
      %v3946 = vshrl.u32 %v3945, 7
      %v3947 = vsub.s32 2, %v3946
      %v3948 = vrot.slane %v3793, %v3947
      %v3949 = vlaneseq
      %v3950 = vshrl.u32 %v3949, 7
      %v3951 = vsub.s32 3, %v3950
      %v3952 = vrot.slane %v3793, %v3951
      %v3957 = vadd.f32 %v3920, %v3940
      %v3958 = vadd.f32 %v3921, %v3944
      %v3959 = vadd.f32 %v3922, %v3948
      %v3960 = vadd.f32 %v3923, %v3952
      %v3961 = vadd.f32 %v3924, %v3940
      %v3962 = vadd.f32 %v3925, %v3944
      %v3963 = vadd.f32 %v3926, %v3948
      %v3964 = vadd.f32 %v3927, %v3952
      %v3965 = vadd.f32 %v3928, %v3940
      %v3966 = vadd.f32 %v3929, %v3944
      %v3967 = vadd.f32 %v3930, %v3948
      %v3968 = vadd.f32 %v3931, %v3952
      %v3969 = vadd.f32 %v3932, %v3940
      %v3970 = vadd.f32 %v3933, %v3944
      %v3971 = vadd.f32 %v3934, %v3948
      %v3972 = vadd.f32 %v3935, %v3952
      %v3973 = vmax.f32 %v3957, 0.0
      %v3974 = vmax.f32 %v3958, 0.0
      %v3975 = vmax.f32 %v3959, 0.0
      %v3976 = vmax.f32 %v3960, 0.0
      %v3977 = vmax.f32 %v3961, 0.0
      %v3978 = vmax.f32 %v3962, 0.0
      %v3979 = vmax.f32 %v3963, 0.0
      %v3980 = vmax.f32 %v3964, 0.0
      %v3981 = vmax.f32 %v3965, 0.0
      %v3982 = vmax.f32 %v3966, 0.0
      %v3983 = vmax.f32 %v3967, 0.0
      %v3984 = vmax.f32 %v3968, 0.0
      %v3985 = vmax.f32 %v3969, 0.0
      %v3986 = vmax.f32 %v3970, 0.0
      %v3987 = vmax.f32 %v3971, 0.0
      %v3988 = vmax.f32 %v3972, 0.0
      %v3989 = vpack.c.bf16 %v3977, %v3973
      %v3990 = vpack.c.bf16 %v3978, %v3974
      %v3991 = vpack.c.bf16 %v3979, %v3975
      %v3992 = vpack.c.bf16 %v3980, %v3976
      %v3993 = vpack.c.bf16 %v3985, %v3981
      %v3994 = vpack.c.bf16 %v3986, %v3982
      %v3995 = vpack.c.bf16 %v3987, %v3983
      %v3996 = vpack.c.bf16 %v3988, %v3984
      %v4005 = vunpack.c.l.b16 %v3989
      %v4006 = vunpack.c.l.b16 %v3990
      %v4007 = vunpack.c.l.b16 %v3991
      %v4008 = vunpack.c.l.b16 %v3992
      %v4009 = vunpack.c.h.b16 %v3989
      %v4010 = vunpack.c.h.b16 %v3990
      %v4011 = vunpack.c.h.b16 %v3991
      %v4012 = vunpack.c.h.b16 %v3992
      %v4013 = vunpack.c.l.b16 %v3993
      %v4014 = vunpack.c.l.b16 %v3994
      %v4015 = vunpack.c.l.b16 %v3995
      %v4016 = vunpack.c.l.b16 %v3996
      %v4017 = vunpack.c.h.b16 %v3993
      %v4018 = vunpack.c.h.b16 %v3994
      %v4019 = vunpack.c.h.b16 %v3995
      %v4020 = vunpack.c.h.b16 %v3996
      %v4021 = vpack.c.b16 %v4006, %v4005
      %v4022 = vpack.c.b16 %v4008, %v4007
      %v4023 = vpack.c.b16 %v4010, %v4009
      %v4024 = vpack.c.b16 %v4012, %v4011
      %v4025 = vpack.c.b16 %v4014, %v4013
      %v4026 = vpack.c.b16 %v4016, %v4015
      %v4027 = vpack.c.b16 %v4018, %v4017
      %v4028 = vpack.c.b16 %v4020, %v4019
      %4037 = vst [vmem:[%s224] sm:$0xff] %v4021
      %4038 = vst [vmem:[%s224 + $0x8] sm:$0xff] %v4022
      %4039 = vst [vmem:[%s224 + $0x10] sm:$0xff] %v4023
      %4040 = vst [vmem:[%s224 + $0x18] sm:$0xff] %v4024
      %4041 = vst [vmem:[%s224 + $0x20] sm:$0xff] %v4025
      %4042 = vst [vmem:[%s224 + $0x28] sm:$0xff] %v4026
      %4043 = vst [vmem:[%s224 + $0x30] sm:$0xff] %v4027
      %4044 = vst [vmem:[%s224 + $0x38] sm:$0xff] %v4028
      %p4045 = scmp.lt.s32.totalorder %s16, 1
      %s4046 = scalar_select %p4045, %s16, 1
      %s4047 = smul.addr %s4046, 16
      %s4048 = smul.addr %s4047, 4
      %s4049 = scalar_lea.vmem %s5, %s4048
      // Predicated region
      $region41: #{encoder4_forward.6} parent=39 // pred_check
        %p4050 = pneg %p144
      $region42: #{encoder4_forward.6} parent=39 // pred_check_branch
        %4052 = sbr.rel (%p4050) target = $region44
      $region43: #{encoder4_forward.6} parent=39 // pred_region
        _
      $region44: #{encoder4_forward.6} parent=39 // pred_fallthru
        _
    $region40: #{encoder4_forward.6} parent=5 // pred_fallthru
      _
    %p4053 = scmp.le.s32.totalorder 2, %s11
    // Predicated region
    $region45: #{encoder4_forward.6} parent=5 // pred_check
      %p4054 = pneg %p4053
    $region46: #{encoder4_forward.6} parent=5 // pred_check_branch
      %4056 = sbr.rel (%p4054) target = $region48
    $region47: #{encoder4_forward.6} parent=5 // pred_region
      %s4057 = ssub.s32 %s11, 2
      // Predicated region
      $region49: #{encoder4_forward.6} parent=47 // pred_check
        %p4058 = pneg %p150
      $region50: #{encoder4_forward.6} parent=47 // pred_check_branch
        %4060 = sbr.rel (%p4058) target = $region52
      $region51: #{encoder4_forward.6} parent=47 // pred_region
        %p4061 = scmp.lt.s32.totalorder %s17, 1
        %s4062 = scalar_select %p4061, %s17, 1
        %s4063 = smul.addr %s4062, 16
        %s4064 = smul.addr %s4063, 4
        %s4065 = scalar_lea.vmem %s5, %s4064
      $region52: #{encoder4_forward.6} parent=47 // pred_fallthru
        _
    $region48: #{encoder4_forward.6} parent=5 // pred_fallthru
      _
  $region6: #{encoder4_forward.6} parent=0 // loop_footer
    %s15 = sadd.s32 1, %s11
  $region7: #{encoder4_forward.6} parent=0 // loop_footer_branch
    %10 = sbr.rel target = $region3
  $region8: #{encoder4_forward.6} parent=0 // loop_exit
    _

// kernel: encoder4_forward.7
$region0: #{encoder4_forward.7}
  #allocation0 [shape = 'u32[]', space=smem, size = 0x4, offset = 0x4, fixed_abs, tag = 'smem constant byte address 0x4 - core index']
  #allocation1 [shape = 'u32[144,128]{1,0:T(1,128)}', space=vmem, size = 0x12000, scoped, tag = 'internal scratch']
  %s0 = inlined_call_operand.vmem [shape: bf16[96,288], index: 0, kind: input, shape index: {}]
  %s1 = inlined_call_operand.vmem [shape: bf16[2,288,512], index: 1, kind: input, shape index: {}]
  %s2 = inlined_call_operand.vmem [shape: f32[32,1], index: 2, kind: input, shape index: {}]
  %s3 = inlined_call_operand.vmem [shape: f32[1,512], index: 3, kind: input, shape index: {}]
  %s4 = inlined_call_operand.vmem [shape: f32[1,512], index: 4, kind: input, shape index: {}]
  %s5 = inlined_call_operand.vmem [shape: bf16[32,32], index: 5, kind: input, shape index: {}]
  %s6 = inlined_call_operand.vmem [shape: f32[32,1], index: 6, kind: input, shape index: {}]
  %s7 = inlined_call_operand.vmem [shape: f32[1,512], index: 7, kind: input, shape index: {}]
  %s8 = inlined_call_operand.vmem [shape: f32[1,512], index: 8, kind: input, shape index: {}]
  %s9 = inlined_call_operand.vmem [shape: f32[2,32,512], index: 9, kind: output, shape index: {}]
  %s10 = sld [smem:[#allocation0]]
  $region69: #{encoder4_forward.7} parent=0
    _
  %s12 = ssub.s32 1, %s10
  %s13 = scalar_select 0, %s12, %s10
  loop: start=0, step=1, limit=4
  $region2: #{encoder4_forward.7} parent=0 // loop_pre_header
    _
  $region3: #{encoder4_forward.7} parent=0 // loop_header
    %s15 = sphi 0, %s19
    %p16 = scmp.ge.s32.totalorder %s15, 4
    %s23 = sphi 0, %s23
    %s25 = sphi 0, %s23
    %s26 = sphi 0, %s25
    %s40 = sphi 0, %s26
    %s46 = sphi 0, %s48
    %s49 = sphi 0, %s46
    %s50 = sphi 0, %s49
    %s66 = sphi 0, %s50
    %s70 = sphi 0, %s70
    %s72 = sphi 0, %s70
    %s73 = sphi 0, %s72
    %s87 = sphi 0, %s73
    %s91 = sphi 0, %s91
    %s93 = sphi 0, %s91
    %s94 = sphi 0, %s93
    %s108 = sphi 0, %s94
    %s112 = sphi 0, %s112
    %s114 = sphi 0, %s112
    %s115 = sphi 0, %s114
    %s129 = sphi 0, %s115
    %s133 = sphi 0, %s133
    %s135 = sphi 0, %s133
    %s136 = sphi 0, %s135
    %s150 = sphi 0, %s136
    %s154 = sphi 0, %s154
    %s156 = sphi 0, %s154
    %s157 = sphi 0, %s156
    %s171 = sphi 0, %s157
    %s175 = sphi 0, %s175
    %s177 = sphi 0, %s175
    %s178 = sphi 0, %s177
    %s192 = sphi 0, %s178
    %s196 = sphi 0, %s196
    %s198 = sphi 0, %s196
    %s199 = sphi 0, %s198
    %s213 = sphi 0, %s199
    %s219 = sphi 0, %s221
    %s222 = sphi 0, %s219
    %s223 = sphi 0, %s222
    %s239 = sphi 0, %s223
  $region4: #{encoder4_forward.7} parent=0 // loop_header_branch
    %18 = sbr.rel (%p16) target = $region8
  $region5: #{encoder4_forward.7} parent=0 // loop_body
    %s20 = ssub.s32 %s15, 1
    %s21 = ssub.s32 %s15, 2
    %s22 = sadd.s32 %s15, 1
    %s24 = sadd.s32 %s23, 1
    %p27 = scmp.eq.s32.totalorder %s15, 1
    %p28 = scmp.ne.s32.totalorder %s23, %s25
    %p29 = scmp.eq.s32.totalorder %s15, 0
    %p30 = por %p28, %p29
    %p31 = scmp.ne.s32.totalorder %s23, %s25
    %p32 = scmp.eq.s32.totalorder %s20, 1
    %p33 = por %p31, %p32
    %p34 = scmp.ne.s32.totalorder %s25, %s26
    %p35 = scmp.eq.s32.totalorder %s20, 0
    %p36 = por %p34, %p35
    %p37 = scmp.ne.s32.totalorder %s25, %s26
    %p38 = scmp.eq.s32.totalorder %s21, 1
    %p39 = por %p37, %p38
    %p41 = scmp.ne.s32.totalorder %s26, %s40
    %p42 = scmp.eq.s32.totalorder %s21, 0
    %p43 = por %p41, %p42
    %s44 = ssub.s32 %s15, %s22
    %p45 = scmp.eq.s32.totalorder %s44, 0
    %s47 = sadd.s32 %s46, 1
    %s48 = scalar_select %p45, %s46, %s47
    %p51 = pneg %p45
    %p52 = scmp.eq.s32.totalorder %s15, 1
    %p53 = por %p51, %p52
    %p54 = scmp.ne.s32.totalorder %s46, %s49
    %p55 = scmp.eq.s32.totalorder %s15, 0
    %p56 = por %p54, %p55
    %p57 = scmp.ne.s32.totalorder %s46, %s49
    %p58 = scmp.eq.s32.totalorder %s20, 1
    %p59 = por %p57, %p58
    %p60 = scmp.ne.s32.totalorder %s49, %s50
    %p61 = scmp.eq.s32.totalorder %s20, 0
    %p62 = por %p60, %p61
    %p63 = scmp.ne.s32.totalorder %s49, %s50
    %p64 = scmp.eq.s32.totalorder %s21, 1
    %p65 = por %p63, %p64
    %p67 = scmp.ne.s32.totalorder %s50, %s66
    %p68 = scmp.eq.s32.totalorder %s21, 0
    %p69 = por %p67, %p68
    %s71 = sadd.s32 %s70, 1
    %p74 = scmp.eq.s32.totalorder %s15, 1
    %p75 = scmp.ne.s32.totalorder %s70, %s72
    %p76 = scmp.eq.s32.totalorder %s15, 0
    %p77 = por %p75, %p76
    %p78 = scmp.ne.s32.totalorder %s70, %s72
    %p79 = scmp.eq.s32.totalorder %s20, 1
    %p80 = por %p78, %p79
    %p81 = scmp.ne.s32.totalorder %s72, %s73
    %p82 = scmp.eq.s32.totalorder %s20, 0
    %p83 = por %p81, %p82
    %p84 = scmp.ne.s32.totalorder %s72, %s73
    %p85 = scmp.eq.s32.totalorder %s21, 1
    %p86 = por %p84, %p85
    %p88 = scmp.ne.s32.totalorder %s73, %s87
    %p89 = scmp.eq.s32.totalorder %s21, 0
    %p90 = por %p88, %p89
    %s92 = sadd.s32 %s91, 1
    %p95 = scmp.eq.s32.totalorder %s15, 1
    %p96 = scmp.ne.s32.totalorder %s91, %s93
    %p97 = scmp.eq.s32.totalorder %s15, 0
    %p98 = por %p96, %p97
    %p99 = scmp.ne.s32.totalorder %s91, %s93
    %p100 = scmp.eq.s32.totalorder %s20, 1
    %p101 = por %p99, %p100
    %p102 = scmp.ne.s32.totalorder %s93, %s94
    %p103 = scmp.eq.s32.totalorder %s20, 0
    %p104 = por %p102, %p103
    %p105 = scmp.ne.s32.totalorder %s93, %s94
    %p106 = scmp.eq.s32.totalorder %s21, 1
    %p107 = por %p105, %p106
    %p109 = scmp.ne.s32.totalorder %s94, %s108
    %p110 = scmp.eq.s32.totalorder %s21, 0
    %p111 = por %p109, %p110
    %s113 = sadd.s32 %s112, 1
    %p116 = scmp.eq.s32.totalorder %s15, 1
    %p117 = scmp.ne.s32.totalorder %s112, %s114
    %p118 = scmp.eq.s32.totalorder %s15, 0
    %p119 = por %p117, %p118
    %p120 = scmp.ne.s32.totalorder %s112, %s114
    %p121 = scmp.eq.s32.totalorder %s20, 1
    %p122 = por %p120, %p121
    %p123 = scmp.ne.s32.totalorder %s114, %s115
    %p124 = scmp.eq.s32.totalorder %s20, 0
    %p125 = por %p123, %p124
    %p126 = scmp.ne.s32.totalorder %s114, %s115
    %p127 = scmp.eq.s32.totalorder %s21, 1
    %p128 = por %p126, %p127
    %p130 = scmp.ne.s32.totalorder %s115, %s129
    %p131 = scmp.eq.s32.totalorder %s21, 0
    %p132 = por %p130, %p131
    %s134 = sadd.s32 %s133, 1
    %p137 = scmp.eq.s32.totalorder %s15, 1
    %p138 = scmp.ne.s32.totalorder %s133, %s135
    %p139 = scmp.eq.s32.totalorder %s15, 0
    %p140 = por %p138, %p139
    %p141 = scmp.ne.s32.totalorder %s133, %s135
    %p142 = scmp.eq.s32.totalorder %s20, 1
    %p143 = por %p141, %p142
    %p144 = scmp.ne.s32.totalorder %s135, %s136
    %p145 = scmp.eq.s32.totalorder %s20, 0
    %p146 = por %p144, %p145
    %p147 = scmp.ne.s32.totalorder %s135, %s136
    %p148 = scmp.eq.s32.totalorder %s21, 1
    %p149 = por %p147, %p148
    %p151 = scmp.ne.s32.totalorder %s136, %s150
    %p152 = scmp.eq.s32.totalorder %s21, 0
    %p153 = por %p151, %p152
    %s155 = sadd.s32 %s154, 1
    %p158 = scmp.eq.s32.totalorder %s15, 1
    %p159 = scmp.ne.s32.totalorder %s154, %s156
    %p160 = scmp.eq.s32.totalorder %s15, 0
    %p161 = por %p159, %p160
    %p162 = scmp.ne.s32.totalorder %s154, %s156
    %p163 = scmp.eq.s32.totalorder %s20, 1
    %p164 = por %p162, %p163
    %p165 = scmp.ne.s32.totalorder %s156, %s157
    %p166 = scmp.eq.s32.totalorder %s20, 0
    %p167 = por %p165, %p166
    %p168 = scmp.ne.s32.totalorder %s156, %s157
    %p169 = scmp.eq.s32.totalorder %s21, 1
    %p170 = por %p168, %p169
    %p172 = scmp.ne.s32.totalorder %s157, %s171
    %p173 = scmp.eq.s32.totalorder %s21, 0
    %p174 = por %p172, %p173
    %s176 = sadd.s32 %s175, 1
    %p179 = scmp.eq.s32.totalorder %s15, 1
    %p180 = scmp.ne.s32.totalorder %s175, %s177
    %p181 = scmp.eq.s32.totalorder %s15, 0
    %p182 = por %p180, %p181
    %p183 = scmp.ne.s32.totalorder %s175, %s177
    %p184 = scmp.eq.s32.totalorder %s20, 1
    %p185 = por %p183, %p184
    %p186 = scmp.ne.s32.totalorder %s177, %s178
    %p187 = scmp.eq.s32.totalorder %s20, 0
    %p188 = por %p186, %p187
    %p189 = scmp.ne.s32.totalorder %s177, %s178
    %p190 = scmp.eq.s32.totalorder %s21, 1
    %p191 = por %p189, %p190
    %p193 = scmp.ne.s32.totalorder %s178, %s192
    %p194 = scmp.eq.s32.totalorder %s21, 0
    %p195 = por %p193, %p194
    %s197 = sadd.s32 %s196, 1
    %p200 = scmp.eq.s32.totalorder %s15, 1
    %p201 = scmp.ne.s32.totalorder %s196, %s198
    %p202 = scmp.eq.s32.totalorder %s15, 0
    %p203 = por %p201, %p202
    %p204 = scmp.ne.s32.totalorder %s196, %s198
    %p205 = scmp.eq.s32.totalorder %s20, 1
    %p206 = por %p204, %p205
    %p207 = scmp.ne.s32.totalorder %s198, %s199
    %p208 = scmp.eq.s32.totalorder %s20, 0
    %p209 = por %p207, %p208
    %p210 = scmp.ne.s32.totalorder %s198, %s199
    %p211 = scmp.eq.s32.totalorder %s21, 1
    %p212 = por %p210, %p211
    %p214 = scmp.ne.s32.totalorder %s199, %s213
    %p215 = scmp.eq.s32.totalorder %s21, 0
    %p216 = por %p214, %p215
    %s217 = ssub.s32 %s15, %s22
    %p218 = scmp.eq.s32.totalorder %s217, 0
    %s220 = sadd.s32 %s219, 1
    %s221 = scalar_select %p218, %s219, %s220
    %p224 = pneg %p218
    %p225 = scmp.eq.s32.totalorder %s15, 1
    %p226 = por %p224, %p225
    %p227 = scmp.ne.s32.totalorder %s219, %s222
    %p228 = scmp.eq.s32.totalorder %s15, 0
    %p229 = por %p227, %p228
    %p230 = scmp.ne.s32.totalorder %s219, %s222
    %p231 = scmp.eq.s32.totalorder %s20, 1
    %p232 = por %p230, %p231
    %p233 = scmp.ne.s32.totalorder %s222, %s223
    %p234 = scmp.eq.s32.totalorder %s20, 0
    %p235 = por %p233, %p234
    %p236 = scmp.ne.s32.totalorder %s222, %s223
    %p237 = scmp.eq.s32.totalorder %s21, 1
    %p238 = por %p236, %p237
    %p240 = scmp.ne.s32.totalorder %s223, %s239
    %p241 = scmp.eq.s32.totalorder %s21, 0
    %p242 = por %p240, %p241
    %p243 = scmp.le.s32.totalorder 1, %s15
    %p244 = scmp.lt.s32.totalorder %s15, 3
    %p245 = pnand %p243, %p244
    %p246 = pneg %p245
    // Predicated region
    $region9: #{encoder4_forward.7} parent=5 // pred_check
      _
    $region10: #{encoder4_forward.7} parent=5 // pred_check_branch
      %248 = sbr.rel (%p245) target = $region12
    $region11: #{encoder4_forward.7} parent=5 // pred_region
      %s249 = ssub.s32 %s15, 1
      // Predicated region
      $region13: #{encoder4_forward.7} parent=11 // pred_check
        %p250 = pneg %p36
      $region14: #{encoder4_forward.7} parent=11 // pred_check_branch
        %252 = sbr.rel (%p250) target = $region16
      $region15: #{encoder4_forward.7} parent=11 // pred_region
        _
      $region16: #{encoder4_forward.7} parent=11 // pred_fallthru
        _
      // Predicated region
      $region17: #{encoder4_forward.7} parent=11 // pred_check
        %p253 = pneg %p83
      $region18: #{encoder4_forward.7} parent=11 // pred_check_branch
        %255 = sbr.rel (%p253) target = $region20
      $region19: #{encoder4_forward.7} parent=11 // pred_region
        _
      $region20: #{encoder4_forward.7} parent=11 // pred_fallthru
        _
      // Predicated region
      $region21: #{encoder4_forward.7} parent=11 // pred_check
        %p256 = pneg %p104
      $region22: #{encoder4_forward.7} parent=11 // pred_check_branch
        %258 = sbr.rel (%p256) target = $region24
      $region23: #{encoder4_forward.7} parent=11 // pred_region
        _
      $region24: #{encoder4_forward.7} parent=11 // pred_fallthru
        _
      // Predicated region
      $region25: #{encoder4_forward.7} parent=11 // pred_check
        %p259 = pneg %p125
      $region26: #{encoder4_forward.7} parent=11 // pred_check_branch
        %261 = sbr.rel (%p259) target = $region28
      $region27: #{encoder4_forward.7} parent=11 // pred_region
        _
      $region28: #{encoder4_forward.7} parent=11 // pred_fallthru
        _
      // Predicated region
      $region29: #{encoder4_forward.7} parent=11 // pred_check
        %p262 = pneg %p146
      $region30: #{encoder4_forward.7} parent=11 // pred_check_branch
        %264 = sbr.rel (%p262) target = $region32
      $region31: #{encoder4_forward.7} parent=11 // pred_region
        _
      $region32: #{encoder4_forward.7} parent=11 // pred_fallthru
        _
      // Predicated region
      $region33: #{encoder4_forward.7} parent=11 // pred_check
        %p265 = pneg %p167
      $region34: #{encoder4_forward.7} parent=11 // pred_check_branch
        %267 = sbr.rel (%p265) target = $region36
      $region35: #{encoder4_forward.7} parent=11 // pred_region
        _
      $region36: #{encoder4_forward.7} parent=11 // pred_fallthru
        _
      // Predicated region
      $region37: #{encoder4_forward.7} parent=11 // pred_check
        %p268 = pneg %p188
      $region38: #{encoder4_forward.7} parent=11 // pred_check_branch
        %270 = sbr.rel (%p268) target = $region40
      $region39: #{encoder4_forward.7} parent=11 // pred_region
        _
      $region40: #{encoder4_forward.7} parent=11 // pred_fallthru
        _
      // Predicated region
      $region41: #{encoder4_forward.7} parent=11 // pred_check
        %p271 = pneg %p209
      $region42: #{encoder4_forward.7} parent=11 // pred_check_branch
        %273 = sbr.rel (%p271) target = $region44
      $region43: #{encoder4_forward.7} parent=11 // pred_region
        _
      $region44: #{encoder4_forward.7} parent=11 // pred_fallthru
        _
    $region12: #{encoder4_forward.7} parent=5 // pred_fallthru
      _
    %p274 = scmp.lt.s32.totalorder %s15, 2
    // Predicated region
    $region45: #{encoder4_forward.7} parent=5 // pred_check
      %p275 = pneg %p274
    $region46: #{encoder4_forward.7} parent=5 // pred_check_branch
      %277 = sbr.rel (%p275) target = $region48
    $region47: #{encoder4_forward.7} parent=5 // pred_region
      // Predicated region
      $region49: #{encoder4_forward.7} parent=47 // pred_check
        %p278 = pneg %p56
      $region50: #{encoder4_forward.7} parent=47 // pred_check_branch
        %280 = sbr.rel (%p278) target = $region52
      $region51: #{encoder4_forward.7} parent=47 // pred_region
        %p281 = scmp.lt.s32.totalorder %s15, 1
        %s282 = scalar_select %p281, %s15, 1
        %s283 = smul.addr %s282, 144
        %s284 = smul.addr %s283, 4
        %s285 = scalar_lea.vmem %s1, %s284
      $region52: #{encoder4_forward.7} parent=47 // pred_fallthru
        _
    $region48: #{encoder4_forward.7} parent=5 // pred_fallthru
      _
    %p286 = scmp.le.s32.totalorder 1, %s15
    %p287 = scmp.lt.s32.totalorder %s15, 3
    %p288 = pnand %p286, %p287
    %p289 = pneg %p288
    // Predicated region
    $region53: #{encoder4_forward.7} parent=5 // pred_check
      _
    $region54: #{encoder4_forward.7} parent=5 // pred_check_branch
      %291 = sbr.rel (%p288) target = $region56
    $region55: #{encoder4_forward.7} parent=5 // pred_region
      %s292 = ssub.s32 %s15, 1
      %p293 = pneg %p36
      %p294 = pneg %p33
      %p295 = scmp.lt.s32.totalorder %s20, 1
      %s296 = scalar_select %p295, %s20, 1
      %s297 = smul.addr %s296, 144
      %s298 = smul.addr %s297, 4
      %s299 = scalar_lea.vmem %s1, %s298
      %p300 = pneg %p62
      %p301 = pneg %p59
      %p302 = pneg %p83
      %p303 = pneg %p80
      %p304 = pneg %p104
      %p305 = pneg %p101
      %p306 = pneg %p125
      %p307 = pneg %p122
      %p308 = pneg %p146
      %p309 = pneg %p143
      %p310 = pneg %p167
      %p311 = pneg %p164
      %p312 = pneg %p188
      %p313 = pneg %p185
      %p314 = pneg %p209
      %p315 = pneg %p206
      %p316 = pneg %p235
      %p317 = pneg %p232
      %p318 = scmp.lt.s32.totalorder %s20, 1
      %s319 = scalar_select %p318, %s20, 1
      %s320 = smul.addr %s319, 16
      %s321 = smul.addr %s320, 8
      %s322 = scalar_lea.vmem %s9, %s321
      %p323 = scmp.lt.s32.totalorder %s20, 1
      %s324 = scalar_select %p323, %s20, 1
      %s325 = smul.addr %s324, 144
      %s326 = smul.addr %s325, 4
      %s327 = scalar_lea.vmem %s1, %s326
      %p328 = scmp.lt.s32.totalorder %s20, 1
      %s329 = scalar_select %p328, %s20, 1
      %s330 = smul.addr %s329, 16
      %s331 = smul.addr %s330, 8
      %s332 = scalar_lea.vmem %s9, %s331
      %v334 = vld [vmem:[%s0] sm:$0xff]
      %v335 = vld [vmem:[%s0 + $0x8] sm:$0xf]
      %v336 = vld [vmem:[%s0 + $0xc] sm:$0xff]
      %v337 = vld [vmem:[%s0 + $0x14] sm:$0xf]
      %v338 = vld [vmem:[%s0 + $0x18] sm:$0xff]
      %v339 = vld [vmem:[%s0 + $0x20] sm:$0xf]
      %v340 = vld [vmem:[%s0 + $0x24] sm:$0xff]
      %v341 = vld [vmem:[%s0 + $0x2c] sm:$0xf]
      %v342 = vld [vmem:[%s0 + $0x30] sm:$0xff]
      %v343 = vld [vmem:[%s0 + $0x38] sm:$0xf]
      %v344 = vld [vmem:[%s0 + $0x3c] sm:$0xff]
      %v345 = vld [vmem:[%s0 + $0x44] sm:$0xf]
      %v346 = vld [vmem:[%s0 + $0x48] sm:$0xff]
      %v347 = vld [vmem:[%s0 + $0x50] sm:$0xf]
      %v348 = vld [vmem:[%s0 + $0x54] sm:$0xff]
      %v349 = vld [vmem:[%s0 + $0x5c] sm:$0xf]
      %v350 = vld [vmem:[%s0 + $0x60] sm:$0xff]
      %v351 = vld [vmem:[%s0 + $0x68] sm:$0xf]
      %v352 = vld [vmem:[%s0 + $0x6c] sm:$0xff]
      %v353 = vld [vmem:[%s0 + $0x74] sm:$0xf]
      %v354 = vld [vmem:[%s0 + $0x78] sm:$0xff]
      %v355 = vld [vmem:[%s0 + $0x80] sm:$0xf]
      %v356 = vld [vmem:[%s0 + $0x84] sm:$0xff]
      %v357 = vld [vmem:[%s0 + $0x8c] sm:$0xf]
      %v358 = vld [vmem:[%s327] sm:$0xff]
      %v359 = vld [vmem:[%s327 + $0x8] sm:$0xff]
      %v360 = vld [vmem:[%s327 + $0x10] sm:$0xff]
      %v361 = vld [vmem:[%s327 + $0x18] sm:$0xff]
      %v362 = vld [vmem:[%s327 + $0x20] sm:$0xff]
      %v363 = vld [vmem:[%s327 + $0x28] sm:$0xff]
      %v364 = vld [vmem:[%s327 + $0x30] sm:$0xff]
      %v365 = vld [vmem:[%s327 + $0x38] sm:$0xff]
      %v366 = vld [vmem:[%s327 + $0x40] sm:$0xff]
      %v367 = vld [vmem:[%s327 + $0x48] sm:$0xff]
      %v368 = vld [vmem:[%s327 + $0x50] sm:$0xff]
      %v369 = vld [vmem:[%s327 + $0x58] sm:$0xff]
      %v370 = vld [vmem:[%s327 + $0x60] sm:$0xff]
      %v371 = vld [vmem:[%s327 + $0x68] sm:$0xff]
      %v372 = vld [vmem:[%s327 + $0x70] sm:$0xff]
      %v373 = vld [vmem:[%s327 + $0x78] sm:$0xff]
      %v374 = vld [vmem:[%s327 + $0x80] sm:$0xff]
      %v375 = vld [vmem:[%s327 + $0x88] sm:$0xff]
      %v376 = vld [vmem:[%s327 + $0x90] sm:$0xff]
      %v377 = vld [vmem:[%s327 + $0x98] sm:$0xff]
      %v378 = vld [vmem:[%s327 + $0xa0] sm:$0xff]
      %v379 = vld [vmem:[%s327 + $0xa8] sm:$0xff]
      %v380 = vld [vmem:[%s327 + $0xb0] sm:$0xff]
      %v381 = vld [vmem:[%s327 + $0xb8] sm:$0xff]
      %v382 = vld [vmem:[%s327 + $0xc0] sm:$0xff]
      %v383 = vld [vmem:[%s327 + $0xc8] sm:$0xff]
      %v384 = vld [vmem:[%s327 + $0xd0] sm:$0xff]
      %v385 = vld [vmem:[%s327 + $0xd8] sm:$0xff]
      %v386 = vld [vmem:[%s327 + $0xe0] sm:$0xff]
      %v387 = vld [vmem:[%s327 + $0xe8] sm:$0xff]
      %v388 = vld [vmem:[%s327 + $0xf0] sm:$0xff]
      %v389 = vld [vmem:[%s327 + $0xf8] sm:$0xff]
      %v390 = vld [vmem:[%s327 + $0x100] sm:$0xff]
      %v391 = vld [vmem:[%s327 + $0x108] sm:$0xff]
      %v392 = vld [vmem:[%s327 + $0x110] sm:$0xff]
      %v393 = vld [vmem:[%s327 + $0x118] sm:$0xff]
      %v394 = vld [vmem:[%s327 + $0x120] sm:$0xff]
      %v395 = vld [vmem:[%s327 + $0x128] sm:$0xff]
      %v396 = vld [vmem:[%s327 + $0x130] sm:$0xff]
      %v397 = vld [vmem:[%s327 + $0x138] sm:$0xff]
      %v398 = vld [vmem:[%s327 + $0x140] sm:$0xff]
      %v399 = vld [vmem:[%s327 + $0x148] sm:$0xff]
      %v400 = vld [vmem:[%s327 + $0x150] sm:$0xff]
      %v401 = vld [vmem:[%s327 + $0x158] sm:$0xff]
      %v402 = vld [vmem:[%s327 + $0x160] sm:$0xff]
      %v403 = vld [vmem:[%s327 + $0x168] sm:$0xff]
      %v404 = vld [vmem:[%s327 + $0x170] sm:$0xff]
      %v405 = vld [vmem:[%s327 + $0x178] sm:$0xff]
      %v406 = vld [vmem:[%s327 + $0x180] sm:$0xff]
      %v407 = vld [vmem:[%s327 + $0x188] sm:$0xff]
      %v408 = vld [vmem:[%s327 + $0x190] sm:$0xff]
      %v409 = vld [vmem:[%s327 + $0x198] sm:$0xff]
      %v410 = vld [vmem:[%s327 + $0x1a0] sm:$0xff]
      %v411 = vld [vmem:[%s327 + $0x1a8] sm:$0xff]
      %v412 = vld [vmem:[%s327 + $0x1b0] sm:$0xff]
      %v413 = vld [vmem:[%s327 + $0x1b8] sm:$0xff]
      %v414 = vld [vmem:[%s327 + $0x1c0] sm:$0xff]
      %v415 = vld [vmem:[%s327 + $0x1c8] sm:$0xff]
      %v416 = vld [vmem:[%s327 + $0x1d0] sm:$0xff]
      %v417 = vld [vmem:[%s327 + $0x1d8] sm:$0xff]
      %v418 = vld [vmem:[%s327 + $0x1e0] sm:$0xff]
      %v419 = vld [vmem:[%s327 + $0x1e8] sm:$0xff]
      %v420 = vld [vmem:[%s327 + $0x1f0] sm:$0xff]
      %v421 = vld [vmem:[%s327 + $0x1f8] sm:$0xff]
      %v422 = vld [vmem:[%s327 + $0x200] sm:$0xff]
      %v423 = vld [vmem:[%s327 + $0x208] sm:$0xff]
      %v424 = vld [vmem:[%s327 + $0x210] sm:$0xff]
      %v425 = vld [vmem:[%s327 + $0x218] sm:$0xff]
      %v426 = vld [vmem:[%s327 + $0x220] sm:$0xff]
      %v427 = vld [vmem:[%s327 + $0x228] sm:$0xff]
      %v428 = vld [vmem:[%s327 + $0x230] sm:$0xff]
      %v429 = vld [vmem:[%s327 + $0x238] sm:$0xff]
      %v454 = vunpack.c.l.b16 %v334
      %v455 = vunpack.c.h.b16 %v334
      %v456 = vunpack.c.l.b16 %v335
      %v457 = vunpack.c.l.b16 %v336
      %v458 = vunpack.c.h.b16 %v336
      %v459 = vunpack.c.l.b16 %v337
      %v460 = vunpack.c.l.b16 %v338
      %v461 = vunpack.c.h.b16 %v338
      %v462 = vunpack.c.l.b16 %v339
      %v463 = vunpack.c.l.b16 %v340
      %v464 = vunpack.c.h.b16 %v340
      %v465 = vunpack.c.l.b16 %v341
      %v466 = vunpack.c.l.b16 %v342
      %v467 = vunpack.c.h.b16 %v342
      %v468 = vunpack.c.l.b16 %v343
      %v469 = vunpack.c.l.b16 %v344
      %v470 = vunpack.c.h.b16 %v344
      %v471 = vunpack.c.l.b16 %v345
      %v472 = vunpack.c.l.b16 %v346
      %v473 = vunpack.c.h.b16 %v346
      %v474 = vunpack.c.l.b16 %v347
      %v475 = vunpack.c.l.b16 %v348
      %v476 = vunpack.c.h.b16 %v348
      %v477 = vunpack.c.l.b16 %v349
      %v478 = vunpack.c.l.b16 %v350
      %v479 = vunpack.c.h.b16 %v350
      %v480 = vunpack.c.l.b16 %v351
      %v481 = vunpack.c.l.b16 %v352
      %v482 = vunpack.c.h.b16 %v352
      %v483 = vunpack.c.l.b16 %v353
      %v484 = vunpack.c.l.b16 %v354
      %v485 = vunpack.c.h.b16 %v354
      %v486 = vunpack.c.l.b16 %v355
      %v487 = vunpack.c.l.b16 %v356
      %v488 = vunpack.c.h.b16 %v356
      %v489 = vunpack.c.l.b16 %v357
      %v490 = vpack.c.b16 %v457, %v454
      %v491 = vpack.c.b16 %v458, %v455
      %v492 = vpack.c.b16 %v459, %v456
      %v493 = vpack.c.b16 %v463, %v460
      %v494 = vpack.c.b16 %v464, %v461
      %v495 = vpack.c.b16 %v465, %v462
      %v496 = vpack.c.b16 %v469, %v466
      %v497 = vpack.c.b16 %v470, %v467
      %v498 = vpack.c.b16 %v471, %v468
      %v499 = vpack.c.b16 %v475, %v472
      %v500 = vpack.c.b16 %v476, %v473
      %v501 = vpack.c.b16 %v477, %v474
      %v502 = vpack.c.b16 %v481, %v478
      %v503 = vpack.c.b16 %v482, %v479
      %v504 = vpack.c.b16 %v483, %v480
      %v505 = vpack.c.b16 %v487, %v484
      %v506 = vpack.c.b16 %v488, %v485
      %v507 = vpack.c.b16 %v489, %v486
      %v592 = vunpack.c.l.b16 %v358
      %v593 = vunpack.c.h.b16 %v358
      %v594 = vunpack.c.l.b16 %v359
      %v595 = vunpack.c.h.b16 %v359
      %v596 = vunpack.c.l.b16 %v360
      %v597 = vunpack.c.h.b16 %v360
      %v598 = vunpack.c.l.b16 %v361
      %v599 = vunpack.c.h.b16 %v361
      %v600 = vunpack.c.l.b16 %v362
      %v601 = vunpack.c.h.b16 %v362
      %v602 = vunpack.c.l.b16 %v363
      %v603 = vunpack.c.h.b16 %v363
      %v604 = vunpack.c.l.b16 %v364
      %v605 = vunpack.c.h.b16 %v364
      %v606 = vunpack.c.l.b16 %v365
      %v607 = vunpack.c.h.b16 %v365
      %v608 = vunpack.c.l.b16 %v366
      %v609 = vunpack.c.h.b16 %v366
      %v610 = vunpack.c.l.b16 %v367
      %v611 = vunpack.c.h.b16 %v367
      %v612 = vunpack.c.l.b16 %v368
      %v613 = vunpack.c.h.b16 %v368
      %v614 = vunpack.c.l.b16 %v369
      %v615 = vunpack.c.h.b16 %v369
      %v616 = vunpack.c.l.b16 %v370
      %v617 = vunpack.c.h.b16 %v370
      %v618 = vunpack.c.l.b16 %v371
      %v619 = vunpack.c.h.b16 %v371
      %v620 = vunpack.c.l.b16 %v372
      %v621 = vunpack.c.h.b16 %v372
      %v622 = vunpack.c.l.b16 %v373
      %v623 = vunpack.c.h.b16 %v373
      %v624 = vunpack.c.l.b16 %v374
      %v625 = vunpack.c.h.b16 %v374
      %v626 = vunpack.c.l.b16 %v375
      %v627 = vunpack.c.h.b16 %v375
      %v628 = vunpack.c.l.b16 %v376
      %v629 = vunpack.c.h.b16 %v376
      %v630 = vunpack.c.l.b16 %v377
      %v631 = vunpack.c.h.b16 %v377
      %v632 = vunpack.c.l.b16 %v378
      %v633 = vunpack.c.h.b16 %v378
      %v634 = vunpack.c.l.b16 %v379
      %v635 = vunpack.c.h.b16 %v379
      %v636 = vunpack.c.l.b16 %v380
      %v637 = vunpack.c.h.b16 %v380
      %v638 = vunpack.c.l.b16 %v381
      %v639 = vunpack.c.h.b16 %v381
      %v640 = vunpack.c.l.b16 %v382
      %v641 = vunpack.c.h.b16 %v382
      %v642 = vunpack.c.l.b16 %v383
      %v643 = vunpack.c.h.b16 %v383
      %v644 = vunpack.c.l.b16 %v384
      %v645 = vunpack.c.h.b16 %v384
      %v646 = vunpack.c.l.b16 %v385
      %v647 = vunpack.c.h.b16 %v385
      %v648 = vunpack.c.l.b16 %v386
      %v649 = vunpack.c.h.b16 %v386
      %v650 = vunpack.c.l.b16 %v387
      %v651 = vunpack.c.h.b16 %v387
      %v652 = vunpack.c.l.b16 %v388
      %v653 = vunpack.c.h.b16 %v388
      %v654 = vunpack.c.l.b16 %v389
      %v655 = vunpack.c.h.b16 %v389
      %v656 = vunpack.c.l.b16 %v390
      %v657 = vunpack.c.h.b16 %v390
      %v658 = vunpack.c.l.b16 %v391
      %v659 = vunpack.c.h.b16 %v391
      %v660 = vunpack.c.l.b16 %v392
      %v661 = vunpack.c.h.b16 %v392
      %v662 = vunpack.c.l.b16 %v393
      %v663 = vunpack.c.h.b16 %v393
      %v664 = vunpack.c.l.b16 %v394
      %v665 = vunpack.c.h.b16 %v394
      %v666 = vunpack.c.l.b16 %v395
      %v667 = vunpack.c.h.b16 %v395
      %v668 = vunpack.c.l.b16 %v396
      %v669 = vunpack.c.h.b16 %v396
      %v670 = vunpack.c.l.b16 %v397
      %v671 = vunpack.c.h.b16 %v397
      %v672 = vunpack.c.l.b16 %v398
      %v673 = vunpack.c.h.b16 %v398
      %v674 = vunpack.c.l.b16 %v399
      %v675 = vunpack.c.h.b16 %v399
      %v676 = vunpack.c.l.b16 %v400
      %v677 = vunpack.c.h.b16 %v400
      %v678 = vunpack.c.l.b16 %v401
      %v679 = vunpack.c.h.b16 %v401
      %v680 = vunpack.c.l.b16 %v402
      %v681 = vunpack.c.h.b16 %v402
      %v682 = vunpack.c.l.b16 %v403
      %v683 = vunpack.c.h.b16 %v403
      %v684 = vunpack.c.l.b16 %v404
      %v685 = vunpack.c.h.b16 %v404
      %v686 = vunpack.c.l.b16 %v405
      %v687 = vunpack.c.h.b16 %v405
      %v688 = vunpack.c.l.b16 %v406
      %v689 = vunpack.c.h.b16 %v406
      %v690 = vunpack.c.l.b16 %v407
      %v691 = vunpack.c.h.b16 %v407
      %v692 = vunpack.c.l.b16 %v408
      %v693 = vunpack.c.h.b16 %v408
      %v694 = vunpack.c.l.b16 %v409
      %v695 = vunpack.c.h.b16 %v409
      %v696 = vunpack.c.l.b16 %v410
      %v697 = vunpack.c.h.b16 %v410
      %v698 = vunpack.c.l.b16 %v411
      %v699 = vunpack.c.h.b16 %v411
      %v700 = vunpack.c.l.b16 %v412
      %v701 = vunpack.c.h.b16 %v412
      %v702 = vunpack.c.l.b16 %v413
      %v703 = vunpack.c.h.b16 %v413
      %v704 = vunpack.c.l.b16 %v414
      %v705 = vunpack.c.h.b16 %v414
      %v706 = vunpack.c.l.b16 %v415
      %v707 = vunpack.c.h.b16 %v415
      %v708 = vunpack.c.l.b16 %v416
      %v709 = vunpack.c.h.b16 %v416
      %v710 = vunpack.c.l.b16 %v417
      %v711 = vunpack.c.h.b16 %v417
      %v712 = vunpack.c.l.b16 %v418
      %v713 = vunpack.c.h.b16 %v418
      %v714 = vunpack.c.l.b16 %v419
      %v715 = vunpack.c.h.b16 %v419
      %v716 = vunpack.c.l.b16 %v420
      %v717 = vunpack.c.h.b16 %v420
      %v718 = vunpack.c.l.b16 %v421
      %v719 = vunpack.c.h.b16 %v421
      %v720 = vunpack.c.l.b16 %v422
      %v721 = vunpack.c.h.b16 %v422
      %v722 = vunpack.c.l.b16 %v423
      %v723 = vunpack.c.h.b16 %v423
      %v724 = vunpack.c.l.b16 %v424
      %v725 = vunpack.c.h.b16 %v424
      %v726 = vunpack.c.l.b16 %v425
      %v727 = vunpack.c.h.b16 %v425
      %v728 = vunpack.c.l.b16 %v426
      %v729 = vunpack.c.h.b16 %v426
      %v730 = vunpack.c.l.b16 %v427
      %v731 = vunpack.c.h.b16 %v427
      %v732 = vunpack.c.l.b16 %v428
      %v733 = vunpack.c.h.b16 %v428
      %v734 = vunpack.c.l.b16 %v429
      %v735 = vunpack.c.h.b16 %v429
      %v736 = vpack.c.b16 %v596, %v592
      %v737 = vpack.c.b16 %v597, %v593
      %v738 = vpack.c.b16 %v598, %v594
      %v739 = vpack.c.b16 %v599, %v595
      %v740 = vpack.c.b16 %v604, %v600
      %v741 = vpack.c.b16 %v605, %v601
      %v742 = vpack.c.b16 %v606, %v602
      %v743 = vpack.c.b16 %v607, %v603
      %v744 = vpack.c.b16 %v612, %v608
      %v745 = vpack.c.b16 %v613, %v609
      %v746 = vpack.c.b16 %v614, %v610
      %v747 = vpack.c.b16 %v615, %v611
      %v748 = vpack.c.b16 %v620, %v616
      %v749 = vpack.c.b16 %v621, %v617
      %v750 = vpack.c.b16 %v622, %v618
      %v751 = vpack.c.b16 %v623, %v619
      %v752 = vpack.c.b16 %v628, %v624
      %v753 = vpack.c.b16 %v629, %v625
      %v754 = vpack.c.b16 %v630, %v626
      %v755 = vpack.c.b16 %v631, %v627
      %v756 = vpack.c.b16 %v636, %v632
      %v757 = vpack.c.b16 %v637, %v633
      %v758 = vpack.c.b16 %v638, %v634
      %v759 = vpack.c.b16 %v639, %v635
      %v760 = vpack.c.b16 %v644, %v640
      %v761 = vpack.c.b16 %v645, %v641
      %v762 = vpack.c.b16 %v646, %v642
      %v763 = vpack.c.b16 %v647, %v643
      %v764 = vpack.c.b16 %v652, %v648
      %v765 = vpack.c.b16 %v653, %v649
      %v766 = vpack.c.b16 %v654, %v650
      %v767 = vpack.c.b16 %v655, %v651
      %v768 = vpack.c.b16 %v660, %v656
      %v769 = vpack.c.b16 %v661, %v657
      %v770 = vpack.c.b16 %v662, %v658
      %v771 = vpack.c.b16 %v663, %v659
      %v772 = vpack.c.b16 %v668, %v664
      %v773 = vpack.c.b16 %v669, %v665
      %v774 = vpack.c.b16 %v670, %v666
      %v775 = vpack.c.b16 %v671, %v667
      %v776 = vpack.c.b16 %v676, %v672
      %v777 = vpack.c.b16 %v677, %v673
      %v778 = vpack.c.b16 %v678, %v674
      %v779 = vpack.c.b16 %v679, %v675
      %v780 = vpack.c.b16 %v684, %v680
      %v781 = vpack.c.b16 %v685, %v681
      %v782 = vpack.c.b16 %v686, %v682
      %v783 = vpack.c.b16 %v687, %v683
      %v784 = vpack.c.b16 %v692, %v688
      %v785 = vpack.c.b16 %v693, %v689
      %v786 = vpack.c.b16 %v694, %v690
      %v787 = vpack.c.b16 %v695, %v691
      %v788 = vpack.c.b16 %v700, %v696
      %v789 = vpack.c.b16 %v701, %v697
      %v790 = vpack.c.b16 %v702, %v698
      %v791 = vpack.c.b16 %v703, %v699
      %v792 = vpack.c.b16 %v708, %v704
      %v793 = vpack.c.b16 %v709, %v705
      %v794 = vpack.c.b16 %v710, %v706
      %v795 = vpack.c.b16 %v711, %v707
      %v796 = vpack.c.b16 %v716, %v712
      %v797 = vpack.c.b16 %v717, %v713
      %v798 = vpack.c.b16 %v718, %v714
      %v799 = vpack.c.b16 %v719, %v715
      %v800 = vpack.c.b16 %v724, %v720
      %v801 = vpack.c.b16 %v725, %v721
      %v802 = vpack.c.b16 %v726, %v722
      %v803 = vpack.c.b16 %v727, %v723
      %v804 = vpack.c.b16 %v732, %v728
      %v805 = vpack.c.b16 %v733, %v729
      %v806 = vpack.c.b16 %v734, %v730
      %v807 = vpack.c.b16 %v735, %v731
      %vm880 = vcmask 261120
      %v882 = vsel %vm880, %v492, 0
      %v885 = vsel %vm880, %v495, 0
      %v888 = vsel %vm880, %v498, 0
      %v891 = vsel %vm880, %v501, 0
      %v894 = vsel %vm880, %v504, 0
      %v897 = vsel %vm880, %v507, 0
      %899 = vmatprep.subr.bf16.mxu0 %v737
      %900 = vmatpush1.bf16.msra.mxu0 %v736
      %901 = vmatprep.subr.bf16.mxu0 %v741
      %902 = vmatpush1.bf16.msra.mxu0 %v740
      %903 = vmatprep.subr.bf16.mxu0 %v745
      %904 = vmatpush1.bf16.msra.mxu0 %v744
      %905 = vmatprep.subr.bf16.mxu0 %v749
      %906 = vmatpush1.bf16.msra.mxu0 %v748
      %907 = vmatprep.subr.bf16.mxu0 %v753
      %908 = vmatpush1.bf16.msra.mxu0 %v752
      %909 = vmatprep.subr.bf16.mxu0 %v757
      %910 = vmatpush1.bf16.msra.mxu0 %v756
      %911 = vmatprep.subr.bf16.mxu0 %v761
      %912 = vmatpush1.bf16.msra.mxu0 %v760
      %913 = vmatprep.subr.bf16.mxu0 %v765
      %914 = vmatpush1.bf16.msra.mxu0 %v764
      %915 = vmatprep.subr.bf16.mxu0 %v769
      %916 = vmatpush1.bf16.msra.mxu0 %v768
      %917 = vmatprep.subr.bf16.mxu0 %v773
      %918 = vmatpush1.bf16.msra.mxu0 %v772
      %919 = vmatprep.subr.bf16.mxu0 %v777
      %920 = vmatpush1.bf16.msra.mxu0 %v776
      %921 = vmatprep.subr.bf16.mxu0 %v781
      %922 = vmatpush1.bf16.msra.mxu0 %v780
      %923 = vmatprep.subr.bf16.mxu0 %v785
      %924 = vmatpush1.bf16.msra.mxu0 %v784
      %925 = vmatprep.subr.bf16.mxu0 %v789
      %926 = vmatpush1.bf16.msra.mxu0 %v788
      %927 = vmatprep.subr.bf16.mxu0 %v793
      %928 = vmatpush1.bf16.msra.mxu0 %v792
      %929 = vmatprep.subr.bf16.mxu0 %v797
      %930 = vmatpush1.bf16.msra.mxu0 %v796
      %931 = vmatprep.mubr.bf16.mxu0 %v491
      %932 = vmatmul.mubr.bf16.gmra.mrb[0].mxu0 %v490
      %v933 = vpop.f32.mrb[0].mxu0
      %v934 = vadd.f32 0.0, %v933
      %v935 = vpop.f32.mrb[0].mxu0
      %v936 = vadd.f32 0.0, %v935
      %v937 = vpop.f32.mrb[0].mxu0
      %v938 = vadd.f32 0.0, %v937
      %v939 = vpop.f32.mrb[0].mxu0
      %v940 = vadd.f32 0.0, %v939
      %941 = vmatprep.mubr.bf16.mxu0 %v494
      %942 = vmatmul.mubr.bf16.gmra.mrb[0].mxu0 %v493
      %v943 = vpop.f32.mrb[0].mxu0
      %v944 = vadd.f32 0.0, %v943
      %v945 = vpop.f32.mrb[0].mxu0
      %v946 = vadd.f32 0.0, %v945
      %v947 = vpop.f32.mrb[0].mxu0
      %v948 = vadd.f32 0.0, %v947
      %v949 = vpop.f32.mrb[0].mxu0
      %v950 = vadd.f32 0.0, %v949
      %951 = vmatprep.mubr.bf16.mxu0 %v497
      %952 = vmatmul.mubr.bf16.gmra.mrb[0].mxu0 %v496
      %v953 = vpop.f32.mrb[0].mxu0
      %v954 = vadd.f32 0.0, %v953
      %v955 = vpop.f32.mrb[0].mxu0
      %v956 = vadd.f32 0.0, %v955
      %v957 = vpop.f32.mrb[0].mxu0
      %v958 = vadd.f32 0.0, %v957
      %v959 = vpop.f32.mrb[0].mxu0
      %v960 = vadd.f32 0.0, %v959
      %961 = vmatprep.mubr.bf16.mxu0 %v500
      %962 = vmatmul.mubr.bf16.gmra.mrb[0].mxu0 %v499
      %v963 = vpop.f32.mrb[0].mxu0
      %v964 = vadd.f32 0.0, %v963
      %v965 = vpop.f32.mrb[0].mxu0
      %v966 = vadd.f32 0.0, %v965
      %v967 = vpop.f32.mrb[0].mxu0
      %v968 = vadd.f32 0.0, %v967
      %v969 = vpop.f32.mrb[0].mxu0
      %v970 = vadd.f32 0.0, %v969
      %971 = vmatprep.mubr.bf16.mxu0 %v503
      %972 = vmatmul.mubr.bf16.gmra.mrb[0].mxu0 %v502
      %v973 = vpop.f32.mrb[0].mxu0
      %v974 = vadd.f32 0.0, %v973
      %v975 = vpop.f32.mrb[0].mxu0
      %v976 = vadd.f32 0.0, %v975
      %v977 = vpop.f32.mrb[0].mxu0
      %v978 = vadd.f32 0.0, %v977
      %v979 = vpop.f32.mrb[0].mxu0
      %v980 = vadd.f32 0.0, %v979
      %981 = vmatprep.mubr.bf16.mxu0 %v506
      %982 = vmatmul.mubr.bf16.gmra.mrb[0].mxu0 %v505
      %v983 = vpop.f32.mrb[0].mxu0
      %v984 = vadd.f32 0.0, %v983
      %v985 = vpop.f32.mrb[0].mxu0
      %v986 = vadd.f32 0.0, %v985
      %v987 = vpop.f32.mrb[0].mxu0
      %v988 = vadd.f32 0.0, %v987
      %v989 = vpop.f32.mrb[0].mxu0
      %v990 = vadd.f32 0.0, %v989
      %991 = vdwg.mxu0
      %992 = vmatprep.subr.bf16.mxu0 %v801
      %993 = vmatpush1.bf16.msra.mxu0 %v800
      %994 = vmatprep.subr.bf16.mxu0 %v805
      %995 = vmatpush1.bf16.msra.mxu0 %v804
      %996 = vmatprep.subr.bf16.mxu0 0
      %997 = vmatpush1.bf16.msra.mxu0 0
      %998 = vmatprep.subr.bf16.mxu0 0
      %999 = vmatpush1.bf16.msra.mxu0 0
      %1000 = vmatprep.subr.bf16.mxu0 0
      %1001 = vmatpush1.bf16.msra.mxu0 0
      %1002 = vmatprep.subr.bf16.mxu0 0
      %1003 = vmatpush1.bf16.msra.mxu0 0
      %1004 = vmatprep.subr.bf16.mxu0 0
      %1005 = vmatpush1.bf16.msra.mxu0 0
      %1006 = vmatprep.subr.bf16.mxu0 0
      %1007 = vmatpush1.bf16.msra.mxu0 0
      %1008 = vmatprep.subr.bf16.mxu0 0
      %1009 = vmatpush1.bf16.msra.mxu0 0
      %1010 = vmatprep.subr.bf16.mxu0 0
      %1011 = vmatpush1.bf16.msra.mxu0 0
      %1012 = vmatprep.subr.bf16.mxu0 0
      %1013 = vmatpush1.bf16.msra.mxu0 0
      %1014 = vmatprep.subr.bf16.mxu0 0
      %1015 = vmatpush1.bf16.msra.mxu0 0
      %1016 = vmatprep.subr.bf16.mxu0 0
      %1017 = vmatpush1.bf16.msra.mxu0 0
      %1018 = vmatprep.subr.bf16.mxu0 0
      %1019 = vmatpush1.bf16.msra.mxu0 0
      %1020 = vmatprep.subr.bf16.mxu0 0
      %1021 = vmatpush1.bf16.msra.mxu0 0
      %1022 = vmatprep.subr.bf16.mxu0 0
      %1023 = vmatpush1.bf16.msra.mxu0 0
      %1024 = vmatprep.mubr.bf16.mxu0 0
      %1025 = vmatmul.mubr.bf16.gmra.mrb[0].mxu0 %v882
      %v1026 = vpop.f32.mrb[0].mxu0
      %v1027 = vadd.f32 %v934, %v1026
      %v1028 = vpop.f32.mrb[0].mxu0
      %v1029 = vadd.f32 %v936, %v1028
      %v1030 = vpop.f32.mrb[0].mxu0
      %v1031 = vadd.f32 %v938, %v1030
      %v1032 = vpop.f32.mrb[0].mxu0
      %v1033 = vadd.f32 %v940, %v1032
      %1034 = vmatprep.mubr.bf16.mxu0 0
      %1035 = vmatmul.mubr.bf16.gmra.mrb[0].mxu0 %v885
      %v1036 = vpop.f32.mrb[0].mxu0
      %v1037 = vadd.f32 %v944, %v1036
      %v1038 = vpop.f32.mrb[0].mxu0
      %v1039 = vadd.f32 %v946, %v1038
      %v1040 = vpop.f32.mrb[0].mxu0
      %v1041 = vadd.f32 %v948, %v1040
      %v1042 = vpop.f32.mrb[0].mxu0
      %v1043 = vadd.f32 %v950, %v1042
      %1044 = vmatprep.mubr.bf16.mxu0 0
      %1045 = vmatmul.mubr.bf16.gmra.mrb[0].mxu0 %v888
      %v1046 = vpop.f32.mrb[0].mxu0
      %v1047 = vadd.f32 %v954, %v1046
      %v1048 = vpop.f32.mrb[0].mxu0
      %v1049 = vadd.f32 %v956, %v1048
      %v1050 = vpop.f32.mrb[0].mxu0
      %v1051 = vadd.f32 %v958, %v1050
      %v1052 = vpop.f32.mrb[0].mxu0
      %v1053 = vadd.f32 %v960, %v1052
      %1054 = vmatprep.mubr.bf16.mxu0 0
      %1055 = vmatmul.mubr.bf16.gmra.mrb[0].mxu0 %v891
      %v1056 = vpop.f32.mrb[0].mxu0
      %v1057 = vadd.f32 %v964, %v1056
      %v1058 = vpop.f32.mrb[0].mxu0
      %v1059 = vadd.f32 %v966, %v1058
      %v1060 = vpop.f32.mrb[0].mxu0
      %v1061 = vadd.f32 %v968, %v1060
      %v1062 = vpop.f32.mrb[0].mxu0
      %v1063 = vadd.f32 %v970, %v1062
      %1064 = vmatprep.mubr.bf16.mxu0 0
      %1065 = vmatmul.mubr.bf16.gmra.mrb[0].mxu0 %v894
      %v1066 = vpop.f32.mrb[0].mxu0
      %v1067 = vadd.f32 %v974, %v1066
      %v1068 = vpop.f32.mrb[0].mxu0
      %v1069 = vadd.f32 %v976, %v1068
      %v1070 = vpop.f32.mrb[0].mxu0
      %v1071 = vadd.f32 %v978, %v1070
      %v1072 = vpop.f32.mrb[0].mxu0
      %v1073 = vadd.f32 %v980, %v1072
      %1074 = vmatprep.mubr.bf16.mxu0 0
      %1075 = vmatmul.mubr.bf16.gmra.mrb[0].mxu0 %v897
      %v1076 = vpop.f32.mrb[0].mxu0
      %v1077 = vadd.f32 %v984, %v1076
      %v1078 = vpop.f32.mrb[0].mxu0
      %v1079 = vadd.f32 %v986, %v1078
      %v1080 = vpop.f32.mrb[0].mxu0
      %v1081 = vadd.f32 %v988, %v1080
      %v1082 = vpop.f32.mrb[0].mxu0
      %v1083 = vadd.f32 %v990, %v1082
      %1084 = vdwg.mxu0
      %1085 = vmatprep.subr.bf16.mxu0 %v739
      %1086 = vmatpush1.bf16.msra.mxu0 %v738
      %1087 = vmatprep.subr.bf16.mxu0 %v743
      %1088 = vmatpush1.bf16.msra.mxu0 %v742
      %1089 = vmatprep.subr.bf16.mxu0 %v747
      %1090 = vmatpush1.bf16.msra.mxu0 %v746
      %1091 = vmatprep.subr.bf16.mxu0 %v751
      %1092 = vmatpush1.bf16.msra.mxu0 %v750
      %1093 = vmatprep.subr.bf16.mxu0 %v755
      %1094 = vmatpush1.bf16.msra.mxu0 %v754
      %1095 = vmatprep.subr.bf16.mxu0 %v759
      %1096 = vmatpush1.bf16.msra.mxu0 %v758
      %1097 = vmatprep.subr.bf16.mxu0 %v763
      %1098 = vmatpush1.bf16.msra.mxu0 %v762
      %1099 = vmatprep.subr.bf16.mxu0 %v767
      %1100 = vmatpush1.bf16.msra.mxu0 %v766
      %1101 = vmatprep.subr.bf16.mxu0 %v771
      %1102 = vmatpush1.bf16.msra.mxu0 %v770
      %1103 = vmatprep.subr.bf16.mxu0 %v775
      %1104 = vmatpush1.bf16.msra.mxu0 %v774
      %1105 = vmatprep.subr.bf16.mxu0 %v779
      %1106 = vmatpush1.bf16.msra.mxu0 %v778
      %1107 = vmatprep.subr.bf16.mxu0 %v783
      %1108 = vmatpush1.bf16.msra.mxu0 %v782
      %1109 = vmatprep.subr.bf16.mxu0 %v787
      %1110 = vmatpush1.bf16.msra.mxu0 %v786
      %1111 = vmatprep.subr.bf16.mxu0 %v791
      %1112 = vmatpush1.bf16.msra.mxu0 %v790
      %1113 = vmatprep.subr.bf16.mxu0 %v795
      %1114 = vmatpush1.bf16.msra.mxu0 %v794
      %1115 = vmatprep.subr.bf16.mxu0 %v799
      %1116 = vmatpush1.bf16.msra.mxu0 %v798
      %1117 = vmatprep.mubr.bf16.mxu0 %v491
      %1118 = vmatmul.mubr.bf16.gmra.mrb[0].mxu0 %v490
      %v1119 = vpop.f32.mrb[0].mxu0
      %v1120 = vadd.f32 0.0, %v1119
      %v1121 = vpop.f32.mrb[0].mxu0
      %v1122 = vadd.f32 0.0, %v1121
      %v1123 = vpop.f32.mrb[0].mxu0
      %v1124 = vadd.f32 0.0, %v1123
      %v1125 = vpop.f32.mrb[0].mxu0
      %v1126 = vadd.f32 0.0, %v1125
      %1127 = vmatprep.mubr.bf16.mxu0 %v494
      %1128 = vmatmul.mubr.bf16.gmra.mrb[0].mxu0 %v493
      %v1129 = vpop.f32.mrb[0].mxu0
      %v1130 = vadd.f32 0.0, %v1129
      %v1131 = vpop.f32.mrb[0].mxu0
      %v1132 = vadd.f32 0.0, %v1131
      %v1133 = vpop.f32.mrb[0].mxu0
      %v1134 = vadd.f32 0.0, %v1133
      %v1135 = vpop.f32.mrb[0].mxu0
      %v1136 = vadd.f32 0.0, %v1135
      %1137 = vmatprep.mubr.bf16.mxu0 %v497
      %1138 = vmatmul.mubr.bf16.gmra.mrb[0].mxu0 %v496
      %v1139 = vpop.f32.mrb[0].mxu0
      %v1140 = vadd.f32 0.0, %v1139
      %v1141 = vpop.f32.mrb[0].mxu0
      %v1142 = vadd.f32 0.0, %v1141
      %v1143 = vpop.f32.mrb[0].mxu0
      %v1144 = vadd.f32 0.0, %v1143
      %v1145 = vpop.f32.mrb[0].mxu0
      %v1146 = vadd.f32 0.0, %v1145
      %1147 = vmatprep.mubr.bf16.mxu0 %v500
      %1148 = vmatmul.mubr.bf16.gmra.mrb[0].mxu0 %v499
      %v1149 = vpop.f32.mrb[0].mxu0
      %v1150 = vadd.f32 0.0, %v1149
      %v1151 = vpop.f32.mrb[0].mxu0
      %v1152 = vadd.f32 0.0, %v1151
      %v1153 = vpop.f32.mrb[0].mxu0
      %v1154 = vadd.f32 0.0, %v1153
      %v1155 = vpop.f32.mrb[0].mxu0
      %v1156 = vadd.f32 0.0, %v1155
      %1157 = vmatprep.mubr.bf16.mxu0 %v503
      %1158 = vmatmul.mubr.bf16.gmra.mrb[0].mxu0 %v502
      %v1159 = vpop.f32.mrb[0].mxu0
      %v1160 = vadd.f32 0.0, %v1159
      %v1161 = vpop.f32.mrb[0].mxu0
      %v1162 = vadd.f32 0.0, %v1161
      %v1163 = vpop.f32.mrb[0].mxu0
      %v1164 = vadd.f32 0.0, %v1163
      %v1165 = vpop.f32.mrb[0].mxu0
      %v1166 = vadd.f32 0.0, %v1165
      %1167 = vmatprep.mubr.bf16.mxu0 %v506
      %1168 = vmatmul.mubr.bf16.gmra.mrb[0].mxu0 %v505
      %v1169 = vpop.f32.mrb[0].mxu0
      %v1170 = vadd.f32 0.0, %v1169
      %v1171 = vpop.f32.mrb[0].mxu0
      %v1172 = vadd.f32 0.0, %v1171
      %v1173 = vpop.f32.mrb[0].mxu0
      %v1174 = vadd.f32 0.0, %v1173
      %v1175 = vpop.f32.mrb[0].mxu0
      %v1176 = vadd.f32 0.0, %v1175
      %1177 = vdwg.mxu0
      %1178 = vmatprep.subr.bf16.mxu0 %v803
      %1179 = vmatpush1.bf16.msra.mxu0 %v802
      %1180 = vmatprep.subr.bf16.mxu0 %v807
      %1181 = vmatpush1.bf16.msra.mxu0 %v806
      %1182 = vmatprep.subr.bf16.mxu0 0
      %1183 = vmatpush1.bf16.msra.mxu0 0
      %1184 = vmatprep.subr.bf16.mxu0 0
      %1185 = vmatpush1.bf16.msra.mxu0 0
      %1186 = vmatprep.subr.bf16.mxu0 0
      %1187 = vmatpush1.bf16.msra.mxu0 0
      %1188 = vmatprep.subr.bf16.mxu0 0
      %1189 = vmatpush1.bf16.msra.mxu0 0
      %1190 = vmatprep.subr.bf16.mxu0 0
      %1191 = vmatpush1.bf16.msra.mxu0 0
      %1192 = vmatprep.subr.bf16.mxu0 0
      %1193 = vmatpush1.bf16.msra.mxu0 0
      %1194 = vmatprep.subr.bf16.mxu0 0
      %1195 = vmatpush1.bf16.msra.mxu0 0
      %1196 = vmatprep.subr.bf16.mxu0 0
      %1197 = vmatpush1.bf16.msra.mxu0 0
      %1198 = vmatprep.subr.bf16.mxu0 0
      %1199 = vmatpush1.bf16.msra.mxu0 0
      %1200 = vmatprep.subr.bf16.mxu0 0
      %1201 = vmatpush1.bf16.msra.mxu0 0
      %1202 = vmatprep.subr.bf16.mxu0 0
      %1203 = vmatpush1.bf16.msra.mxu0 0
      %1204 = vmatprep.subr.bf16.mxu0 0
      %1205 = vmatpush1.bf16.msra.mxu0 0
      %1206 = vmatprep.subr.bf16.mxu0 0
      %1207 = vmatpush1.bf16.msra.mxu0 0
      %1208 = vmatprep.subr.bf16.mxu0 0
      %1209 = vmatpush1.bf16.msra.mxu0 0
      %1210 = vmatprep.mubr.bf16.mxu0 0
      %1211 = vmatmul.mubr.bf16.gmra.mrb[0].mxu0 %v882
      %v1212 = vpop.f32.mrb[0].mxu0
      %v1213 = vadd.f32 %v1120, %v1212
      %v1214 = vpop.f32.mrb[0].mxu0
      %v1215 = vadd.f32 %v1122, %v1214
      %v1216 = vpop.f32.mrb[0].mxu0
      %v1217 = vadd.f32 %v1124, %v1216
      %v1218 = vpop.f32.mrb[0].mxu0
      %v1219 = vadd.f32 %v1126, %v1218
      %1220 = vmatprep.mubr.bf16.mxu0 0
      %1221 = vmatmul.mubr.bf16.gmra.mrb[0].mxu0 %v885
      %v1222 = vpop.f32.mrb[0].mxu0
      %v1223 = vadd.f32 %v1130, %v1222
      %v1224 = vpop.f32.mrb[0].mxu0
      %v1225 = vadd.f32 %v1132, %v1224
      %v1226 = vpop.f32.mrb[0].mxu0
      %v1227 = vadd.f32 %v1134, %v1226
      %v1228 = vpop.f32.mrb[0].mxu0
      %v1229 = vadd.f32 %v1136, %v1228
      %1230 = vmatprep.mubr.bf16.mxu0 0
      %1231 = vmatmul.mubr.bf16.gmra.mrb[0].mxu0 %v888
      %v1232 = vpop.f32.mrb[0].mxu0
      %v1233 = vadd.f32 %v1140, %v1232
      %v1234 = vpop.f32.mrb[0].mxu0
      %v1235 = vadd.f32 %v1142, %v1234
      %v1236 = vpop.f32.mrb[0].mxu0
      %v1237 = vadd.f32 %v1144, %v1236
      %v1238 = vpop.f32.mrb[0].mxu0
      %v1239 = vadd.f32 %v1146, %v1238
      %1240 = vmatprep.mubr.bf16.mxu0 0
      %1241 = vmatmul.mubr.bf16.gmra.mrb[0].mxu0 %v891
      %v1242 = vpop.f32.mrb[0].mxu0
      %v1243 = vadd.f32 %v1150, %v1242
      %v1244 = vpop.f32.mrb[0].mxu0
      %v1245 = vadd.f32 %v1152, %v1244
      %v1246 = vpop.f32.mrb[0].mxu0
      %v1247 = vadd.f32 %v1154, %v1246
      %v1248 = vpop.f32.mrb[0].mxu0
      %v1249 = vadd.f32 %v1156, %v1248
      %1250 = vmatprep.mubr.bf16.mxu0 0
      %1251 = vmatmul.mubr.bf16.gmra.mrb[0].mxu0 %v894
      %v1252 = vpop.f32.mrb[0].mxu0
      %v1253 = vadd.f32 %v1160, %v1252
      %v1254 = vpop.f32.mrb[0].mxu0
      %v1255 = vadd.f32 %v1162, %v1254
      %v1256 = vpop.f32.mrb[0].mxu0
      %v1257 = vadd.f32 %v1164, %v1256
      %v1258 = vpop.f32.mrb[0].mxu0
      %v1259 = vadd.f32 %v1166, %v1258
      %1260 = vmatprep.mubr.bf16.mxu0 0
      %1261 = vmatmul.mubr.bf16.gmra.mrb[0].mxu0 %v897
      %v1262 = vpop.f32.mrb[0].mxu0
      %v1263 = vadd.f32 %v1170, %v1262
      %v1264 = vpop.f32.mrb[0].mxu0
      %v1265 = vadd.f32 %v1172, %v1264
      %v1266 = vpop.f32.mrb[0].mxu0
      %v1267 = vadd.f32 %v1174, %v1266
      %v1268 = vpop.f32.mrb[0].mxu0
      %v1269 = vadd.f32 %v1176, %v1268
      %1270 = vdwg.mxu0
      %1287 = vrot.lane.b32.xlu0 %v1027, 64
      %v1288 = vpop.permute.xlu0 %1287
      %1289 = vrot.lane.b32.xlu0 %v1029, 64
      %v1290 = vpop.permute.xlu0 %1289
      %1291 = vrot.lane.b32.xlu0 %v1213, 64
      %v1292 = vpop.permute.xlu0 %1291
      %1293 = vrot.lane.b32.xlu0 %v1215, 64
      %v1294 = vpop.permute.xlu0 %1293
      %1295 = vrot.lane.b32.xlu0 %v1031, 64
      %v1296 = vpop.permute.xlu0 %1295
      %1297 = vrot.lane.b32.xlu0 %v1033, 64
      %v1298 = vpop.permute.xlu0 %1297
      %1299 = vrot.lane.b32.xlu0 %v1217, 64
      %v1300 = vpop.permute.xlu0 %1299
      %1301 = vrot.lane.b32.xlu0 %v1219, 64
      %v1302 = vpop.permute.xlu0 %1301
      %1303 = vrot.lane.b32.xlu0 %v1037, 64
      %v1304 = vpop.permute.xlu0 %1303
      %1305 = vrot.lane.b32.xlu0 %v1039, 64
      %v1306 = vpop.permute.xlu0 %1305
      %1307 = vrot.lane.b32.xlu0 %v1223, 64
      %v1308 = vpop.permute.xlu0 %1307
      %1309 = vrot.lane.b32.xlu0 %v1225, 64
      %v1310 = vpop.permute.xlu0 %1309
      %1311 = vrot.lane.b32.xlu0 %v1041, 64
      %v1312 = vpop.permute.xlu0 %1311
      %1313 = vrot.lane.b32.xlu0 %v1043, 64
      %v1314 = vpop.permute.xlu0 %1313
      %1315 = vrot.lane.b32.xlu0 %v1227, 64
      %v1316 = vpop.permute.xlu0 %1315
      %1317 = vrot.lane.b32.xlu0 %v1229, 64
      %v1318 = vpop.permute.xlu0 %1317
      %vm1319 = vcmask 523264
      %v1320 = vsel %vm1319, %v1288, %v1290
      %v1321 = vsel %vm1319, %v1290, %v1292
      %v1322 = vsel %vm1319, %v1292, %v1294
      %v1323 = vsel %vm1319, %v1296, %v1298
      %v1324 = vsel %vm1319, %v1298, %v1300
      %v1325 = vsel %vm1319, %v1300, %v1302
      %v1326 = vsel %vm1319, %v1304, %v1306
      %v1327 = vsel %vm1319, %v1306, %v1308
      %v1328 = vsel %vm1319, %v1308, %v1310
      %v1329 = vsel %vm1319, %v1312, %v1314
      %v1330 = vsel %vm1319, %v1314, %v1316
      %v1331 = vsel %vm1319, %v1316, %v1318
      %v1348 = vsel %vm1319, 0.0, %v1288
      %v1349 = vsel %vm1319, 0.0, %v1296
      %v1350 = vsel %vm1319, 0.0, %v1304
      %v1351 = vsel %vm1319, 0.0, %v1312
      %v1352 = vadd.f32 %v1348, 0.0
      %v1353 = vadd.f32 %v1320, 0.0
      %v1354 = vadd.f32 %v1321, 0.0
      %v1355 = vadd.f32 %v1322, 0.0
      %v1356 = vadd.f32 %v1349, 0.0
      %v1357 = vadd.f32 %v1323, 0.0
      %v1358 = vadd.f32 %v1324, 0.0
      %v1359 = vadd.f32 %v1325, 0.0
      %v1360 = vadd.f32 %v1350, 0.0
      %v1361 = vadd.f32 %v1326, 0.0
      %v1362 = vadd.f32 %v1327, 0.0
      %v1363 = vadd.f32 %v1328, 0.0
      %v1364 = vadd.f32 %v1351, 0.0
      %v1365 = vadd.f32 %v1329, 0.0
      %v1366 = vadd.f32 %v1330, 0.0
      %v1367 = vadd.f32 %v1331, 0.0
      %v1368 = vadd.f32 %v1352, %v1047
      %v1369 = vadd.f32 %v1353, %v1049
      %v1370 = vadd.f32 %v1354, %v1233
      %v1371 = vadd.f32 %v1355, %v1235
      %v1372 = vadd.f32 %v1356, %v1051
      %v1373 = vadd.f32 %v1357, %v1053
      %v1374 = vadd.f32 %v1358, %v1237
      %v1375 = vadd.f32 %v1359, %v1239
      %v1376 = vadd.f32 %v1360, %v1057
      %v1377 = vadd.f32 %v1361, %v1059
      %v1378 = vadd.f32 %v1362, %v1243
      %v1379 = vadd.f32 %v1363, %v1245
      %v1380 = vadd.f32 %v1364, %v1061
      %v1381 = vadd.f32 %v1365, %v1063
      %v1382 = vadd.f32 %v1366, %v1247
      %v1383 = vadd.f32 %v1367, %v1249
      %1400 = vrot.lane.b32.xlu0 %v1067, 64
      %v1401 = vpop.permute.xlu0 %1400
      %1402 = vrot.lane.b32.xlu0 %v1069, 64
      %v1403 = vpop.permute.xlu0 %1402
      %1404 = vrot.lane.b32.xlu0 %v1253, 64
      %v1405 = vpop.permute.xlu0 %1404
      %1406 = vrot.lane.b32.xlu0 %v1255, 64
      %v1407 = vpop.permute.xlu0 %1406
      %1408 = vrot.lane.b32.xlu0 %v1071, 64
      %v1409 = vpop.permute.xlu0 %1408
      %1410 = vrot.lane.b32.xlu0 %v1073, 64
      %v1411 = vpop.permute.xlu0 %1410
      %1412 = vrot.lane.b32.xlu0 %v1257, 64
      %v1413 = vpop.permute.xlu0 %1412
      %1414 = vrot.lane.b32.xlu0 %v1259, 64
      %v1415 = vpop.permute.xlu0 %1414
      %1416 = vrot.lane.b32.xlu0 %v1077, 64
      %v1417 = vpop.permute.xlu0 %1416
      %1418 = vrot.lane.b32.xlu0 %v1079, 64
      %v1419 = vpop.permute.xlu0 %1418
      %1420 = vrot.lane.b32.xlu0 %v1263, 64
      %v1421 = vpop.permute.xlu0 %1420
      %1422 = vrot.lane.b32.xlu0 %v1265, 64
      %v1423 = vpop.permute.xlu0 %1422
      %1424 = vrot.lane.b32.xlu0 %v1081, 64
      %v1425 = vpop.permute.xlu0 %1424
      %1426 = vrot.lane.b32.xlu0 %v1083, 64
      %v1427 = vpop.permute.xlu0 %1426
      %1428 = vrot.lane.b32.xlu0 %v1267, 64
      %v1429 = vpop.permute.xlu0 %1428
      %1430 = vrot.lane.b32.xlu0 %v1269, 64
      %v1431 = vpop.permute.xlu0 %1430
      %v1432 = vsel %vm1319, %v1401, %v1403
      %v1433 = vsel %vm1319, %v1403, %v1405
      %v1434 = vsel %vm1319, %v1405, %v1407
      %v1435 = vsel %vm1319, %v1409, %v1411
      %v1436 = vsel %vm1319, %v1411, %v1413
      %v1437 = vsel %vm1319, %v1413, %v1415
      %v1438 = vsel %vm1319, %v1417, %v1419
      %v1439 = vsel %vm1319, %v1419, %v1421
      %v1440 = vsel %vm1319, %v1421, %v1423
      %v1441 = vsel %vm1319, %v1425, %v1427
      %v1442 = vsel %vm1319, %v1427, %v1429
      %v1443 = vsel %vm1319, %v1429, %v1431
      %v1460 = vsel %vm1319, %v1407, 0.0
      %v1461 = vsel %vm1319, %v1415, 0.0
      %v1462 = vsel %vm1319, %v1423, 0.0
      %v1463 = vsel %vm1319, %v1431, 0.0
      %v1464 = vadd.f32 %v1368, %v1432
      %v1465 = vadd.f32 %v1369, %v1433
      %v1466 = vadd.f32 %v1370, %v1434
      %v1467 = vadd.f32 %v1371, %v1460
      %v1468 = vadd.f32 %v1372, %v1435
      %v1469 = vadd.f32 %v1373, %v1436
      %v1470 = vadd.f32 %v1374, %v1437
      %v1471 = vadd.f32 %v1375, %v1461
      %v1472 = vadd.f32 %v1376, %v1438
      %v1473 = vadd.f32 %v1377, %v1439
      %v1474 = vadd.f32 %v1378, %v1440
      %v1475 = vadd.f32 %v1379, %v1462
      %v1476 = vadd.f32 %v1380, %v1441
      %v1477 = vadd.f32 %v1381, %v1442
      %v1478 = vadd.f32 %v1382, %v1443
      %v1479 = vadd.f32 %v1383, %v1463
      %v1480 = vld [vmem:[%s2] sm:$0xff]
      %v1481 = vld [vmem:[%s2 + $0x8] sm:$0xff]
      %v1482 = vld [vmem:[%s2 + $0x10] sm:$0xff]
      %v1483 = vld [vmem:[%s2 + $0x18] sm:$0xff]
      %1485 = vset.pattern.permute.xlu0 0
      %1486 = vperm.xlu0 %1485, %v1480
      %v1487 = vpop.permute.xlu0 %1486
      %1490 = vset.pattern.permute.xlu0 0
      %1491 = vperm.xlu0 %1490, %v1481
      %v1492 = vpop.permute.xlu0 %1491
      %1495 = vset.pattern.permute.xlu0 0
      %1496 = vperm.xlu0 %1495, %v1482
      %v1497 = vpop.permute.xlu0 %1496
      %1500 = vset.pattern.permute.xlu0 0
      %1501 = vperm.xlu0 %1500, %v1483
      %v1502 = vpop.permute.xlu0 %1501
      %v1504 = vadd.f32 %v1464, %v1487
      %v1505 = vadd.f32 %v1465, %v1487
      %v1506 = vadd.f32 %v1466, %v1487
      %v1507 = vadd.f32 %v1467, %v1487
      %v1508 = vadd.f32 %v1468, %v1492
      %v1509 = vadd.f32 %v1469, %v1492
      %v1510 = vadd.f32 %v1470, %v1492
      %v1511 = vadd.f32 %v1471, %v1492
      %v1512 = vadd.f32 %v1472, %v1497
      %v1513 = vadd.f32 %v1473, %v1497
      %v1514 = vadd.f32 %v1474, %v1497
      %v1515 = vadd.f32 %v1475, %v1497
      %v1516 = vadd.f32 %v1476, %v1502
      %v1517 = vadd.f32 %v1477, %v1502
      %v1518 = vadd.f32 %v1478, %v1502
      %v1519 = vadd.f32 %v1479, %v1502
      %v1520 = vld [vmem:[%s3] sm:$0xf]
      %v1521 = vld [vmem:[%s4] sm:$0xf]
      %v1522 = vadd.f32 %v1504, %v1505
      %v1523 = vadd.f32 %v1522, %v1506
      %v1524 = vadd.f32 %v1523, %v1507
      %1525 = vadd.xlane.f32.xlu0 %v1524
      %v1526 = vpop.xlane.xlu0 %1525
      %v1527 = vadd.f32 %v1508, %v1509
      %v1528 = vadd.f32 %v1527, %v1510
      %v1529 = vadd.f32 %v1528, %v1511
      %1530 = vadd.xlane.f32.xlu0 %v1529
      %v1531 = vpop.xlane.xlu0 %1530
      %v1532 = vadd.f32 %v1512, %v1513
      %v1533 = vadd.f32 %v1532, %v1514
      %v1534 = vadd.f32 %v1533, %v1515
      %1535 = vadd.xlane.f32.xlu0 %v1534
      %v1536 = vpop.xlane.xlu0 %1535
      %v1537 = vadd.f32 %v1516, %v1517
      %v1538 = vadd.f32 %v1537, %v1518
      %v1539 = vadd.f32 %v1538, %v1519
      %1540 = vadd.xlane.f32.xlu0 %v1539
      %v1541 = vpop.xlane.xlu0 %1540
      %v1542 = vrcp.pop 512.0
      %v1543 = vmul.f32 %v1526, %v1542
      %v1544 = vmul.f32 %v1531, %v1542
      %v1545 = vmul.f32 %v1536, %v1542
      %v1546 = vmul.f32 %v1541, %v1542
      %v1547 = vsub.f32 %v1504, %v1543
      %v1548 = vsub.f32 %v1505, %v1543
      %v1549 = vsub.f32 %v1506, %v1543
      %v1550 = vsub.f32 %v1507, %v1543
      %v1551 = vsub.f32 %v1508, %v1544
      %v1552 = vsub.f32 %v1509, %v1544
      %v1553 = vsub.f32 %v1510, %v1544
      %v1554 = vsub.f32 %v1511, %v1544
      %v1555 = vsub.f32 %v1512, %v1545
      %v1556 = vsub.f32 %v1513, %v1545
      %v1557 = vsub.f32 %v1514, %v1545
      %v1558 = vsub.f32 %v1515, %v1545
      %v1559 = vsub.f32 %v1516, %v1546
      %v1560 = vsub.f32 %v1517, %v1546
      %v1561 = vsub.f32 %v1518, %v1546
      %v1562 = vsub.f32 %v1519, %v1546
      %v1563 = vmul.f32 %v1547, %v1547
      %v1564 = vmul.f32 %v1548, %v1548
      %v1565 = vmul.f32 %v1549, %v1549
      %v1566 = vmul.f32 %v1550, %v1550
      %v1567 = vmul.f32 %v1551, %v1551
      %v1568 = vmul.f32 %v1552, %v1552
      %v1569 = vmul.f32 %v1553, %v1553
      %v1570 = vmul.f32 %v1554, %v1554
      %v1571 = vmul.f32 %v1555, %v1555
      %v1572 = vmul.f32 %v1556, %v1556
      %v1573 = vmul.f32 %v1557, %v1557
      %v1574 = vmul.f32 %v1558, %v1558
      %v1575 = vmul.f32 %v1559, %v1559
      %v1576 = vmul.f32 %v1560, %v1560
      %v1577 = vmul.f32 %v1561, %v1561
      %v1578 = vmul.f32 %v1562, %v1562
      %v1579 = vadd.f32 %v1563, %v1564
      %v1580 = vadd.f32 %v1579, %v1565
      %v1581 = vadd.f32 %v1580, %v1566
      %1582 = vadd.xlane.f32.xlu0 %v1581
      %v1583 = vpop.xlane.xlu0 %1582
      %v1584 = vadd.f32 %v1567, %v1568
      %v1585 = vadd.f32 %v1584, %v1569
      %v1586 = vadd.f32 %v1585, %v1570
      %1587 = vadd.xlane.f32.xlu0 %v1586
      %v1588 = vpop.xlane.xlu0 %1587
      %v1589 = vadd.f32 %v1571, %v1572
      %v1590 = vadd.f32 %v1589, %v1573
      %v1591 = vadd.f32 %v1590, %v1574
      %1592 = vadd.xlane.f32.xlu0 %v1591
      %v1593 = vpop.xlane.xlu0 %1592
      %v1594 = vadd.f32 %v1575, %v1576
      %v1595 = vadd.f32 %v1594, %v1577
      %v1596 = vadd.f32 %v1595, %v1578
      %1597 = vadd.xlane.f32.xlu0 %v1596
      %v1598 = vpop.xlane.xlu0 %1597
      %v1599 = vmul.f32 %v1583, %v1542
      %v1600 = vmul.f32 %v1588, %v1542
      %v1601 = vmul.f32 %v1593, %v1542
      %v1602 = vmul.f32 %v1598, %v1542
      %v1603 = vadd.f32 %v1599, 1e-05
      %v1604 = vadd.f32 %v1600, 1e-05
      %v1605 = vadd.f32 %v1601, 1e-05
      %v1606 = vadd.f32 %v1602, 1e-05
      %v1607 = vrsqrt.pop %v1603
      %v1608 = vrsqrt.pop %v1604
      %v1609 = vrsqrt.pop %v1605
      %v1610 = vrsqrt.pop %v1606
      %v1611 = vmul.f32 %v1547, %v1607
      %v1612 = vmul.f32 %v1548, %v1607
      %v1613 = vmul.f32 %v1549, %v1607
      %v1614 = vmul.f32 %v1550, %v1607
      %v1615 = vmul.f32 %v1551, %v1608
      %v1616 = vmul.f32 %v1552, %v1608
      %v1617 = vmul.f32 %v1553, %v1608
      %v1618 = vmul.f32 %v1554, %v1608
      %v1619 = vmul.f32 %v1555, %v1609
      %v1620 = vmul.f32 %v1556, %v1609
      %v1621 = vmul.f32 %v1557, %v1609
      %v1622 = vmul.f32 %v1558, %v1609
      %v1623 = vmul.f32 %v1559, %v1610
      %v1624 = vmul.f32 %v1560, %v1610
      %v1625 = vmul.f32 %v1561, %v1610
      %v1626 = vmul.f32 %v1562, %v1610
      %v1628 = vlaneseq
      %v1629 = vshrl.u32 %v1628, 7
      %v1630 = vsub.s32 0, %v1629
      %v1631 = vrot.slane %v1520, %v1630
      %v1632 = vlaneseq
      %v1633 = vshrl.u32 %v1632, 7
      %v1634 = vsub.s32 1, %v1633
      %v1635 = vrot.slane %v1520, %v1634
      %v1636 = vlaneseq
      %v1637 = vshrl.u32 %v1636, 7
      %v1638 = vsub.s32 2, %v1637
      %v1639 = vrot.slane %v1520, %v1638
      %v1640 = vlaneseq
      %v1641 = vshrl.u32 %v1640, 7
      %v1642 = vsub.s32 3, %v1641
      %v1643 = vrot.slane %v1520, %v1642
      %v1648 = vmul.f32 %v1611, %v1631
      %v1649 = vmul.f32 %v1612, %v1635
      %v1650 = vmul.f32 %v1613, %v1639
      %v1651 = vmul.f32 %v1614, %v1643
      %v1652 = vmul.f32 %v1615, %v1631
      %v1653 = vmul.f32 %v1616, %v1635
      %v1654 = vmul.f32 %v1617, %v1639
      %v1655 = vmul.f32 %v1618, %v1643
      %v1656 = vmul.f32 %v1619, %v1631
      %v1657 = vmul.f32 %v1620, %v1635
      %v1658 = vmul.f32 %v1621, %v1639
      %v1659 = vmul.f32 %v1622, %v1643
      %v1660 = vmul.f32 %v1623, %v1631
      %v1661 = vmul.f32 %v1624, %v1635
      %v1662 = vmul.f32 %v1625, %v1639
      %v1663 = vmul.f32 %v1626, %v1643
      %v1665 = vlaneseq
      %v1666 = vshrl.u32 %v1665, 7
      %v1667 = vsub.s32 0, %v1666
      %v1668 = vrot.slane %v1521, %v1667
      %v1669 = vlaneseq
      %v1670 = vshrl.u32 %v1669, 7
      %v1671 = vsub.s32 1, %v1670
      %v1672 = vrot.slane %v1521, %v1671
      %v1673 = vlaneseq
      %v1674 = vshrl.u32 %v1673, 7
      %v1675 = vsub.s32 2, %v1674
      %v1676 = vrot.slane %v1521, %v1675
      %v1677 = vlaneseq
      %v1678 = vshrl.u32 %v1677, 7
      %v1679 = vsub.s32 3, %v1678
      %v1680 = vrot.slane %v1521, %v1679
      %v1685 = vadd.f32 %v1648, %v1668
      %v1686 = vadd.f32 %v1649, %v1672
      %v1687 = vadd.f32 %v1650, %v1676
      %v1688 = vadd.f32 %v1651, %v1680
      %v1689 = vadd.f32 %v1652, %v1668
      %v1690 = vadd.f32 %v1653, %v1672
      %v1691 = vadd.f32 %v1654, %v1676
      %v1692 = vadd.f32 %v1655, %v1680
      %v1693 = vadd.f32 %v1656, %v1668
      %v1694 = vadd.f32 %v1657, %v1672
      %v1695 = vadd.f32 %v1658, %v1676
      %v1696 = vadd.f32 %v1659, %v1680
      %v1697 = vadd.f32 %v1660, %v1668
      %v1698 = vadd.f32 %v1661, %v1672
      %v1699 = vadd.f32 %v1662, %v1676
      %v1700 = vadd.f32 %v1663, %v1680
      %v1701 = vmax.f32 %v1685, 0.0
      %v1702 = vmax.f32 %v1686, 0.0
      %v1703 = vmax.f32 %v1687, 0.0
      %v1704 = vmax.f32 %v1688, 0.0
      %v1705 = vmax.f32 %v1689, 0.0
      %v1706 = vmax.f32 %v1690, 0.0
      %v1707 = vmax.f32 %v1691, 0.0
      %v1708 = vmax.f32 %v1692, 0.0
      %v1709 = vmax.f32 %v1693, 0.0
      %v1710 = vmax.f32 %v1694, 0.0
      %v1711 = vmax.f32 %v1695, 0.0
      %v1712 = vmax.f32 %v1696, 0.0
      %v1713 = vmax.f32 %v1697, 0.0
      %v1714 = vmax.f32 %v1698, 0.0
      %v1715 = vmax.f32 %v1699, 0.0
      %v1716 = vmax.f32 %v1700, 0.0
      %v1717 = vld [vmem:[%s5] sm:$0xf]
      %v1718 = vld [vmem:[%s5 + $0x4] sm:$0xf]
      %v1719 = vld [vmem:[%s5 + $0x8] sm:$0xf]
      %v1720 = vld [vmem:[%s5 + $0xc] sm:$0xf]
      %v1721 = vpack.c.bf16 %v1705, %v1701
      %v1722 = vpack.c.bf16 %v1706, %v1702
      %v1723 = vpack.c.bf16 %v1707, %v1703
      %v1724 = vpack.c.bf16 %v1708, %v1704
      %v1725 = vpack.c.bf16 %v1713, %v1709
      %v1726 = vpack.c.bf16 %v1714, %v1710
      %v1727 = vpack.c.bf16 %v1715, %v1711
      %v1728 = vpack.c.bf16 %v1716, %v1712
      %v1729 = vld [vmem:[%s6] sm:$0xff]
      %v1730 = vld [vmem:[%s6 + $0x8] sm:$0xff]
      %v1731 = vld [vmem:[%s6 + $0x10] sm:$0xff]
      %v1732 = vld [vmem:[%s6 + $0x18] sm:$0xff]
      %1734 = vset.pattern.permute.xlu0 0
      %1735 = vperm.xlu0 %1734, %v1729
      %v1736 = vpop.permute.xlu0 %1735
      %1739 = vset.pattern.permute.xlu0 0
      %1740 = vperm.xlu0 %1739, %v1730
      %v1741 = vpop.permute.xlu0 %1740
      %1744 = vset.pattern.permute.xlu0 0
      %1745 = vperm.xlu0 %1744, %v1731
      %v1746 = vpop.permute.xlu0 %1745
      %1749 = vset.pattern.permute.xlu0 0
      %1750 = vperm.xlu0 %1749, %v1732
      %v1751 = vpop.permute.xlu0 %1750
      %v1757 = vunpack.c.l.b16 %v1717
      %v1758 = vunpack.c.l.b16 %v1718
      %v1759 = vunpack.c.l.b16 %v1719
      %v1760 = vunpack.c.l.b16 %v1720
      %v1761 = vpack.c.b16 %v1758, %v1757
      %v1762 = vpack.c.b16 %v1760, %v1759
      %v1764 = vsel %vm880, %v1761, 0
      %v1767 = vsel %vm880, %v1762, 0
      %1769 = vmatprep.subr.bf16.mxu0 %v1722
      %1770 = vmatpush1.bf16.msra.mxu0 %v1721
      %1771 = vmatprep.subr.bf16.mxu0 %v1726
      %1772 = vmatpush1.bf16.msra.mxu0 %v1725
      %1773 = vmatprep.subr.bf16.mxu0 0
      %1774 = vmatpush1.bf16.msra.mxu0 0
      %1775 = vmatprep.subr.bf16.mxu0 0
      %1776 = vmatpush1.bf16.msra.mxu0 0
      %1777 = vmatprep.subr.bf16.mxu0 0
      %1778 = vmatpush1.bf16.msra.mxu0 0
      %1779 = vmatprep.subr.bf16.mxu0 0
      %1780 = vmatpush1.bf16.msra.mxu0 0
      %1781 = vmatprep.subr.bf16.mxu0 0
      %1782 = vmatpush1.bf16.msra.mxu0 0
      %1783 = vmatprep.subr.bf16.mxu0 0
      %1784 = vmatpush1.bf16.msra.mxu0 0
      %1785 = vmatprep.subr.bf16.mxu0 0
      %1786 = vmatpush1.bf16.msra.mxu0 0
      %1787 = vmatprep.subr.bf16.mxu0 0
      %1788 = vmatpush1.bf16.msra.mxu0 0
      %1789 = vmatprep.subr.bf16.mxu0 0
      %1790 = vmatpush1.bf16.msra.mxu0 0
      %1791 = vmatprep.subr.bf16.mxu0 0
      %1792 = vmatpush1.bf16.msra.mxu0 0
      %1793 = vmatprep.subr.bf16.mxu0 0
      %1794 = vmatpush1.bf16.msra.mxu0 0
      %1795 = vmatprep.subr.bf16.mxu0 0
      %1796 = vmatpush1.bf16.msra.mxu0 0
      %1797 = vmatprep.subr.bf16.mxu0 0
      %1798 = vmatpush1.bf16.msra.mxu0 0
      %1799 = vmatprep.subr.bf16.mxu0 0
      %1800 = vmatpush1.bf16.msra.mxu0 0
      %1801 = vmatprep.mubr.bf16.mxu0 0
      %1802 = vmatmul.mubr.bf16.gmra.mrb[0].mxu0 %v1764
      %v1803 = vpop.f32.mrb[0].mxu0
      %v1804 = vadd.f32 %v1736, %v1803
      %v1805 = vpop.f32.mrb[0].mxu0
      %v1806 = vadd.f32 %v1736, %v1805
      %v1807 = vpop.f32.mrb[0].mxu0
      %v1808 = vadd.f32 %v1741, %v1807
      %v1809 = vpop.f32.mrb[0].mxu0
      %v1810 = vadd.f32 %v1741, %v1809
      %1811 = vmatprep.mubr.bf16.mxu0 0
      %1812 = vmatmul.mubr.bf16.gmra.mrb[0].mxu0 %v1767
      %v1813 = vpop.f32.mrb[0].mxu0
      %v1814 = vadd.f32 %v1746, %v1813
      %v1815 = vpop.f32.mrb[0].mxu0
      %v1816 = vadd.f32 %v1746, %v1815
      %v1817 = vpop.f32.mrb[0].mxu0
      %v1818 = vadd.f32 %v1751, %v1817
      %v1819 = vpop.f32.mrb[0].mxu0
      %v1820 = vadd.f32 %v1751, %v1819
      %1821 = vdwg.mxu0
      %1822 = vmatprep.subr.bf16.mxu0 %v1724
      %1823 = vmatpush1.bf16.msra.mxu0 %v1723
      %1824 = vmatprep.subr.bf16.mxu0 %v1728
      %1825 = vmatpush1.bf16.msra.mxu0 %v1727
      %1826 = vmatprep.subr.bf16.mxu0 0
      %1827 = vmatpush1.bf16.msra.mxu0 0
      %1828 = vmatprep.subr.bf16.mxu0 0
      %1829 = vmatpush1.bf16.msra.mxu0 0
      %1830 = vmatprep.subr.bf16.mxu0 0
      %1831 = vmatpush1.bf16.msra.mxu0 0
      %1832 = vmatprep.subr.bf16.mxu0 0
      %1833 = vmatpush1.bf16.msra.mxu0 0
      %1834 = vmatprep.subr.bf16.mxu0 0
      %1835 = vmatpush1.bf16.msra.mxu0 0
      %1836 = vmatprep.subr.bf16.mxu0 0
      %1837 = vmatpush1.bf16.msra.mxu0 0
      %1838 = vmatprep.subr.bf16.mxu0 0
      %1839 = vmatpush1.bf16.msra.mxu0 0
      %1840 = vmatprep.subr.bf16.mxu0 0
      %1841 = vmatpush1.bf16.msra.mxu0 0
      %1842 = vmatprep.subr.bf16.mxu0 0
      %1843 = vmatpush1.bf16.msra.mxu0 0
      %1844 = vmatprep.subr.bf16.mxu0 0
      %1845 = vmatpush1.bf16.msra.mxu0 0
      %1846 = vmatprep.subr.bf16.mxu0 0
      %1847 = vmatpush1.bf16.msra.mxu0 0
      %1848 = vmatprep.subr.bf16.mxu0 0
      %1849 = vmatpush1.bf16.msra.mxu0 0
      %1850 = vmatprep.subr.bf16.mxu0 0
      %1851 = vmatpush1.bf16.msra.mxu0 0
      %1852 = vmatprep.subr.bf16.mxu0 0
      %1853 = vmatpush1.bf16.msra.mxu0 0
      %1854 = vmatprep.mubr.bf16.mxu0 0
      %1855 = vmatmul.mubr.bf16.gmra.mrb[0].mxu0 %v1764
      %v1856 = vpop.f32.mrb[0].mxu0
      %v1857 = vadd.f32 %v1736, %v1856
      %v1858 = vpop.f32.mrb[0].mxu0
      %v1859 = vadd.f32 %v1736, %v1858
      %v1860 = vpop.f32.mrb[0].mxu0
      %v1861 = vadd.f32 %v1741, %v1860
      %v1862 = vpop.f32.mrb[0].mxu0
      %v1863 = vadd.f32 %v1741, %v1862
      %1864 = vmatprep.mubr.bf16.mxu0 0
      %1865 = vmatmul.mubr.bf16.gmra.mrb[0].mxu0 %v1767
      %v1866 = vpop.f32.mrb[0].mxu0
      %v1867 = vadd.f32 %v1746, %v1866
      %v1868 = vpop.f32.mrb[0].mxu0
      %v1869 = vadd.f32 %v1746, %v1868
      %v1870 = vpop.f32.mrb[0].mxu0
      %v1871 = vadd.f32 %v1751, %v1870
      %v1872 = vpop.f32.mrb[0].mxu0
      %v1873 = vadd.f32 %v1751, %v1872
      %1874 = vdwg.mxu0
      %v1875 = vld [vmem:[%s7] sm:$0xf]
      %v1876 = vld [vmem:[%s8] sm:$0xf]
      %v1877 = vadd.f32 %v1804, %v1806
      %v1878 = vadd.f32 %v1877, %v1857
      %v1879 = vadd.f32 %v1878, %v1859
      %1880 = vadd.xlane.f32.xlu0 %v1879
      %v1881 = vpop.xlane.xlu0 %1880
      %v1882 = vadd.f32 %v1808, %v1810
      %v1883 = vadd.f32 %v1882, %v1861
      %v1884 = vadd.f32 %v1883, %v1863
      %1885 = vadd.xlane.f32.xlu0 %v1884
      %v1886 = vpop.xlane.xlu0 %1885
      %v1887 = vadd.f32 %v1814, %v1816
      %v1888 = vadd.f32 %v1887, %v1867
      %v1889 = vadd.f32 %v1888, %v1869
      %1890 = vadd.xlane.f32.xlu0 %v1889
      %v1891 = vpop.xlane.xlu0 %1890
      %v1892 = vadd.f32 %v1818, %v1820
      %v1893 = vadd.f32 %v1892, %v1871
      %v1894 = vadd.f32 %v1893, %v1873
      %1895 = vadd.xlane.f32.xlu0 %v1894
      %v1896 = vpop.xlane.xlu0 %1895
      %v1897 = vmul.f32 %v1881, %v1542
      %v1898 = vmul.f32 %v1886, %v1542
      %v1899 = vmul.f32 %v1891, %v1542
      %v1900 = vmul.f32 %v1896, %v1542
      %v1901 = vsub.f32 %v1804, %v1897
      %v1902 = vsub.f32 %v1806, %v1897
      %v1903 = vsub.f32 %v1857, %v1897
      %v1904 = vsub.f32 %v1859, %v1897
      %v1905 = vsub.f32 %v1808, %v1898
      %v1906 = vsub.f32 %v1810, %v1898
      %v1907 = vsub.f32 %v1861, %v1898
      %v1908 = vsub.f32 %v1863, %v1898
      %v1909 = vsub.f32 %v1814, %v1899
      %v1910 = vsub.f32 %v1816, %v1899
      %v1911 = vsub.f32 %v1867, %v1899
      %v1912 = vsub.f32 %v1869, %v1899
      %v1913 = vsub.f32 %v1818, %v1900
      %v1914 = vsub.f32 %v1820, %v1900
      %v1915 = vsub.f32 %v1871, %v1900
      %v1916 = vsub.f32 %v1873, %v1900
      %v1917 = vmul.f32 %v1901, %v1901
      %v1918 = vmul.f32 %v1902, %v1902
      %v1919 = vmul.f32 %v1903, %v1903
      %v1920 = vmul.f32 %v1904, %v1904
      %v1921 = vmul.f32 %v1905, %v1905
      %v1922 = vmul.f32 %v1906, %v1906
      %v1923 = vmul.f32 %v1907, %v1907
      %v1924 = vmul.f32 %v1908, %v1908
      %v1925 = vmul.f32 %v1909, %v1909
      %v1926 = vmul.f32 %v1910, %v1910
      %v1927 = vmul.f32 %v1911, %v1911
      %v1928 = vmul.f32 %v1912, %v1912
      %v1929 = vmul.f32 %v1913, %v1913
      %v1930 = vmul.f32 %v1914, %v1914
      %v1931 = vmul.f32 %v1915, %v1915
      %v1932 = vmul.f32 %v1916, %v1916
      %v1933 = vadd.f32 %v1917, %v1918
      %v1934 = vadd.f32 %v1933, %v1919
      %v1935 = vadd.f32 %v1934, %v1920
      %1936 = vadd.xlane.f32.xlu0 %v1935
      %v1937 = vpop.xlane.xlu0 %1936
      %v1938 = vadd.f32 %v1921, %v1922
      %v1939 = vadd.f32 %v1938, %v1923
      %v1940 = vadd.f32 %v1939, %v1924
      %1941 = vadd.xlane.f32.xlu0 %v1940
      %v1942 = vpop.xlane.xlu0 %1941
      %v1943 = vadd.f32 %v1925, %v1926
      %v1944 = vadd.f32 %v1943, %v1927
      %v1945 = vadd.f32 %v1944, %v1928
      %1946 = vadd.xlane.f32.xlu0 %v1945
      %v1947 = vpop.xlane.xlu0 %1946
      %v1948 = vadd.f32 %v1929, %v1930
      %v1949 = vadd.f32 %v1948, %v1931
      %v1950 = vadd.f32 %v1949, %v1932
      %1951 = vadd.xlane.f32.xlu0 %v1950
      %v1952 = vpop.xlane.xlu0 %1951
      %v1953 = vmul.f32 %v1937, %v1542
      %v1954 = vmul.f32 %v1942, %v1542
      %v1955 = vmul.f32 %v1947, %v1542
      %v1956 = vmul.f32 %v1952, %v1542
      %v1957 = vadd.f32 %v1953, 1e-05
      %v1958 = vadd.f32 %v1954, 1e-05
      %v1959 = vadd.f32 %v1955, 1e-05
      %v1960 = vadd.f32 %v1956, 1e-05
      %v1961 = vrsqrt.pop %v1957
      %v1962 = vrsqrt.pop %v1958
      %v1963 = vrsqrt.pop %v1959
      %v1964 = vrsqrt.pop %v1960
      %v1965 = vmul.f32 %v1901, %v1961
      %v1966 = vmul.f32 %v1902, %v1961
      %v1967 = vmul.f32 %v1903, %v1961
      %v1968 = vmul.f32 %v1904, %v1961
      %v1969 = vmul.f32 %v1905, %v1962
      %v1970 = vmul.f32 %v1906, %v1962
      %v1971 = vmul.f32 %v1907, %v1962
      %v1972 = vmul.f32 %v1908, %v1962
      %v1973 = vmul.f32 %v1909, %v1963
      %v1974 = vmul.f32 %v1910, %v1963
      %v1975 = vmul.f32 %v1911, %v1963
      %v1976 = vmul.f32 %v1912, %v1963
      %v1977 = vmul.f32 %v1913, %v1964
      %v1978 = vmul.f32 %v1914, %v1964
      %v1979 = vmul.f32 %v1915, %v1964
      %v1980 = vmul.f32 %v1916, %v1964
      %v1982 = vlaneseq
      %v1983 = vshrl.u32 %v1982, 7
      %v1984 = vsub.s32 0, %v1983
      %v1985 = vrot.slane %v1875, %v1984
      %v1986 = vlaneseq
      %v1987 = vshrl.u32 %v1986, 7
      %v1988 = vsub.s32 1, %v1987
      %v1989 = vrot.slane %v1875, %v1988
      %v1990 = vlaneseq
      %v1991 = vshrl.u32 %v1990, 7
      %v1992 = vsub.s32 2, %v1991
      %v1993 = vrot.slane %v1875, %v1992
      %v1994 = vlaneseq
      %v1995 = vshrl.u32 %v1994, 7
      %v1996 = vsub.s32 3, %v1995
      %v1997 = vrot.slane %v1875, %v1996
      %v2002 = vmul.f32 %v1965, %v1985
      %v2003 = vmul.f32 %v1966, %v1989
      %v2004 = vmul.f32 %v1967, %v1993
      %v2005 = vmul.f32 %v1968, %v1997
      %v2006 = vmul.f32 %v1969, %v1985
      %v2007 = vmul.f32 %v1970, %v1989
      %v2008 = vmul.f32 %v1971, %v1993
      %v2009 = vmul.f32 %v1972, %v1997
      %v2010 = vmul.f32 %v1973, %v1985
      %v2011 = vmul.f32 %v1974, %v1989
      %v2012 = vmul.f32 %v1975, %v1993
      %v2013 = vmul.f32 %v1976, %v1997
      %v2014 = vmul.f32 %v1977, %v1985
      %v2015 = vmul.f32 %v1978, %v1989
      %v2016 = vmul.f32 %v1979, %v1993
      %v2017 = vmul.f32 %v1980, %v1997
      %v2019 = vlaneseq
      %v2020 = vshrl.u32 %v2019, 7
      %v2021 = vsub.s32 0, %v2020
      %v2022 = vrot.slane %v1876, %v2021
      %v2023 = vlaneseq
      %v2024 = vshrl.u32 %v2023, 7
      %v2025 = vsub.s32 1, %v2024
      %v2026 = vrot.slane %v1876, %v2025
      %v2027 = vlaneseq
      %v2028 = vshrl.u32 %v2027, 7
      %v2029 = vsub.s32 2, %v2028
      %v2030 = vrot.slane %v1876, %v2029
      %v2031 = vlaneseq
      %v2032 = vshrl.u32 %v2031, 7
      %v2033 = vsub.s32 3, %v2032
      %v2034 = vrot.slane %v1876, %v2033
      %v2039 = vadd.f32 %v2002, %v2022
      %v2040 = vadd.f32 %v2003, %v2026
      %v2041 = vadd.f32 %v2004, %v2030
      %v2042 = vadd.f32 %v2005, %v2034
      %v2043 = vadd.f32 %v2006, %v2022
      %v2044 = vadd.f32 %v2007, %v2026
      %v2045 = vadd.f32 %v2008, %v2030
      %v2046 = vadd.f32 %v2009, %v2034
      %v2047 = vadd.f32 %v2010, %v2022
      %v2048 = vadd.f32 %v2011, %v2026
      %v2049 = vadd.f32 %v2012, %v2030
      %v2050 = vadd.f32 %v2013, %v2034
      %v2051 = vadd.f32 %v2014, %v2022
      %v2052 = vadd.f32 %v2015, %v2026
      %v2053 = vadd.f32 %v2016, %v2030
      %v2054 = vadd.f32 %v2017, %v2034
      %v2055 = vmax.f32 %v2039, 0.0
      %v2056 = vmax.f32 %v2040, 0.0
      %v2057 = vmax.f32 %v2041, 0.0
      %v2058 = vmax.f32 %v2042, 0.0
      %v2059 = vmax.f32 %v2043, 0.0
      %v2060 = vmax.f32 %v2044, 0.0
      %v2061 = vmax.f32 %v2045, 0.0
      %v2062 = vmax.f32 %v2046, 0.0
      %v2063 = vmax.f32 %v2047, 0.0
      %v2064 = vmax.f32 %v2048, 0.0
      %v2065 = vmax.f32 %v2049, 0.0
      %v2066 = vmax.f32 %v2050, 0.0
      %v2067 = vmax.f32 %v2051, 0.0
      %v2068 = vmax.f32 %v2052, 0.0
      %v2069 = vmax.f32 %v2053, 0.0
      %v2070 = vmax.f32 %v2054, 0.0
      %2071 = vst [vmem:[%s332] sm:$0xff] %v2055
      %2072 = vst [vmem:[%s332 + $0x8] sm:$0xff] %v2056
      %2073 = vst [vmem:[%s332 + $0x10] sm:$0xff] %v2057
      %2074 = vst [vmem:[%s332 + $0x18] sm:$0xff] %v2058
      %2075 = vst [vmem:[%s332 + $0x20] sm:$0xff] %v2059
      %2076 = vst [vmem:[%s332 + $0x28] sm:$0xff] %v2060
      %2077 = vst [vmem:[%s332 + $0x30] sm:$0xff] %v2061
      %2078 = vst [vmem:[%s332 + $0x38] sm:$0xff] %v2062
      %2079 = vst [vmem:[%s332 + $0x40] sm:$0xff] %v2063
      %2080 = vst [vmem:[%s332 + $0x48] sm:$0xff] %v2064
      %2081 = vst [vmem:[%s332 + $0x50] sm:$0xff] %v2065
      %2082 = vst [vmem:[%s332 + $0x58] sm:$0xff] %v2066
      %2083 = vst [vmem:[%s332 + $0x60] sm:$0xff] %v2067
      %2084 = vst [vmem:[%s332 + $0x68] sm:$0xff] %v2068
      %2085 = vst [vmem:[%s332 + $0x70] sm:$0xff] %v2069
      %2086 = vst [vmem:[%s332 + $0x78] sm:$0xff] %v2070
      %p2087 = scmp.lt.s32.totalorder %s20, 1
      %s2088 = scalar_select %p2087, %s20, 1
      %s2089 = smul.addr %s2088, 16
      %s2090 = smul.addr %s2089, 8
      %s2091 = scalar_lea.vmem %s9, %s2090
      // Predicated region
      $region57: #{encoder4_forward.7} parent=55 // pred_check
        %p2092 = pneg %p232
      $region58: #{encoder4_forward.7} parent=55 // pred_check_branch
        %2094 = sbr.rel (%p2092) target = $region60
      $region59: #{encoder4_forward.7} parent=55 // pred_region
        _
      $region60: #{encoder4_forward.7} parent=55 // pred_fallthru
        _
    $region56: #{encoder4_forward.7} parent=5 // pred_fallthru
      _
    %p2095 = scmp.le.s32.totalorder 2, %s15
    // Predicated region
    $region61: #{encoder4_forward.7} parent=5 // pred_check
      %p2096 = pneg %p2095
    $region62: #{encoder4_forward.7} parent=5 // pred_check_branch
      %2098 = sbr.rel (%p2096) target = $region64
    $region63: #{encoder4_forward.7} parent=5 // pred_region
      %s2099 = ssub.s32 %s15, 2
      // Predicated region
      $region65: #{encoder4_forward.7} parent=63 // pred_check
        %p2100 = pneg %p238
      $region66: #{encoder4_forward.7} parent=63 // pred_check_branch
        %2102 = sbr.rel (%p2100) target = $region68
      $region67: #{encoder4_forward.7} parent=63 // pred_region
        %p2103 = scmp.lt.s32.totalorder %s21, 1
        %s2104 = scalar_select %p2103, %s21, 1
        %s2105 = smul.addr %s2104, 16
        %s2106 = smul.addr %s2105, 8
        %s2107 = scalar_lea.vmem %s9, %s2106
      $region68: #{encoder4_forward.7} parent=63 // pred_fallthru
        _
    $region64: #{encoder4_forward.7} parent=5 // pred_fallthru
      _
  $region6: #{encoder4_forward.7} parent=0 // loop_footer
    %s19 = sadd.s32 1, %s15
  $region7: #{encoder4_forward.7} parent=0 // loop_footer_branch
    %14 = sbr.rel target = $region3
  $region8: #{encoder4_forward.7} parent=0 // loop_exit
    _

// kernel: encoder4_forward.8
$region0: #{encoder4_forward.8}
  #allocation0 [shape = 'u32[]', space=smem, size = 0x4, offset = 0x4, fixed_abs, tag = 'smem constant byte address 0x4 - core index']
  #allocation1 [shape = 'u32[144,128]{1,0:T(1,128)}', space=vmem, size = 0x12000, scoped, tag = 'internal scratch']
  %s0 = inlined_call_operand.vmem [shape: f32[2,32,512], index: 0, kind: input, shape index: {}]
  %s1 = inlined_call_operand.vmem [shape: bf16[2,128,512], index: 1, kind: input, shape index: {}]
  %s2 = inlined_call_operand.vmem [shape: bf16[32,128], index: 2, kind: input, shape index: {}]
  %s3 = inlined_call_operand.vmem [shape: f32[1,32,1], index: 3, kind: input, shape index: {}]
  %s4 = inlined_call_operand.vmem [shape: f32[1,32,1], index: 4, kind: input, shape index: {}]
  %s5 = inlined_call_operand.vmem [shape: f32[1,32,1], index: 5, kind: input, shape index: {}]
  %s6 = inlined_call_operand.vmem [shape: f32[32,2], index: 6, kind: input, shape index: {}]
  %s7 = inlined_call_operand.vmem [shape: f32[2,32], index: 7, kind: input, shape index: {}]
  %s8 = inlined_call_operand.vmem [shape: f32[2,32,512], index: 8, kind: output, shape index: {0}]
  %s9 = inlined_call_operand.vmem [shape: f32[2,32,1], index: 9, kind: output, shape index: {1}]
  %s10 = inlined_call_operand.vmem [shape: bf16[2,2,512], index: 10, kind: output, shape index: {2}]
  %11 = xla_tuple %s8, %s9, %s10
  %s12 = sld [smem:[#allocation0]]
  $region58: #{encoder4_forward.8} parent=0
    _
  %s14 = ssub.s32 1, %s12
  %s15 = scalar_select 0, %s14, %s12
  // Predicated region
  $region2: #{encoder4_forward.8} parent=0 // pred_check
    _
  $region3: #{encoder4_forward.8} parent=0 // pred_check_branch
    %17 = sbr.rel (0) target = $region5
  $region4: #{encoder4_forward.8} parent=0 // pred_region
    _
  $region5: #{encoder4_forward.8} parent=0 // pred_fallthru
    _
  // Predicated region
  $region6: #{encoder4_forward.8} parent=0 // pred_check
    _
  $region7: #{encoder4_forward.8} parent=0 // pred_check_branch
    %19 = sbr.rel (0) target = $region9
  $region8: #{encoder4_forward.8} parent=0 // pred_region
    _
  $region9: #{encoder4_forward.8} parent=0 // pred_fallthru
    _
  // Predicated region
  $region10: #{encoder4_forward.8} parent=0 // pred_check
    _
  $region11: #{encoder4_forward.8} parent=0 // pred_check_branch
    %21 = sbr.rel (0) target = $region13
  $region12: #{encoder4_forward.8} parent=0 // pred_region
    _
  $region13: #{encoder4_forward.8} parent=0 // pred_fallthru
    _
  // Predicated region
  $region14: #{encoder4_forward.8} parent=0 // pred_check
    _
  $region15: #{encoder4_forward.8} parent=0 // pred_check_branch
    %23 = sbr.rel (0) target = $region17
  $region16: #{encoder4_forward.8} parent=0 // pred_region
    _
  $region17: #{encoder4_forward.8} parent=0 // pred_fallthru
    _
  // Predicated region
  $region18: #{encoder4_forward.8} parent=0 // pred_check
    _
  $region19: #{encoder4_forward.8} parent=0 // pred_check_branch
    %25 = sbr.rel (0) target = $region21
  $region20: #{encoder4_forward.8} parent=0 // pred_region
    _
  $region21: #{encoder4_forward.8} parent=0 // pred_fallthru
    _
  // Predicated region
  $region22: #{encoder4_forward.8} parent=0 // pred_check
    _
  $region23: #{encoder4_forward.8} parent=0 // pred_check_branch
    %27 = sbr.rel (0) target = $region25
  $region24: #{encoder4_forward.8} parent=0 // pred_region
    _
  $region25: #{encoder4_forward.8} parent=0 // pred_fallthru
    _
  // Predicated region
  $region26: #{encoder4_forward.8} parent=0 // pred_check
    _
  $region27: #{encoder4_forward.8} parent=0 // pred_check_branch
    %29 = sbr.rel (0) target = $region29
  $region28: #{encoder4_forward.8} parent=0 // pred_region
    _
  $region29: #{encoder4_forward.8} parent=0 // pred_fallthru
    _
  // Predicated region
  $region30: #{encoder4_forward.8} parent=0 // pred_check
    _
  $region31: #{encoder4_forward.8} parent=0 // pred_check_branch
    %31 = sbr.rel (0) target = $region33
  $region32: #{encoder4_forward.8} parent=0 // pred_region
    _
  $region33: #{encoder4_forward.8} parent=0 // pred_fallthru
    _
  %v33 = vld [vmem:[%s2] sm:$0xf]
  %v34 = vld [vmem:[%s2 + $0x4] sm:$0xf]
  %v35 = vld [vmem:[%s2 + $0x8] sm:$0xf]
  %v36 = vld [vmem:[%s2 + $0xc] sm:$0xf]
  %v37 = vld [vmem:[%s1] sm:$0xff]
  %v38 = vld [vmem:[%s1 + $0x8] sm:$0xff]
  %v39 = vld [vmem:[%s1 + $0x10] sm:$0xff]
  %v40 = vld [vmem:[%s1 + $0x18] sm:$0xff]
  %v41 = vld [vmem:[%s1 + $0x20] sm:$0xff]
  %v42 = vld [vmem:[%s1 + $0x28] sm:$0xff]
  %v43 = vld [vmem:[%s1 + $0x30] sm:$0xff]
  %v44 = vld [vmem:[%s1 + $0x38] sm:$0xff]
  %v45 = vld [vmem:[%s1 + $0x40] sm:$0xff]
  %v46 = vld [vmem:[%s1 + $0x48] sm:$0xff]
  %v47 = vld [vmem:[%s1 + $0x50] sm:$0xff]
  %v48 = vld [vmem:[%s1 + $0x58] sm:$0xff]
  %v49 = vld [vmem:[%s1 + $0x60] sm:$0xff]
  %v50 = vld [vmem:[%s1 + $0x68] sm:$0xff]
  %v51 = vld [vmem:[%s1 + $0x70] sm:$0xff]
  %v52 = vld [vmem:[%s1 + $0x78] sm:$0xff]
  %v53 = vld [vmem:[%s1 + $0x80] sm:$0xff]
  %v54 = vld [vmem:[%s1 + $0x88] sm:$0xff]
  %v55 = vld [vmem:[%s1 + $0x90] sm:$0xff]
  %v56 = vld [vmem:[%s1 + $0x98] sm:$0xff]
  %v57 = vld [vmem:[%s1 + $0xa0] sm:$0xff]
  %v58 = vld [vmem:[%s1 + $0xa8] sm:$0xff]
  %v59 = vld [vmem:[%s1 + $0xb0] sm:$0xff]
  %v60 = vld [vmem:[%s1 + $0xb8] sm:$0xff]
  %v61 = vld [vmem:[%s1 + $0xc0] sm:$0xff]
  %v62 = vld [vmem:[%s1 + $0xc8] sm:$0xff]
  %v63 = vld [vmem:[%s1 + $0xd0] sm:$0xff]
  %v64 = vld [vmem:[%s1 + $0xd8] sm:$0xff]
  %v65 = vld [vmem:[%s1 + $0xe0] sm:$0xff]
  %v66 = vld [vmem:[%s1 + $0xe8] sm:$0xff]
  %v67 = vld [vmem:[%s1 + $0xf0] sm:$0xff]
  %v68 = vld [vmem:[%s1 + $0xf8] sm:$0xff]
  %v73 = vunpack.c.l.b16 %v33
  %v74 = vunpack.c.l.b16 %v34
  %v75 = vunpack.c.l.b16 %v35
  %v76 = vunpack.c.l.b16 %v36
  %v77 = vpack.c.b16 %v74, %v73
  %v78 = vpack.c.b16 %v76, %v75
  %v113 = vunpack.c.l.b16 %v37
  %v114 = vunpack.c.h.b16 %v37
  %v115 = vunpack.c.l.b16 %v38
  %v116 = vunpack.c.h.b16 %v38
  %v117 = vunpack.c.l.b16 %v39
  %v118 = vunpack.c.h.b16 %v39
  %v119 = vunpack.c.l.b16 %v40
  %v120 = vunpack.c.h.b16 %v40
  %v121 = vunpack.c.l.b16 %v41
  %v122 = vunpack.c.h.b16 %v41
  %v123 = vunpack.c.l.b16 %v42
  %v124 = vunpack.c.h.b16 %v42
  %v125 = vunpack.c.l.b16 %v43
  %v126 = vunpack.c.h.b16 %v43
  %v127 = vunpack.c.l.b16 %v44
  %v128 = vunpack.c.h.b16 %v44
  %v129 = vunpack.c.l.b16 %v45
  %v130 = vunpack.c.h.b16 %v45
  %v131 = vunpack.c.l.b16 %v46
  %v132 = vunpack.c.h.b16 %v46
  %v133 = vunpack.c.l.b16 %v47
  %v134 = vunpack.c.h.b16 %v47
  %v135 = vunpack.c.l.b16 %v48
  %v136 = vunpack.c.h.b16 %v48
  %v137 = vunpack.c.l.b16 %v49
  %v138 = vunpack.c.h.b16 %v49
  %v139 = vunpack.c.l.b16 %v50
  %v140 = vunpack.c.h.b16 %v50
  %v141 = vunpack.c.l.b16 %v51
  %v142 = vunpack.c.h.b16 %v51
  %v143 = vunpack.c.l.b16 %v52
  %v144 = vunpack.c.h.b16 %v52
  %v145 = vunpack.c.l.b16 %v53
  %v146 = vunpack.c.h.b16 %v53
  %v147 = vunpack.c.l.b16 %v54
  %v148 = vunpack.c.h.b16 %v54
  %v149 = vunpack.c.l.b16 %v55
  %v150 = vunpack.c.h.b16 %v55
  %v151 = vunpack.c.l.b16 %v56
  %v152 = vunpack.c.h.b16 %v56
  %v153 = vunpack.c.l.b16 %v57
  %v154 = vunpack.c.h.b16 %v57
  %v155 = vunpack.c.l.b16 %v58
  %v156 = vunpack.c.h.b16 %v58
  %v157 = vunpack.c.l.b16 %v59
  %v158 = vunpack.c.h.b16 %v59
  %v159 = vunpack.c.l.b16 %v60
  %v160 = vunpack.c.h.b16 %v60
  %v161 = vunpack.c.l.b16 %v61
  %v162 = vunpack.c.h.b16 %v61
  %v163 = vunpack.c.l.b16 %v62
  %v164 = vunpack.c.h.b16 %v62
  %v165 = vunpack.c.l.b16 %v63
  %v166 = vunpack.c.h.b16 %v63
  %v167 = vunpack.c.l.b16 %v64
  %v168 = vunpack.c.h.b16 %v64
  %v169 = vunpack.c.l.b16 %v65
  %v170 = vunpack.c.h.b16 %v65
  %v171 = vunpack.c.l.b16 %v66
  %v172 = vunpack.c.h.b16 %v66
  %v173 = vunpack.c.l.b16 %v67
  %v174 = vunpack.c.h.b16 %v67
  %v175 = vunpack.c.l.b16 %v68
  %v176 = vunpack.c.h.b16 %v68
  %v177 = vpack.c.b16 %v117, %v113
  %v178 = vpack.c.b16 %v118, %v114
  %v179 = vpack.c.b16 %v119, %v115
  %v180 = vpack.c.b16 %v120, %v116
  %v181 = vpack.c.b16 %v125, %v121
  %v182 = vpack.c.b16 %v126, %v122
  %v183 = vpack.c.b16 %v127, %v123
  %v184 = vpack.c.b16 %v128, %v124
  %v185 = vpack.c.b16 %v133, %v129
  %v186 = vpack.c.b16 %v134, %v130
  %v187 = vpack.c.b16 %v135, %v131
  %v188 = vpack.c.b16 %v136, %v132
  %v189 = vpack.c.b16 %v141, %v137
  %v190 = vpack.c.b16 %v142, %v138
  %v191 = vpack.c.b16 %v143, %v139
  %v192 = vpack.c.b16 %v144, %v140
  %v193 = vpack.c.b16 %v149, %v145
  %v194 = vpack.c.b16 %v150, %v146
  %v195 = vpack.c.b16 %v151, %v147
  %v196 = vpack.c.b16 %v152, %v148
  %v197 = vpack.c.b16 %v157, %v153
  %v198 = vpack.c.b16 %v158, %v154
  %v199 = vpack.c.b16 %v159, %v155
  %v200 = vpack.c.b16 %v160, %v156
  %v201 = vpack.c.b16 %v165, %v161
  %v202 = vpack.c.b16 %v166, %v162
  %v203 = vpack.c.b16 %v167, %v163
  %v204 = vpack.c.b16 %v168, %v164
  %v205 = vpack.c.b16 %v173, %v169
  %v206 = vpack.c.b16 %v174, %v170
  %v207 = vpack.c.b16 %v175, %v171
  %v208 = vpack.c.b16 %v176, %v172
  %241 = vmatprep.subr.bf16.mxu0 %v178
  %242 = vmatpush1.bf16.msra.mxu0 %v177
  %243 = vmatprep.subr.bf16.mxu0 %v182
  %244 = vmatpush1.bf16.msra.mxu0 %v181
  %245 = vmatprep.subr.bf16.mxu0 %v186
  %246 = vmatpush1.bf16.msra.mxu0 %v185
  %247 = vmatprep.subr.bf16.mxu0 %v190
  %248 = vmatpush1.bf16.msra.mxu0 %v189
  %249 = vmatprep.subr.bf16.mxu0 %v194
  %250 = vmatpush1.bf16.msra.mxu0 %v193
  %251 = vmatprep.subr.bf16.mxu0 %v198
  %252 = vmatpush1.bf16.msra.mxu0 %v197
  %253 = vmatprep.subr.bf16.mxu0 %v202
  %254 = vmatpush1.bf16.msra.mxu0 %v201
  %255 = vmatprep.subr.bf16.mxu0 %v206
  %256 = vmatpush1.bf16.msra.mxu0 %v205
  %257 = vmatprep.subr.bf16.mxu0 0
  %258 = vmatpush1.bf16.msra.mxu0 0
  %259 = vmatprep.subr.bf16.mxu0 0
  %260 = vmatpush1.bf16.msra.mxu0 0
  %261 = vmatprep.subr.bf16.mxu0 0
  %262 = vmatpush1.bf16.msra.mxu0 0
  %263 = vmatprep.subr.bf16.mxu0 0
  %264 = vmatpush1.bf16.msra.mxu0 0
  %265 = vmatprep.subr.bf16.mxu0 0
  %266 = vmatpush1.bf16.msra.mxu0 0
  %267 = vmatprep.subr.bf16.mxu0 0
  %268 = vmatpush1.bf16.msra.mxu0 0
  %269 = vmatprep.subr.bf16.mxu0 0
  %270 = vmatpush1.bf16.msra.mxu0 0
  %271 = vmatprep.subr.bf16.mxu0 0
  %272 = vmatpush1.bf16.msra.mxu0 0
  %273 = vmatprep.mubr.bf16.mxu0 0
  %274 = vmatmul.mubr.bf16.gmra.mrb[0].mxu0 %v77
  %v275 = vpop.f32.mrb[0].mxu0
  %v276 = vadd.f32 0.0, %v275
  %v277 = vpop.f32.mrb[0].mxu0
  %v278 = vadd.f32 0.0, %v277
  %v279 = vpop.f32.mrb[0].mxu0
  %v280 = vadd.f32 0.0, %v279
  %v281 = vpop.f32.mrb[0].mxu0
  %v282 = vadd.f32 0.0, %v281
  %283 = vmatprep.mubr.bf16.mxu0 0
  %284 = vmatmul.mubr.bf16.gmra.mrb[0].mxu0 %v78
  %v285 = vpop.f32.mrb[0].mxu0
  %v286 = vadd.f32 0.0, %v285
  %v287 = vpop.f32.mrb[0].mxu0
  %v288 = vadd.f32 0.0, %v287
  %v289 = vpop.f32.mrb[0].mxu0
  %v290 = vadd.f32 0.0, %v289
  %v291 = vpop.f32.mrb[0].mxu0
  %v292 = vadd.f32 0.0, %v291
  %293 = vdwg.mxu0
  %294 = vmatprep.subr.bf16.mxu0 %v180
  %295 = vmatpush1.bf16.msra.mxu0 %v179
  %296 = vmatprep.subr.bf16.mxu0 %v184
  %297 = vmatpush1.bf16.msra.mxu0 %v183
  %298 = vmatprep.subr.bf16.mxu0 %v188
  %299 = vmatpush1.bf16.msra.mxu0 %v187
  %300 = vmatprep.subr.bf16.mxu0 %v192
  %301 = vmatpush1.bf16.msra.mxu0 %v191
  %302 = vmatprep.subr.bf16.mxu0 %v196
  %303 = vmatpush1.bf16.msra.mxu0 %v195
  %304 = vmatprep.subr.bf16.mxu0 %v200
  %305 = vmatpush1.bf16.msra.mxu0 %v199
  %306 = vmatprep.subr.bf16.mxu0 %v204
  %307 = vmatpush1.bf16.msra.mxu0 %v203
  %308 = vmatprep.subr.bf16.mxu0 %v208
  %309 = vmatpush1.bf16.msra.mxu0 %v207
  %310 = vmatprep.subr.bf16.mxu0 0
  %311 = vmatpush1.bf16.msra.mxu0 0
  %312 = vmatprep.subr.bf16.mxu0 0
  %313 = vmatpush1.bf16.msra.mxu0 0
  %314 = vmatprep.subr.bf16.mxu0 0
  %315 = vmatpush1.bf16.msra.mxu0 0
  %316 = vmatprep.subr.bf16.mxu0 0
  %317 = vmatpush1.bf16.msra.mxu0 0
  %318 = vmatprep.subr.bf16.mxu0 0
  %319 = vmatpush1.bf16.msra.mxu0 0
  %320 = vmatprep.subr.bf16.mxu0 0
  %321 = vmatpush1.bf16.msra.mxu0 0
  %322 = vmatprep.subr.bf16.mxu0 0
  %323 = vmatpush1.bf16.msra.mxu0 0
  %324 = vmatprep.subr.bf16.mxu0 0
  %325 = vmatpush1.bf16.msra.mxu0 0
  %326 = vmatprep.mubr.bf16.mxu0 0
  %327 = vmatmul.mubr.bf16.gmra.mrb[0].mxu0 %v77
  %v328 = vpop.f32.mrb[0].mxu0
  %v329 = vadd.f32 0.0, %v328
  %v330 = vpop.f32.mrb[0].mxu0
  %v331 = vadd.f32 0.0, %v330
  %v332 = vpop.f32.mrb[0].mxu0
  %v333 = vadd.f32 0.0, %v332
  %v334 = vpop.f32.mrb[0].mxu0
  %v335 = vadd.f32 0.0, %v334
  %336 = vmatprep.mubr.bf16.mxu0 0
  %337 = vmatmul.mubr.bf16.gmra.mrb[0].mxu0 %v78
  %v338 = vpop.f32.mrb[0].mxu0
  %v339 = vadd.f32 0.0, %v338
  %v340 = vpop.f32.mrb[0].mxu0
  %v341 = vadd.f32 0.0, %v340
  %v342 = vpop.f32.mrb[0].mxu0
  %v343 = vadd.f32 0.0, %v342
  %v344 = vpop.f32.mrb[0].mxu0
  %v345 = vadd.f32 0.0, %v344
  %346 = vdwg.mxu0
  %s347 = scalar_lea.vmem %s1, 256
  %v348 = vld [vmem:[%s347] sm:$0xff]
  %v349 = vld [vmem:[%s347 + $0x8] sm:$0xff]
  %v350 = vld [vmem:[%s347 + $0x10] sm:$0xff]
  %v351 = vld [vmem:[%s347 + $0x18] sm:$0xff]
  %v352 = vld [vmem:[%s347 + $0x20] sm:$0xff]
  %v353 = vld [vmem:[%s347 + $0x28] sm:$0xff]
  %v354 = vld [vmem:[%s347 + $0x30] sm:$0xff]
  %v355 = vld [vmem:[%s347 + $0x38] sm:$0xff]
  %v356 = vld [vmem:[%s347 + $0x40] sm:$0xff]
  %v357 = vld [vmem:[%s347 + $0x48] sm:$0xff]
  %v358 = vld [vmem:[%s347 + $0x50] sm:$0xff]
  %v359 = vld [vmem:[%s347 + $0x58] sm:$0xff]
  %v360 = vld [vmem:[%s347 + $0x60] sm:$0xff]
  %v361 = vld [vmem:[%s347 + $0x68] sm:$0xff]
  %v362 = vld [vmem:[%s347 + $0x70] sm:$0xff]
  %v363 = vld [vmem:[%s347 + $0x78] sm:$0xff]
  %v364 = vld [vmem:[%s347 + $0x80] sm:$0xff]
  %v365 = vld [vmem:[%s347 + $0x88] sm:$0xff]
  %v366 = vld [vmem:[%s347 + $0x90] sm:$0xff]
  %v367 = vld [vmem:[%s347 + $0x98] sm:$0xff]
  %v368 = vld [vmem:[%s347 + $0xa0] sm:$0xff]
  %v369 = vld [vmem:[%s347 + $0xa8] sm:$0xff]
  %v370 = vld [vmem:[%s347 + $0xb0] sm:$0xff]
  %v371 = vld [vmem:[%s347 + $0xb8] sm:$0xff]
  %v372 = vld [vmem:[%s347 + $0xc0] sm:$0xff]
  %v373 = vld [vmem:[%s347 + $0xc8] sm:$0xff]
  %v374 = vld [vmem:[%s347 + $0xd0] sm:$0xff]
  %v375 = vld [vmem:[%s347 + $0xd8] sm:$0xff]
  %v376 = vld [vmem:[%s347 + $0xe0] sm:$0xff]
  %v377 = vld [vmem:[%s347 + $0xe8] sm:$0xff]
  %v378 = vld [vmem:[%s347 + $0xf0] sm:$0xff]
  %v379 = vld [vmem:[%s347 + $0xf8] sm:$0xff]
  %v412 = vunpack.c.l.b16 %v348
  %v413 = vunpack.c.h.b16 %v348
  %v414 = vunpack.c.l.b16 %v349
  %v415 = vunpack.c.h.b16 %v349
  %v416 = vunpack.c.l.b16 %v350
  %v417 = vunpack.c.h.b16 %v350
  %v418 = vunpack.c.l.b16 %v351
  %v419 = vunpack.c.h.b16 %v351
  %v420 = vunpack.c.l.b16 %v352
  %v421 = vunpack.c.h.b16 %v352
  %v422 = vunpack.c.l.b16 %v353
  %v423 = vunpack.c.h.b16 %v353
  %v424 = vunpack.c.l.b16 %v354
  %v425 = vunpack.c.h.b16 %v354
  %v426 = vunpack.c.l.b16 %v355
  %v427 = vunpack.c.h.b16 %v355
  %v428 = vunpack.c.l.b16 %v356
  %v429 = vunpack.c.h.b16 %v356
  %v430 = vunpack.c.l.b16 %v357
  %v431 = vunpack.c.h.b16 %v357
  %v432 = vunpack.c.l.b16 %v358
  %v433 = vunpack.c.h.b16 %v358
  %v434 = vunpack.c.l.b16 %v359
  %v435 = vunpack.c.h.b16 %v359
  %v436 = vunpack.c.l.b16 %v360
  %v437 = vunpack.c.h.b16 %v360
  %v438 = vunpack.c.l.b16 %v361
  %v439 = vunpack.c.h.b16 %v361
  %v440 = vunpack.c.l.b16 %v362
  %v441 = vunpack.c.h.b16 %v362
  %v442 = vunpack.c.l.b16 %v363
  %v443 = vunpack.c.h.b16 %v363
  %v444 = vunpack.c.l.b16 %v364
  %v445 = vunpack.c.h.b16 %v364
  %v446 = vunpack.c.l.b16 %v365
  %v447 = vunpack.c.h.b16 %v365
  %v448 = vunpack.c.l.b16 %v366
  %v449 = vunpack.c.h.b16 %v366
  %v450 = vunpack.c.l.b16 %v367
  %v451 = vunpack.c.h.b16 %v367
  %v452 = vunpack.c.l.b16 %v368
  %v453 = vunpack.c.h.b16 %v368
  %v454 = vunpack.c.l.b16 %v369
  %v455 = vunpack.c.h.b16 %v369
  %v456 = vunpack.c.l.b16 %v370
  %v457 = vunpack.c.h.b16 %v370
  %v458 = vunpack.c.l.b16 %v371
  %v459 = vunpack.c.h.b16 %v371
  %v460 = vunpack.c.l.b16 %v372
  %v461 = vunpack.c.h.b16 %v372
  %v462 = vunpack.c.l.b16 %v373
  %v463 = vunpack.c.h.b16 %v373
  %v464 = vunpack.c.l.b16 %v374
  %v465 = vunpack.c.h.b16 %v374
  %v466 = vunpack.c.l.b16 %v375
  %v467 = vunpack.c.h.b16 %v375
  %v468 = vunpack.c.l.b16 %v376
  %v469 = vunpack.c.h.b16 %v376
  %v470 = vunpack.c.l.b16 %v377
  %v471 = vunpack.c.h.b16 %v377
  %v472 = vunpack.c.l.b16 %v378
  %v473 = vunpack.c.h.b16 %v378
  %v474 = vunpack.c.l.b16 %v379
  %v475 = vunpack.c.h.b16 %v379
  %v476 = vpack.c.b16 %v416, %v412
  %v477 = vpack.c.b16 %v417, %v413
  %v478 = vpack.c.b16 %v418, %v414
  %v479 = vpack.c.b16 %v419, %v415
  %v480 = vpack.c.b16 %v424, %v420
  %v481 = vpack.c.b16 %v425, %v421
  %v482 = vpack.c.b16 %v426, %v422
  %v483 = vpack.c.b16 %v427, %v423
  %v484 = vpack.c.b16 %v432, %v428
  %v485 = vpack.c.b16 %v433, %v429
  %v486 = vpack.c.b16 %v434, %v430
  %v487 = vpack.c.b16 %v435, %v431
  %v488 = vpack.c.b16 %v440, %v436
  %v489 = vpack.c.b16 %v441, %v437
  %v490 = vpack.c.b16 %v442, %v438
  %v491 = vpack.c.b16 %v443, %v439
  %v492 = vpack.c.b16 %v448, %v444
  %v493 = vpack.c.b16 %v449, %v445
  %v494 = vpack.c.b16 %v450, %v446
  %v495 = vpack.c.b16 %v451, %v447
  %v496 = vpack.c.b16 %v456, %v452
  %v497 = vpack.c.b16 %v457, %v453
  %v498 = vpack.c.b16 %v458, %v454
  %v499 = vpack.c.b16 %v459, %v455
  %v500 = vpack.c.b16 %v464, %v460
  %v501 = vpack.c.b16 %v465, %v461
  %v502 = vpack.c.b16 %v466, %v462
  %v503 = vpack.c.b16 %v467, %v463
  %v504 = vpack.c.b16 %v472, %v468
  %v505 = vpack.c.b16 %v473, %v469
  %v506 = vpack.c.b16 %v474, %v470
  %v507 = vpack.c.b16 %v475, %v471
  %540 = vmatprep.subr.bf16.mxu0 %v477
  %541 = vmatpush1.bf16.msra.mxu0 %v476
  %542 = vmatprep.subr.bf16.mxu0 %v481
  %543 = vmatpush1.bf16.msra.mxu0 %v480
  %544 = vmatprep.subr.bf16.mxu0 %v485
  %545 = vmatpush1.bf16.msra.mxu0 %v484
  %546 = vmatprep.subr.bf16.mxu0 %v489
  %547 = vmatpush1.bf16.msra.mxu0 %v488
  %548 = vmatprep.subr.bf16.mxu0 %v493
  %549 = vmatpush1.bf16.msra.mxu0 %v492
  %550 = vmatprep.subr.bf16.mxu0 %v497
  %551 = vmatpush1.bf16.msra.mxu0 %v496
  %552 = vmatprep.subr.bf16.mxu0 %v501
  %553 = vmatpush1.bf16.msra.mxu0 %v500
  %554 = vmatprep.subr.bf16.mxu0 %v505
  %555 = vmatpush1.bf16.msra.mxu0 %v504
  %556 = vmatprep.subr.bf16.mxu0 0
  %557 = vmatpush1.bf16.msra.mxu0 0
  %558 = vmatprep.subr.bf16.mxu0 0
  %559 = vmatpush1.bf16.msra.mxu0 0
  %560 = vmatprep.subr.bf16.mxu0 0
  %561 = vmatpush1.bf16.msra.mxu0 0
  %562 = vmatprep.subr.bf16.mxu0 0
  %563 = vmatpush1.bf16.msra.mxu0 0
  %564 = vmatprep.subr.bf16.mxu0 0
  %565 = vmatpush1.bf16.msra.mxu0 0
  %566 = vmatprep.subr.bf16.mxu0 0
  %567 = vmatpush1.bf16.msra.mxu0 0
  %568 = vmatprep.subr.bf16.mxu0 0
  %569 = vmatpush1.bf16.msra.mxu0 0
  %570 = vmatprep.subr.bf16.mxu0 0
  %571 = vmatpush1.bf16.msra.mxu0 0
  %572 = vmatprep.mubr.bf16.mxu0 0
  %573 = vmatmul.mubr.bf16.gmra.mrb[0].mxu0 %v77
  %v574 = vpop.f32.mrb[0].mxu0
  %v575 = vadd.f32 0.0, %v574
  %v576 = vpop.f32.mrb[0].mxu0
  %v577 = vadd.f32 0.0, %v576
  %v578 = vpop.f32.mrb[0].mxu0
  %v579 = vadd.f32 0.0, %v578
  %v580 = vpop.f32.mrb[0].mxu0
  %v581 = vadd.f32 0.0, %v580
  %582 = vmatprep.mubr.bf16.mxu0 0
  %583 = vmatmul.mubr.bf16.gmra.mrb[0].mxu0 %v78
  %v584 = vpop.f32.mrb[0].mxu0
  %v585 = vadd.f32 0.0, %v584
  %v586 = vpop.f32.mrb[0].mxu0
  %v587 = vadd.f32 0.0, %v586
  %v588 = vpop.f32.mrb[0].mxu0
  %v589 = vadd.f32 0.0, %v588
  %v590 = vpop.f32.mrb[0].mxu0
  %v591 = vadd.f32 0.0, %v590
  %592 = vdwg.mxu0
  %593 = vmatprep.subr.bf16.mxu0 %v479
  %594 = vmatpush1.bf16.msra.mxu0 %v478
  %595 = vmatprep.subr.bf16.mxu0 %v483
  %596 = vmatpush1.bf16.msra.mxu0 %v482
  %597 = vmatprep.subr.bf16.mxu0 %v487
  %598 = vmatpush1.bf16.msra.mxu0 %v486
  %599 = vmatprep.subr.bf16.mxu0 %v491
  %600 = vmatpush1.bf16.msra.mxu0 %v490
  %601 = vmatprep.subr.bf16.mxu0 %v495
  %602 = vmatpush1.bf16.msra.mxu0 %v494
  %603 = vmatprep.subr.bf16.mxu0 %v499
  %604 = vmatpush1.bf16.msra.mxu0 %v498
  %605 = vmatprep.subr.bf16.mxu0 %v503
  %606 = vmatpush1.bf16.msra.mxu0 %v502
  %607 = vmatprep.subr.bf16.mxu0 %v507
  %608 = vmatpush1.bf16.msra.mxu0 %v506
  %609 = vmatprep.subr.bf16.mxu0 0
  %610 = vmatpush1.bf16.msra.mxu0 0
  %611 = vmatprep.subr.bf16.mxu0 0
  %612 = vmatpush1.bf16.msra.mxu0 0
  %613 = vmatprep.subr.bf16.mxu0 0
  %614 = vmatpush1.bf16.msra.mxu0 0
  %615 = vmatprep.subr.bf16.mxu0 0
  %616 = vmatpush1.bf16.msra.mxu0 0
  %617 = vmatprep.subr.bf16.mxu0 0
  %618 = vmatpush1.bf16.msra.mxu0 0
  %619 = vmatprep.subr.bf16.mxu0 0
  %620 = vmatpush1.bf16.msra.mxu0 0
  %621 = vmatprep.subr.bf16.mxu0 0
  %622 = vmatpush1.bf16.msra.mxu0 0
  %623 = vmatprep.subr.bf16.mxu0 0
  %624 = vmatpush1.bf16.msra.mxu0 0
  %625 = vmatprep.mubr.bf16.mxu0 0
  %626 = vmatmul.mubr.bf16.gmra.mrb[0].mxu0 %v77
  %v627 = vpop.f32.mrb[0].mxu0
  %v628 = vadd.f32 0.0, %v627
  %v629 = vpop.f32.mrb[0].mxu0
  %v630 = vadd.f32 0.0, %v629
  %v631 = vpop.f32.mrb[0].mxu0
  %v632 = vadd.f32 0.0, %v631
  %v633 = vpop.f32.mrb[0].mxu0
  %v634 = vadd.f32 0.0, %v633
  %635 = vmatprep.mubr.bf16.mxu0 0
  %636 = vmatmul.mubr.bf16.gmra.mrb[0].mxu0 %v78
  %v637 = vpop.f32.mrb[0].mxu0
  %v638 = vadd.f32 0.0, %v637
  %v639 = vpop.f32.mrb[0].mxu0
  %v640 = vadd.f32 0.0, %v639
  %v641 = vpop.f32.mrb[0].mxu0
  %v642 = vadd.f32 0.0, %v641
  %v643 = vpop.f32.mrb[0].mxu0
  %v644 = vadd.f32 0.0, %v643
  %645 = vdwg.mxu0
  %v646 = vld [vmem:[%s3] sm:$0xff]
  %v647 = vld [vmem:[%s3 + $0x8] sm:$0xff]
  %v648 = vld [vmem:[%s3 + $0x10] sm:$0xff]
  %v649 = vld [vmem:[%s3 + $0x18] sm:$0xff]
  %651 = vset.pattern.permute.xlu0 0
  %652 = vperm.xlu0 %651, %v646
  %v653 = vpop.permute.xlu0 %652
  %656 = vset.pattern.permute.xlu0 0
  %657 = vperm.xlu0 %656, %v647
  %v658 = vpop.permute.xlu0 %657
  %661 = vset.pattern.permute.xlu0 0
  %662 = vperm.xlu0 %661, %v648
  %v663 = vpop.permute.xlu0 %662
  %666 = vset.pattern.permute.xlu0 0
  %667 = vperm.xlu0 %666, %v649
  %v668 = vpop.permute.xlu0 %667
  %v670 = vadd.f32 %v276, %v653
  %v671 = vadd.f32 %v278, %v653
  %v672 = vadd.f32 %v329, %v653
  %v673 = vadd.f32 %v331, %v653
  %v674 = vadd.f32 %v280, %v658
  %v675 = vadd.f32 %v282, %v658
  %v676 = vadd.f32 %v333, %v658
  %v677 = vadd.f32 %v335, %v658
  %v678 = vadd.f32 %v286, %v663
  %v679 = vadd.f32 %v288, %v663
  %v680 = vadd.f32 %v339, %v663
  %v681 = vadd.f32 %v341, %v663
  %v682 = vadd.f32 %v290, %v668
  %v683 = vadd.f32 %v292, %v668
  %v684 = vadd.f32 %v343, %v668
  %v685 = vadd.f32 %v345, %v668
  %v686 = vadd.f32 %v575, %v653
  %v687 = vadd.f32 %v577, %v653
  %v688 = vadd.f32 %v628, %v653
  %v689 = vadd.f32 %v630, %v653
  %v690 = vadd.f32 %v579, %v658
  %v691 = vadd.f32 %v581, %v658
  %v692 = vadd.f32 %v632, %v658
  %v693 = vadd.f32 %v634, %v658
  %v694 = vadd.f32 %v585, %v663
  %v695 = vadd.f32 %v587, %v663
  %v696 = vadd.f32 %v638, %v663
  %v697 = vadd.f32 %v640, %v663
  %v698 = vadd.f32 %v589, %v668
  %v699 = vadd.f32 %v591, %v668
  %v700 = vadd.f32 %v642, %v668
  %v701 = vadd.f32 %v644, %v668
  %v702 = vadd.f32 %v670, %v671
  %v703 = vadd.f32 %v702, %v672
  %v704 = vadd.f32 %v703, %v673
  %705 = vadd.xlane.f32.xlu0 %v704
  %v706 = vpop.xlane.xlu0 %705
  %v707 = vadd.f32 %v674, %v675
  %v708 = vadd.f32 %v707, %v676
  %v709 = vadd.f32 %v708, %v677
  %710 = vadd.xlane.f32.xlu0 %v709
  %v711 = vpop.xlane.xlu0 %710
  %v712 = vadd.f32 %v678, %v679
  %v713 = vadd.f32 %v712, %v680
  %v714 = vadd.f32 %v713, %v681
  %715 = vadd.xlane.f32.xlu0 %v714
  %v716 = vpop.xlane.xlu0 %715
  %v717 = vadd.f32 %v682, %v683
  %v718 = vadd.f32 %v717, %v684
  %v719 = vadd.f32 %v718, %v685
  %720 = vadd.xlane.f32.xlu0 %v719
  %v721 = vpop.xlane.xlu0 %720
  %v722 = vadd.f32 %v686, %v687
  %v723 = vadd.f32 %v722, %v688
  %v724 = vadd.f32 %v723, %v689
  %725 = vadd.xlane.f32.xlu0 %v724
  %v726 = vpop.xlane.xlu0 %725
  %v727 = vadd.f32 %v690, %v691
  %v728 = vadd.f32 %v727, %v692
  %v729 = vadd.f32 %v728, %v693
  %730 = vadd.xlane.f32.xlu0 %v729
  %v731 = vpop.xlane.xlu0 %730
  %v732 = vadd.f32 %v694, %v695
  %v733 = vadd.f32 %v732, %v696
  %v734 = vadd.f32 %v733, %v697
  %735 = vadd.xlane.f32.xlu0 %v734
  %v736 = vpop.xlane.xlu0 %735
  %v737 = vadd.f32 %v698, %v699
  %v738 = vadd.f32 %v737, %v700
  %v739 = vadd.f32 %v738, %v701
  %740 = vadd.xlane.f32.xlu0 %v739
  %v741 = vpop.xlane.xlu0 %740
  %v742 = vadd.f32 %v706, %v726
  %v743 = vadd.f32 %v711, %v731
  %v744 = vadd.f32 %v716, %v736
  %v745 = vadd.f32 %v721, %v741
  %v746 = vrcp.pop 1024.0
  %v747 = vmul.f32 %v742, %v746
  %v748 = vmul.f32 %v743, %v746
  %v749 = vmul.f32 %v744, %v746
  %v750 = vmul.f32 %v745, %v746
  %v751 = vsub.f32 %v670, %v747
  %v752 = vsub.f32 %v671, %v747
  %v753 = vsub.f32 %v672, %v747
  %v754 = vsub.f32 %v673, %v747
  %v755 = vsub.f32 %v674, %v748
  %v756 = vsub.f32 %v675, %v748
  %v757 = vsub.f32 %v676, %v748
  %v758 = vsub.f32 %v677, %v748
  %v759 = vsub.f32 %v678, %v749
  %v760 = vsub.f32 %v679, %v749
  %v761 = vsub.f32 %v680, %v749
  %v762 = vsub.f32 %v681, %v749
  %v763 = vsub.f32 %v682, %v750
  %v764 = vsub.f32 %v683, %v750
  %v765 = vsub.f32 %v684, %v750
  %v766 = vsub.f32 %v685, %v750
  %v767 = vsub.f32 %v686, %v747
  %v768 = vsub.f32 %v687, %v747
  %v769 = vsub.f32 %v688, %v747
  %v770 = vsub.f32 %v689, %v747
  %v771 = vsub.f32 %v690, %v748
  %v772 = vsub.f32 %v691, %v748
  %v773 = vsub.f32 %v692, %v748
  %v774 = vsub.f32 %v693, %v748
  %v775 = vsub.f32 %v694, %v749
  %v776 = vsub.f32 %v695, %v749
  %v777 = vsub.f32 %v696, %v749
  %v778 = vsub.f32 %v697, %v749
  %v779 = vsub.f32 %v698, %v750
  %v780 = vsub.f32 %v699, %v750
  %v781 = vsub.f32 %v700, %v750
  %v782 = vsub.f32 %v701, %v750
  %v783 = vmul.f32 %v751, %v751
  %v784 = vmul.f32 %v752, %v752
  %v785 = vmul.f32 %v753, %v753
  %v786 = vmul.f32 %v754, %v754
  %v787 = vmul.f32 %v755, %v755
  %v788 = vmul.f32 %v756, %v756
  %v789 = vmul.f32 %v757, %v757
  %v790 = vmul.f32 %v758, %v758
  %v791 = vmul.f32 %v759, %v759
  %v792 = vmul.f32 %v760, %v760
  %v793 = vmul.f32 %v761, %v761
  %v794 = vmul.f32 %v762, %v762
  %v795 = vmul.f32 %v763, %v763
  %v796 = vmul.f32 %v764, %v764
  %v797 = vmul.f32 %v765, %v765
  %v798 = vmul.f32 %v766, %v766
  %v799 = vmul.f32 %v767, %v767
  %v800 = vmul.f32 %v768, %v768
  %v801 = vmul.f32 %v769, %v769
  %v802 = vmul.f32 %v770, %v770
  %v803 = vmul.f32 %v771, %v771
  %v804 = vmul.f32 %v772, %v772
  %v805 = vmul.f32 %v773, %v773
  %v806 = vmul.f32 %v774, %v774
  %v807 = vmul.f32 %v775, %v775
  %v808 = vmul.f32 %v776, %v776
  %v809 = vmul.f32 %v777, %v777
  %v810 = vmul.f32 %v778, %v778
  %v811 = vmul.f32 %v779, %v779
  %v812 = vmul.f32 %v780, %v780
  %v813 = vmul.f32 %v781, %v781
  %v814 = vmul.f32 %v782, %v782
  %v815 = vadd.f32 %v783, %v784
  %v816 = vadd.f32 %v815, %v785
  %v817 = vadd.f32 %v816, %v786
  %818 = vadd.xlane.f32.xlu0 %v817
  %v819 = vpop.xlane.xlu0 %818
  %v820 = vadd.f32 %v787, %v788
  %v821 = vadd.f32 %v820, %v789
  %v822 = vadd.f32 %v821, %v790
  %823 = vadd.xlane.f32.xlu0 %v822
  %v824 = vpop.xlane.xlu0 %823
  %v825 = vadd.f32 %v791, %v792
  %v826 = vadd.f32 %v825, %v793
  %v827 = vadd.f32 %v826, %v794
  %828 = vadd.xlane.f32.xlu0 %v827
  %v829 = vpop.xlane.xlu0 %828
  %v830 = vadd.f32 %v795, %v796
  %v831 = vadd.f32 %v830, %v797
  %v832 = vadd.f32 %v831, %v798
  %833 = vadd.xlane.f32.xlu0 %v832
  %v834 = vpop.xlane.xlu0 %833
  %v835 = vadd.f32 %v799, %v800
  %v836 = vadd.f32 %v835, %v801
  %v837 = vadd.f32 %v836, %v802
  %838 = vadd.xlane.f32.xlu0 %v837
  %v839 = vpop.xlane.xlu0 %838
  %v840 = vadd.f32 %v803, %v804
  %v841 = vadd.f32 %v840, %v805
  %v842 = vadd.f32 %v841, %v806
  %843 = vadd.xlane.f32.xlu0 %v842
  %v844 = vpop.xlane.xlu0 %843
  %v845 = vadd.f32 %v807, %v808
  %v846 = vadd.f32 %v845, %v809
  %v847 = vadd.f32 %v846, %v810
  %848 = vadd.xlane.f32.xlu0 %v847
  %v849 = vpop.xlane.xlu0 %848
  %v850 = vadd.f32 %v811, %v812
  %v851 = vadd.f32 %v850, %v813
  %v852 = vadd.f32 %v851, %v814
  %853 = vadd.xlane.f32.xlu0 %v852
  %v854 = vpop.xlane.xlu0 %853
  %v855 = vadd.f32 %v819, %v839
  %v856 = vadd.f32 %v824, %v844
  %v857 = vadd.f32 %v829, %v849
  %v858 = vadd.f32 %v834, %v854
  %v859 = vmul.f32 %v855, %v746
  %v860 = vmul.f32 %v856, %v746
  %v861 = vmul.f32 %v857, %v746
  %v862 = vmul.f32 %v858, %v746
  %v863 = vadd.f32 %v859, 1e-05
  %v864 = vadd.f32 %v860, 1e-05
  %v865 = vadd.f32 %v861, 1e-05
  %v866 = vadd.f32 %v862, 1e-05
  %v867 = vrsqrt.pop %v863
  %v868 = vrsqrt.pop %v864
  %v869 = vrsqrt.pop %v865
  %v870 = vrsqrt.pop %v866
  %v871 = vmul.f32 %v751, %v867
  %v872 = vmul.f32 %v752, %v867
  %v873 = vmul.f32 %v753, %v867
  %v874 = vmul.f32 %v754, %v867
  %v875 = vmul.f32 %v755, %v868
  %v876 = vmul.f32 %v756, %v868
  %v877 = vmul.f32 %v757, %v868
  %v878 = vmul.f32 %v758, %v868
  %v879 = vmul.f32 %v759, %v869
  %v880 = vmul.f32 %v760, %v869
  %v881 = vmul.f32 %v761, %v869
  %v882 = vmul.f32 %v762, %v869
  %v883 = vmul.f32 %v763, %v870
  %v884 = vmul.f32 %v764, %v870
  %v885 = vmul.f32 %v765, %v870
  %v886 = vmul.f32 %v766, %v870
  %v887 = vmul.f32 %v767, %v867
  %v888 = vmul.f32 %v768, %v867
  %v889 = vmul.f32 %v769, %v867
  %v890 = vmul.f32 %v770, %v867
  %v891 = vmul.f32 %v771, %v868
  %v892 = vmul.f32 %v772, %v868
  %v893 = vmul.f32 %v773, %v868
  %v894 = vmul.f32 %v774, %v868
  %v895 = vmul.f32 %v775, %v869
  %v896 = vmul.f32 %v776, %v869
  %v897 = vmul.f32 %v777, %v869
  %v898 = vmul.f32 %v778, %v869
  %v899 = vmul.f32 %v779, %v870
  %v900 = vmul.f32 %v780, %v870
  %v901 = vmul.f32 %v781, %v870
  %v902 = vmul.f32 %v782, %v870
  %v903 = vld [vmem:[%s4] sm:$0xff]
  %v904 = vld [vmem:[%s4 + $0x8] sm:$0xff]
  %v905 = vld [vmem:[%s4 + $0x10] sm:$0xff]
  %v906 = vld [vmem:[%s4 + $0x18] sm:$0xff]
  %908 = vset.pattern.permute.xlu0 0
  %909 = vperm.xlu0 %908, %v903
  %v910 = vpop.permute.xlu0 %909
  %913 = vset.pattern.permute.xlu0 0
  %914 = vperm.xlu0 %913, %v904
  %v915 = vpop.permute.xlu0 %914
  %918 = vset.pattern.permute.xlu0 0
  %919 = vperm.xlu0 %918, %v905
  %v920 = vpop.permute.xlu0 %919
  %923 = vset.pattern.permute.xlu0 0
  %924 = vperm.xlu0 %923, %v906
  %v925 = vpop.permute.xlu0 %924
  %v927 = vmul.f32 %v871, %v910
  %v928 = vmul.f32 %v872, %v910
  %v929 = vmul.f32 %v873, %v910
  %v930 = vmul.f32 %v874, %v910
  %v931 = vmul.f32 %v875, %v915
  %v932 = vmul.f32 %v876, %v915
  %v933 = vmul.f32 %v877, %v915
  %v934 = vmul.f32 %v878, %v915
  %v935 = vmul.f32 %v879, %v920
  %v936 = vmul.f32 %v880, %v920
  %v937 = vmul.f32 %v881, %v920
  %v938 = vmul.f32 %v882, %v920
  %v939 = vmul.f32 %v883, %v925
  %v940 = vmul.f32 %v884, %v925
  %v941 = vmul.f32 %v885, %v925
  %v942 = vmul.f32 %v886, %v925
  %v943 = vmul.f32 %v887, %v910
  %v944 = vmul.f32 %v888, %v910
  %v945 = vmul.f32 %v889, %v910
  %v946 = vmul.f32 %v890, %v910
  %v947 = vmul.f32 %v891, %v915
  %v948 = vmul.f32 %v892, %v915
  %v949 = vmul.f32 %v893, %v915
  %v950 = vmul.f32 %v894, %v915
  %v951 = vmul.f32 %v895, %v920
  %v952 = vmul.f32 %v896, %v920
  %v953 = vmul.f32 %v897, %v920
  %v954 = vmul.f32 %v898, %v920
  %v955 = vmul.f32 %v899, %v925
  %v956 = vmul.f32 %v900, %v925
  %v957 = vmul.f32 %v901, %v925
  %v958 = vmul.f32 %v902, %v925
  %v959 = vld [vmem:[%s5] sm:$0xff]
  %v960 = vld [vmem:[%s5 + $0x8] sm:$0xff]
  %v961 = vld [vmem:[%s5 + $0x10] sm:$0xff]
  %v962 = vld [vmem:[%s5 + $0x18] sm:$0xff]
  %964 = vset.pattern.permute.xlu0 0
  %965 = vperm.xlu0 %964, %v959
  %v966 = vpop.permute.xlu0 %965
  %969 = vset.pattern.permute.xlu0 0
  %970 = vperm.xlu0 %969, %v960
  %v971 = vpop.permute.xlu0 %970
  %974 = vset.pattern.permute.xlu0 0
  %975 = vperm.xlu0 %974, %v961
  %v976 = vpop.permute.xlu0 %975
  %979 = vset.pattern.permute.xlu0 0
  %980 = vperm.xlu0 %979, %v962
  %v981 = vpop.permute.xlu0 %980
  %v983 = vadd.f32 %v927, %v966
  %v984 = vadd.f32 %v928, %v966
  %v985 = vadd.f32 %v929, %v966
  %v986 = vadd.f32 %v930, %v966
  %v987 = vadd.f32 %v931, %v971
  %v988 = vadd.f32 %v932, %v971
  %v989 = vadd.f32 %v933, %v971
  %v990 = vadd.f32 %v934, %v971
  %v991 = vadd.f32 %v935, %v976
  %v992 = vadd.f32 %v936, %v976
  %v993 = vadd.f32 %v937, %v976
  %v994 = vadd.f32 %v938, %v976
  %v995 = vadd.f32 %v939, %v981
  %v996 = vadd.f32 %v940, %v981
  %v997 = vadd.f32 %v941, %v981
  %v998 = vadd.f32 %v942, %v981
  %v999 = vadd.f32 %v943, %v966
  %v1000 = vadd.f32 %v944, %v966
  %v1001 = vadd.f32 %v945, %v966
  %v1002 = vadd.f32 %v946, %v966
  %v1003 = vadd.f32 %v947, %v971
  %v1004 = vadd.f32 %v948, %v971
  %v1005 = vadd.f32 %v949, %v971
  %v1006 = vadd.f32 %v950, %v971
  %v1007 = vadd.f32 %v951, %v976
  %v1008 = vadd.f32 %v952, %v976
  %v1009 = vadd.f32 %v953, %v976
  %v1010 = vadd.f32 %v954, %v976
  %v1011 = vadd.f32 %v955, %v981
  %v1012 = vadd.f32 %v956, %v981
  %v1013 = vadd.f32 %v957, %v981
  %v1014 = vadd.f32 %v958, %v981
  %v1015 = vld [vmem:[%s0] sm:$0xff]
  %v1016 = vld [vmem:[%s0 + $0x8] sm:$0xff]
  %v1017 = vld [vmem:[%s0 + $0x10] sm:$0xff]
  %v1018 = vld [vmem:[%s0 + $0x18] sm:$0xff]
  %v1019 = vld [vmem:[%s0 + $0x20] sm:$0xff]
  %v1020 = vld [vmem:[%s0 + $0x28] sm:$0xff]
  %v1021 = vld [vmem:[%s0 + $0x30] sm:$0xff]
  %v1022 = vld [vmem:[%s0 + $0x38] sm:$0xff]
  %v1023 = vld [vmem:[%s0 + $0x40] sm:$0xff]
  %v1024 = vld [vmem:[%s0 + $0x48] sm:$0xff]
  %v1025 = vld [vmem:[%s0 + $0x50] sm:$0xff]
  %v1026 = vld [vmem:[%s0 + $0x58] sm:$0xff]
  %v1027 = vld [vmem:[%s0 + $0x60] sm:$0xff]
  %v1028 = vld [vmem:[%s0 + $0x68] sm:$0xff]
  %v1029 = vld [vmem:[%s0 + $0x70] sm:$0xff]
  %v1030 = vld [vmem:[%s0 + $0x78] sm:$0xff]
  %v1031 = vld [vmem:[%s0 + $0x80] sm:$0xff]
  %v1032 = vld [vmem:[%s0 + $0x88] sm:$0xff]
  %v1033 = vld [vmem:[%s0 + $0x90] sm:$0xff]
  %v1034 = vld [vmem:[%s0 + $0x98] sm:$0xff]
  %v1035 = vld [vmem:[%s0 + $0xa0] sm:$0xff]
  %v1036 = vld [vmem:[%s0 + $0xa8] sm:$0xff]
  %v1037 = vld [vmem:[%s0 + $0xb0] sm:$0xff]
  %v1038 = vld [vmem:[%s0 + $0xb8] sm:$0xff]
  %v1039 = vld [vmem:[%s0 + $0xc0] sm:$0xff]
  %v1040 = vld [vmem:[%s0 + $0xc8] sm:$0xff]
  %v1041 = vld [vmem:[%s0 + $0xd0] sm:$0xff]
  %v1042 = vld [vmem:[%s0 + $0xd8] sm:$0xff]
  %v1043 = vld [vmem:[%s0 + $0xe0] sm:$0xff]
  %v1044 = vld [vmem:[%s0 + $0xe8] sm:$0xff]
  %v1045 = vld [vmem:[%s0 + $0xf0] sm:$0xff]
  %v1046 = vld [vmem:[%s0 + $0xf8] sm:$0xff]
  %v1047 = vadd.f32 %v1015, %v983
  %v1048 = vadd.f32 %v1016, %v984
  %v1049 = vadd.f32 %v1017, %v985
  %v1050 = vadd.f32 %v1018, %v986
  %v1051 = vadd.f32 %v1019, %v987
  %v1052 = vadd.f32 %v1020, %v988
  %v1053 = vadd.f32 %v1021, %v989
  %v1054 = vadd.f32 %v1022, %v990
  %v1055 = vadd.f32 %v1023, %v991
  %v1056 = vadd.f32 %v1024, %v992
  %v1057 = vadd.f32 %v1025, %v993
  %v1058 = vadd.f32 %v1026, %v994
  %v1059 = vadd.f32 %v1027, %v995
  %v1060 = vadd.f32 %v1028, %v996
  %v1061 = vadd.f32 %v1029, %v997
  %v1062 = vadd.f32 %v1030, %v998
  %v1063 = vadd.f32 %v1031, %v999
  %v1064 = vadd.f32 %v1032, %v1000
  %v1065 = vadd.f32 %v1033, %v1001
  %v1066 = vadd.f32 %v1034, %v1002
  %v1067 = vadd.f32 %v1035, %v1003
  %v1068 = vadd.f32 %v1036, %v1004
  %v1069 = vadd.f32 %v1037, %v1005
  %v1070 = vadd.f32 %v1038, %v1006
  %v1071 = vadd.f32 %v1039, %v1007
  %v1072 = vadd.f32 %v1040, %v1008
  %v1073 = vadd.f32 %v1041, %v1009
  %v1074 = vadd.f32 %v1042, %v1010
  %v1075 = vadd.f32 %v1043, %v1011
  %v1076 = vadd.f32 %v1044, %v1012
  %v1077 = vadd.f32 %v1045, %v1013
  %v1078 = vadd.f32 %v1046, %v1014
  %1079 = vst [vmem:[%s8] sm:$0xff] %v1047
  %1080 = vst [vmem:[%s8 + $0x8] sm:$0xff] %v1048
  %1081 = vst [vmem:[%s8 + $0x10] sm:$0xff] %v1049
  %1082 = vst [vmem:[%s8 + $0x18] sm:$0xff] %v1050
  %1083 = vst [vmem:[%s8 + $0x20] sm:$0xff] %v1051
  %1084 = vst [vmem:[%s8 + $0x28] sm:$0xff] %v1052
  %1085 = vst [vmem:[%s8 + $0x30] sm:$0xff] %v1053
  %1086 = vst [vmem:[%s8 + $0x38] sm:$0xff] %v1054
  %1087 = vst [vmem:[%s8 + $0x40] sm:$0xff] %v1055
  %1088 = vst [vmem:[%s8 + $0x48] sm:$0xff] %v1056
  %1089 = vst [vmem:[%s8 + $0x50] sm:$0xff] %v1057
  %1090 = vst [vmem:[%s8 + $0x58] sm:$0xff] %v1058
  %1091 = vst [vmem:[%s8 + $0x60] sm:$0xff] %v1059
  %1092 = vst [vmem:[%s8 + $0x68] sm:$0xff] %v1060
  %1093 = vst [vmem:[%s8 + $0x70] sm:$0xff] %v1061
  %1094 = vst [vmem:[%s8 + $0x78] sm:$0xff] %v1062
  %1095 = vst [vmem:[%s8 + $0x80] sm:$0xff] %v1063
  %1096 = vst [vmem:[%s8 + $0x88] sm:$0xff] %v1064
  %1097 = vst [vmem:[%s8 + $0x90] sm:$0xff] %v1065
  %1098 = vst [vmem:[%s8 + $0x98] sm:$0xff] %v1066
  %1099 = vst [vmem:[%s8 + $0xa0] sm:$0xff] %v1067
  %1100 = vst [vmem:[%s8 + $0xa8] sm:$0xff] %v1068
  %1101 = vst [vmem:[%s8 + $0xb0] sm:$0xff] %v1069
  %1102 = vst [vmem:[%s8 + $0xb8] sm:$0xff] %v1070
  %1103 = vst [vmem:[%s8 + $0xc0] sm:$0xff] %v1071
  %1104 = vst [vmem:[%s8 + $0xc8] sm:$0xff] %v1072
  %1105 = vst [vmem:[%s8 + $0xd0] sm:$0xff] %v1073
  %1106 = vst [vmem:[%s8 + $0xd8] sm:$0xff] %v1074
  %1107 = vst [vmem:[%s8 + $0xe0] sm:$0xff] %v1075
  %1108 = vst [vmem:[%s8 + $0xe8] sm:$0xff] %v1076
  %1109 = vst [vmem:[%s8 + $0xf0] sm:$0xff] %v1077
  %1110 = vst [vmem:[%s8 + $0xf8] sm:$0xff] %v1078
  %v1111 = vadd.f32 %v1047, %v1048
  %v1112 = vadd.f32 %v1111, %v1049
  %v1113 = vadd.f32 %v1112, %v1050
  %1114 = vadd.xlane.f32.xlu0 %v1113
  %v1115 = vpop.xlane.xlu0 %1114
  %v1116 = vadd.f32 %v1051, %v1052
  %v1117 = vadd.f32 %v1116, %v1053
  %v1118 = vadd.f32 %v1117, %v1054
  %1119 = vadd.xlane.f32.xlu0 %v1118
  %v1120 = vpop.xlane.xlu0 %1119
  %v1121 = vadd.f32 %v1055, %v1056
  %v1122 = vadd.f32 %v1121, %v1057
  %v1123 = vadd.f32 %v1122, %v1058
  %1124 = vadd.xlane.f32.xlu0 %v1123
  %v1125 = vpop.xlane.xlu0 %1124
  %v1126 = vadd.f32 %v1059, %v1060
  %v1127 = vadd.f32 %v1126, %v1061
  %v1128 = vadd.f32 %v1127, %v1062
  %1129 = vadd.xlane.f32.xlu0 %v1128
  %v1130 = vpop.xlane.xlu0 %1129
  %v1131 = vadd.f32 %v1063, %v1064
  %v1132 = vadd.f32 %v1131, %v1065
  %v1133 = vadd.f32 %v1132, %v1066
  %1134 = vadd.xlane.f32.xlu0 %v1133
  %v1135 = vpop.xlane.xlu0 %1134
  %v1136 = vadd.f32 %v1067, %v1068
  %v1137 = vadd.f32 %v1136, %v1069
  %v1138 = vadd.f32 %v1137, %v1070
  %1139 = vadd.xlane.f32.xlu0 %v1138
  %v1140 = vpop.xlane.xlu0 %1139
  %v1141 = vadd.f32 %v1071, %v1072
  %v1142 = vadd.f32 %v1141, %v1073
  %v1143 = vadd.f32 %v1142, %v1074
  %1144 = vadd.xlane.f32.xlu0 %v1143
  %v1145 = vpop.xlane.xlu0 %1144
  %v1146 = vadd.f32 %v1075, %v1076
  %v1147 = vadd.f32 %v1146, %v1077
  %v1148 = vadd.f32 %v1147, %v1078
  %1149 = vadd.xlane.f32.xlu0 %v1148
  %v1150 = vpop.xlane.xlu0 %1149
  %v1151 = vrcp.pop 512.0
  %v1152 = vmul.f32 %v1115, %v1151
  %v1153 = vmul.f32 %v1120, %v1151
  %v1154 = vmul.f32 %v1125, %v1151
  %v1155 = vmul.f32 %v1130, %v1151
  %v1156 = vmul.f32 %v1135, %v1151
  %v1157 = vmul.f32 %v1140, %v1151
  %v1158 = vmul.f32 %v1145, %v1151
  %v1159 = vmul.f32 %v1150, %v1151
  %v1160 = vmax.f32 %v1047, %v1048
  %v1161 = vmax.f32 %v1160, %v1049
  %v1162 = vmax.f32 %v1161, %v1050
  %1163 = vmax.xlane.f32.xlu0 %v1162
  %v1164 = vpop.xlane.xlu0 %1163
  %v1165 = vmax.f32 %v1051, %v1052
  %v1166 = vmax.f32 %v1165, %v1053
  %v1167 = vmax.f32 %v1166, %v1054
  %1168 = vmax.xlane.f32.xlu0 %v1167
  %v1169 = vpop.xlane.xlu0 %1168
  %v1170 = vmax.f32 %v1055, %v1056
  %v1171 = vmax.f32 %v1170, %v1057
  %v1172 = vmax.f32 %v1171, %v1058
  %1173 = vmax.xlane.f32.xlu0 %v1172
  %v1174 = vpop.xlane.xlu0 %1173
  %v1175 = vmax.f32 %v1059, %v1060
  %v1176 = vmax.f32 %v1175, %v1061
  %v1177 = vmax.f32 %v1176, %v1062
  %1178 = vmax.xlane.f32.xlu0 %v1177
  %v1179 = vpop.xlane.xlu0 %1178
  %v1180 = vmax.f32 %v1063, %v1064
  %v1181 = vmax.f32 %v1180, %v1065
  %v1182 = vmax.f32 %v1181, %v1066
  %1183 = vmax.xlane.f32.xlu0 %v1182
  %v1184 = vpop.xlane.xlu0 %1183
  %v1185 = vmax.f32 %v1067, %v1068
  %v1186 = vmax.f32 %v1185, %v1069
  %v1187 = vmax.f32 %v1186, %v1070
  %1188 = vmax.xlane.f32.xlu0 %v1187
  %v1189 = vpop.xlane.xlu0 %1188
  %v1190 = vmax.f32 %v1071, %v1072
  %v1191 = vmax.f32 %v1190, %v1073
  %v1192 = vmax.f32 %v1191, %v1074
  %1193 = vmax.xlane.f32.xlu0 %v1192
  %v1194 = vpop.xlane.xlu0 %1193
  %v1195 = vmax.f32 %v1075, %v1076
  %v1196 = vmax.f32 %v1195, %v1077
  %v1197 = vmax.f32 %v1196, %v1078
  %1198 = vmax.xlane.f32.xlu0 %v1197
  %v1199 = vpop.xlane.xlu0 %1198
  %v1200 = vld [vmem:[%s6] sm:$0xff]
  %v1201 = vld [vmem:[%s6 + $0x8] sm:$0xff]
  %v1202 = vld [vmem:[%s6 + $0x10] sm:$0xff]
  %v1203 = vld [vmem:[%s6 + $0x18] sm:$0xff]
  %v1204 = vmul.f32 %v1152, %v1200
  %v1205 = vmul.f32 %v1153, %v1201
  %v1206 = vmul.f32 %v1154, %v1202
  %v1207 = vmul.f32 %v1155, %v1203
  %v1208 = vmul.f32 %v1156, %v1200
  %v1209 = vmul.f32 %v1157, %v1201
  %v1210 = vmul.f32 %v1158, %v1202
  %v1211 = vmul.f32 %v1159, %v1203
  %vm1212 = vcmask 15360
  %v1213 = vsel %vm1212, %v1204, 0.0
  %v1214 = vsel %vm1212, %v1205, 0.0
  %v1215 = vadd.f32 %v1213, %v1214
  %v1216 = vsel %vm1212, %v1206, 0.0
  %v1217 = vadd.f32 %v1215, %v1216
  %v1218 = vsel %vm1212, %v1207, 0.0
  %v1219 = vadd.f32 %v1217, %v1218
  %v1220 = vrot.slane %v1219, 4
  %v1221 = vadd.f32 %v1219, %v1220
  %v1222 = vrot.slane %v1221, 2
  %v1223 = vadd.f32 %v1221, %v1222
  %v1224 = vrot.slane %v1223, 1
  %v1225 = vadd.f32 %v1223, %v1224
  %v1226 = vsel %vm1212, %v1208, 0.0
  %v1227 = vsel %vm1212, %v1209, 0.0
  %v1228 = vadd.f32 %v1226, %v1227
  %v1229 = vsel %vm1212, %v1210, 0.0
  %v1230 = vadd.f32 %v1228, %v1229
  %v1231 = vsel %vm1212, %v1211, 0.0
  %v1232 = vadd.f32 %v1230, %v1231
  %v1233 = vrot.slane %v1232, 4
  %v1234 = vadd.f32 %v1232, %v1233
  %v1235 = vrot.slane %v1234, 2
  %v1236 = vadd.f32 %v1234, %v1235
  %v1237 = vrot.slane %v1236, 1
  %v1238 = vadd.f32 %v1236, %v1237
  %v1239 = vmax.f32 %v1225, 0.0
  %v1240 = vmax.f32 %v1238, 0.0
  %1242 = vbcast.lane.b32.xlu0 %v1239, 256
  %v1243 = vpop.permute.xlu0 %1242
  %1245 = vbcast.lane.b32.xlu0 %v1240, 256
  %v1246 = vpop.permute.xlu0 %1245
  %v1247 = vld [vmem:[%s7] sm:$0x3]
  %v1248 = vmul.f32 %v1243, %v1247
  %v1249 = vmul.f32 %v1246, %v1247
  %vm1250 = vcmask 254976
  %v1251 = vsel %vm1250, %v1248, 0.0
  %v1252 = vrot.slane %v1251, 4
  %v1253 = vadd.f32 %v1251, %v1252
  %v1254 = vrot.slane %v1253, 2
  %v1255 = vadd.f32 %v1253, %v1254
  %v1256 = vrot.slane %v1255, 1
  %v1257 = vadd.f32 %v1255, %v1256
  %v1258 = vsel %vm1250, %v1249, 0.0
  %v1259 = vrot.slane %v1258, 4
  %v1260 = vadd.f32 %v1258, %v1259
  %v1261 = vrot.slane %v1260, 2
  %v1262 = vadd.f32 %v1260, %v1261
  %v1263 = vrot.slane %v1262, 1
  %v1264 = vadd.f32 %v1262, %v1263
  %v1265 = vmul.f32 %v1164, %v1200
  %v1266 = vmul.f32 %v1169, %v1201
  %v1267 = vmul.f32 %v1174, %v1202
  %v1268 = vmul.f32 %v1179, %v1203
  %v1269 = vmul.f32 %v1184, %v1200
  %v1270 = vmul.f32 %v1189, %v1201
  %v1271 = vmul.f32 %v1194, %v1202
  %v1272 = vmul.f32 %v1199, %v1203
  %v1273 = vsel %vm1212, %v1265, 0.0
  %v1274 = vsel %vm1212, %v1266, 0.0
  %v1275 = vadd.f32 %v1273, %v1274
  %v1276 = vsel %vm1212, %v1267, 0.0
  %v1277 = vadd.f32 %v1275, %v1276
  %v1278 = vsel %vm1212, %v1268, 0.0
  %v1279 = vadd.f32 %v1277, %v1278
  %v1280 = vrot.slane %v1279, 4
  %v1281 = vadd.f32 %v1279, %v1280
  %v1282 = vrot.slane %v1281, 2
  %v1283 = vadd.f32 %v1281, %v1282
  %v1284 = vrot.slane %v1283, 1
  %v1285 = vadd.f32 %v1283, %v1284
  %v1286 = vsel %vm1212, %v1269, 0.0
  %v1287 = vsel %vm1212, %v1270, 0.0
  %v1288 = vadd.f32 %v1286, %v1287
  %v1289 = vsel %vm1212, %v1271, 0.0
  %v1290 = vadd.f32 %v1288, %v1289
  %v1291 = vsel %vm1212, %v1272, 0.0
  %v1292 = vadd.f32 %v1290, %v1291
  %v1293 = vrot.slane %v1292, 4
  %v1294 = vadd.f32 %v1292, %v1293
  %v1295 = vrot.slane %v1294, 2
  %v1296 = vadd.f32 %v1294, %v1295
  %v1297 = vrot.slane %v1296, 1
  %v1298 = vadd.f32 %v1296, %v1297
  %v1299 = vmax.f32 %v1285, 0.0
  %v1300 = vmax.f32 %v1298, 0.0
  %1302 = vbcast.lane.b32.xlu0 %v1299, 256
  %v1303 = vpop.permute.xlu0 %1302
  %1305 = vbcast.lane.b32.xlu0 %v1300, 256
  %v1306 = vpop.permute.xlu0 %1305
  %v1307 = vmul.f32 %v1303, %v1247
  %v1308 = vmul.f32 %v1306, %v1247
  %v1309 = vsel %vm1250, %v1307, 0.0
  %v1310 = vrot.slane %v1309, 4
  %v1311 = vadd.f32 %v1309, %v1310
  %v1312 = vrot.slane %v1311, 2
  %v1313 = vadd.f32 %v1311, %v1312
  %v1314 = vrot.slane %v1313, 1
  %v1315 = vadd.f32 %v1313, %v1314
  %v1316 = vsel %vm1250, %v1308, 0.0
  %v1317 = vrot.slane %v1316, 4
  %v1318 = vadd.f32 %v1316, %v1317
  %v1319 = vrot.slane %v1318, 2
  %v1320 = vadd.f32 %v1318, %v1319
  %v1321 = vrot.slane %v1320, 1
  %v1322 = vadd.f32 %v1320, %v1321
  %v1323 = vadd.f32 %v1257, %v1315
  %v1324 = vadd.f32 %v1264, %v1322
  %v1325 = vmul.f32 %v1323, 0.5
  %v1326 = vmul.f32 %v1324, 0.5
  %v1327 = vtanh.pop %v1325
  %v1328 = vtanh.pop %v1326
  %v1329 = vadd.f32 %v1327, 1.0
  %v1330 = vadd.f32 %v1328, 1.0
  %v1331 = vmul.f32 %v1329, 0.5
  %v1332 = vmul.f32 %v1330, 0.5
  %1334 = vbcast.lane.b32.xlu0 %v1331, 256
  %v1335 = vpop.permute.xlu0 %1334
  %s1337 = sor.u32 256, 8
  %1338 = vbcast.lane.b32.xlu0 %v1331, %s1337
  %v1339 = vpop.permute.xlu0 %1338
  %s1341 = sor.u32 256, 16
  %1342 = vbcast.lane.b32.xlu0 %v1331, %s1341
  %v1343 = vpop.permute.xlu0 %1342
  %s1345 = sor.u32 256, 24
  %1346 = vbcast.lane.b32.xlu0 %v1331, %s1345
  %v1347 = vpop.permute.xlu0 %1346
  %1349 = vbcast.lane.b32.xlu0 %v1332, 256
  %v1350 = vpop.permute.xlu0 %1349
  %s1352 = sor.u32 256, 8
  %1353 = vbcast.lane.b32.xlu0 %v1332, %s1352
  %v1354 = vpop.permute.xlu0 %1353
  %s1356 = sor.u32 256, 16
  %1357 = vbcast.lane.b32.xlu0 %v1332, %s1356
  %v1358 = vpop.permute.xlu0 %1357
  %s1360 = sor.u32 256, 24
  %1361 = vbcast.lane.b32.xlu0 %v1332, %s1360
  %v1362 = vpop.permute.xlu0 %1361
  %vm1363 = vcmask 7168
  %1364 = vst.msk [vmem:[%s9] sm:$0xff] %vm1363, %v1335
  %1365 = vst.msk [vmem:[%s9 + $0x8] sm:$0xff] %vm1363, %v1339
  %1366 = vst.msk [vmem:[%s9 + $0x10] sm:$0xff] %vm1363, %v1343
  %1367 = vst.msk [vmem:[%s9 + $0x18] sm:$0xff] %vm1363, %v1347
  %1368 = vst.msk [vmem:[%s9 + $0x20] sm:$0xff] %vm1363, %v1350
  %1369 = vst.msk [vmem:[%s9 + $0x28] sm:$0xff] %vm1363, %v1354
  %1370 = vst.msk [vmem:[%s9 + $0x30] sm:$0xff] %vm1363, %v1358
  %1371 = vst.msk [vmem:[%s9 + $0x38] sm:$0xff] %vm1363, %v1362
  %v1372 = vmul.f32 %v1335, %v1047
  %v1373 = vmul.f32 %v1335, %v1048
  %v1374 = vmul.f32 %v1335, %v1049
  %v1375 = vmul.f32 %v1335, %v1050
  %v1376 = vmul.f32 %v1339, %v1051
  %v1377 = vmul.f32 %v1339, %v1052
  %v1378 = vmul.f32 %v1339, %v1053
  %v1379 = vmul.f32 %v1339, %v1054
  %v1380 = vmul.f32 %v1343, %v1055
  %v1381 = vmul.f32 %v1343, %v1056
  %v1382 = vmul.f32 %v1343, %v1057
  %v1383 = vmul.f32 %v1343, %v1058
  %v1384 = vmul.f32 %v1347, %v1059
  %v1385 = vmul.f32 %v1347, %v1060
  %v1386 = vmul.f32 %v1347, %v1061
  %v1387 = vmul.f32 %v1347, %v1062
  %v1388 = vmul.f32 %v1350, %v1063
  %v1389 = vmul.f32 %v1350, %v1064
  %v1390 = vmul.f32 %v1350, %v1065
  %v1391 = vmul.f32 %v1350, %v1066
  %v1392 = vmul.f32 %v1354, %v1067
  %v1393 = vmul.f32 %v1354, %v1068
  %v1394 = vmul.f32 %v1354, %v1069
  %v1395 = vmul.f32 %v1354, %v1070
  %v1396 = vmul.f32 %v1358, %v1071
  %v1397 = vmul.f32 %v1358, %v1072
  %v1398 = vmul.f32 %v1358, %v1073
  %v1399 = vmul.f32 %v1358, %v1074
  %v1400 = vmul.f32 %v1362, %v1075
  %v1401 = vmul.f32 %v1362, %v1076
  %v1402 = vmul.f32 %v1362, %v1077
  %v1403 = vmul.f32 %v1362, %v1078
  %v1404 = vadd.f32 %v1372, %v1376
  %v1405 = vadd.f32 %v1404, %v1380
  %v1406 = vadd.f32 %v1405, %v1384
  %v1407 = vrot.slane %v1406, 4
  %v1408 = vadd.f32 %v1406, %v1407
  %v1409 = vrot.slane %v1408, 2
  %v1410 = vadd.f32 %v1408, %v1409
  %v1411 = vrot.slane %v1410, 1
  %v1412 = vadd.f32 %v1410, %v1411
  %v1413 = vadd.f32 %v1373, %v1377
  %v1414 = vadd.f32 %v1413, %v1381
  %v1415 = vadd.f32 %v1414, %v1385
  %v1416 = vrot.slane %v1415, 4
  %v1417 = vadd.f32 %v1415, %v1416
  %v1418 = vrot.slane %v1417, 2
  %v1419 = vadd.f32 %v1417, %v1418
  %v1420 = vrot.slane %v1419, 1
  %v1421 = vadd.f32 %v1419, %v1420
  %v1422 = vadd.f32 %v1374, %v1378
  %v1423 = vadd.f32 %v1422, %v1382
  %v1424 = vadd.f32 %v1423, %v1386
  %v1425 = vrot.slane %v1424, 4
  %v1426 = vadd.f32 %v1424, %v1425
  %v1427 = vrot.slane %v1426, 2
  %v1428 = vadd.f32 %v1426, %v1427
  %v1429 = vrot.slane %v1428, 1
  %v1430 = vadd.f32 %v1428, %v1429
  %v1431 = vadd.f32 %v1375, %v1379
  %v1432 = vadd.f32 %v1431, %v1383
  %v1433 = vadd.f32 %v1432, %v1387
  %v1434 = vrot.slane %v1433, 4
  %v1435 = vadd.f32 %v1433, %v1434
  %v1436 = vrot.slane %v1435, 2
  %v1437 = vadd.f32 %v1435, %v1436
  %v1438 = vrot.slane %v1437, 1
  %v1439 = vadd.f32 %v1437, %v1438
  %v1440 = vadd.f32 %v1388, %v1392
  %v1441 = vadd.f32 %v1440, %v1396
  %v1442 = vadd.f32 %v1441, %v1400
  %v1443 = vrot.slane %v1442, 4
  %v1444 = vadd.f32 %v1442, %v1443
  %v1445 = vrot.slane %v1444, 2
  %v1446 = vadd.f32 %v1444, %v1445
  %v1447 = vrot.slane %v1446, 1
  %v1448 = vadd.f32 %v1446, %v1447
  %v1449 = vadd.f32 %v1389, %v1393
  %v1450 = vadd.f32 %v1449, %v1397
  %v1451 = vadd.f32 %v1450, %v1401
  %v1452 = vrot.slane %v1451, 4
  %v1453 = vadd.f32 %v1451, %v1452
  %v1454 = vrot.slane %v1453, 2
  %v1455 = vadd.f32 %v1453, %v1454
  %v1456 = vrot.slane %v1455, 1
  %v1457 = vadd.f32 %v1455, %v1456
  %v1458 = vadd.f32 %v1390, %v1394
  %v1459 = vadd.f32 %v1458, %v1398
  %v1460 = vadd.f32 %v1459, %v1402
  %v1461 = vrot.slane %v1460, 4
  %v1462 = vadd.f32 %v1460, %v1461
  %v1463 = vrot.slane %v1462, 2
  %v1464 = vadd.f32 %v1462, %v1463
  %v1465 = vrot.slane %v1464, 1
  %v1466 = vadd.f32 %v1464, %v1465
  %v1467 = vadd.f32 %v1391, %v1395
  %v1468 = vadd.f32 %v1467, %v1399
  %v1469 = vadd.f32 %v1468, %v1403
  %v1470 = vrot.slane %v1469, 4
  %v1471 = vadd.f32 %v1469, %v1470
  %v1472 = vrot.slane %v1471, 2
  %v1473 = vadd.f32 %v1471, %v1472
  %v1474 = vrot.slane %v1473, 1
  %v1475 = vadd.f32 %v1473, %v1474
  %v1476 = vrcp.pop 32.0
  %v1477 = vmul.f32 %v1412, %v1476
  %v1478 = vmul.f32 %v1421, %v1476
  %v1479 = vmul.f32 %v1430, %v1476
  %v1480 = vmul.f32 %v1439, %v1476
  %v1481 = vmul.f32 %v1448, %v1476
  %v1482 = vmul.f32 %v1457, %v1476
  %v1483 = vmul.f32 %v1466, %v1476
  %v1484 = vmul.f32 %v1475, %v1476
  %v1485 = vmax.f32 %v1372, %v1376
  %v1486 = vmax.f32 %v1485, %v1380
  %v1487 = vmax.f32 %v1486, %v1384
  %v1488 = vrot.slane %v1487, 4
  %v1489 = vmax.f32 %v1487, %v1488
  %v1490 = vrot.slane %v1489, 2
  %v1491 = vmax.f32 %v1489, %v1490
  %v1492 = vrot.slane %v1491, 1
  %v1493 = vmax.f32 %v1491, %v1492
  %v1494 = vmax.f32 %v1373, %v1377
  %v1495 = vmax.f32 %v1494, %v1381
  %v1496 = vmax.f32 %v1495, %v1385
  %v1497 = vrot.slane %v1496, 4
  %v1498 = vmax.f32 %v1496, %v1497
  %v1499 = vrot.slane %v1498, 2
  %v1500 = vmax.f32 %v1498, %v1499
  %v1501 = vrot.slane %v1500, 1
  %v1502 = vmax.f32 %v1500, %v1501
  %v1503 = vmax.f32 %v1374, %v1378
  %v1504 = vmax.f32 %v1503, %v1382
  %v1505 = vmax.f32 %v1504, %v1386
  %v1506 = vrot.slane %v1505, 4
  %v1507 = vmax.f32 %v1505, %v1506
  %v1508 = vrot.slane %v1507, 2
  %v1509 = vmax.f32 %v1507, %v1508
  %v1510 = vrot.slane %v1509, 1
  %v1511 = vmax.f32 %v1509, %v1510
  %v1512 = vmax.f32 %v1375, %v1379
  %v1513 = vmax.f32 %v1512, %v1383
  %v1514 = vmax.f32 %v1513, %v1387
  %v1515 = vrot.slane %v1514, 4
  %v1516 = vmax.f32 %v1514, %v1515
  %v1517 = vrot.slane %v1516, 2
  %v1518 = vmax.f32 %v1516, %v1517
  %v1519 = vrot.slane %v1518, 1
  %v1520 = vmax.f32 %v1518, %v1519
  %v1521 = vmax.f32 %v1388, %v1392
  %v1522 = vmax.f32 %v1521, %v1396
  %v1523 = vmax.f32 %v1522, %v1400
  %v1524 = vrot.slane %v1523, 4
  %v1525 = vmax.f32 %v1523, %v1524
  %v1526 = vrot.slane %v1525, 2
  %v1527 = vmax.f32 %v1525, %v1526
  %v1528 = vrot.slane %v1527, 1
  %v1529 = vmax.f32 %v1527, %v1528
  %v1530 = vmax.f32 %v1389, %v1393
  %v1531 = vmax.f32 %v1530, %v1397
  %v1532 = vmax.f32 %v1531, %v1401
  %v1533 = vrot.slane %v1532, 4
  %v1534 = vmax.f32 %v1532, %v1533
  %v1535 = vrot.slane %v1534, 2
  %v1536 = vmax.f32 %v1534, %v1535
  %v1537 = vrot.slane %v1536, 1
  %v1538 = vmax.f32 %v1536, %v1537
  %v1539 = vmax.f32 %v1390, %v1394
  %v1540 = vmax.f32 %v1539, %v1398
  %v1541 = vmax.f32 %v1540, %v1402
  %v1542 = vrot.slane %v1541, 4
  %v1543 = vmax.f32 %v1541, %v1542
  %v1544 = vrot.slane %v1543, 2
  %v1545 = vmax.f32 %v1543, %v1544
  %v1546 = vrot.slane %v1545, 1
  %v1547 = vmax.f32 %v1545, %v1546
  %v1548 = vmax.f32 %v1391, %v1395
  %v1549 = vmax.f32 %v1548, %v1399
  %v1550 = vmax.f32 %v1549, %v1403
  %v1551 = vrot.slane %v1550, 4
  %v1552 = vmax.f32 %v1550, %v1551
  %v1553 = vrot.slane %v1552, 2
  %v1554 = vmax.f32 %v1552, %v1553
  %v1555 = vrot.slane %v1554, 1
  %v1556 = vmax.f32 %v1554, %v1555
  %vm1557 = vcmask 1040384
  %v1558 = vsel %vm1557, %v1477, %v1493
  %v1559 = vsel %vm1557, %v1478, %v1502
  %v1560 = vsel %vm1557, %v1479, %v1511
  %v1561 = vsel %vm1557, %v1480, %v1520
  %v1562 = vsel %vm1557, %v1481, %v1529
  %v1563 = vsel %vm1557, %v1482, %v1538
  %v1564 = vsel %vm1557, %v1483, %v1547
  %v1565 = vsel %vm1557, %v1484, %v1556
  %v1566 = vpack.c.bf16 %v1558, %v1558
  %v1567 = vpack.c.bf16 %v1559, %v1559
  %v1568 = vpack.c.bf16 %v1560, %v1560
  %v1569 = vpack.c.bf16 %v1561, %v1561
  %v1570 = vpack.c.bf16 %v1562, %v1562
  %v1571 = vpack.c.bf16 %v1563, %v1563
  %v1572 = vpack.c.bf16 %v1564, %v1564
  %v1573 = vpack.c.bf16 %v1565, %v1565
  %v1582 = vcombine.low %v1566, %v1567
  %v1583 = vcombine.low %v1568, %v1569
  %v1585 = vunpack.c.l.s4 1966171168
  %v1586 = vunpack.c.0.s8 %v1585
  %v1587 = vlaneseq
  %v1588 = vshrl.u32 %v1587, 7
  %v1589 = vsub.s32 %v1586, %v1588
  %v1590 = vrot.slane %v1582, %v1589
  %v1592 = vunpack.c.l.s4 1966171168
  %v1593 = vunpack.c.0.s8 %v1592
  %v1594 = vlaneseq
  %v1595 = vshrl.u32 %v1594, 7
  %v1596 = vsub.s32 %v1593, %v1595
  %v1597 = vrot.slane %v1583, %v1596
  %v1598 = vcombine.low %v1590, %v1597
  %v1600 = vunpack.c.l.s4 1966171168
  %v1601 = vunpack.c.0.s8 %v1600
  %v1602 = vlaneseq
  %v1603 = vshrl.u32 %v1602, 7
  %v1604 = vsub.s32 %v1601, %v1603
  %v1605 = vrot.slane %v1598, %v1604
  %v1606 = vcombine.low %v1570, %v1571
  %v1607 = vcombine.low %v1572, %v1573
  %v1609 = vunpack.c.l.s4 1966171168
  %v1610 = vunpack.c.0.s8 %v1609
  %v1611 = vlaneseq
  %v1612 = vshrl.u32 %v1611, 7
  %v1613 = vsub.s32 %v1610, %v1612
  %v1614 = vrot.slane %v1606, %v1613
  %v1616 = vunpack.c.l.s4 1966171168
  %v1617 = vunpack.c.0.s8 %v1616
  %v1618 = vlaneseq
  %v1619 = vshrl.u32 %v1618, 7
  %v1620 = vsub.s32 %v1617, %v1619
  %v1621 = vrot.slane %v1607, %v1620
  %v1622 = vcombine.low %v1614, %v1621
  %v1624 = vunpack.c.l.s4 1966171168
  %v1625 = vunpack.c.0.s8 %v1624
  %v1626 = vlaneseq
  %v1627 = vshrl.u32 %v1626, 7
  %v1628 = vsub.s32 %v1625, %v1627
  %v1629 = vrot.slane %v1622, %v1628
  %1632 = vst [vmem:[%s10] sm:$0xf] %v1605
  %1633 = vst [vmem:[%s10 + $0x4] sm:$0xf] %v1629
  // Predicated region
  $region34: #{encoder4_forward.8} parent=0 // pred_check
    _
  $region35: #{encoder4_forward.8} parent=0 // pred_check_branch
    %1635 = sbr.rel (0) target = $region37
  $region36: #{encoder4_forward.8} parent=0 // pred_region
    _
  $region37: #{encoder4_forward.8} parent=0 // pred_fallthru
    _
  // Predicated region
  $region38: #{encoder4_forward.8} parent=0 // pred_check
    _
  $region39: #{encoder4_forward.8} parent=0 // pred_check_branch
    %1637 = sbr.rel (0) target = $region41
  $region40: #{encoder4_forward.8} parent=0 // pred_region
    _
  $region41: #{encoder4_forward.8} parent=0 // pred_fallthru
    _
  // Predicated region
  $region42: #{encoder4_forward.8} parent=0 // pred_check
    _
  $region43: #{encoder4_forward.8} parent=0 // pred_check_branch
    %1639 = sbr.rel (0) target = $region45
  $region44: #{encoder4_forward.8} parent=0 // pred_region
    _
  $region45: #{encoder4_forward.8} parent=0 // pred_fallthru
    _
  // Predicated region
  $region46: #{encoder4_forward.8} parent=0 // pred_check
    _
  $region47: #{encoder4_forward.8} parent=0 // pred_check_branch
    %1641 = sbr.rel (0) target = $region49
  $region48: #{encoder4_forward.8} parent=0 // pred_region
    _
  $region49: #{encoder4_forward.8} parent=0 // pred_fallthru
    _
  // Predicated region
  $region50: #{encoder4_forward.8} parent=0 // pred_check
    _
  $region51: #{encoder4_forward.8} parent=0 // pred_check_branch
    %1643 = sbr.rel (0) target = $region53
  $region52: #{encoder4_forward.8} parent=0 // pred_region
    _
  $region53: #{encoder4_forward.8} parent=0 // pred_fallthru
    _
  // Predicated region
  $region54: #{encoder4_forward.8} parent=0 // pred_check
    _
  $region55: #{encoder4_forward.8} parent=0 // pred_check_branch
    %1645 = sbr.rel (0) target = $region57
  $region56: #{encoder4_forward.8} parent=0 // pred_region
    _
  $region57: #{encoder4_forward.8} parent=0 // pred_fallthru
    _

// kernel: encoder4_forward.9
$region0: #{encoder4_forward.9}
  #allocation0 [shape = 'u32[]', space=smem, size = 0x4, offset = 0x4, fixed_abs, tag = 'smem constant byte address 0x4 - core index']
  #allocation1 [shape = 'u32[144,128]{1,0:T(1,128)}', space=vmem, size = 0x12000, scoped, tag = 'internal scratch']
  %s0 = inlined_call_operand.vmem [shape: bf16[8,112], index: 0, kind: input, shape index: {}]
  %s1 = inlined_call_operand.vmem [shape: f32[2,32,512], index: 1, kind: input, shape index: {}]
  %s2 = inlined_call_operand.vmem [shape: f32[2,32,1], index: 2, kind: input, shape index: {}]
  %s3 = inlined_call_operand.vmem [shape: bf16[2,112,512], index: 3, kind: input, shape index: {}]
  %s4 = inlined_call_operand.vmem [shape: f32[2,32,512], index: 4, kind: output, shape index: {}]
  %s5 = sld [smem:[#allocation0]]
  $region49: #{encoder4_forward.9} parent=0
    _
  %s7 = ssub.s32 1, %s5
  %s8 = scalar_select 0, %s7, %s5
  loop: start=0, step=1, limit=4
  $region2: #{encoder4_forward.9} parent=0 // loop_pre_header
    _
  $region3: #{encoder4_forward.9} parent=0 // loop_header
    %s10 = sphi 0, %s14
    %p11 = scmp.ge.s32.totalorder %s10, 4
    %s18 = sphi 0, %s18
    %s20 = sphi 0, %s18
    %s21 = sphi 0, %s20
    %s35 = sphi 0, %s21
    %s41 = sphi 0, %s43
    %s44 = sphi 0, %s41
    %s45 = sphi 0, %s44
    %s61 = sphi 0, %s45
    %s67 = sphi 0, %s69
    %s70 = sphi 0, %s67
    %s71 = sphi 0, %s70
    %s87 = sphi 0, %s71
    %s93 = sphi 0, %s95
    %s96 = sphi 0, %s93
    %s97 = sphi 0, %s96
    %s113 = sphi 0, %s97
    %s119 = sphi 0, %s121
    %s122 = sphi 0, %s119
    %s123 = sphi 0, %s122
    %s139 = sphi 0, %s123
  $region4: #{encoder4_forward.9} parent=0 // loop_header_branch
    %13 = sbr.rel (%p11) target = $region8
  $region5: #{encoder4_forward.9} parent=0 // loop_body
    %s15 = ssub.s32 %s10, 1
    %s16 = ssub.s32 %s10, 2
    %s17 = sadd.s32 %s10, 1
    %s19 = sadd.s32 %s18, 1
    %p22 = scmp.eq.s32.totalorder %s10, 1
    %p23 = scmp.ne.s32.totalorder %s18, %s20
    %p24 = scmp.eq.s32.totalorder %s10, 0
    %p25 = por %p23, %p24
    %p26 = scmp.ne.s32.totalorder %s18, %s20
    %p27 = scmp.eq.s32.totalorder %s15, 1
    %p28 = por %p26, %p27
    %p29 = scmp.ne.s32.totalorder %s20, %s21
    %p30 = scmp.eq.s32.totalorder %s15, 0
    %p31 = por %p29, %p30
    %p32 = scmp.ne.s32.totalorder %s20, %s21
    %p33 = scmp.eq.s32.totalorder %s16, 1
    %p34 = por %p32, %p33
    %p36 = scmp.ne.s32.totalorder %s21, %s35
    %p37 = scmp.eq.s32.totalorder %s16, 0
    %p38 = por %p36, %p37
    %s39 = ssub.s32 %s10, %s17
    %p40 = scmp.eq.s32.totalorder %s39, 0
    %s42 = sadd.s32 %s41, 1
    %s43 = scalar_select %p40, %s41, %s42
    %p46 = pneg %p40
    %p47 = scmp.eq.s32.totalorder %s10, 1
    %p48 = por %p46, %p47
    %p49 = scmp.ne.s32.totalorder %s41, %s44
    %p50 = scmp.eq.s32.totalorder %s10, 0
    %p51 = por %p49, %p50
    %p52 = scmp.ne.s32.totalorder %s41, %s44
    %p53 = scmp.eq.s32.totalorder %s15, 1
    %p54 = por %p52, %p53
    %p55 = scmp.ne.s32.totalorder %s44, %s45
    %p56 = scmp.eq.s32.totalorder %s15, 0
    %p57 = por %p55, %p56
    %p58 = scmp.ne.s32.totalorder %s44, %s45
    %p59 = scmp.eq.s32.totalorder %s16, 1
    %p60 = por %p58, %p59
    %p62 = scmp.ne.s32.totalorder %s45, %s61
    %p63 = scmp.eq.s32.totalorder %s16, 0
    %p64 = por %p62, %p63
    %s65 = ssub.s32 %s10, %s17
    %p66 = scmp.eq.s32.totalorder %s65, 0
    %s68 = sadd.s32 %s67, 1
    %s69 = scalar_select %p66, %s67, %s68
    %p72 = pneg %p66
    %p73 = scmp.eq.s32.totalorder %s10, 1
    %p74 = por %p72, %p73
    %p75 = scmp.ne.s32.totalorder %s67, %s70
    %p76 = scmp.eq.s32.totalorder %s10, 0
    %p77 = por %p75, %p76
    %p78 = scmp.ne.s32.totalorder %s67, %s70
    %p79 = scmp.eq.s32.totalorder %s15, 1
    %p80 = por %p78, %p79
    %p81 = scmp.ne.s32.totalorder %s70, %s71
    %p82 = scmp.eq.s32.totalorder %s15, 0
    %p83 = por %p81, %p82
    %p84 = scmp.ne.s32.totalorder %s70, %s71
    %p85 = scmp.eq.s32.totalorder %s16, 1
    %p86 = por %p84, %p85
    %p88 = scmp.ne.s32.totalorder %s71, %s87
    %p89 = scmp.eq.s32.totalorder %s16, 0
    %p90 = por %p88, %p89
    %s91 = ssub.s32 %s10, %s17
    %p92 = scmp.eq.s32.totalorder %s91, 0
    %s94 = sadd.s32 %s93, 1
    %s95 = scalar_select %p92, %s93, %s94
    %p98 = pneg %p92
    %p99 = scmp.eq.s32.totalorder %s10, 1
    %p100 = por %p98, %p99
    %p101 = scmp.ne.s32.totalorder %s93, %s96
    %p102 = scmp.eq.s32.totalorder %s10, 0
    %p103 = por %p101, %p102
    %p104 = scmp.ne.s32.totalorder %s93, %s96
    %p105 = scmp.eq.s32.totalorder %s15, 1
    %p106 = por %p104, %p105
    %p107 = scmp.ne.s32.totalorder %s96, %s97
    %p108 = scmp.eq.s32.totalorder %s15, 0
    %p109 = por %p107, %p108
    %p110 = scmp.ne.s32.totalorder %s96, %s97
    %p111 = scmp.eq.s32.totalorder %s16, 1
    %p112 = por %p110, %p111
    %p114 = scmp.ne.s32.totalorder %s97, %s113
    %p115 = scmp.eq.s32.totalorder %s16, 0
    %p116 = por %p114, %p115
    %s117 = ssub.s32 %s10, %s17
    %p118 = scmp.eq.s32.totalorder %s117, 0
    %s120 = sadd.s32 %s119, 1
    %s121 = scalar_select %p118, %s119, %s120
    %p124 = pneg %p118
    %p125 = scmp.eq.s32.totalorder %s10, 1
    %p126 = por %p124, %p125
    %p127 = scmp.ne.s32.totalorder %s119, %s122
    %p128 = scmp.eq.s32.totalorder %s10, 0
    %p129 = por %p127, %p128
    %p130 = scmp.ne.s32.totalorder %s119, %s122
    %p131 = scmp.eq.s32.totalorder %s15, 1
    %p132 = por %p130, %p131
    %p133 = scmp.ne.s32.totalorder %s122, %s123
    %p134 = scmp.eq.s32.totalorder %s15, 0
    %p135 = por %p133, %p134
    %p136 = scmp.ne.s32.totalorder %s122, %s123
    %p137 = scmp.eq.s32.totalorder %s16, 1
    %p138 = por %p136, %p137
    %p140 = scmp.ne.s32.totalorder %s123, %s139
    %p141 = scmp.eq.s32.totalorder %s16, 0
    %p142 = por %p140, %p141
    %p143 = scmp.le.s32.totalorder 1, %s10
    %p144 = scmp.lt.s32.totalorder %s10, 3
    %p145 = pnand %p143, %p144
    %p146 = pneg %p145
    // Predicated region
    $region9: #{encoder4_forward.9} parent=5 // pred_check
      _
    $region10: #{encoder4_forward.9} parent=5 // pred_check_branch
      %148 = sbr.rel (%p145) target = $region12
    $region11: #{encoder4_forward.9} parent=5 // pred_region
      %s149 = ssub.s32 %s10, 1
      // Predicated region
      $region13: #{encoder4_forward.9} parent=11 // pred_check
        %p150 = pneg %p31
      $region14: #{encoder4_forward.9} parent=11 // pred_check_branch
        %152 = sbr.rel (%p150) target = $region16
      $region15: #{encoder4_forward.9} parent=11 // pred_region
        _
      $region16: #{encoder4_forward.9} parent=11 // pred_fallthru
        _
    $region12: #{encoder4_forward.9} parent=5 // pred_fallthru
      _
    %p153 = scmp.lt.s32.totalorder %s10, 2
    // Predicated region
    $region17: #{encoder4_forward.9} parent=5 // pred_check
      %p154 = pneg %p153
    $region18: #{encoder4_forward.9} parent=5 // pred_check_branch
      %156 = sbr.rel (%p154) target = $region20
    $region19: #{encoder4_forward.9} parent=5 // pred_region
      // Predicated region
      $region21: #{encoder4_forward.9} parent=19 // pred_check
        %p157 = pneg %p51
      $region22: #{encoder4_forward.9} parent=19 // pred_check_branch
        %159 = sbr.rel (%p157) target = $region24
      $region23: #{encoder4_forward.9} parent=19 // pred_region
        %p160 = scmp.lt.s32.totalorder %s10, 1
        %s161 = scalar_select %p160, %s10, 1
        %s162 = smul.addr %s161, 16
        %s163 = smul.addr %s162, 8
        %s164 = scalar_lea.vmem %s1, %s163
      $region24: #{encoder4_forward.9} parent=19 // pred_fallthru
        _
      // Predicated region
      $region25: #{encoder4_forward.9} parent=19 // pred_check
        %p165 = pneg %p77
      $region26: #{encoder4_forward.9} parent=19 // pred_check_branch
        %167 = sbr.rel (%p165) target = $region28
      $region27: #{encoder4_forward.9} parent=19 // pred_region
        %p168 = scmp.lt.s32.totalorder %s10, 1
        %s169 = scalar_select %p168, %s10, 1
        %s170 = smul.addr %s169, 4
        %s171 = smul.addr %s170, 8
        %s172 = scalar_lea.vmem %s2, %s171
      $region28: #{encoder4_forward.9} parent=19 // pred_fallthru
        _
      // Predicated region
      $region29: #{encoder4_forward.9} parent=19 // pred_check
        %p173 = pneg %p103
      $region30: #{encoder4_forward.9} parent=19 // pred_check_branch
        %175 = sbr.rel (%p173) target = $region32
      $region31: #{encoder4_forward.9} parent=19 // pred_region
        %p176 = scmp.lt.s32.totalorder %s10, 1
        %s177 = scalar_select %p176, %s10, 1
        %s178 = smul.addr %s177, 56
        %s179 = smul.addr %s178, 4
        %s180 = scalar_lea.vmem %s3, %s179
      $region32: #{encoder4_forward.9} parent=19 // pred_fallthru
        _
    $region20: #{encoder4_forward.9} parent=5 // pred_fallthru
      _
    %p181 = scmp.le.s32.totalorder 1, %s10
    %p182 = scmp.lt.s32.totalorder %s10, 3
    %p183 = pnand %p181, %p182
    %p184 = pneg %p183
    // Predicated region
    $region33: #{encoder4_forward.9} parent=5 // pred_check
      _
    $region34: #{encoder4_forward.9} parent=5 // pred_check_branch
      %186 = sbr.rel (%p183) target = $region36
    $region35: #{encoder4_forward.9} parent=5 // pred_region
      %s187 = ssub.s32 %s10, 1
      %p188 = pneg %p31
      %p189 = pneg %p28
      %p190 = scmp.lt.s32.totalorder %s15, 1
      %s191 = scalar_select %p190, %s15, 1
      %s192 = smul.addr %s191, 16
      %s193 = smul.addr %s192, 8
      %s194 = scalar_lea.vmem %s1, %s193
      %p195 = pneg %p57
      %p196 = pneg %p54
      %p197 = scmp.lt.s32.totalorder %s15, 1
      %s198 = scalar_select %p197, %s15, 1
      %s199 = smul.addr %s198, 4
      %s200 = smul.addr %s199, 8
      %s201 = scalar_lea.vmem %s2, %s200
      %p202 = pneg %p83
      %p203 = pneg %p80
      %p204 = scmp.lt.s32.totalorder %s15, 1
      %s205 = scalar_select %p204, %s15, 1
      %s206 = smul.addr %s205, 56
      %s207 = smul.addr %s206, 4
      %s208 = scalar_lea.vmem %s3, %s207
      %p209 = pneg %p109
      %p210 = pneg %p106
      %p211 = pneg %p135
      %p212 = pneg %p132
      %p213 = scmp.lt.s32.totalorder %s15, 1
      %s214 = scalar_select %p213, %s15, 1
      %s215 = smul.addr %s214, 16
      %s216 = smul.addr %s215, 8
      %s217 = scalar_lea.vmem %s4, %s216
      %p218 = scmp.lt.s32.totalorder %s15, 1
      %s219 = scalar_select %p218, %s15, 1
      %s220 = smul.addr %s219, 16
      %s221 = smul.addr %s220, 8
      %s222 = scalar_lea.vmem %s1, %s221
      %p223 = scmp.lt.s32.totalorder %s15, 1
      %s224 = scalar_select %p223, %s15, 1
      %s225 = smul.addr %s224, 4
      %s226 = smul.addr %s225, 8
      %s227 = scalar_lea.vmem %s2, %s226
      %p228 = scmp.lt.s32.totalorder %s15, 1
      %s229 = scalar_select %p228, %s15, 1
      %s230 = smul.addr %s229, 56
      %s231 = smul.addr %s230, 4
      %s232 = scalar_lea.vmem %s3, %s231
      %p233 = scmp.lt.s32.totalorder %s15, 1
      %s234 = scalar_select %p233, %s15, 1
      %s235 = smul.addr %s234, 16
      %s236 = smul.addr %s235, 8
      %s237 = scalar_lea.vmem %s4, %s236
      %v239 = vld [vmem:[%s0] sm:$0xf]
      %v240 = vld [vmem:[%s232] sm:$0xff]
      %v241 = vld [vmem:[%s232 + $0x8] sm:$0xff]
      %v242 = vld [vmem:[%s232 + $0x10] sm:$0xff]
      %v243 = vld [vmem:[%s232 + $0x18] sm:$0xff]
      %v244 = vld [vmem:[%s232 + $0x20] sm:$0xff]
      %v245 = vld [vmem:[%s232 + $0x28] sm:$0xff]
      %v246 = vld [vmem:[%s232 + $0x30] sm:$0xff]
      %v247 = vld [vmem:[%s232 + $0x38] sm:$0xff]
      %v248 = vld [vmem:[%s232 + $0x40] sm:$0xff]
      %v249 = vld [vmem:[%s232 + $0x48] sm:$0xff]
      %v250 = vld [vmem:[%s232 + $0x50] sm:$0xff]
      %v251 = vld [vmem:[%s232 + $0x58] sm:$0xff]
      %v252 = vld [vmem:[%s232 + $0x60] sm:$0xff]
      %v253 = vld [vmem:[%s232 + $0x68] sm:$0xff]
      %v254 = vld [vmem:[%s232 + $0x70] sm:$0xff]
      %v255 = vld [vmem:[%s232 + $0x78] sm:$0xff]
      %v256 = vld [vmem:[%s232 + $0x80] sm:$0xff]
      %v257 = vld [vmem:[%s232 + $0x88] sm:$0xff]
      %v258 = vld [vmem:[%s232 + $0x90] sm:$0xff]
      %v259 = vld [vmem:[%s232 + $0x98] sm:$0xff]
      %v260 = vld [vmem:[%s232 + $0xa0] sm:$0xff]
      %v261 = vld [vmem:[%s232 + $0xa8] sm:$0xff]
      %v262 = vld [vmem:[%s232 + $0xb0] sm:$0xff]
      %v263 = vld [vmem:[%s232 + $0xb8] sm:$0xff]
      %v264 = vld [vmem:[%s232 + $0xc0] sm:$0xff]
      %v265 = vld [vmem:[%s232 + $0xc8] sm:$0xff]
      %v266 = vld [vmem:[%s232 + $0xd0] sm:$0xff]
      %v267 = vld [vmem:[%s232 + $0xd8] sm:$0xff]
      %v296 = vunpack.c.l.b16 %v240
      %v297 = vunpack.c.h.b16 %v240
      %v298 = vunpack.c.l.b16 %v241
      %v299 = vunpack.c.h.b16 %v241
      %v300 = vunpack.c.l.b16 %v242
      %v301 = vunpack.c.h.b16 %v242
      %v302 = vunpack.c.l.b16 %v243
      %v303 = vunpack.c.h.b16 %v243
      %v304 = vunpack.c.l.b16 %v244
      %v305 = vunpack.c.h.b16 %v244
      %v306 = vunpack.c.l.b16 %v245
      %v307 = vunpack.c.h.b16 %v245
      %v308 = vunpack.c.l.b16 %v246
      %v309 = vunpack.c.h.b16 %v246
      %v310 = vunpack.c.l.b16 %v247
      %v311 = vunpack.c.h.b16 %v247
      %v312 = vunpack.c.l.b16 %v248
      %v313 = vunpack.c.h.b16 %v248
      %v314 = vunpack.c.l.b16 %v249
      %v315 = vunpack.c.h.b16 %v249
      %v316 = vunpack.c.l.b16 %v250
      %v317 = vunpack.c.h.b16 %v250
      %v318 = vunpack.c.l.b16 %v251
      %v319 = vunpack.c.h.b16 %v251
      %v320 = vunpack.c.l.b16 %v252
      %v321 = vunpack.c.h.b16 %v252
      %v322 = vunpack.c.l.b16 %v253
      %v323 = vunpack.c.h.b16 %v253
      %v324 = vunpack.c.l.b16 %v254
      %v325 = vunpack.c.h.b16 %v254
      %v326 = vunpack.c.l.b16 %v255
      %v327 = vunpack.c.h.b16 %v255
      %v328 = vunpack.c.l.b16 %v256
      %v329 = vunpack.c.h.b16 %v256
      %v330 = vunpack.c.l.b16 %v257
      %v331 = vunpack.c.h.b16 %v257
      %v332 = vunpack.c.l.b16 %v258
      %v333 = vunpack.c.h.b16 %v258
      %v334 = vunpack.c.l.b16 %v259
      %v335 = vunpack.c.h.b16 %v259
      %v336 = vunpack.c.l.b16 %v260
      %v337 = vunpack.c.h.b16 %v260
      %v338 = vunpack.c.l.b16 %v261
      %v339 = vunpack.c.h.b16 %v261
      %v340 = vunpack.c.l.b16 %v262
      %v341 = vunpack.c.h.b16 %v262
      %v342 = vunpack.c.l.b16 %v263
      %v343 = vunpack.c.h.b16 %v263
      %v344 = vunpack.c.l.b16 %v264
      %v345 = vunpack.c.h.b16 %v264
      %v346 = vunpack.c.l.b16 %v265
      %v347 = vunpack.c.h.b16 %v265
      %v348 = vunpack.c.l.b16 %v266
      %v349 = vunpack.c.h.b16 %v266
      %v350 = vunpack.c.l.b16 %v267
      %v351 = vunpack.c.h.b16 %v267
      %v352 = vpack.c.b16 %v300, %v296
      %v353 = vpack.c.b16 %v301, %v297
      %v354 = vpack.c.b16 %v302, %v298
      %v355 = vpack.c.b16 %v303, %v299
      %v356 = vpack.c.b16 %v308, %v304
      %v357 = vpack.c.b16 %v309, %v305
      %v358 = vpack.c.b16 %v310, %v306
      %v359 = vpack.c.b16 %v311, %v307
      %v360 = vpack.c.b16 %v316, %v312
      %v361 = vpack.c.b16 %v317, %v313
      %v362 = vpack.c.b16 %v318, %v314
      %v363 = vpack.c.b16 %v319, %v315
      %v364 = vpack.c.b16 %v324, %v320
      %v365 = vpack.c.b16 %v325, %v321
      %v366 = vpack.c.b16 %v326, %v322
      %v367 = vpack.c.b16 %v327, %v323
      %v368 = vpack.c.b16 %v332, %v328
      %v369 = vpack.c.b16 %v333, %v329
      %v370 = vpack.c.b16 %v334, %v330
      %v371 = vpack.c.b16 %v335, %v331
      %v372 = vpack.c.b16 %v340, %v336
      %v373 = vpack.c.b16 %v341, %v337
      %v374 = vpack.c.b16 %v342, %v338
      %v375 = vpack.c.b16 %v343, %v339
      %v376 = vpack.c.b16 %v348, %v344
      %v377 = vpack.c.b16 %v349, %v345
      %v378 = vpack.c.b16 %v350, %v346
      %v379 = vpack.c.b16 %v351, %v347
      %vm408 = vcmask 916480
      %v410 = vsel %vm408, %v239, 0
      %412 = vmatprep.subr.bf16.mxu0 %v353
      %413 = vmatpush1.bf16.msra.mxu0 %v352
      %414 = vmatprep.subr.bf16.mxu0 %v357
      %415 = vmatpush1.bf16.msra.mxu0 %v356
      %416 = vmatprep.subr.bf16.mxu0 %v361
      %417 = vmatpush1.bf16.msra.mxu0 %v360
      %418 = vmatprep.subr.bf16.mxu0 %v365
      %419 = vmatpush1.bf16.msra.mxu0 %v364
      %420 = vmatprep.subr.bf16.mxu0 %v369
      %421 = vmatpush1.bf16.msra.mxu0 %v368
      %422 = vmatprep.subr.bf16.mxu0 %v373
      %423 = vmatpush1.bf16.msra.mxu0 %v372
      %424 = vmatprep.subr.bf16.mxu0 %v377
      %425 = vmatpush1.bf16.msra.mxu0 %v376
      %426 = vmatprep.subr.bf16.mxu0 0
      %427 = vmatpush1.bf16.msra.mxu0 0
      %428 = vmatprep.subr.bf16.mxu0 0
      %429 = vmatpush1.bf16.msra.mxu0 0
      %430 = vmatprep.subr.bf16.mxu0 0
      %431 = vmatpush1.bf16.msra.mxu0 0
      %432 = vmatprep.subr.bf16.mxu0 0
      %433 = vmatpush1.bf16.msra.mxu0 0
      %434 = vmatprep.subr.bf16.mxu0 0
      %435 = vmatpush1.bf16.msra.mxu0 0
      %436 = vmatprep.subr.bf16.mxu0 0
      %437 = vmatpush1.bf16.msra.mxu0 0
      %438 = vmatprep.subr.bf16.mxu0 0
      %439 = vmatpush1.bf16.msra.mxu0 0
      %440 = vmatprep.subr.bf16.mxu0 0
      %441 = vmatpush1.bf16.msra.mxu0 0
      %442 = vmatprep.subr.bf16.mxu0 0
      %443 = vmatpush1.bf16.msra.mxu0 0
      %444 = vmatprep.mubr.bf16.mxu0 0
      %445 = vmatmul.mubr.bf16.gmra.mrb[0].mxu0 %v410
      %v446 = vpop.f32.mrb[0].mxu0
      %v447 = vadd.f32 0.0, %v446
      %v448 = vpop.f32.mrb[0].mxu0
      %v449 = vadd.f32 0.0, %v448
      %v450 = vpop.f32.mrb[0].mxu0
      %v451 = vpop.f32.mrb[0].mxu0
      %452 = vdwg.mxu0
      %453 = vmatprep.subr.bf16.mxu0 %v355
      %454 = vmatpush1.bf16.msra.mxu0 %v354
      %455 = vmatprep.subr.bf16.mxu0 %v359
      %456 = vmatpush1.bf16.msra.mxu0 %v358
      %457 = vmatprep.subr.bf16.mxu0 %v363
      %458 = vmatpush1.bf16.msra.mxu0 %v362
      %459 = vmatprep.subr.bf16.mxu0 %v367
      %460 = vmatpush1.bf16.msra.mxu0 %v366
      %461 = vmatprep.subr.bf16.mxu0 %v371
      %462 = vmatpush1.bf16.msra.mxu0 %v370
      %463 = vmatprep.subr.bf16.mxu0 %v375
      %464 = vmatpush1.bf16.msra.mxu0 %v374
      %465 = vmatprep.subr.bf16.mxu0 %v379
      %466 = vmatpush1.bf16.msra.mxu0 %v378
      %467 = vmatprep.subr.bf16.mxu0 0
      %468 = vmatpush1.bf16.msra.mxu0 0
      %469 = vmatprep.subr.bf16.mxu0 0
      %470 = vmatpush1.bf16.msra.mxu0 0
      %471 = vmatprep.subr.bf16.mxu0 0
      %472 = vmatpush1.bf16.msra.mxu0 0
      %473 = vmatprep.subr.bf16.mxu0 0
      %474 = vmatpush1.bf16.msra.mxu0 0
      %475 = vmatprep.subr.bf16.mxu0 0
      %476 = vmatpush1.bf16.msra.mxu0 0
      %477 = vmatprep.subr.bf16.mxu0 0
      %478 = vmatpush1.bf16.msra.mxu0 0
      %479 = vmatprep.subr.bf16.mxu0 0
      %480 = vmatpush1.bf16.msra.mxu0 0
      %481 = vmatprep.subr.bf16.mxu0 0
      %482 = vmatpush1.bf16.msra.mxu0 0
      %483 = vmatprep.subr.bf16.mxu0 0
      %484 = vmatpush1.bf16.msra.mxu0 0
      %485 = vmatprep.mubr.bf16.mxu0 0
      %486 = vmatmul.mubr.bf16.gmra.mrb[0].mxu0 %v410
      %v487 = vpop.f32.mrb[0].mxu0
      %v488 = vadd.f32 0.0, %v487
      %v489 = vpop.f32.mrb[0].mxu0
      %v490 = vadd.f32 0.0, %v489
      %v491 = vpop.f32.mrb[0].mxu0
      %v492 = vpop.f32.mrb[0].mxu0
      %493 = vdwg.mxu0
      %497 = vrot.lane.b32.xlu0 %v447, 64
      %v498 = vpop.permute.xlu0 %497
      %499 = vrot.lane.b32.xlu0 %v449, 64
      %v500 = vpop.permute.xlu0 %499
      %501 = vrot.lane.b32.xlu0 %v488, 64
      %v502 = vpop.permute.xlu0 %501
      %vm503 = vcmask 523264
      %v504 = vsel %vm503, %v498, %v500
      %v505 = vsel %vm503, %v500, %v502
      %v509 = vsel %vm503, 0.0, %v498
      %v510 = vadd.f32 %v509, 0.0
      %v511 = vadd.f32 %v504, 0.0
      %v512 = vadd.f32 %v505, 0.0
      %v513 = vrot.slane %v447, 1
      %v514 = vrot.slane %v449, 1
      %v515 = vrot.slane %v488, 1
      %v519 = vadd.f32 %v510, %v513
      %v520 = vadd.f32 %v511, %v514
      %v521 = vadd.f32 %v512, %v515
      %v523 = vrot.slane %v447, 2
      %v524 = vrot.slane %v449, 2
      %v525 = vrot.slane %v488, 2
      %v526 = vrot.slane %v490, 2
      %527 = vrot.lane.b32.xlu0 %v523, 64
      %v528 = vpop.permute.xlu0 %527
      %529 = vrot.lane.b32.xlu0 %v524, 64
      %v530 = vpop.permute.xlu0 %529
      %531 = vrot.lane.b32.xlu0 %v525, 64
      %v532 = vpop.permute.xlu0 %531
      %533 = vrot.lane.b32.xlu0 %v526, 64
      %v534 = vpop.permute.xlu0 %533
      %v535 = vsel %vm503, %v528, %v530
      %v536 = vsel %vm503, %v530, %v532
      %v537 = vsel %vm503, %v532, %v534
      %v542 = vsel %vm503, 0.0, %v528
      %v543 = vadd.f32 %v542, 0.0
      %v544 = vadd.f32 %v519, %v535
      %v545 = vadd.f32 %v520, %v536
      %v546 = vadd.f32 %v521, %v537
      %v547 = vrot.slane %v447, 3
      %v548 = vrot.slane %v449, 3
      %v549 = vrot.slane %v488, 3
      %v550 = vrot.slane %v490, 3
      %v555 = vadd.f32 %v543, %v547
      %v556 = vadd.f32 %v544, %v548
      %v557 = vadd.f32 %v545, %v549
      %v558 = vadd.f32 %v546, %v550
      %559 = vrot.lane.b32.xlu0 %v490, 64
      %v560 = vpop.permute.xlu0 %559
      %v561 = vsel %vm503, %v502, %v560
      %v563 = vsel %vm503, %v560, 0.0
      %v565 = vrot.slane %v504, 4
      %v566 = vrot.slane %v505, 4
      %v567 = vrot.slane %v561, 4
      %v568 = vrot.slane %v563, 4
      %v573 = vadd.f32 %v555, %v565
      %v574 = vadd.f32 %v556, %v566
      %v575 = vadd.f32 %v557, %v567
      %v576 = vadd.f32 %v558, %v568
      %v578 = vrot.slane %v449, 5
      %v579 = vrot.slane %v488, 5
      %v580 = vrot.slane %v490, 5
      %v581 = vrot.slane 0.0, 5
      %v586 = vadd.f32 %v573, %v578
      %v587 = vadd.f32 %v574, %v579
      %v588 = vadd.f32 %v575, %v580
      %v589 = vadd.f32 %v576, %v581
      %v590 = vrot.slane %v505, 6
      %v591 = vrot.slane %v561, 6
      %v592 = vrot.slane %v563, 6
      %v593 = vrot.slane 0.0, 6
      %v598 = vadd.f32 %v586, %v590
      %v599 = vadd.f32 %v587, %v591
      %v600 = vadd.f32 %v588, %v592
      %v601 = vadd.f32 %v589, %v593
      %v602 = vld [vmem:[%s222] sm:$0xff]
      %v603 = vld [vmem:[%s222 + $0x8] sm:$0xff]
      %v604 = vld [vmem:[%s222 + $0x10] sm:$0xff]
      %v605 = vld [vmem:[%s222 + $0x18] sm:$0xff]
      %v606 = vld [vmem:[%s222 + $0x20] sm:$0xff]
      %v607 = vld [vmem:[%s222 + $0x28] sm:$0xff]
      %v608 = vld [vmem:[%s222 + $0x30] sm:$0xff]
      %v609 = vld [vmem:[%s222 + $0x38] sm:$0xff]
      %v610 = vld [vmem:[%s222 + $0x40] sm:$0xff]
      %v611 = vld [vmem:[%s222 + $0x48] sm:$0xff]
      %v612 = vld [vmem:[%s222 + $0x50] sm:$0xff]
      %v613 = vld [vmem:[%s222 + $0x58] sm:$0xff]
      %v614 = vld [vmem:[%s222 + $0x60] sm:$0xff]
      %v615 = vld [vmem:[%s222 + $0x68] sm:$0xff]
      %v616 = vld [vmem:[%s222 + $0x70] sm:$0xff]
      %v617 = vld [vmem:[%s222 + $0x78] sm:$0xff]
      %v618 = vld [vmem:[%s227] sm:$0xff]
      %v619 = vld [vmem:[%s227 + $0x8] sm:$0xff]
      %v620 = vld [vmem:[%s227 + $0x10] sm:$0xff]
      %v621 = vld [vmem:[%s227 + $0x18] sm:$0xff]
      %623 = vset.pattern.permute.xlu0 0
      %624 = vperm.xlu0 %623, %v618
      %v625 = vpop.permute.xlu0 %624
      %628 = vset.pattern.permute.xlu0 0
      %629 = vperm.xlu0 %628, %v619
      %v630 = vpop.permute.xlu0 %629
      %633 = vset.pattern.permute.xlu0 0
      %634 = vperm.xlu0 %633, %v620
      %v635 = vpop.permute.xlu0 %634
      %638 = vset.pattern.permute.xlu0 0
      %639 = vperm.xlu0 %638, %v621
      %v640 = vpop.permute.xlu0 %639
      %v642 = vmul.f32 %v625, %v602
      %v643 = vmul.f32 %v625, %v603
      %v644 = vmul.f32 %v625, %v604
      %v645 = vmul.f32 %v625, %v605
      %v646 = vmul.f32 %v630, %v606
      %v647 = vmul.f32 %v630, %v607
      %v648 = vmul.f32 %v630, %v608
      %v649 = vmul.f32 %v630, %v609
      %v650 = vmul.f32 %v635, %v610
      %v651 = vmul.f32 %v635, %v611
      %v652 = vmul.f32 %v635, %v612
      %v653 = vmul.f32 %v635, %v613
      %v654 = vmul.f32 %v640, %v614
      %v655 = vmul.f32 %v640, %v615
      %v656 = vmul.f32 %v640, %v616
      %v657 = vmul.f32 %v640, %v617
      %v658 = vmul.f32 %v598, 0.5
      %v659 = vmul.f32 %v599, 0.5
      %v660 = vmul.f32 %v600, 0.5
      %v661 = vmul.f32 %v601, 0.5
      %v662 = vtanh.pop %v658
      %v663 = vtanh.pop %v659
      %v664 = vtanh.pop %v660
      %v665 = vtanh.pop %v661
      %v666 = vadd.f32 %v662, 1.0
      %v667 = vadd.f32 %v663, 1.0
      %v668 = vadd.f32 %v664, 1.0
      %v669 = vadd.f32 %v665, 1.0
      %v670 = vmul.f32 %v666, 0.5
      %v671 = vmul.f32 %v667, 0.5
      %v672 = vmul.f32 %v668, 0.5
      %v673 = vmul.f32 %v669, 0.5
      %v674 = vlaneseq
      %v675 = vshrl.u32 %v674, 7
      %v676 = vsub.s32 0, %v675
      %v677 = vrot.slane %v670, %v676
      %v678 = vlaneseq
      %v679 = vshrl.u32 %v678, 7
      %v680 = vsub.s32 0, %v679
      %v681 = vrot.slane %v671, %v680
      %v682 = vlaneseq
      %v683 = vshrl.u32 %v682, 7
      %v684 = vsub.s32 0, %v683
      %v685 = vrot.slane %v672, %v684
      %v686 = vlaneseq
      %v687 = vshrl.u32 %v686, 7
      %v688 = vsub.s32 0, %v687
      %v689 = vrot.slane %v673, %v688
      %v690 = vmul.f32 %v677, %v642
      %v691 = vmul.f32 %v681, %v643
      %v692 = vmul.f32 %v685, %v644
      %v693 = vmul.f32 %v689, %v645
      %v694 = vmul.f32 %v677, %v646
      %v695 = vmul.f32 %v681, %v647
      %v696 = vmul.f32 %v685, %v648
      %v697 = vmul.f32 %v689, %v649
      %v698 = vmul.f32 %v677, %v650
      %v699 = vmul.f32 %v681, %v651
      %v700 = vmul.f32 %v685, %v652
      %v701 = vmul.f32 %v689, %v653
      %v702 = vmul.f32 %v677, %v654
      %v703 = vmul.f32 %v681, %v655
      %v704 = vmul.f32 %v685, %v656
      %v705 = vmul.f32 %v689, %v657
      %v706 = vadd.f32 %v690, %v602
      %v707 = vadd.f32 %v691, %v603
      %v708 = vadd.f32 %v692, %v604
      %v709 = vadd.f32 %v693, %v605
      %v710 = vadd.f32 %v694, %v606
      %v711 = vadd.f32 %v695, %v607
      %v712 = vadd.f32 %v696, %v608
      %v713 = vadd.f32 %v697, %v609
      %v714 = vadd.f32 %v698, %v610
      %v715 = vadd.f32 %v699, %v611
      %v716 = vadd.f32 %v700, %v612
      %v717 = vadd.f32 %v701, %v613
      %v718 = vadd.f32 %v702, %v614
      %v719 = vadd.f32 %v703, %v615
      %v720 = vadd.f32 %v704, %v616
      %v721 = vadd.f32 %v705, %v617
      %722 = vst [vmem:[%s237] sm:$0xff] %v706
      %723 = vst [vmem:[%s237 + $0x8] sm:$0xff] %v707
      %724 = vst [vmem:[%s237 + $0x10] sm:$0xff] %v708
      %725 = vst [vmem:[%s237 + $0x18] sm:$0xff] %v709
      %726 = vst [vmem:[%s237 + $0x20] sm:$0xff] %v710
      %727 = vst [vmem:[%s237 + $0x28] sm:$0xff] %v711
      %728 = vst [vmem:[%s237 + $0x30] sm:$0xff] %v712
      %729 = vst [vmem:[%s237 + $0x38] sm:$0xff] %v713
      %730 = vst [vmem:[%s237 + $0x40] sm:$0xff] %v714
      %731 = vst [vmem:[%s237 + $0x48] sm:$0xff] %v715
      %732 = vst [vmem:[%s237 + $0x50] sm:$0xff] %v716
      %733 = vst [vmem:[%s237 + $0x58] sm:$0xff] %v717
      %734 = vst [vmem:[%s237 + $0x60] sm:$0xff] %v718
      %735 = vst [vmem:[%s237 + $0x68] sm:$0xff] %v719
      %736 = vst [vmem:[%s237 + $0x70] sm:$0xff] %v720
      %737 = vst [vmem:[%s237 + $0x78] sm:$0xff] %v721
      %p738 = scmp.lt.s32.totalorder %s15, 1
      %s739 = scalar_select %p738, %s15, 1
      %s740 = smul.addr %s739, 16
      %s741 = smul.addr %s740, 8
      %s742 = scalar_lea.vmem %s4, %s741
      // Predicated region
      $region37: #{encoder4_forward.9} parent=35 // pred_check
        %p743 = pneg %p132
      $region38: #{encoder4_forward.9} parent=35 // pred_check_branch
        %745 = sbr.rel (%p743) target = $region40
      $region39: #{encoder4_forward.9} parent=35 // pred_region
        _
      $region40: #{encoder4_forward.9} parent=35 // pred_fallthru
        _
    $region36: #{encoder4_forward.9} parent=5 // pred_fallthru
      _
    %p746 = scmp.le.s32.totalorder 2, %s10
    // Predicated region
    $region41: #{encoder4_forward.9} parent=5 // pred_check
      %p747 = pneg %p746
    $region42: #{encoder4_forward.9} parent=5 // pred_check_branch
      %749 = sbr.rel (%p747) target = $region44
    $region43: #{encoder4_forward.9} parent=5 // pred_region
      %s750 = ssub.s32 %s10, 2
      // Predicated region
      $region45: #{encoder4_forward.9} parent=43 // pred_check
        %p751 = pneg %p138
      $region46: #{encoder4_forward.9} parent=43 // pred_check_branch
        %753 = sbr.rel (%p751) target = $region48
      $region47: #{encoder4_forward.9} parent=43 // pred_region
        %p754 = scmp.lt.s32.totalorder %s16, 1
        %s755 = scalar_select %p754, %s16, 1
        %s756 = smul.addr %s755, 16
        %s757 = smul.addr %s756, 8
        %s758 = scalar_lea.vmem %s4, %s757
      $region48: #{encoder4_forward.9} parent=43 // pred_fallthru
        _
    $region44: #{encoder4_forward.9} parent=5 // pred_fallthru
      _
  $region6: #{encoder4_forward.9} parent=0 // loop_footer
    %s14 = sadd.s32 1, %s10
  $region7: #{encoder4_forward.9} parent=0 // loop_footer_branch
    %9 = sbr.rel target = $region3
  $region8: #{encoder4_forward.9} parent=0 // loop_exit
    _

</llo_original>
